<compile_context>
chip_gen: v6e
topology: v6e:2x2x1
jax: 0.10.0
libtpu: 0.0.40
codegen_flags: <defaults>
</compile_context>

<pallas_src>
import functools
import numpy as np
import jax
import jax.numpy as jnp
from jax.experimental import pallas as pl
from jax.experimental.pallas import tpu as pltpu


def _adaptive_pool_matrix(in_size: int, out_size: int) -> np.ndarray:
    """Row-stochastic M (out, in) s.t. y = M @ x matches torch AdaptiveAvgPool
    semantics along one axis (start=floor, end=ceil bins)."""
    m = np.zeros((out_size, in_size), dtype=np.float32)
    for i in range(out_size):
        start = (i * in_size) // out_size
        end = -((-(i + 1) * in_size) // out_size)  # ceil div
        m[i, start:end] = 1.0 / (end - start)
    return m


def _border_masks(H: int, W: int) -> np.ndarray:
    """(49, 1, H*W) 0/1 masks: for tap (dh, dw), whether output position p reads
    an in-bounds input position (same-padding zeros otherwise)."""
    L = H * W
    pos = np.arange(L)
    hp = pos // W
    wp = pos % W
    m = np.zeros((49, 1, L), dtype=np.float32)
    for dh in range(7):
        for dw in range(7):
            oh, ow = dh - 3, dw - 3
            ok = (hp + oh >= 0) & (hp + oh < H) & (wp + ow >= 0) & (wp + ow < W)
            m[dh * 7 + dw, 0] = ok.astype(np.float32)
    return m


def _fused_kernel(x_ref, w_ref, m_ref, ph_ref, pwt_ref, out_ref, xcol_ref, t_ref,
                  *, Cp, H, W, HO, WO, cpb):
    # x_ref   : (1, Cp, H*W)        flat image (channel-padded), spatial on lanes
    # w_ref   : (1, cpb, 49*Cp)     merged/flattened conv weights for this split
    # m_ref   : (49, 1, H*W)        per-tap border masks (compute dtype)
    # ph_ref  : (HO, H)   f32       adaptive-pool matrix (H axis)
    # pwt_ref : (W, WO)   f32       adaptive-pool matrix (W axis), transposed
    # out_ref : (1, cpb, HO, WO)
    # xcol_ref: (49*Cp, H*W)        im2col scratch (VMEM, compute dtype)
    # t_ref   : (H, cpb, WO) f32    W-pooled conv output scratch (VMEM)
    L = H * W
    KK = 7

    x = x_ref[0]                                              # (Cp, L)

    # ---- im2col: rows ordered (dh, dw, ci_padded), matching the host-side
    # weight flattening.  Each tap = one XLU lane rotation of the flat image
    # plus one broadcast mask multiply; stores are full sublane-aligned slabs.
    for dh in range(KK):
        oh = dh - KK // 2
        for dw in range(KK):
            ow = dw - KK // 2
            s = oh * W + ow                                   # flat shift
            tap = dh * KK + dw
            if s == 0:
                shifted = x
            else:
                # shifted[:, m] = x[:, (m + s) % L]
                shifted = pltpu.roll(x, (-s) % L, 1)
            xcol_ref[tap * Cp:(tap + 1) * Cp, :] = (
                shifted * m_ref[tap]).astype(xcol_ref.dtype)

    # ---- conv: ONE MXU matmul, K = 49*Cp, lane-dense (cpb, H*W) f32 result.
    y = jnp.dot(w_ref[0], xcol_ref[...],
                preferred_element_type=jnp.float32)           # (cpb, L) f32

    # ---- adaptive pool along W: per-image-row matmuls, whole-row contiguous
    # (cpb, WO) stores into the (H, cpb, WO) scratch (no masked sublane stores).
    pwt = pwt_ref[...]                                        # (W, WO) f32
    for h in range(H):
        yh = y[:, h * W:(h + 1) * W]                          # (cpb, W) f32
        t_ref[h] = jnp.dot(yh, pwt, preferred_element_type=jnp.float32)

    # ---- adaptive pool along H: per-channel (HO,H)@(H,WO) matmuls written
    # straight into fully lane-dense (128, 128) output slabs.
    ph = ph_ref[...]                                          # (HO, H) f32
    for c in range(cpb):
        tc = t_ref[:, c, :]                                   # (H, WO) f32
        out_ref[0, c] = jnp.dot(
            ph, tc, preferred_element_type=jnp.float32).astype(out_ref.dtype)


def overlap_patch_embed(x, w3, w5, w7, out_hw=(128, 128), *,
                        compute_dtype=jnp.float32, channel_splits=1):
    """x: (N, C, H, W); w{3,5,7}: (E, C, K, K) PyTorch-layout conv weights.
    Returns (N, 3E, 128, 128) float32, matching the PyTorch module."""
    N, C, H, W = x.shape
    E = w3.shape[0]
    C3 = 3 * E
    HO, WO = out_hw
    L = H * W
    KK = 7

    isz = np.dtype(compute_dtype).itemsize
    sub = max(8, 32 // isz)                     # sublane multiple: f32->8, bf16->16
    Cp = -(-C // sub) * sub                     # channel dim padded for aligned stores
    KCp = KK * KK * Cp

    if channel_splits < 1 or C3 % channel_splits != 0:
        channel_splits = 1
    cpb = C3 // channel_splits

    # Weights: embed 3x3/5x5 into a centered 7x7 support (exactly reproduces the
    # padding=1/2 "same" convs under one padding=3 conv), concat on out-channel,
    # zero-pad the input-channel dim to Cp, flatten with column order (dh,dw,ci).
    w3p = jnp.pad(w3, ((0, 0), (0, 0), (2, 2), (2, 2)))
    w5p = jnp.pad(w5, ((0, 0), (0, 0), (1, 1), (1, 1)))
    wall = jnp.concatenate([w3p, w5p, w7], axis=0)                   # (3E, C, 7, 7)
    wall = jnp.transpose(wall, (0, 2, 3, 1))                         # (3E, 7, 7, C)
    wall = jnp.pad(wall, ((0, 0), (0, 0), (0, 0), (0, Cp - C)))      # (3E, 7, 7, Cp)
    wmat = wall.reshape(channel_splits, cpb, KCp).astype(compute_dtype)

    # Input: NCHW -> (N, Cp, H*W), zero-padded channels (free row-major merge).
    xf = jnp.pad(x.reshape(N, C, L), ((0, 0), (0, Cp - C), (0, 0))).astype(compute_dtype)

    # Per-tap border masks: grid-invariant, tiny, DMA'd once.
    masks = jnp.asarray(_border_masks(H, W), dtype=compute_dtype)    # (49, 1, L)

    # Exact torch AdaptiveAvgPool2d as two matrices (kept f32 even for bf16).
    ph = jnp.asarray(_adaptive_pool_matrix(H, HO), jnp.float32)      # (HO, H)
    pwt = jnp.asarray(_adaptive_pool_matrix(W, WO).T, jnp.float32)   # (W, WO)

    kernel = functools.partial(_fused_kernel, Cp=Cp, H=H, W=W, HO=HO, WO=WO, cpb=cpb)

    flops = 2 * N * (C3 * KCp * L + C3 * L * WO + C3 * H * HO * WO)
    bytes_accessed = ((N * Cp * L + C3 * KCp + 49 * L) * isz
                      + (HO * H + W * WO) * 4 + N * C3 * HO * WO * 4)
    cost = pl.CostEstimate(flops=int(flops), transcendentals=0,
                           bytes_accessed=int(bytes_accessed))

    vmem_est = (2 * (Cp * L + cpb * KCp + 49 * L) * isz      # double-buffered inputs
                + 2 * (HO * H + W * WO) * 4                  # pool matrices
                + 2 * cpb * HO * WO * 4                      # double-buffered output
                + KCp * L * isz + H * cpb * WO * 4           # scratch
                + (1 << 20))
    vmem_limit = int(min(max(3 * vmem_est // 2, 32 * 2 ** 20), 96 * 2 ** 20))

    return pl.pallas_call(
        kernel,
        out_shape=jax.ShapeDtypeStruct((N, C3, HO, WO), jnp.float32),
        grid=(N, channel_splits),
        in_specs=[
            pl.BlockSpec((1, Cp, L), lambda n, cs: (n, 0, 0)),
            pl.BlockSpec((1, cpb, KCp), lambda n, cs: (cs, 0, 0)),
            pl.BlockSpec((49, 1, L), lambda n, cs: (0, 0, 0)),
            pl.BlockSpec((HO, H), lambda n, cs: (0, 0)),
            pl.BlockSpec((W, WO), lambda n, cs: (0, 0)),
        ],
        out_specs=pl.BlockSpec((1, cpb, HO, WO), lambda n, cs: (n, cs, 0, 0)),
        scratch_shapes=[
            pltpu.VMEM((KCp, L), compute_dtype),      # im2col matrix
            pltpu.VMEM((H, cpb, WO), jnp.float32),    # W-pooled conv output
        ],
        compiler_params=pltpu.CompilerParams(
            dimension_semantics=("parallel", "parallel"),
            vmem_limit_bytes=vmem_limit),
        cost_estimate=cost,
    )(xf, wmat, masks, ph, pwt)


def _reference(x, w3, w5, w7, out_hw=(128, 128)):
    """Pure-JAX reference with exact PyTorch semantics (NCHW, f32)."""
    def conv(w, pad):
        return jax.lax.conv_general_dilated(
            x, w, window_strides=(1, 1), padding=[(pad, pad), (pad, pad)],
            dimension_numbers=("NCHW", "OIHW", "NCHW"))
    y = jnp.concatenate([conv(w3, 1), conv(w5, 2), conv(w7, 3)], axis=1)
    ph = jnp.asarray(_adaptive_pool_matrix(y.shape[2], out_hw[0]))
    pw = jnp.asarray(_adaptive_pool_matrix(y.shape[3], out_hw[1]))
    return jnp.einsum("oh,nchw,pw->ncop", ph, y, pw)


if __name__ == "__main__":
    key = jax.random.PRNGKey(0)
    kx, k3, k5, k7 = jax.random.split(key, 4)

    # Small, module-consistent shapes: batch=2, in_c=4, spatial=16, embed_dim=8.
    N, C, H, W, E = 2, 4, 16, 16, 8
    x = jax.random.normal(kx, (N, C, H, W), jnp.float32)
    w3 = 0.1 * jax.random.normal(k3, (E, C, 3, 3), jnp.float32)
    w5 = 0.1 * jax.random.normal(k5, (E, C, 5, 5), jnp.float32)
    w7 = 0.1 * jax.random.normal(k7, (E, C, 7, 7), jnp.float32)

    ref = np.asarray(_reference(x, w3, w5, w7))

    # f32 path (default: no channel split -> single TC friendly).
    out = jax.block_until_ready(overlap_patch_embed(x, w3, w5, w7))
    assert out.shape == (N, 3 * E, 128, 128), out.shape
    np.testing.assert_allclose(np.asarray(out), ref, rtol=1e-4, atol=1e-4)

    # channel-split path (v7x dual-TC knob): must be numerically identical.
    out_cs = jax.block_until_ready(
        overlap_patch_embed(x, w3, w5, w7, channel_splits=2))
    np.testing.assert_allclose(np.asarray(out_cs), ref, rtol=1e-4, atol=1e-4)

    # bf16-MXU path (conv operands bf16, f32 accumulation and f32 pools).
    out_bf16 = jax.block_until_ready(
        overlap_patch_embed(x, w3, w5, w7, compute_dtype=jnp.bfloat16))
    rel_err = (np.linalg.norm(np.asarray(out_bf16) - ref)
               / max(np.linalg.norm(ref), 1e-12))
    assert rel_err < 2e-2, rel_err

    print("KERNEL_OK")
</pallas_src>

<mosaic_0001>
module attributes {stable_mosaic.version = 11 : i64} {
  func.func @_fused_kernel(%arg0: i32, %arg1: i32, %arg2: memref<1x8x256xf32, #tpu.memory_space<vmem>>, %arg3: memref<1x24x392xf32, #tpu.memory_space<vmem>>, %arg4: memref<49x1x256xf32, #tpu.memory_space<vmem>>, %arg5: memref<128x16xf32, #tpu.memory_space<vmem>>, %arg6: memref<16x128xf32, #tpu.memory_space<vmem>>, %arg7: memref<1x24x128x128xf32, #tpu.memory_space<vmem>>, %arg8: memref<392x256xf32, #tpu.memory_space<vmem>>, %arg9: memref<16x24x128xf32, #tpu.memory_space<vmem>>) attributes {dimension_semantics = [#tpu.dimension_semantics<parallel>, #tpu.dimension_semantics<parallel>], iteration_bounds = array<i64: 2, 1>, scalar_prefetch = 0 : i64, scratch_operands = 2 : i64, tpu.core_type = #tpu.core_type<tc>, window_params = [{transform_indices = @transform_0, window_bounds = array<i64: 1, 8, 256>}, {transform_indices = @transform_1, window_bounds = array<i64: 1, 24, 392>}, {pipeline_mode = #tpu.pipeline_mode<synchronous>, transform_indices = @transform_2, window_bounds = array<i64: 49, 1, 256>}, {pipeline_mode = #tpu.pipeline_mode<synchronous>, transform_indices = @transform_3, window_bounds = array<i64: 128, 16>}, {pipeline_mode = #tpu.pipeline_mode<synchronous>, transform_indices = @transform_4, window_bounds = array<i64: 16, 128>}, {transform_indices = @transform_5, window_bounds = array<i64: 1, 24, 128, 128>}]} {
    %c0 = arith.constant 0 : index
    %c0_0 = arith.constant 0 : index
    %c0_1 = arith.constant 0 : index
    %0 = vector.load %arg2[%c0, %c0_0, %c0_1] : memref<1x8x256xf32, #tpu.memory_space<vmem>>, vector<1x8x256xf32>
    %1 = vector.shape_cast %0 : vector<1x8x256xf32> to vector<8x256xf32>
    %c51_i32 = arith.constant 51 : i32
    %2 = tpu.dynamic_rotate %1 by %c51_i32 dim 1 : vector<8x256xf32>, i32 -> vector<8x256xf32>
    %c0_2 = arith.constant 0 : index
    %c0_3 = arith.constant 0 : index
    %c0_4 = arith.constant 0 : index
    %3 = vector.load %arg4[%c0_2, %c0_3, %c0_4] : memref<49x1x256xf32, #tpu.memory_space<vmem>>, vector<1x1x256xf32>
    %4 = vector.shape_cast %3 : vector<1x1x256xf32> to vector<1x256xf32>
    %5 = vector.broadcast %4 : vector<1x256xf32> to vector<8x256xf32>
    %6 = arith.mulf %2, %5 : vector<8x256xf32>
    %c0_5 = arith.constant 0 : index
    %c0_6 = arith.constant 0 : index
    %7 = vector.load %arg8[%c0_5, %c0_6] : memref<392x256xf32, #tpu.memory_space<vmem>>, vector<8x256xf32>
    tpu.vector_store %arg8[%c0_5, %c0_6], %6 {strides = array<i32>} : memref<392x256xf32, #tpu.memory_space<vmem>>, vector<8x256xf32>,
    %c50_i32 = arith.constant 50 : i32
    %8 = tpu.dynamic_rotate %1 by %c50_i32 dim 1 : vector<8x256xf32>, i32 -> vector<8x256xf32>
    %c1 = arith.constant 1 : index
    %c0_7 = arith.constant 0 : index
    %c0_8 = arith.constant 0 : index
    %9 = vector.load %arg4[%c1, %c0_7, %c0_8] : memref<49x1x256xf32, #tpu.memory_space<vmem>>, vector<1x1x256xf32>
    %10 = vector.shape_cast %9 : vector<1x1x256xf32> to vector<1x256xf32>
    %11 = vector.broadcast %10 : vector<1x256xf32> to vector<8x256xf32>
    %12 = arith.mulf %8, %11 : vector<8x256xf32>
    %c8 = arith.constant 8 : index
    %c0_9 = arith.constant 0 : index
    %13 = vector.load %arg8[%c8, %c0_9] : memref<392x256xf32, #tpu.memory_space<vmem>>, vector<8x256xf32>
    tpu.vector_store %arg8[%c8, %c0_9], %12 {strides = array<i32>} : memref<392x256xf32, #tpu.memory_space<vmem>>, vector<8x256xf32>,
    %c49_i32 = arith.constant 49 : i32
    %14 = tpu.dynamic_rotate %1 by %c49_i32 dim 1 : vector<8x256xf32>, i32 -> vector<8x256xf32>
    %c2 = arith.constant 2 : index
    %c0_10 = arith.constant 0 : index
    %c0_11 = arith.constant 0 : index
    %15 = vector.load %arg4[%c2, %c0_10, %c0_11] : memref<49x1x256xf32, #tpu.memory_space<vmem>>, vector<1x1x256xf32>
    %16 = vector.shape_cast %15 : vector<1x1x256xf32> to vector<1x256xf32>
    %17 = vector.broadcast %16 : vector<1x256xf32> to vector<8x256xf32>
    %18 = arith.mulf %14, %17 : vector<8x256xf32>
    %c16 = arith.constant 16 : index
    %c0_12 = arith.constant 0 : index
    %19 = vector.load %arg8[%c16, %c0_12] : memref<392x256xf32, #tpu.memory_space<vmem>>, vector<8x256xf32>
    tpu.vector_store %arg8[%c16, %c0_12], %18 {strides = array<i32>} : memref<392x256xf32, #tpu.memory_space<vmem>>, vector<8x256xf32>,
    %c48_i32 = arith.constant 48 : i32
    %20 = tpu.dynamic_rotate %1 by %c48_i32 dim 1 : vector<8x256xf32>, i32 -> vector<8x256xf32>
    %c3 = arith.constant 3 : index
    %c0_13 = arith.constant 0 : index
    %c0_14 = arith.constant 0 : index
    %21 = vector.load %arg4[%c3, %c0_13, %c0_14] : memref<49x1x256xf32, #tpu.memory_space<vmem>>, vector<1x1x256xf32>
    %22 = vector.shape_cast %21 : vector<1x1x256xf32> to vector<1x256xf32>
    %23 = vector.broadcast %22 : vector<1x256xf32> to vector<8x256xf32>
    %24 = arith.mulf %20, %23 : vector<8x256xf32>
    %c24 = arith.constant 24 : index
    %c0_15 = arith.constant 0 : index
    %25 = vector.load %arg8[%c24, %c0_15] : memref<392x256xf32, #tpu.memory_space<vmem>>, vector<8x256xf32>
    tpu.vector_store %arg8[%c24, %c0_15], %24 {strides = array<i32>} : memref<392x256xf32, #tpu.memory_space<vmem>>, vector<8x256xf32>,
    %c47_i32 = arith.constant 47 : i32
    %26 = tpu.dynamic_rotate %1 by %c47_i32 dim 1 : vector<8x256xf32>, i32 -> vector<8x256xf32>
    %c4 = arith.constant 4 : index
    %c0_16 = arith.constant 0 : index
    %c0_17 = arith.constant 0 : index
    %27 = vector.load %arg4[%c4, %c0_16, %c0_17] : memref<49x1x256xf32, #tpu.memory_space<vmem>>, vector<1x1x256xf32>
    %28 = vector.shape_cast %27 : vector<1x1x256xf32> to vector<1x256xf32>
    %29 = vector.broadcast %28 : vector<1x256xf32> to vector<8x256xf32>
    %30 = arith.mulf %26, %29 : vector<8x256xf32>
    %c32 = arith.constant 32 : index
    %c0_18 = arith.constant 0 : index
    %31 = vector.load %arg8[%c32, %c0_18] : memref<392x256xf32, #tpu.memory_space<vmem>>, vector<8x256xf32>
    tpu.vector_store %arg8[%c32, %c0_18], %30 {strides = array<i32>} : memref<392x256xf32, #tpu.memory_space<vmem>>, vector<8x256xf32>,
    %c46_i32 = arith.constant 46 : i32
    %32 = tpu.dynamic_rotate %1 by %c46_i32 dim 1 : vector<8x256xf32>, i32 -> vector<8x256xf32>
    %c5 = arith.constant 5 : index
    %c0_19 = arith.constant 0 : index
    %c0_20 = arith.constant 0 : index
    %33 = vector.load %arg4[%c5, %c0_19, %c0_20] : memref<49x1x256xf32, #tpu.memory_space<vmem>>, vector<1x1x256xf32>
    %34 = vector.shape_cast %33 : vector<1x1x256xf32> to vector<1x256xf32>
    %35 = vector.broadcast %34 : vector<1x256xf32> to vector<8x256xf32>
    %36 = arith.mulf %32, %35 : vector<8x256xf32>
    %c40 = arith.constant 40 : index
    %c0_21 = arith.constant 0 : index
    %37 = vector.load %arg8[%c40, %c0_21] : memref<392x256xf32, #tpu.memory_space<vmem>>, vector<8x256xf32>
    tpu.vector_store %arg8[%c40, %c0_21], %36 {strides = array<i32>} : memref<392x256xf32, #tpu.memory_space<vmem>>, vector<8x256xf32>,
    %c45_i32 = arith.constant 45 : i32
    %38 = tpu.dynamic_rotate %1 by %c45_i32 dim 1 : vector<8x256xf32>, i32 -> vector<8x256xf32>
    %c6 = arith.constant 6 : index
    %c0_22 = arith.constant 0 : index
    %c0_23 = arith.constant 0 : index
    %39 = vector.load %arg4[%c6, %c0_22, %c0_23] : memref<49x1x256xf32, #tpu.memory_space<vmem>>, vector<1x1x256xf32>
    %40 = vector.shape_cast %39 : vector<1x1x256xf32> to vector<1x256xf32>
    %41 = vector.broadcast %40 : vector<1x256xf32> to vector<8x256xf32>
    %42 = arith.mulf %38, %41 : vector<8x256xf32>
    %c48 = arith.constant 48 : index
    %c0_24 = arith.constant 0 : index
    %43 = vector.load %arg8[%c48, %c0_24] : memref<392x256xf32, #tpu.memory_space<vmem>>, vector<8x256xf32>
    tpu.vector_store %arg8[%c48, %c0_24], %42 {strides = array<i32>} : memref<392x256xf32, #tpu.memory_space<vmem>>, vector<8x256xf32>,
    %c35_i32 = arith.constant 35 : i32
    %44 = tpu.dynamic_rotate %1 by %c35_i32 dim 1 : vector<8x256xf32>, i32 -> vector<8x256xf32>
    %c7 = arith.constant 7 : index
    %c0_25 = arith.constant 0 : index
    %c0_26 = arith.constant 0 : index
    %45 = vector.load %arg4[%c7, %c0_25, %c0_26] : memref<49x1x256xf32, #tpu.memory_space<vmem>>, vector<1x1x256xf32>
    %46 = vector.shape_cast %45 : vector<1x1x256xf32> to vector<1x256xf32>
    %47 = vector.broadcast %46 : vector<1x256xf32> to vector<8x256xf32>
    %48 = arith.mulf %44, %47 : vector<8x256xf32>
    %c56 = arith.constant 56 : index
    %c0_27 = arith.constant 0 : index
    %49 = vector.load %arg8[%c56, %c0_27] : memref<392x256xf32, #tpu.memory_space<vmem>>, vector<8x256xf32>
    tpu.vector_store %arg8[%c56, %c0_27], %48 {strides = array<i32>} : memref<392x256xf32, #tpu.memory_space<vmem>>, vector<8x256xf32>,
    %c34_i32 = arith.constant 34 : i32
    %50 = tpu.dynamic_rotate %1 by %c34_i32 dim 1 : vector<8x256xf32>, i32 -> vector<8x256xf32>
    %c8_28 = arith.constant 8 : index
    %c0_29 = arith.constant 0 : index
    %c0_30 = arith.constant 0 : index
    %51 = vector.load %arg4[%c8_28, %c0_29, %c0_30] : memref<49x1x256xf32, #tpu.memory_space<vmem>>, vector<1x1x256xf32>
    %52 = vector.shape_cast %51 : vector<1x1x256xf32> to vector<1x256xf32>
    %53 = vector.broadcast %52 : vector<1x256xf32> to vector<8x256xf32>
    %54 = arith.mulf %50, %53 : vector<8x256xf32>
    %c64 = arith.constant 64 : index
    %c0_31 = arith.constant 0 : index
    %55 = vector.load %arg8[%c64, %c0_31] : memref<392x256xf32, #tpu.memory_space<vmem>>, vector<8x256xf32>
    tpu.vector_store %arg8[%c64, %c0_31], %54 {strides = array<i32>} : memref<392x256xf32, #tpu.memory_space<vmem>>, vector<8x256xf32>,
    %c33_i32 = arith.constant 33 : i32
    %56 = tpu.dynamic_rotate %1 by %c33_i32 dim 1 : vector<8x256xf32>, i32 -> vector<8x256xf32>
    %c9 = arith.constant 9 : index
    %c0_32 = arith.constant 0 : index
    %c0_33 = arith.constant 0 : index
    %57 = vector.load %arg4[%c9, %c0_32, %c0_33] : memref<49x1x256xf32, #tpu.memory_space<vmem>>, vector<1x1x256xf32>
    %58 = vector.shape_cast %57 : vector<1x1x256xf32> to vector<1x256xf32>
    %59 = vector.broadcast %58 : vector<1x256xf32> to vector<8x256xf32>
    %60 = arith.mulf %56, %59 : vector<8x256xf32>
    %c72 = arith.constant 72 : index
    %c0_34 = arith.constant 0 : index
    %61 = vector.load %arg8[%c72, %c0_34] : memref<392x256xf32, #tpu.memory_space<vmem>>, vector<8x256xf32>
    tpu.vector_store %arg8[%c72, %c0_34], %60 {strides = array<i32>} : memref<392x256xf32, #tpu.memory_space<vmem>>, vector<8x256xf32>,
    %c32_i32 = arith.constant 32 : i32
    %62 = tpu.dynamic_rotate %1 by %c32_i32 dim 1 : vector<8x256xf32>, i32 -> vector<8x256xf32>
    %c10 = arith.constant 10 : index
    %c0_35 = arith.constant 0 : index
    %c0_36 = arith.constant 0 : index
    %63 = vector.load %arg4[%c10, %c0_35, %c0_36] : memref<49x1x256xf32, #tpu.memory_space<vmem>>, vector<1x1x256xf32>
    %64 = vector.shape_cast %63 : vector<1x1x256xf32> to vector<1x256xf32>
    %65 = vector.broadcast %64 : vector<1x256xf32> to vector<8x256xf32>
    %66 = arith.mulf %62, %65 : vector<8x256xf32>
    %c80 = arith.constant 80 : index
    %c0_37 = arith.constant 0 : index
    %67 = vector.load %arg8[%c80, %c0_37] : memref<392x256xf32, #tpu.memory_space<vmem>>, vector<8x256xf32>
    tpu.vector_store %arg8[%c80, %c0_37], %66 {strides = array<i32>} : memref<392x256xf32, #tpu.memory_space<vmem>>, vector<8x256xf32>,
    %c31_i32 = arith.constant 31 : i32
    %68 = tpu.dynamic_rotate %1 by %c31_i32 dim 1 : vector<8x256xf32>, i32 -> vector<8x256xf32>
    %c11 = arith.constant 11 : index
    %c0_38 = arith.constant 0 : index
    %c0_39 = arith.constant 0 : index
    %69 = vector.load %arg4[%c11, %c0_38, %c0_39] : memref<49x1x256xf32, #tpu.memory_space<vmem>>, vector<1x1x256xf32>
    %70 = vector.shape_cast %69 : vector<1x1x256xf32> to vector<1x256xf32>
    %71 = vector.broadcast %70 : vector<1x256xf32> to vector<8x256xf32>
    %72 = arith.mulf %68, %71 : vector<8x256xf32>
    %c88 = arith.constant 88 : index
    %c0_40 = arith.constant 0 : index
    %73 = vector.load %arg8[%c88, %c0_40] : memref<392x256xf32, #tpu.memory_space<vmem>>, vector<8x256xf32>
    tpu.vector_store %arg8[%c88, %c0_40], %72 {strides = array<i32>} : memref<392x256xf32, #tpu.memory_space<vmem>>, vector<8x256xf32>,
    %c30_i32 = arith.constant 30 : i32
    %74 = tpu.dynamic_rotate %1 by %c30_i32 dim 1 : vector<8x256xf32>, i32 -> vector<8x256xf32>
    %c12 = arith.constant 12 : index
    %c0_41 = arith.constant 0 : index
    %c0_42 = arith.constant 0 : index
    %75 = vector.load %arg4[%c12, %c0_41, %c0_42] : memref<49x1x256xf32, #tpu.memory_space<vmem>>, vector<1x1x256xf32>
    %76 = vector.shape_cast %75 : vector<1x1x256xf32> to vector<1x256xf32>
    %77 = vector.broadcast %76 : vector<1x256xf32> to vector<8x256xf32>
    %78 = arith.mulf %74, %77 : vector<8x256xf32>
    %c96 = arith.constant 96 : index
    %c0_43 = arith.constant 0 : index
    %79 = vector.load %arg8[%c96, %c0_43] : memref<392x256xf32, #tpu.memory_space<vmem>>, vector<8x256xf32>
    tpu.vector_store %arg8[%c96, %c0_43], %78 {strides = array<i32>} : memref<392x256xf32, #tpu.memory_space<vmem>>, vector<8x256xf32>,
    %c29_i32 = arith.constant 29 : i32
    %80 = tpu.dynamic_rotate %1 by %c29_i32 dim 1 : vector<8x256xf32>, i32 -> vector<8x256xf32>
    %c13 = arith.constant 13 : index
    %c0_44 = arith.constant 0 : index
    %c0_45 = arith.constant 0 : index
    %81 = vector.load %arg4[%c13, %c0_44, %c0_45] : memref<49x1x256xf32, #tpu.memory_space<vmem>>, vector<1x1x256xf32>
    %82 = vector.shape_cast %81 : vector<1x1x256xf32> to vector<1x256xf32>
    %83 = vector.broadcast %82 : vector<1x256xf32> to vector<8x256xf32>
    %84 = arith.mulf %80, %83 : vector<8x256xf32>
    %c104 = arith.constant 104 : index
    %c0_46 = arith.constant 0 : index
    %85 = vector.load %arg8[%c104, %c0_46] : memref<392x256xf32, #tpu.memory_space<vmem>>, vector<8x256xf32>
    tpu.vector_store %arg8[%c104, %c0_46], %84 {strides = array<i32>} : memref<392x256xf32, #tpu.memory_space<vmem>>, vector<8x256xf32>,
    %c19_i32 = arith.constant 19 : i32
    %86 = tpu.dynamic_rotate %1 by %c19_i32 dim 1 : vector<8x256xf32>, i32 -> vector<8x256xf32>
    %c14 = arith.constant 14 : index
    %c0_47 = arith.constant 0 : index
    %c0_48 = arith.constant 0 : index
    %87 = vector.load %arg4[%c14, %c0_47, %c0_48] : memref<49x1x256xf32, #tpu.memory_space<vmem>>, vector<1x1x256xf32>
    %88 = vector.shape_cast %87 : vector<1x1x256xf32> to vector<1x256xf32>
    %89 = vector.broadcast %88 : vector<1x256xf32> to vector<8x256xf32>
    %90 = arith.mulf %86, %89 : vector<8x256xf32>
    %c112 = arith.constant 112 : index
    %c0_49 = arith.constant 0 : index
    %91 = vector.load %arg8[%c112, %c0_49] : memref<392x256xf32, #tpu.memory_space<vmem>>, vector<8x256xf32>
    tpu.vector_store %arg8[%c112, %c0_49], %90 {strides = array<i32>} : memref<392x256xf32, #tpu.memory_space<vmem>>, vector<8x256xf32>,
    %c18_i32 = arith.constant 18 : i32
    %92 = tpu.dynamic_rotate %1 by %c18_i32 dim 1 : vector<8x256xf32>, i32 -> vector<8x256xf32>
    %c15 = arith.constant 15 : index
    %c0_50 = arith.constant 0 : index
    %c0_51 = arith.constant 0 : index
    %93 = vector.load %arg4[%c15, %c0_50, %c0_51] : memref<49x1x256xf32, #tpu.memory_space<vmem>>, vector<1x1x256xf32>
    %94 = vector.shape_cast %93 : vector<1x1x256xf32> to vector<1x256xf32>
    %95 = vector.broadcast %94 : vector<1x256xf32> to vector<8x256xf32>
    %96 = arith.mulf %92, %95 : vector<8x256xf32>
    %c120 = arith.constant 120 : index
    %c0_52 = arith.constant 0 : index
    %97 = vector.load %arg8[%c120, %c0_52] : memref<392x256xf32, #tpu.memory_space<vmem>>, vector<8x256xf32>
    tpu.vector_store %arg8[%c120, %c0_52], %96 {strides = array<i32>} : memref<392x256xf32, #tpu.memory_space<vmem>>, vector<8x256xf32>,
    %c17_i32 = arith.constant 17 : i32
    %98 = tpu.dynamic_rotate %1 by %c17_i32 dim 1 : vector<8x256xf32>, i32 -> vector<8x256xf32>
    %c16_53 = arith.constant 16 : index
    %c0_54 = arith.constant 0 : index
    %c0_55 = arith.constant 0 : index
    %99 = vector.load %arg4[%c16_53, %c0_54, %c0_55] : memref<49x1x256xf32, #tpu.memory_space<vmem>>, vector<1x1x256xf32>
    %100 = vector.shape_cast %99 : vector<1x1x256xf32> to vector<1x256xf32>
    %101 = vector.broadcast %100 : vector<1x256xf32> to vector<8x256xf32>
    %102 = arith.mulf %98, %101 : vector<8x256xf32>
    %c128 = arith.constant 128 : index
    %c0_56 = arith.constant 0 : index
    %103 = vector.load %arg8[%c128, %c0_56] : memref<392x256xf32, #tpu.memory_space<vmem>>, vector<8x256xf32>
    tpu.vector_store %arg8[%c128, %c0_56], %102 {strides = array<i32>} : memref<392x256xf32, #tpu.memory_space<vmem>>, vector<8x256xf32>,
    %c16_i32 = arith.constant 16 : i32
    %104 = tpu.dynamic_rotate %1 by %c16_i32 dim 1 : vector<8x256xf32>, i32 -> vector<8x256xf32>
    %c17 = arith.constant 17 : index
    %c0_57 = arith.constant 0 : index
    %c0_58 = arith.constant 0 : index
    %105 = vector.load %arg4[%c17, %c0_57, %c0_58] : memref<49x1x256xf32, #tpu.memory_space<vmem>>, vector<1x1x256xf32>
    %106 = vector.shape_cast %105 : vector<1x1x256xf32> to vector<1x256xf32>
    %107 = vector.broadcast %106 : vector<1x256xf32> to vector<8x256xf32>
    %108 = arith.mulf %104, %107 : vector<8x256xf32>
    %c136 = arith.constant 136 : index
    %c0_59 = arith.constant 0 : index
    %109 = vector.load %arg8[%c136, %c0_59] : memref<392x256xf32, #tpu.memory_space<vmem>>, vector<8x256xf32>
    tpu.vector_store %arg8[%c136, %c0_59], %108 {strides = array<i32>} : memref<392x256xf32, #tpu.memory_space<vmem>>, vector<8x256xf32>,
    %c15_i32 = arith.constant 15 : i32
    %110 = tpu.dynamic_rotate %1 by %c15_i32 dim 1 : vector<8x256xf32>, i32 -> vector<8x256xf32>
    %c18 = arith.constant 18 : index
    %c0_60 = arith.constant 0 : index
    %c0_61 = arith.constant 0 : index
    %111 = vector.load %arg4[%c18, %c0_60, %c0_61] : memref<49x1x256xf32, #tpu.memory_space<vmem>>, vector<1x1x256xf32>
    %112 = vector.shape_cast %111 : vector<1x1x256xf32> to vector<1x256xf32>
    %113 = vector.broadcast %112 : vector<1x256xf32> to vector<8x256xf32>
    %114 = arith.mulf %110, %113 : vector<8x256xf32>
    %c144 = arith.constant 144 : index
    %c0_62 = arith.constant 0 : index
    %115 = vector.load %arg8[%c144, %c0_62] : memref<392x256xf32, #tpu.memory_space<vmem>>, vector<8x256xf32>
    tpu.vector_store %arg8[%c144, %c0_62], %114 {strides = array<i32>} : memref<392x256xf32, #tpu.memory_space<vmem>>, vector<8x256xf32>,
    %c14_i32 = arith.constant 14 : i32
    %116 = tpu.dynamic_rotate %1 by %c14_i32 dim 1 : vector<8x256xf32>, i32 -> vector<8x256xf32>
    %c19 = arith.constant 19 : index
    %c0_63 = arith.constant 0 : index
    %c0_64 = arith.constant 0 : index
    %117 = vector.load %arg4[%c19, %c0_63, %c0_64] : memref<49x1x256xf32, #tpu.memory_space<vmem>>, vector<1x1x256xf32>
    %118 = vector.shape_cast %117 : vector<1x1x256xf32> to vector<1x256xf32>
    %119 = vector.broadcast %118 : vector<1x256xf32> to vector<8x256xf32>
    %120 = arith.mulf %116, %119 : vector<8x256xf32>
    %c152 = arith.constant 152 : index
    %c0_65 = arith.constant 0 : index
    %121 = vector.load %arg8[%c152, %c0_65] : memref<392x256xf32, #tpu.memory_space<vmem>>, vector<8x256xf32>
    tpu.vector_store %arg8[%c152, %c0_65], %120 {strides = array<i32>} : memref<392x256xf32, #tpu.memory_space<vmem>>, vector<8x256xf32>,
    %c13_i32 = arith.constant 13 : i32
    %122 = tpu.dynamic_rotate %1 by %c13_i32 dim 1 : vector<8x256xf32>, i32 -> vector<8x256xf32>
    %c20 = arith.constant 20 : index
    %c0_66 = arith.constant 0 : index
    %c0_67 = arith.constant 0 : index
    %123 = vector.load %arg4[%c20, %c0_66, %c0_67] : memref<49x1x256xf32, #tpu.memory_space<vmem>>, vector<1x1x256xf32>
    %124 = vector.shape_cast %123 : vector<1x1x256xf32> to vector<1x256xf32>
    %125 = vector.broadcast %124 : vector<1x256xf32> to vector<8x256xf32>
    %126 = arith.mulf %122, %125 : vector<8x256xf32>
    %c160 = arith.constant 160 : index
    %c0_68 = arith.constant 0 : index
    %127 = vector.load %arg8[%c160, %c0_68] : memref<392x256xf32, #tpu.memory_space<vmem>>, vector<8x256xf32>
    tpu.vector_store %arg8[%c160, %c0_68], %126 {strides = array<i32>} : memref<392x256xf32, #tpu.memory_space<vmem>>, vector<8x256xf32>,
    %c3_i32 = arith.constant 3 : i32
    %128 = tpu.dynamic_rotate %1 by %c3_i32 dim 1 : vector<8x256xf32>, i32 -> vector<8x256xf32>
    %c21 = arith.constant 21 : index
    %c0_69 = arith.constant 0 : index
    %c0_70 = arith.constant 0 : index
    %129 = vector.load %arg4[%c21, %c0_69, %c0_70] : memref<49x1x256xf32, #tpu.memory_space<vmem>>, vector<1x1x256xf32>
    %130 = vector.shape_cast %129 : vector<1x1x256xf32> to vector<1x256xf32>
    %131 = vector.broadcast %130 : vector<1x256xf32> to vector<8x256xf32>
    %132 = arith.mulf %128, %131 : vector<8x256xf32>
    %c168 = arith.constant 168 : index
    %c0_71 = arith.constant 0 : index
    %133 = vector.load %arg8[%c168, %c0_71] : memref<392x256xf32, #tpu.memory_space<vmem>>, vector<8x256xf32>
    tpu.vector_store %arg8[%c168, %c0_71], %132 {strides = array<i32>} : memref<392x256xf32, #tpu.memory_space<vmem>>, vector<8x256xf32>,
    %c2_i32 = arith.constant 2 : i32
    %134 = tpu.dynamic_rotate %1 by %c2_i32 dim 1 : vector<8x256xf32>, i32 -> vector<8x256xf32>
    %c22 = arith.constant 22 : index
    %c0_72 = arith.constant 0 : index
    %c0_73 = arith.constant 0 : index
    %135 = vector.load %arg4[%c22, %c0_72, %c0_73] : memref<49x1x256xf32, #tpu.memory_space<vmem>>, vector<1x1x256xf32>
    %136 = vector.shape_cast %135 : vector<1x1x256xf32> to vector<1x256xf32>
    %137 = vector.broadcast %136 : vector<1x256xf32> to vector<8x256xf32>
    %138 = arith.mulf %134, %137 : vector<8x256xf32>
    %c176 = arith.constant 176 : index
    %c0_74 = arith.constant 0 : index
    %139 = vector.load %arg8[%c176, %c0_74] : memref<392x256xf32, #tpu.memory_space<vmem>>, vector<8x256xf32>
    tpu.vector_store %arg8[%c176, %c0_74], %138 {strides = array<i32>} : memref<392x256xf32, #tpu.memory_space<vmem>>, vector<8x256xf32>,
    %c1_i32 = arith.constant 1 : i32
    %140 = tpu.dynamic_rotate %1 by %c1_i32 dim 1 : vector<8x256xf32>, i32 -> vector<8x256xf32>
    %c23 = arith.constant 23 : index
    %c0_75 = arith.constant 0 : index
    %c0_76 = arith.constant 0 : index
    %141 = vector.load %arg4[%c23, %c0_75, %c0_76] : memref<49x1x256xf32, #tpu.memory_space<vmem>>, vector<1x1x256xf32>
    %142 = vector.shape_cast %141 : vector<1x1x256xf32> to vector<1x256xf32>
    %143 = vector.broadcast %142 : vector<1x256xf32> to vector<8x256xf32>
    %144 = arith.mulf %140, %143 : vector<8x256xf32>
    %c184 = arith.constant 184 : index
    %c0_77 = arith.constant 0 : index
    %145 = vector.load %arg8[%c184, %c0_77] : memref<392x256xf32, #tpu.memory_space<vmem>>, vector<8x256xf32>
    tpu.vector_store %arg8[%c184, %c0_77], %144 {strides = array<i32>} : memref<392x256xf32, #tpu.memory_space<vmem>>, vector<8x256xf32>,
    %c24_78 = arith.constant 24 : index
    %c0_79 = arith.constant 0 : index
    %c0_80 = arith.constant 0 : index
    %146 = vector.load %arg4[%c24_78, %c0_79, %c0_80] : memref<49x1x256xf32, #tpu.memory_space<vmem>>, vector<1x1x256xf32>
    %147 = vector.shape_cast %146 : vector<1x1x256xf32> to vector<1x256xf32>
    %148 = vector.broadcast %147 : vector<1x256xf32> to vector<8x256xf32>
    %149 = arith.mulf %1, %148 : vector<8x256xf32>
    %c192 = arith.constant 192 : index
    %c0_81 = arith.constant 0 : index
    %150 = vector.load %arg8[%c192, %c0_81] : memref<392x256xf32, #tpu.memory_space<vmem>>, vector<8x256xf32>
    tpu.vector_store %arg8[%c192, %c0_81], %149 {strides = array<i32>} : memref<392x256xf32, #tpu.memory_space<vmem>>, vector<8x256xf32>,
    %c255_i32 = arith.constant 255 : i32
    %151 = tpu.dynamic_rotate %1 by %c255_i32 dim 1 : vector<8x256xf32>, i32 -> vector<8x256xf32>
    %c25 = arith.constant 25 : index
    %c0_82 = arith.constant 0 : index
    %c0_83 = arith.constant 0 : index
    %152 = vector.load %arg4[%c25, %c0_82, %c0_83] : memref<49x1x256xf32, #tpu.memory_space<vmem>>, vector<1x1x256xf32>
    %153 = vector.shape_cast %152 : vector<1x1x256xf32> to vector<1x256xf32>
    %154 = vector.broadcast %153 : vector<1x256xf32> to vector<8x256xf32>
    %155 = arith.mulf %151, %154 : vector<8x256xf32>
    %c200 = arith.constant 200 : index
    %c0_84 = arith.constant 0 : index
    %156 = vector.load %arg8[%c200, %c0_84] : memref<392x256xf32, #tpu.memory_space<vmem>>, vector<8x256xf32>
    tpu.vector_store %arg8[%c200, %c0_84], %155 {strides = array<i32>} : memref<392x256xf32, #tpu.memory_space<vmem>>, vector<8x256xf32>,
    %c254_i32 = arith.constant 254 : i32
    %157 = tpu.dynamic_rotate %1 by %c254_i32 dim 1 : vector<8x256xf32>, i32 -> vector<8x256xf32>
    %c26 = arith.constant 26 : index
    %c0_85 = arith.constant 0 : index
    %c0_86 = arith.constant 0 : index
    %158 = vector.load %arg4[%c26, %c0_85, %c0_86] : memref<49x1x256xf32, #tpu.memory_space<vmem>>, vector<1x1x256xf32>
    %159 = vector.shape_cast %158 : vector<1x1x256xf32> to vector<1x256xf32>
    %160 = vector.broadcast %159 : vector<1x256xf32> to vector<8x256xf32>
    %161 = arith.mulf %157, %160 : vector<8x256xf32>
    %c208 = arith.constant 208 : index
    %c0_87 = arith.constant 0 : index
    %162 = vector.load %arg8[%c208, %c0_87] : memref<392x256xf32, #tpu.memory_space<vmem>>, vector<8x256xf32>
    tpu.vector_store %arg8[%c208, %c0_87], %161 {strides = array<i32>} : memref<392x256xf32, #tpu.memory_space<vmem>>, vector<8x256xf32>,
    %c253_i32 = arith.constant 253 : i32
    %163 = tpu.dynamic_rotate %1 by %c253_i32 dim 1 : vector<8x256xf32>, i32 -> vector<8x256xf32>
    %c27 = arith.constant 27 : index
    %c0_88 = arith.constant 0 : index
    %c0_89 = arith.constant 0 : index
    %164 = vector.load %arg4[%c27, %c0_88, %c0_89] : memref<49x1x256xf32, #tpu.memory_space<vmem>>, vector<1x1x256xf32>
    %165 = vector.shape_cast %164 : vector<1x1x256xf32> to vector<1x256xf32>
    %166 = vector.broadcast %165 : vector<1x256xf32> to vector<8x256xf32>
    %167 = arith.mulf %163, %166 : vector<8x256xf32>
    %c216 = arith.constant 216 : index
    %c0_90 = arith.constant 0 : index
    %168 = vector.load %arg8[%c216, %c0_90] : memref<392x256xf32, #tpu.memory_space<vmem>>, vector<8x256xf32>
    tpu.vector_store %arg8[%c216, %c0_90], %167 {strides = array<i32>} : memref<392x256xf32, #tpu.memory_space<vmem>>, vector<8x256xf32>,
    %c243_i32 = arith.constant 243 : i32
    %169 = tpu.dynamic_rotate %1 by %c243_i32 dim 1 : vector<8x256xf32>, i32 -> vector<8x256xf32>
    %c28 = arith.constant 28 : index
    %c0_91 = arith.constant 0 : index
    %c0_92 = arith.constant 0 : index
    %170 = vector.load %arg4[%c28, %c0_91, %c0_92] : memref<49x1x256xf32, #tpu.memory_space<vmem>>, vector<1x1x256xf32>
    %171 = vector.shape_cast %170 : vector<1x1x256xf32> to vector<1x256xf32>
    %172 = vector.broadcast %171 : vector<1x256xf32> to vector<8x256xf32>
    %173 = arith.mulf %169, %172 : vector<8x256xf32>
    %c224 = arith.constant 224 : index
    %c0_93 = arith.constant 0 : index
    %174 = vector.load %arg8[%c224, %c0_93] : memref<392x256xf32, #tpu.memory_space<vmem>>, vector<8x256xf32>
    tpu.vector_store %arg8[%c224, %c0_93], %173 {strides = array<i32>} : memref<392x256xf32, #tpu.memory_space<vmem>>, vector<8x256xf32>,
    %c242_i32 = arith.constant 242 : i32
    %175 = tpu.dynamic_rotate %1 by %c242_i32 dim 1 : vector<8x256xf32>, i32 -> vector<8x256xf32>
    %c29 = arith.constant 29 : index
    %c0_94 = arith.constant 0 : index
    %c0_95 = arith.constant 0 : index
    %176 = vector.load %arg4[%c29, %c0_94, %c0_95] : memref<49x1x256xf32, #tpu.memory_space<vmem>>, vector<1x1x256xf32>
    %177 = vector.shape_cast %176 : vector<1x1x256xf32> to vector<1x256xf32>
    %178 = vector.broadcast %177 : vector<1x256xf32> to vector<8x256xf32>
    %179 = arith.mulf %175, %178 : vector<8x256xf32>
    %c232 = arith.constant 232 : index
    %c0_96 = arith.constant 0 : index
    %180 = vector.load %arg8[%c232, %c0_96] : memref<392x256xf32, #tpu.memory_space<vmem>>, vector<8x256xf32>
    tpu.vector_store %arg8[%c232, %c0_96], %179 {strides = array<i32>} : memref<392x256xf32, #tpu.memory_space<vmem>>, vector<8x256xf32>,
    %c241_i32 = arith.constant 241 : i32
    %181 = tpu.dynamic_rotate %1 by %c241_i32 dim 1 : vector<8x256xf32>, i32 -> vector<8x256xf32>
    %c30 = arith.constant 30 : index
    %c0_97 = arith.constant 0 : index
    %c0_98 = arith.constant 0 : index
    %182 = vector.load %arg4[%c30, %c0_97, %c0_98] : memref<49x1x256xf32, #tpu.memory_space<vmem>>, vector<1x1x256xf32>
    %183 = vector.shape_cast %182 : vector<1x1x256xf32> to vector<1x256xf32>
    %184 = vector.broadcast %183 : vector<1x256xf32> to vector<8x256xf32>
    %185 = arith.mulf %181, %184 : vector<8x256xf32>
    %c240 = arith.constant 240 : index
    %c0_99 = arith.constant 0 : index
    %186 = vector.load %arg8[%c240, %c0_99] : memref<392x256xf32, #tpu.memory_space<vmem>>, vector<8x256xf32>
    tpu.vector_store %arg8[%c240, %c0_99], %185 {strides = array<i32>} : memref<392x256xf32, #tpu.memory_space<vmem>>, vector<8x256xf32>,
    %c240_i32 = arith.constant 240 : i32
    %187 = tpu.dynamic_rotate %1 by %c240_i32 dim 1 : vector<8x256xf32>, i32 -> vector<8x256xf32>
    %c31 = arith.constant 31 : index
    %c0_100 = arith.constant 0 : index
    %c0_101 = arith.constant 0 : index
    %188 = vector.load %arg4[%c31, %c0_100, %c0_101] : memref<49x1x256xf32, #tpu.memory_space<vmem>>, vector<1x1x256xf32>
    %189 = vector.shape_cast %188 : vector<1x1x256xf32> to vector<1x256xf32>
    %190 = vector.broadcast %189 : vector<1x256xf32> to vector<8x256xf32>
    %191 = arith.mulf %187, %190 : vector<8x256xf32>
    %c248 = arith.constant 248 : index
    %c0_102 = arith.constant 0 : index
    %192 = vector.load %arg8[%c248, %c0_102] : memref<392x256xf32, #tpu.memory_space<vmem>>, vector<8x256xf32>
    tpu.vector_store %arg8[%c248, %c0_102], %191 {strides = array<i32>} : memref<392x256xf32, #tpu.memory_space<vmem>>, vector<8x256xf32>,
    %c239_i32 = arith.constant 239 : i32
    %193 = tpu.dynamic_rotate %1 by %c239_i32 dim 1 : vector<8x256xf32>, i32 -> vector<8x256xf32>
    %c32_103 = arith.constant 32 : index
    %c0_104 = arith.constant 0 : index
    %c0_105 = arith.constant 0 : index
    %194 = vector.load %arg4[%c32_103, %c0_104, %c0_105] : memref<49x1x256xf32, #tpu.memory_space<vmem>>, vector<1x1x256xf32>
    %195 = vector.shape_cast %194 : vector<1x1x256xf32> to vector<1x256xf32>
    %196 = vector.broadcast %195 : vector<1x256xf32> to vector<8x256xf32>
    %197 = arith.mulf %193, %196 : vector<8x256xf32>
    %c256 = arith.constant 256 : index
    %c0_106 = arith.constant 0 : index
    %198 = vector.load %arg8[%c256, %c0_106] : memref<392x256xf32, #tpu.memory_space<vmem>>, vector<8x256xf32>
    tpu.vector_store %arg8[%c256, %c0_106], %197 {strides = array<i32>} : memref<392x256xf32, #tpu.memory_space<vmem>>, vector<8x256xf32>,
    %c238_i32 = arith.constant 238 : i32
    %199 = tpu.dynamic_rotate %1 by %c238_i32 dim 1 : vector<8x256xf32>, i32 -> vector<8x256xf32>
    %c33 = arith.constant 33 : index
    %c0_107 = arith.constant 0 : index
    %c0_108 = arith.constant 0 : index
    %200 = vector.load %arg4[%c33, %c0_107, %c0_108] : memref<49x1x256xf32, #tpu.memory_space<vmem>>, vector<1x1x256xf32>
    %201 = vector.shape_cast %200 : vector<1x1x256xf32> to vector<1x256xf32>
    %202 = vector.broadcast %201 : vector<1x256xf32> to vector<8x256xf32>
    %203 = arith.mulf %199, %202 : vector<8x256xf32>
    %c264 = arith.constant 264 : index
    %c0_109 = arith.constant 0 : index
    %204 = vector.load %arg8[%c264, %c0_109] : memref<392x256xf32, #tpu.memory_space<vmem>>, vector<8x256xf32>
    tpu.vector_store %arg8[%c264, %c0_109], %203 {strides = array<i32>} : memref<392x256xf32, #tpu.memory_space<vmem>>, vector<8x256xf32>,
    %c237_i32 = arith.constant 237 : i32
    %205 = tpu.dynamic_rotate %1 by %c237_i32 dim 1 : vector<8x256xf32>, i32 -> vector<8x256xf32>
    %c34 = arith.constant 34 : index
    %c0_110 = arith.constant 0 : index
    %c0_111 = arith.constant 0 : index
    %206 = vector.load %arg4[%c34, %c0_110, %c0_111] : memref<49x1x256xf32, #tpu.memory_space<vmem>>, vector<1x1x256xf32>
    %207 = vector.shape_cast %206 : vector<1x1x256xf32> to vector<1x256xf32>
    %208 = vector.broadcast %207 : vector<1x256xf32> to vector<8x256xf32>
    %209 = arith.mulf %205, %208 : vector<8x256xf32>
    %c272 = arith.constant 272 : index
    %c0_112 = arith.constant 0 : index
    %210 = vector.load %arg8[%c272, %c0_112] : memref<392x256xf32, #tpu.memory_space<vmem>>, vector<8x256xf32>
    tpu.vector_store %arg8[%c272, %c0_112], %209 {strides = array<i32>} : memref<392x256xf32, #tpu.memory_space<vmem>>, vector<8x256xf32>,
    %c227_i32 = arith.constant 227 : i32
    %211 = tpu.dynamic_rotate %1 by %c227_i32 dim 1 : vector<8x256xf32>, i32 -> vector<8x256xf32>
    %c35 = arith.constant 35 : index
    %c0_113 = arith.constant 0 : index
    %c0_114 = arith.constant 0 : index
    %212 = vector.load %arg4[%c35, %c0_113, %c0_114] : memref<49x1x256xf32, #tpu.memory_space<vmem>>, vector<1x1x256xf32>
    %213 = vector.shape_cast %212 : vector<1x1x256xf32> to vector<1x256xf32>
    %214 = vector.broadcast %213 : vector<1x256xf32> to vector<8x256xf32>
    %215 = arith.mulf %211, %214 : vector<8x256xf32>
    %c280 = arith.constant 280 : index
    %c0_115 = arith.constant 0 : index
    %216 = vector.load %arg8[%c280, %c0_115] : memref<392x256xf32, #tpu.memory_space<vmem>>, vector<8x256xf32>
    tpu.vector_store %arg8[%c280, %c0_115], %215 {strides = array<i32>} : memref<392x256xf32, #tpu.memory_space<vmem>>, vector<8x256xf32>,
    %c226_i32 = arith.constant 226 : i32
    %217 = tpu.dynamic_rotate %1 by %c226_i32 dim 1 : vector<8x256xf32>, i32 -> vector<8x256xf32>
    %c36 = arith.constant 36 : index
    %c0_116 = arith.constant 0 : index
    %c0_117 = arith.constant 0 : index
    %218 = vector.load %arg4[%c36, %c0_116, %c0_117] : memref<49x1x256xf32, #tpu.memory_space<vmem>>, vector<1x1x256xf32>
    %219 = vector.shape_cast %218 : vector<1x1x256xf32> to vector<1x256xf32>
    %220 = vector.broadcast %219 : vector<1x256xf32> to vector<8x256xf32>
    %221 = arith.mulf %217, %220 : vector<8x256xf32>
    %c288 = arith.constant 288 : index
    %c0_118 = arith.constant 0 : index
    %222 = vector.load %arg8[%c288, %c0_118] : memref<392x256xf32, #tpu.memory_space<vmem>>, vector<8x256xf32>
    tpu.vector_store %arg8[%c288, %c0_118], %221 {strides = array<i32>} : memref<392x256xf32, #tpu.memory_space<vmem>>, vector<8x256xf32>,
    %c225_i32 = arith.constant 225 : i32
    %223 = tpu.dynamic_rotate %1 by %c225_i32 dim 1 : vector<8x256xf32>, i32 -> vector<8x256xf32>
    %c37 = arith.constant 37 : index
    %c0_119 = arith.constant 0 : index
    %c0_120 = arith.constant 0 : index
    %224 = vector.load %arg4[%c37, %c0_119, %c0_120] : memref<49x1x256xf32, #tpu.memory_space<vmem>>, vector<1x1x256xf32>
    %225 = vector.shape_cast %224 : vector<1x1x256xf32> to vector<1x256xf32>
    %226 = vector.broadcast %225 : vector<1x256xf32> to vector<8x256xf32>
    %227 = arith.mulf %223, %226 : vector<8x256xf32>
    %c296 = arith.constant 296 : index
    %c0_121 = arith.constant 0 : index
    %228 = vector.load %arg8[%c296, %c0_121] : memref<392x256xf32, #tpu.memory_space<vmem>>, vector<8x256xf32>
    tpu.vector_store %arg8[%c296, %c0_121], %227 {strides = array<i32>} : memref<392x256xf32, #tpu.memory_space<vmem>>, vector<8x256xf32>,
    %c224_i32 = arith.constant 224 : i32
    %229 = tpu.dynamic_rotate %1 by %c224_i32 dim 1 : vector<8x256xf32>, i32 -> vector<8x256xf32>
    %c38 = arith.constant 38 : index
    %c0_122 = arith.constant 0 : index
    %c0_123 = arith.constant 0 : index
    %230 = vector.load %arg4[%c38, %c0_122, %c0_123] : memref<49x1x256xf32, #tpu.memory_space<vmem>>, vector<1x1x256xf32>
    %231 = vector.shape_cast %230 : vector<1x1x256xf32> to vector<1x256xf32>
    %232 = vector.broadcast %231 : vector<1x256xf32> to vector<8x256xf32>
    %233 = arith.mulf %229, %232 : vector<8x256xf32>
    %c304 = arith.constant 304 : index
    %c0_124 = arith.constant 0 : index
    %234 = vector.load %arg8[%c304, %c0_124] : memref<392x256xf32, #tpu.memory_space<vmem>>, vector<8x256xf32>
    tpu.vector_store %arg8[%c304, %c0_124], %233 {strides = array<i32>} : memref<392x256xf32, #tpu.memory_space<vmem>>, vector<8x256xf32>,
    %c223_i32 = arith.constant 223 : i32
    %235 = tpu.dynamic_rotate %1 by %c223_i32 dim 1 : vector<8x256xf32>, i32 -> vector<8x256xf32>
    %c39 = arith.constant 39 : index
    %c0_125 = arith.constant 0 : index
    %c0_126 = arith.constant 0 : index
    %236 = vector.load %arg4[%c39, %c0_125, %c0_126] : memref<49x1x256xf32, #tpu.memory_space<vmem>>, vector<1x1x256xf32>
    %237 = vector.shape_cast %236 : vector<1x1x256xf32> to vector<1x256xf32>
    %238 = vector.broadcast %237 : vector<1x256xf32> to vector<8x256xf32>
    %239 = arith.mulf %235, %238 : vector<8x256xf32>
    %c312 = arith.constant 312 : index
    %c0_127 = arith.constant 0 : index
    %240 = vector.load %arg8[%c312, %c0_127] : memref<392x256xf32, #tpu.memory_space<vmem>>, vector<8x256xf32>
    tpu.vector_store %arg8[%c312, %c0_127], %239 {strides = array<i32>} : memref<392x256xf32, #tpu.memory_space<vmem>>, vector<8x256xf32>,
    %c222_i32 = arith.constant 222 : i32
    %241 = tpu.dynamic_rotate %1 by %c222_i32 dim 1 : vector<8x256xf32>, i32 -> vector<8x256xf32>
    %c40_128 = arith.constant 40 : index
    %c0_129 = arith.constant 0 : index
    %c0_130 = arith.constant 0 : index
    %242 = vector.load %arg4[%c40_128, %c0_129, %c0_130] : memref<49x1x256xf32, #tpu.memory_space<vmem>>, vector<1x1x256xf32>
    %243 = vector.shape_cast %242 : vector<1x1x256xf32> to vector<1x256xf32>
    %244 = vector.broadcast %243 : vector<1x256xf32> to vector<8x256xf32>
    %245 = arith.mulf %241, %244 : vector<8x256xf32>
    %c320 = arith.constant 320 : index
    %c0_131 = arith.constant 0 : index
    %246 = vector.load %arg8[%c320, %c0_131] : memref<392x256xf32, #tpu.memory_space<vmem>>, vector<8x256xf32>
    tpu.vector_store %arg8[%c320, %c0_131], %245 {strides = array<i32>} : memref<392x256xf32, #tpu.memory_space<vmem>>, vector<8x256xf32>,
    %c221_i32 = arith.constant 221 : i32
    %247 = tpu.dynamic_rotate %1 by %c221_i32 dim 1 : vector<8x256xf32>, i32 -> vector<8x256xf32>
    %c41 = arith.constant 41 : index
    %c0_132 = arith.constant 0 : index
    %c0_133 = arith.constant 0 : index
    %248 = vector.load %arg4[%c41, %c0_132, %c0_133] : memref<49x1x256xf32, #tpu.memory_space<vmem>>, vector<1x1x256xf32>
    %249 = vector.shape_cast %248 : vector<1x1x256xf32> to vector<1x256xf32>
    %250 = vector.broadcast %249 : vector<1x256xf32> to vector<8x256xf32>
    %251 = arith.mulf %247, %250 : vector<8x256xf32>
    %c328 = arith.constant 328 : index
    %c0_134 = arith.constant 0 : index
    %252 = vector.load %arg8[%c328, %c0_134] : memref<392x256xf32, #tpu.memory_space<vmem>>, vector<8x256xf32>
    tpu.vector_store %arg8[%c328, %c0_134], %251 {strides = array<i32>} : memref<392x256xf32, #tpu.memory_space<vmem>>, vector<8x256xf32>,
    %c211_i32 = arith.constant 211 : i32
    %253 = tpu.dynamic_rotate %1 by %c211_i32 dim 1 : vector<8x256xf32>, i32 -> vector<8x256xf32>
    %c42 = arith.constant 42 : index
    %c0_135 = arith.constant 0 : index
    %c0_136 = arith.constant 0 : index
    %254 = vector.load %arg4[%c42, %c0_135, %c0_136] : memref<49x1x256xf32, #tpu.memory_space<vmem>>, vector<1x1x256xf32>
    %255 = vector.shape_cast %254 : vector<1x1x256xf32> to vector<1x256xf32>
    %256 = vector.broadcast %255 : vector<1x256xf32> to vector<8x256xf32>
    %257 = arith.mulf %253, %256 : vector<8x256xf32>
    %c336 = arith.constant 336 : index
    %c0_137 = arith.constant 0 : index
    %258 = vector.load %arg8[%c336, %c0_137] : memref<392x256xf32, #tpu.memory_space<vmem>>, vector<8x256xf32>
    tpu.vector_store %arg8[%c336, %c0_137], %257 {strides = array<i32>} : memref<392x256xf32, #tpu.memory_space<vmem>>, vector<8x256xf32>,
    %c210_i32 = arith.constant 210 : i32
    %259 = tpu.dynamic_rotate %1 by %c210_i32 dim 1 : vector<8x256xf32>, i32 -> vector<8x256xf32>
    %c43 = arith.constant 43 : index
    %c0_138 = arith.constant 0 : index
    %c0_139 = arith.constant 0 : index
    %260 = vector.load %arg4[%c43, %c0_138, %c0_139] : memref<49x1x256xf32, #tpu.memory_space<vmem>>, vector<1x1x256xf32>
    %261 = vector.shape_cast %260 : vector<1x1x256xf32> to vector<1x256xf32>
    %262 = vector.broadcast %261 : vector<1x256xf32> to vector<8x256xf32>
    %263 = arith.mulf %259, %262 : vector<8x256xf32>
    %c344 = arith.constant 344 : index
    %c0_140 = arith.constant 0 : index
    %264 = vector.load %arg8[%c344, %c0_140] : memref<392x256xf32, #tpu.memory_space<vmem>>, vector<8x256xf32>
    tpu.vector_store %arg8[%c344, %c0_140], %263 {strides = array<i32>} : memref<392x256xf32, #tpu.memory_space<vmem>>, vector<8x256xf32>,
    %c209_i32 = arith.constant 209 : i32
    %265 = tpu.dynamic_rotate %1 by %c209_i32 dim 1 : vector<8x256xf32>, i32 -> vector<8x256xf32>
    %c44 = arith.constant 44 : index
    %c0_141 = arith.constant 0 : index
    %c0_142 = arith.constant 0 : index
    %266 = vector.load %arg4[%c44, %c0_141, %c0_142] : memref<49x1x256xf32, #tpu.memory_space<vmem>>, vector<1x1x256xf32>
    %267 = vector.shape_cast %266 : vector<1x1x256xf32> to vector<1x256xf32>
    %268 = vector.broadcast %267 : vector<1x256xf32> to vector<8x256xf32>
    %269 = arith.mulf %265, %268 : vector<8x256xf32>
    %c352 = arith.constant 352 : index
    %c0_143 = arith.constant 0 : index
    %270 = vector.load %arg8[%c352, %c0_143] : memref<392x256xf32, #tpu.memory_space<vmem>>, vector<8x256xf32>
    tpu.vector_store %arg8[%c352, %c0_143], %269 {strides = array<i32>} : memref<392x256xf32, #tpu.memory_space<vmem>>, vector<8x256xf32>,
    %c208_i32 = arith.constant 208 : i32
    %271 = tpu.dynamic_rotate %1 by %c208_i32 dim 1 : vector<8x256xf32>, i32 -> vector<8x256xf32>
    %c45 = arith.constant 45 : index
    %c0_144 = arith.constant 0 : index
    %c0_145 = arith.constant 0 : index
    %272 = vector.load %arg4[%c45, %c0_144, %c0_145] : memref<49x1x256xf32, #tpu.memory_space<vmem>>, vector<1x1x256xf32>
    %273 = vector.shape_cast %272 : vector<1x1x256xf32> to vector<1x256xf32>
    %274 = vector.broadcast %273 : vector<1x256xf32> to vector<8x256xf32>
    %275 = arith.mulf %271, %274 : vector<8x256xf32>
    %c360 = arith.constant 360 : index
    %c0_146 = arith.constant 0 : index
    %276 = vector.load %arg8[%c360, %c0_146] : memref<392x256xf32, #tpu.memory_space<vmem>>, vector<8x256xf32>
    tpu.vector_store %arg8[%c360, %c0_146], %275 {strides = array<i32>} : memref<392x256xf32, #tpu.memory_space<vmem>>, vector<8x256xf32>,
    %c207_i32 = arith.constant 207 : i32
    %277 = tpu.dynamic_rotate %1 by %c207_i32 dim 1 : vector<8x256xf32>, i32 -> vector<8x256xf32>
    %c46 = arith.constant 46 : index
    %c0_147 = arith.constant 0 : index
    %c0_148 = arith.constant 0 : index
    %278 = vector.load %arg4[%c46, %c0_147, %c0_148] : memref<49x1x256xf32, #tpu.memory_space<vmem>>, vector<1x1x256xf32>
    %279 = vector.shape_cast %278 : vector<1x1x256xf32> to vector<1x256xf32>
    %280 = vector.broadcast %279 : vector<1x256xf32> to vector<8x256xf32>
    %281 = arith.mulf %277, %280 : vector<8x256xf32>
    %c368 = arith.constant 368 : index
    %c0_149 = arith.constant 0 : index
    %282 = vector.load %arg8[%c368, %c0_149] : memref<392x256xf32, #tpu.memory_space<vmem>>, vector<8x256xf32>
    tpu.vector_store %arg8[%c368, %c0_149], %281 {strides = array<i32>} : memref<392x256xf32, #tpu.memory_space<vmem>>, vector<8x256xf32>,
    %c206_i32 = arith.constant 206 : i32
    %283 = tpu.dynamic_rotate %1 by %c206_i32 dim 1 : vector<8x256xf32>, i32 -> vector<8x256xf32>
    %c47 = arith.constant 47 : index
    %c0_150 = arith.constant 0 : index
    %c0_151 = arith.constant 0 : index
    %284 = vector.load %arg4[%c47, %c0_150, %c0_151] : memref<49x1x256xf32, #tpu.memory_space<vmem>>, vector<1x1x256xf32>
    %285 = vector.shape_cast %284 : vector<1x1x256xf32> to vector<1x256xf32>
    %286 = vector.broadcast %285 : vector<1x256xf32> to vector<8x256xf32>
    %287 = arith.mulf %283, %286 : vector<8x256xf32>
    %c376 = arith.constant 376 : index
    %c0_152 = arith.constant 0 : index
    %288 = vector.load %arg8[%c376, %c0_152] : memref<392x256xf32, #tpu.memory_space<vmem>>, vector<8x256xf32>
    tpu.vector_store %arg8[%c376, %c0_152], %287 {strides = array<i32>} : memref<392x256xf32, #tpu.memory_space<vmem>>, vector<8x256xf32>,
    %c205_i32 = arith.constant 205 : i32
    %289 = tpu.dynamic_rotate %1 by %c205_i32 dim 1 : vector<8x256xf32>, i32 -> vector<8x256xf32>
    %c48_153 = arith.constant 48 : index
    %c0_154 = arith.constant 0 : index
    %c0_155 = arith.constant 0 : index
    %290 = vector.load %arg4[%c48_153, %c0_154, %c0_155] : memref<49x1x256xf32, #tpu.memory_space<vmem>>, vector<1x1x256xf32>
    %291 = vector.shape_cast %290 : vector<1x1x256xf32> to vector<1x256xf32>
    %292 = vector.broadcast %291 : vector<1x256xf32> to vector<8x256xf32>
    %293 = arith.mulf %289, %292 : vector<8x256xf32>
    %c384 = arith.constant 384 : index
    %c0_156 = arith.constant 0 : index
    %294 = vector.load %arg8[%c384, %c0_156] : memref<392x256xf32, #tpu.memory_space<vmem>>, vector<8x256xf32>
    tpu.vector_store %arg8[%c384, %c0_156], %293 {strides = array<i32>} : memref<392x256xf32, #tpu.memory_space<vmem>>, vector<8x256xf32>,
    %c0_157 = arith.constant 0 : index
    %c0_158 = arith.constant 0 : index
    %c0_159 = arith.constant 0 : index
    %295 = vector.load %arg3[%c0_157, %c0_158, %c0_159] : memref<1x24x392xf32, #tpu.memory_space<vmem>>, vector<1x24x392xf32>
    %296 = vector.shape_cast %295 : vector<1x24x392xf32> to vector<24x392xf32>
    %c0_160 = arith.constant 0 : index
    %c0_161 = arith.constant 0 : index
    %297 = vector.load %arg8[%c0_160, %c0_161] : memref<392x256xf32, #tpu.memory_space<vmem>>, vector<392x256xf32>
    %cst = arith.constant dense<0.000000e+00> : vector<24x256xf32>
    %298 = tpu.matmul %296, %297, %cst {dimension_numbers = #tpu.dot_dimension_numbers<[1], [0], [0], [1], [0, 0, 1, 1], [], []>} : vector<24x392xf32>, vector<392x256xf32>, vector<24x256xf32> -> vector<24x256xf32>
    %c0_162 = arith.constant 0 : index
    %c0_163 = arith.constant 0 : index
    %299 = vector.load %arg6[%c0_162, %c0_163] : memref<16x128xf32, #tpu.memory_space<vmem>>, vector<16x128xf32>
    %300 = vector.extract_strided_slice %298 {offsets = [0, 0], sizes = [24, 16], strides = [1, 1]} : vector<24x256xf32> to vector<24x16xf32>
    %cst_164 = arith.constant dense<0.000000e+00> : vector<24x128xf32>
    %301 = tpu.matmul %300, %299, %cst_164 {dimension_numbers = #tpu.dot_dimension_numbers<[1], [0], [0], [1], [0, 0, 1, 1], [], []>} : vector<24x16xf32>, vector<16x128xf32>, vector<24x128xf32> -> vector<24x128xf32>
    %c0_165 = arith.constant 0 : index
    %c0_166 = arith.constant 0 : index
    %c0_167 = arith.constant 0 : index
    %302 = vector.load %arg9[%c0_165, %c0_166, %c0_167] : memref<16x24x128xf32, #tpu.memory_space<vmem>>, vector<1x24x128xf32>
    %303 = vector.shape_cast %302 : vector<1x24x128xf32> to vector<24x128xf32>
    %304 = vector.shape_cast %301 : vector<24x128xf32> to vector<1x24x128xf32>
    tpu.vector_store %arg9[%c0_165, %c0_166, %c0_167], %304 {strides = array<i32>} : memref<16x24x128xf32, #tpu.memory_space<vmem>>, vector<1x24x128xf32>,
    %305 = vector.extract_strided_slice %298 {offsets = [0, 16], sizes = [24, 16], strides = [1, 1]} : vector<24x256xf32> to vector<24x16xf32>
    %cst_168 = arith.constant dense<0.000000e+00> : vector<24x128xf32>
    %306 = tpu.matmul %305, %299, %cst_168 {dimension_numbers = #tpu.dot_dimension_numbers<[1], [0], [0], [1], [0, 0, 1, 1], [], []>} : vector<24x16xf32>, vector<16x128xf32>, vector<24x128xf32> -> vector<24x128xf32>
    %c1_169 = arith.constant 1 : index
    %c0_170 = arith.constant 0 : index
    %c0_171 = arith.constant 0 : index
    %307 = vector.load %arg9[%c1_169, %c0_170, %c0_171] : memref<16x24x128xf32, #tpu.memory_space<vmem>>, vector<1x24x128xf32>
    %308 = vector.shape_cast %307 : vector<1x24x128xf32> to vector<24x128xf32>
    %309 = vector.shape_cast %306 : vector<24x128xf32> to vector<1x24x128xf32>
    tpu.vector_store %arg9[%c1_169, %c0_170, %c0_171], %309 {strides = array<i32>} : memref<16x24x128xf32, #tpu.memory_space<vmem>>, vector<1x24x128xf32>,
    %310 = vector.extract_strided_slice %298 {offsets = [0, 32], sizes = [24, 16], strides = [1, 1]} : vector<24x256xf32> to vector<24x16xf32>
    %cst_172 = arith.constant dense<0.000000e+00> : vector<24x128xf32>
    %311 = tpu.matmul %310, %299, %cst_172 {dimension_numbers = #tpu.dot_dimension_numbers<[1], [0], [0], [1], [0, 0, 1, 1], [], []>} : vector<24x16xf32>, vector<16x128xf32>, vector<24x128xf32> -> vector<24x128xf32>
    %c2_173 = arith.constant 2 : index
    %c0_174 = arith.constant 0 : index
    %c0_175 = arith.constant 0 : index
    %312 = vector.load %arg9[%c2_173, %c0_174, %c0_175] : memref<16x24x128xf32, #tpu.memory_space<vmem>>, vector<1x24x128xf32>
    %313 = vector.shape_cast %312 : vector<1x24x128xf32> to vector<24x128xf32>
    %314 = vector.shape_cast %311 : vector<24x128xf32> to vector<1x24x128xf32>
    tpu.vector_store %arg9[%c2_173, %c0_174, %c0_175], %314 {strides = array<i32>} : memref<16x24x128xf32, #tpu.memory_space<vmem>>, vector<1x24x128xf32>,
    %315 = vector.extract_strided_slice %298 {offsets = [0, 48], sizes = [24, 16], strides = [1, 1]} : vector<24x256xf32> to vector<24x16xf32>
    %cst_176 = arith.constant dense<0.000000e+00> : vector<24x128xf32>
    %316 = tpu.matmul %315, %299, %cst_176 {dimension_numbers = #tpu.dot_dimension_numbers<[1], [0], [0], [1], [0, 0, 1, 1], [], []>} : vector<24x16xf32>, vector<16x128xf32>, vector<24x128xf32> -> vector<24x128xf32>
    %c3_177 = arith.constant 3 : index
    %c0_178 = arith.constant 0 : index
    %c0_179 = arith.constant 0 : index
    %317 = vector.load %arg9[%c3_177, %c0_178, %c0_179] : memref<16x24x128xf32, #tpu.memory_space<vmem>>, vector<1x24x128xf32>
    %318 = vector.shape_cast %317 : vector<1x24x128xf32> to vector<24x128xf32>
    %319 = vector.shape_cast %316 : vector<24x128xf32> to vector<1x24x128xf32>
    tpu.vector_store %arg9[%c3_177, %c0_178, %c0_179], %319 {strides = array<i32>} : memref<16x24x128xf32, #tpu.memory_space<vmem>>, vector<1x24x128xf32>,
    %320 = vector.extract_strided_slice %298 {offsets = [0, 64], sizes = [24, 16], strides = [1, 1]} : vector<24x256xf32> to vector<24x16xf32>
    %cst_180 = arith.constant dense<0.000000e+00> : vector<24x128xf32>
    %321 = tpu.matmul %320, %299, %cst_180 {dimension_numbers = #tpu.dot_dimension_numbers<[1], [0], [0], [1], [0, 0, 1, 1], [], []>} : vector<24x16xf32>, vector<16x128xf32>, vector<24x128xf32> -> vector<24x128xf32>
    %c4_181 = arith.constant 4 : index
    %c0_182 = arith.constant 0 : index
    %c0_183 = arith.constant 0 : index
    %322 = vector.load %arg9[%c4_181, %c0_182, %c0_183] : memref<16x24x128xf32, #tpu.memory_space<vmem>>, vector<1x24x128xf32>
    %323 = vector.shape_cast %322 : vector<1x24x128xf32> to vector<24x128xf32>
    %324 = vector.shape_cast %321 : vector<24x128xf32> to vector<1x24x128xf32>
    tpu.vector_store %arg9[%c4_181, %c0_182, %c0_183], %324 {strides = array<i32>} : memref<16x24x128xf32, #tpu.memory_space<vmem>>, vector<1x24x128xf32>,
    %325 = vector.extract_strided_slice %298 {offsets = [0, 80], sizes = [24, 16], strides = [1, 1]} : vector<24x256xf32> to vector<24x16xf32>
    %cst_184 = arith.constant dense<0.000000e+00> : vector<24x128xf32>
    %326 = tpu.matmul %325, %299, %cst_184 {dimension_numbers = #tpu.dot_dimension_numbers<[1], [0], [0], [1], [0, 0, 1, 1], [], []>} : vector<24x16xf32>, vector<16x128xf32>, vector<24x128xf32> -> vector<24x128xf32>
    %c5_185 = arith.constant 5 : index
    %c0_186 = arith.constant 0 : index
    %c0_187 = arith.constant 0 : index
    %327 = vector.load %arg9[%c5_185, %c0_186, %c0_187] : memref<16x24x128xf32, #tpu.memory_space<vmem>>, vector<1x24x128xf32>
    %328 = vector.shape_cast %327 : vector<1x24x128xf32> to vector<24x128xf32>
    %329 = vector.shape_cast %326 : vector<24x128xf32> to vector<1x24x128xf32>
    tpu.vector_store %arg9[%c5_185, %c0_186, %c0_187], %329 {strides = array<i32>} : memref<16x24x128xf32, #tpu.memory_space<vmem>>, vector<1x24x128xf32>,
    %330 = vector.extract_strided_slice %298 {offsets = [0, 96], sizes = [24, 16], strides = [1, 1]} : vector<24x256xf32> to vector<24x16xf32>
    %cst_188 = arith.constant dense<0.000000e+00> : vector<24x128xf32>
    %331 = tpu.matmul %330, %299, %cst_188 {dimension_numbers = #tpu.dot_dimension_numbers<[1], [0], [0], [1], [0, 0, 1, 1], [], []>} : vector<24x16xf32>, vector<16x128xf32>, vector<24x128xf32> -> vector<24x128xf32>
    %c6_189 = arith.constant 6 : index
    %c0_190 = arith.constant 0 : index
    %c0_191 = arith.constant 0 : index
    %332 = vector.load %arg9[%c6_189, %c0_190, %c0_191] : memref<16x24x128xf32, #tpu.memory_space<vmem>>, vector<1x24x128xf32>
    %333 = vector.shape_cast %332 : vector<1x24x128xf32> to vector<24x128xf32>
    %334 = vector.shape_cast %331 : vector<24x128xf32> to vector<1x24x128xf32>
    tpu.vector_store %arg9[%c6_189, %c0_190, %c0_191], %334 {strides = array<i32>} : memref<16x24x128xf32, #tpu.memory_space<vmem>>, vector<1x24x128xf32>,
    %335 = vector.extract_strided_slice %298 {offsets = [0, 112], sizes = [24, 16], strides = [1, 1]} : vector<24x256xf32> to vector<24x16xf32>
    %cst_192 = arith.constant dense<0.000000e+00> : vector<24x128xf32>
    %336 = tpu.matmul %335, %299, %cst_192 {dimension_numbers = #tpu.dot_dimension_numbers<[1], [0], [0], [1], [0, 0, 1, 1], [], []>} : vector<24x16xf32>, vector<16x128xf32>, vector<24x128xf32> -> vector<24x128xf32>
    %c7_193 = arith.constant 7 : index
    %c0_194 = arith.constant 0 : index
    %c0_195 = arith.constant 0 : index
    %337 = vector.load %arg9[%c7_193, %c0_194, %c0_195] : memref<16x24x128xf32, #tpu.memory_space<vmem>>, vector<1x24x128xf32>
    %338 = vector.shape_cast %337 : vector<1x24x128xf32> to vector<24x128xf32>
    %339 = vector.shape_cast %336 : vector<24x128xf32> to vector<1x24x128xf32>
    tpu.vector_store %arg9[%c7_193, %c0_194, %c0_195], %339 {strides = array<i32>} : memref<16x24x128xf32, #tpu.memory_space<vmem>>, vector<1x24x128xf32>,
    %340 = vector.extract_strided_slice %298 {offsets = [0, 128], sizes = [24, 16], strides = [1, 1]} : vector<24x256xf32> to vector<24x16xf32>
    %cst_196 = arith.constant dense<0.000000e+00> : vector<24x128xf32>
    %341 = tpu.matmul %340, %299, %cst_196 {dimension_numbers = #tpu.dot_dimension_numbers<[1], [0], [0], [1], [0, 0, 1, 1], [], []>} : vector<24x16xf32>, vector<16x128xf32>, vector<24x128xf32> -> vector<24x128xf32>
    %c8_197 = arith.constant 8 : index
    %c0_198 = arith.constant 0 : index
    %c0_199 = arith.constant 0 : index
    %342 = vector.load %arg9[%c8_197, %c0_198, %c0_199] : memref<16x24x128xf32, #tpu.memory_space<vmem>>, vector<1x24x128xf32>
    %343 = vector.shape_cast %342 : vector<1x24x128xf32> to vector<24x128xf32>
    %344 = vector.shape_cast %341 : vector<24x128xf32> to vector<1x24x128xf32>
    tpu.vector_store %arg9[%c8_197, %c0_198, %c0_199], %344 {strides = array<i32>} : memref<16x24x128xf32, #tpu.memory_space<vmem>>, vector<1x24x128xf32>,
    %345 = vector.extract_strided_slice %298 {offsets = [0, 144], sizes = [24, 16], strides = [1, 1]} : vector<24x256xf32> to vector<24x16xf32>
    %cst_200 = arith.constant dense<0.000000e+00> : vector<24x128xf32>
    %346 = tpu.matmul %345, %299, %cst_200 {dimension_numbers = #tpu.dot_dimension_numbers<[1], [0], [0], [1], [0, 0, 1, 1], [], []>} : vector<24x16xf32>, vector<16x128xf32>, vector<24x128xf32> -> vector<24x128xf32>
    %c9_201 = arith.constant 9 : index
    %c0_202 = arith.constant 0 : index
    %c0_203 = arith.constant 0 : index
    %347 = vector.load %arg9[%c9_201, %c0_202, %c0_203] : memref<16x24x128xf32, #tpu.memory_space<vmem>>, vector<1x24x128xf32>
    %348 = vector.shape_cast %347 : vector<1x24x128xf32> to vector<24x128xf32>
    %349 = vector.shape_cast %346 : vector<24x128xf32> to vector<1x24x128xf32>
    tpu.vector_store %arg9[%c9_201, %c0_202, %c0_203], %349 {strides = array<i32>} : memref<16x24x128xf32, #tpu.memory_space<vmem>>, vector<1x24x128xf32>,
    %350 = vector.extract_strided_slice %298 {offsets = [0, 160], sizes = [24, 16], strides = [1, 1]} : vector<24x256xf32> to vector<24x16xf32>
    %cst_204 = arith.constant dense<0.000000e+00> : vector<24x128xf32>
    %351 = tpu.matmul %350, %299, %cst_204 {dimension_numbers = #tpu.dot_dimension_numbers<[1], [0], [0], [1], [0, 0, 1, 1], [], []>} : vector<24x16xf32>, vector<16x128xf32>, vector<24x128xf32> -> vector<24x128xf32>
    %c10_205 = arith.constant 10 : index
    %c0_206 = arith.constant 0 : index
    %c0_207 = arith.constant 0 : index
    %352 = vector.load %arg9[%c10_205, %c0_206, %c0_207] : memref<16x24x128xf32, #tpu.memory_space<vmem>>, vector<1x24x128xf32>
    %353 = vector.shape_cast %352 : vector<1x24x128xf32> to vector<24x128xf32>
    %354 = vector.shape_cast %351 : vector<24x128xf32> to vector<1x24x128xf32>
    tpu.vector_store %arg9[%c10_205, %c0_206, %c0_207], %354 {strides = array<i32>} : memref<16x24x128xf32, #tpu.memory_space<vmem>>, vector<1x24x128xf32>,
    %355 = vector.extract_strided_slice %298 {offsets = [0, 176], sizes = [24, 16], strides = [1, 1]} : vector<24x256xf32> to vector<24x16xf32>
    %cst_208 = arith.constant dense<0.000000e+00> : vector<24x128xf32>
    %356 = tpu.matmul %355, %299, %cst_208 {dimension_numbers = #tpu.dot_dimension_numbers<[1], [0], [0], [1], [0, 0, 1, 1], [], []>} : vector<24x16xf32>, vector<16x128xf32>, vector<24x128xf32> -> vector<24x128xf32>
    %c11_209 = arith.constant 11 : index
    %c0_210 = arith.constant 0 : index
    %c0_211 = arith.constant 0 : index
    %357 = vector.load %arg9[%c11_209, %c0_210, %c0_211] : memref<16x24x128xf32, #tpu.memory_space<vmem>>, vector<1x24x128xf32>
    %358 = vector.shape_cast %357 : vector<1x24x128xf32> to vector<24x128xf32>
    %359 = vector.shape_cast %356 : vector<24x128xf32> to vector<1x24x128xf32>
    tpu.vector_store %arg9[%c11_209, %c0_210, %c0_211], %359 {strides = array<i32>} : memref<16x24x128xf32, #tpu.memory_space<vmem>>, vector<1x24x128xf32>,
    %360 = vector.extract_strided_slice %298 {offsets = [0, 192], sizes = [24, 16], strides = [1, 1]} : vector<24x256xf32> to vector<24x16xf32>
    %cst_212 = arith.constant dense<0.000000e+00> : vector<24x128xf32>
    %361 = tpu.matmul %360, %299, %cst_212 {dimension_numbers = #tpu.dot_dimension_numbers<[1], [0], [0], [1], [0, 0, 1, 1], [], []>} : vector<24x16xf32>, vector<16x128xf32>, vector<24x128xf32> -> vector<24x128xf32>
    %c12_213 = arith.constant 12 : index
    %c0_214 = arith.constant 0 : index
    %c0_215 = arith.constant 0 : index
    %362 = vector.load %arg9[%c12_213, %c0_214, %c0_215] : memref<16x24x128xf32, #tpu.memory_space<vmem>>, vector<1x24x128xf32>
    %363 = vector.shape_cast %362 : vector<1x24x128xf32> to vector<24x128xf32>
    %364 = vector.shape_cast %361 : vector<24x128xf32> to vector<1x24x128xf32>
    tpu.vector_store %arg9[%c12_213, %c0_214, %c0_215], %364 {strides = array<i32>} : memref<16x24x128xf32, #tpu.memory_space<vmem>>, vector<1x24x128xf32>,
    %365 = vector.extract_strided_slice %298 {offsets = [0, 208], sizes = [24, 16], strides = [1, 1]} : vector<24x256xf32> to vector<24x16xf32>
    %cst_216 = arith.constant dense<0.000000e+00> : vector<24x128xf32>
    %366 = tpu.matmul %365, %299, %cst_216 {dimension_numbers = #tpu.dot_dimension_numbers<[1], [0], [0], [1], [0, 0, 1, 1], [], []>} : vector<24x16xf32>, vector<16x128xf32>, vector<24x128xf32> -> vector<24x128xf32>
    %c13_217 = arith.constant 13 : index
    %c0_218 = arith.constant 0 : index
    %c0_219 = arith.constant 0 : index
    %367 = vector.load %arg9[%c13_217, %c0_218, %c0_219] : memref<16x24x128xf32, #tpu.memory_space<vmem>>, vector<1x24x128xf32>
    %368 = vector.shape_cast %367 : vector<1x24x128xf32> to vector<24x128xf32>
    %369 = vector.shape_cast %366 : vector<24x128xf32> to vector<1x24x128xf32>
    tpu.vector_store %arg9[%c13_217, %c0_218, %c0_219], %369 {strides = array<i32>} : memref<16x24x128xf32, #tpu.memory_space<vmem>>, vector<1x24x128xf32>,
    %370 = vector.extract_strided_slice %298 {offsets = [0, 224], sizes = [24, 16], strides = [1, 1]} : vector<24x256xf32> to vector<24x16xf32>
    %cst_220 = arith.constant dense<0.000000e+00> : vector<24x128xf32>
    %371 = tpu.matmul %370, %299, %cst_220 {dimension_numbers = #tpu.dot_dimension_numbers<[1], [0], [0], [1], [0, 0, 1, 1], [], []>} : vector<24x16xf32>, vector<16x128xf32>, vector<24x128xf32> -> vector<24x128xf32>
    %c14_221 = arith.constant 14 : index
    %c0_222 = arith.constant 0 : index
    %c0_223 = arith.constant 0 : index
    %372 = vector.load %arg9[%c14_221, %c0_222, %c0_223] : memref<16x24x128xf32, #tpu.memory_space<vmem>>, vector<1x24x128xf32>
    %373 = vector.shape_cast %372 : vector<1x24x128xf32> to vector<24x128xf32>
    %374 = vector.shape_cast %371 : vector<24x128xf32> to vector<1x24x128xf32>
    tpu.vector_store %arg9[%c14_221, %c0_222, %c0_223], %374 {strides = array<i32>} : memref<16x24x128xf32, #tpu.memory_space<vmem>>, vector<1x24x128xf32>,
    %375 = vector.extract_strided_slice %298 {offsets = [0, 240], sizes = [24, 16], strides = [1, 1]} : vector<24x256xf32> to vector<24x16xf32>
    %cst_224 = arith.constant dense<0.000000e+00> : vector<24x128xf32>
    %376 = tpu.matmul %375, %299, %cst_224 {dimension_numbers = #tpu.dot_dimension_numbers<[1], [0], [0], [1], [0, 0, 1, 1], [], []>} : vector<24x16xf32>, vector<16x128xf32>, vector<24x128xf32> -> vector<24x128xf32>
    %c15_225 = arith.constant 15 : index
    %c0_226 = arith.constant 0 : index
    %c0_227 = arith.constant 0 : index
    %377 = vector.load %arg9[%c15_225, %c0_226, %c0_227] : memref<16x24x128xf32, #tpu.memory_space<vmem>>, vector<1x24x128xf32>
    %378 = vector.shape_cast %377 : vector<1x24x128xf32> to vector<24x128xf32>
    %379 = vector.shape_cast %376 : vector<24x128xf32> to vector<1x24x128xf32>
    tpu.vector_store %arg9[%c15_225, %c0_226, %c0_227], %379 {strides = array<i32>} : memref<16x24x128xf32, #tpu.memory_space<vmem>>, vector<1x24x128xf32>,
    %c0_228 = arith.constant 0 : index
    %c0_229 = arith.constant 0 : index
    %380 = vector.load %arg5[%c0_228, %c0_229] : memref<128x16xf32, #tpu.memory_space<vmem>>, vector<128x16xf32>
    %c0_230 = arith.constant 0 : index
    %c0_231 = arith.constant 0 : index
    %c0_232 = arith.constant 0 : index
    %381 = vector.load %arg9[%c0_230, %c0_231, %c0_232] : memref<16x24x128xf32, #tpu.memory_space<vmem>>, vector<16x1x128xf32>
    %382 = vector.shape_cast %381 : vector<16x1x128xf32> to vector<16x128xf32>
    %cst_233 = arith.constant dense<0.000000e+00> : vector<128x128xf32>
    %383 = tpu.matmul %380, %382, %cst_233 {dimension_numbers = #tpu.dot_dimension_numbers<[1], [0], [0], [1], [0, 0, 1, 1], [], []>} : vector<128x16xf32>, vector<16x128xf32>, vector<128x128xf32> -> vector<128x128xf32>
    %c0_234 = arith.constant 0 : index
    %c0_235 = arith.constant 0 : index
    %c0_236 = arith.constant 0 : index
    %c0_237 = arith.constant 0 : index
    %384 = vector.load %arg7[%c0_234, %c0_235, %c0_236, %c0_237] : memref<1x24x128x128xf32, #tpu.memory_space<vmem>>, vector<1x1x128x128xf32>
    %385 = vector.shape_cast %384 : vector<1x1x128x128xf32> to vector<128x128xf32>
    %386 = vector.shape_cast %383 : vector<128x128xf32> to vector<1x1x128x128xf32>
    tpu.vector_store %arg7[%c0_234, %c0_235, %c0_236, %c0_237], %386 {strides = array<i32>} : memref<1x24x128x128xf32, #tpu.memory_space<vmem>>, vector<1x1x128x128xf32>,
    %c0_238 = arith.constant 0 : index
    %c1_239 = arith.constant 1 : index
    %c0_240 = arith.constant 0 : index
    %387 = vector.load %arg9[%c0_238, %c1_239, %c0_240] : memref<16x24x128xf32, #tpu.memory_space<vmem>>, vector<16x1x128xf32>
    %388 = vector.shape_cast %387 : vector<16x1x128xf32> to vector<16x128xf32>
    %cst_241 = arith.constant dense<0.000000e+00> : vector<128x128xf32>
    %389 = tpu.matmul %380, %388, %cst_241 {dimension_numbers = #tpu.dot_dimension_numbers<[1], [0], [0], [1], [0, 0, 1, 1], [], []>} : vector<128x16xf32>, vector<16x128xf32>, vector<128x128xf32> -> vector<128x128xf32>
    %c0_242 = arith.constant 0 : index
    %c1_243 = arith.constant 1 : index
    %c0_244 = arith.constant 0 : index
    %c0_245 = arith.constant 0 : index
    %390 = vector.load %arg7[%c0_242, %c1_243, %c0_244, %c0_245] : memref<1x24x128x128xf32, #tpu.memory_space<vmem>>, vector<1x1x128x128xf32>
    %391 = vector.shape_cast %390 : vector<1x1x128x128xf32> to vector<128x128xf32>
    %392 = vector.shape_cast %389 : vector<128x128xf32> to vector<1x1x128x128xf32>
    tpu.vector_store %arg7[%c0_242, %c1_243, %c0_244, %c0_245], %392 {strides = array<i32>} : memref<1x24x128x128xf32, #tpu.memory_space<vmem>>, vector<1x1x128x128xf32>,
    %c0_246 = arith.constant 0 : index
    %c2_247 = arith.constant 2 : index
    %c0_248 = arith.constant 0 : index
    %393 = vector.load %arg9[%c0_246, %c2_247, %c0_248] : memref<16x24x128xf32, #tpu.memory_space<vmem>>, vector<16x1x128xf32>
    %394 = vector.shape_cast %393 : vector<16x1x128xf32> to vector<16x128xf32>
    %cst_249 = arith.constant dense<0.000000e+00> : vector<128x128xf32>
    %395 = tpu.matmul %380, %394, %cst_249 {dimension_numbers = #tpu.dot_dimension_numbers<[1], [0], [0], [1], [0, 0, 1, 1], [], []>} : vector<128x16xf32>, vector<16x128xf32>, vector<128x128xf32> -> vector<128x128xf32>
    %c0_250 = arith.constant 0 : index
    %c2_251 = arith.constant 2 : index
    %c0_252 = arith.constant 0 : index
    %c0_253 = arith.constant 0 : index
    %396 = vector.load %arg7[%c0_250, %c2_251, %c0_252, %c0_253] : memref<1x24x128x128xf32, #tpu.memory_space<vmem>>, vector<1x1x128x128xf32>
    %397 = vector.shape_cast %396 : vector<1x1x128x128xf32> to vector<128x128xf32>
    %398 = vector.shape_cast %395 : vector<128x128xf32> to vector<1x1x128x128xf32>
    tpu.vector_store %arg7[%c0_250, %c2_251, %c0_252, %c0_253], %398 {strides = array<i32>} : memref<1x24x128x128xf32, #tpu.memory_space<vmem>>, vector<1x1x128x128xf32>,
    %c0_254 = arith.constant 0 : index
    %c3_255 = arith.constant 3 : index
    %c0_256 = arith.constant 0 : index
    %399 = vector.load %arg9[%c0_254, %c3_255, %c0_256] : memref<16x24x128xf32, #tpu.memory_space<vmem>>, vector<16x1x128xf32>
    %400 = vector.shape_cast %399 : vector<16x1x128xf32> to vector<16x128xf32>
    %cst_257 = arith.constant dense<0.000000e+00> : vector<128x128xf32>
    %401 = tpu.matmul %380, %400, %cst_257 {dimension_numbers = #tpu.dot_dimension_numbers<[1], [0], [0], [1], [0, 0, 1, 1], [], []>} : vector<128x16xf32>, vector<16x128xf32>, vector<128x128xf32> -> vector<128x128xf32>
    %c0_258 = arith.constant 0 : index
    %c3_259 = arith.constant 3 : index
    %c0_260 = arith.constant 0 : index
    %c0_261 = arith.constant 0 : index
    %402 = vector.load %arg7[%c0_258, %c3_259, %c0_260, %c0_261] : memref<1x24x128x128xf32, #tpu.memory_space<vmem>>, vector<1x1x128x128xf32>
    %403 = vector.shape_cast %402 : vector<1x1x128x128xf32> to vector<128x128xf32>
    %404 = vector.shape_cast %401 : vector<128x128xf32> to vector<1x1x128x128xf32>
    tpu.vector_store %arg7[%c0_258, %c3_259, %c0_260, %c0_261], %404 {strides = array<i32>} : memref<1x24x128x128xf32, #tpu.memory_space<vmem>>, vector<1x1x128x128xf32>,
    %c0_262 = arith.constant 0 : index
    %c4_263 = arith.constant 4 : index
    %c0_264 = arith.constant 0 : index
    %405 = vector.load %arg9[%c0_262, %c4_263, %c0_264] : memref<16x24x128xf32, #tpu.memory_space<vmem>>, vector<16x1x128xf32>
    %406 = vector.shape_cast %405 : vector<16x1x128xf32> to vector<16x128xf32>
    %cst_265 = arith.constant dense<0.000000e+00> : vector<128x128xf32>
    %407 = tpu.matmul %380, %406, %cst_265 {dimension_numbers = #tpu.dot_dimension_numbers<[1], [0], [0], [1], [0, 0, 1, 1], [], []>} : vector<128x16xf32>, vector<16x128xf32>, vector<128x128xf32> -> vector<128x128xf32>
    %c0_266 = arith.constant 0 : index
    %c4_267 = arith.constant 4 : index
    %c0_268 = arith.constant 0 : index
    %c0_269 = arith.constant 0 : index
    %408 = vector.load %arg7[%c0_266, %c4_267, %c0_268, %c0_269] : memref<1x24x128x128xf32, #tpu.memory_space<vmem>>, vector<1x1x128x128xf32>
    %409 = vector.shape_cast %408 : vector<1x1x128x128xf32> to vector<128x128xf32>
    %410 = vector.shape_cast %407 : vector<128x128xf32> to vector<1x1x128x128xf32>
    tpu.vector_store %arg7[%c0_266, %c4_267, %c0_268, %c0_269], %410 {strides = array<i32>} : memref<1x24x128x128xf32, #tpu.memory_space<vmem>>, vector<1x1x128x128xf32>,
    %c0_270 = arith.constant 0 : index
    %c5_271 = arith.constant 5 : index
    %c0_272 = arith.constant 0 : index
    %411 = vector.load %arg9[%c0_270, %c5_271, %c0_272] : memref<16x24x128xf32, #tpu.memory_space<vmem>>, vector<16x1x128xf32>
    %412 = vector.shape_cast %411 : vector<16x1x128xf32> to vector<16x128xf32>
    %cst_273 = arith.constant dense<0.000000e+00> : vector<128x128xf32>
    %413 = tpu.matmul %380, %412, %cst_273 {dimension_numbers = #tpu.dot_dimension_numbers<[1], [0], [0], [1], [0, 0, 1, 1], [], []>} : vector<128x16xf32>, vector<16x128xf32>, vector<128x128xf32> -> vector<128x128xf32>
    %c0_274 = arith.constant 0 : index
    %c5_275 = arith.constant 5 : index
    %c0_276 = arith.constant 0 : index
    %c0_277 = arith.constant 0 : index
    %414 = vector.load %arg7[%c0_274, %c5_275, %c0_276, %c0_277] : memref<1x24x128x128xf32, #tpu.memory_space<vmem>>, vector<1x1x128x128xf32>
    %415 = vector.shape_cast %414 : vector<1x1x128x128xf32> to vector<128x128xf32>
    %416 = vector.shape_cast %413 : vector<128x128xf32> to vector<1x1x128x128xf32>
    tpu.vector_store %arg7[%c0_274, %c5_275, %c0_276, %c0_277], %416 {strides = array<i32>} : memref<1x24x128x128xf32, #tpu.memory_space<vmem>>, vector<1x1x128x128xf32>,
    %c0_278 = arith.constant 0 : index
    %c6_279 = arith.constant 6 : index
    %c0_280 = arith.constant 0 : index
    %417 = vector.load %arg9[%c0_278, %c6_279, %c0_280] : memref<16x24x128xf32, #tpu.memory_space<vmem>>, vector<16x1x128xf32>
    %418 = vector.shape_cast %417 : vector<16x1x128xf32> to vector<16x128xf32>
    %cst_281 = arith.constant dense<0.000000e+00> : vector<128x128xf32>
    %419 = tpu.matmul %380, %418, %cst_281 {dimension_numbers = #tpu.dot_dimension_numbers<[1], [0], [0], [1], [0, 0, 1, 1], [], []>} : vector<128x16xf32>, vector<16x128xf32>, vector<128x128xf32> -> vector<128x128xf32>
    %c0_282 = arith.constant 0 : index
    %c6_283 = arith.constant 6 : index
    %c0_284 = arith.constant 0 : index
    %c0_285 = arith.constant 0 : index
    %420 = vector.load %arg7[%c0_282, %c6_283, %c0_284, %c0_285] : memref<1x24x128x128xf32, #tpu.memory_space<vmem>>, vector<1x1x128x128xf32>
    %421 = vector.shape_cast %420 : vector<1x1x128x128xf32> to vector<128x128xf32>
    %422 = vector.shape_cast %419 : vector<128x128xf32> to vector<1x1x128x128xf32>
    tpu.vector_store %arg7[%c0_282, %c6_283, %c0_284, %c0_285], %422 {strides = array<i32>} : memref<1x24x128x128xf32, #tpu.memory_space<vmem>>, vector<1x1x128x128xf32>,
    %c0_286 = arith.constant 0 : index
    %c7_287 = arith.constant 7 : index
    %c0_288 = arith.constant 0 : index
    %423 = vector.load %arg9[%c0_286, %c7_287, %c0_288] : memref<16x24x128xf32, #tpu.memory_space<vmem>>, vector<16x1x128xf32>
    %424 = vector.shape_cast %423 : vector<16x1x128xf32> to vector<16x128xf32>
    %cst_289 = arith.constant dense<0.000000e+00> : vector<128x128xf32>
    %425 = tpu.matmul %380, %424, %cst_289 {dimension_numbers = #tpu.dot_dimension_numbers<[1], [0], [0], [1], [0, 0, 1, 1], [], []>} : vector<128x16xf32>, vector<16x128xf32>, vector<128x128xf32> -> vector<128x128xf32>
    %c0_290 = arith.constant 0 : index
    %c7_291 = arith.constant 7 : index
    %c0_292 = arith.constant 0 : index
    %c0_293 = arith.constant 0 : index
    %426 = vector.load %arg7[%c0_290, %c7_291, %c0_292, %c0_293] : memref<1x24x128x128xf32, #tpu.memory_space<vmem>>, vector<1x1x128x128xf32>
    %427 = vector.shape_cast %426 : vector<1x1x128x128xf32> to vector<128x128xf32>
    %428 = vector.shape_cast %425 : vector<128x128xf32> to vector<1x1x128x128xf32>
    tpu.vector_store %arg7[%c0_290, %c7_291, %c0_292, %c0_293], %428 {strides = array<i32>} : memref<1x24x128x128xf32, #tpu.memory_space<vmem>>, vector<1x1x128x128xf32>,
    %c0_294 = arith.constant 0 : index
    %c8_295 = arith.constant 8 : index
    %c0_296 = arith.constant 0 : index
    %429 = vector.load %arg9[%c0_294, %c8_295, %c0_296] : memref<16x24x128xf32, #tpu.memory_space<vmem>>, vector<16x1x128xf32>
    %430 = vector.shape_cast %429 : vector<16x1x128xf32> to vector<16x128xf32>
    %cst_297 = arith.constant dense<0.000000e+00> : vector<128x128xf32>
    %431 = tpu.matmul %380, %430, %cst_297 {dimension_numbers = #tpu.dot_dimension_numbers<[1], [0], [0], [1], [0, 0, 1, 1], [], []>} : vector<128x16xf32>, vector<16x128xf32>, vector<128x128xf32> -> vector<128x128xf32>
    %c0_298 = arith.constant 0 : index
    %c8_299 = arith.constant 8 : index
    %c0_300 = arith.constant 0 : index
    %c0_301 = arith.constant 0 : index
    %432 = vector.load %arg7[%c0_298, %c8_299, %c0_300, %c0_301] : memref<1x24x128x128xf32, #tpu.memory_space<vmem>>, vector<1x1x128x128xf32>
    %433 = vector.shape_cast %432 : vector<1x1x128x128xf32> to vector<128x128xf32>
    %434 = vector.shape_cast %431 : vector<128x128xf32> to vector<1x1x128x128xf32>
    tpu.vector_store %arg7[%c0_298, %c8_299, %c0_300, %c0_301], %434 {strides = array<i32>} : memref<1x24x128x128xf32, #tpu.memory_space<vmem>>, vector<1x1x128x128xf32>,
    %c0_302 = arith.constant 0 : index
    %c9_303 = arith.constant 9 : index
    %c0_304 = arith.constant 0 : index
    %435 = vector.load %arg9[%c0_302, %c9_303, %c0_304] : memref<16x24x128xf32, #tpu.memory_space<vmem>>, vector<16x1x128xf32>
    %436 = vector.shape_cast %435 : vector<16x1x128xf32> to vector<16x128xf32>
    %cst_305 = arith.constant dense<0.000000e+00> : vector<128x128xf32>
    %437 = tpu.matmul %380, %436, %cst_305 {dimension_numbers = #tpu.dot_dimension_numbers<[1], [0], [0], [1], [0, 0, 1, 1], [], []>} : vector<128x16xf32>, vector<16x128xf32>, vector<128x128xf32> -> vector<128x128xf32>
    %c0_306 = arith.constant 0 : index
    %c9_307 = arith.constant 9 : index
    %c0_308 = arith.constant 0 : index
    %c0_309 = arith.constant 0 : index
    %438 = vector.load %arg7[%c0_306, %c9_307, %c0_308, %c0_309] : memref<1x24x128x128xf32, #tpu.memory_space<vmem>>, vector<1x1x128x128xf32>
    %439 = vector.shape_cast %438 : vector<1x1x128x128xf32> to vector<128x128xf32>
    %440 = vector.shape_cast %437 : vector<128x128xf32> to vector<1x1x128x128xf32>
    tpu.vector_store %arg7[%c0_306, %c9_307, %c0_308, %c0_309], %440 {strides = array<i32>} : memref<1x24x128x128xf32, #tpu.memory_space<vmem>>, vector<1x1x128x128xf32>,
    %c0_310 = arith.constant 0 : index
    %c10_311 = arith.constant 10 : index
    %c0_312 = arith.constant 0 : index
    %441 = vector.load %arg9[%c0_310, %c10_311, %c0_312] : memref<16x24x128xf32, #tpu.memory_space<vmem>>, vector<16x1x128xf32>
    %442 = vector.shape_cast %441 : vector<16x1x128xf32> to vector<16x128xf32>
    %cst_313 = arith.constant dense<0.000000e+00> : vector<128x128xf32>
    %443 = tpu.matmul %380, %442, %cst_313 {dimension_numbers = #tpu.dot_dimension_numbers<[1], [0], [0], [1], [0, 0, 1, 1], [], []>} : vector<128x16xf32>, vector<16x128xf32>, vector<128x128xf32> -> vector<128x128xf32>
    %c0_314 = arith.constant 0 : index
    %c10_315 = arith.constant 10 : index
    %c0_316 = arith.constant 0 : index
    %c0_317 = arith.constant 0 : index
    %444 = vector.load %arg7[%c0_314, %c10_315, %c0_316, %c0_317] : memref<1x24x128x128xf32, #tpu.memory_space<vmem>>, vector<1x1x128x128xf32>
    %445 = vector.shape_cast %444 : vector<1x1x128x128xf32> to vector<128x128xf32>
    %446 = vector.shape_cast %443 : vector<128x128xf32> to vector<1x1x128x128xf32>
    tpu.vector_store %arg7[%c0_314, %c10_315, %c0_316, %c0_317], %446 {strides = array<i32>} : memref<1x24x128x128xf32, #tpu.memory_space<vmem>>, vector<1x1x128x128xf32>,
    %c0_318 = arith.constant 0 : index
    %c11_319 = arith.constant 11 : index
    %c0_320 = arith.constant 0 : index
    %447 = vector.load %arg9[%c0_318, %c11_319, %c0_320] : memref<16x24x128xf32, #tpu.memory_space<vmem>>, vector<16x1x128xf32>
    %448 = vector.shape_cast %447 : vector<16x1x128xf32> to vector<16x128xf32>
    %cst_321 = arith.constant dense<0.000000e+00> : vector<128x128xf32>
    %449 = tpu.matmul %380, %448, %cst_321 {dimension_numbers = #tpu.dot_dimension_numbers<[1], [0], [0], [1], [0, 0, 1, 1], [], []>} : vector<128x16xf32>, vector<16x128xf32>, vector<128x128xf32> -> vector<128x128xf32>
    %c0_322 = arith.constant 0 : index
    %c11_323 = arith.constant 11 : index
    %c0_324 = arith.constant 0 : index
    %c0_325 = arith.constant 0 : index
    %450 = vector.load %arg7[%c0_322, %c11_323, %c0_324, %c0_325] : memref<1x24x128x128xf32, #tpu.memory_space<vmem>>, vector<1x1x128x128xf32>
    %451 = vector.shape_cast %450 : vector<1x1x128x128xf32> to vector<128x128xf32>
    %452 = vector.shape_cast %449 : vector<128x128xf32> to vector<1x1x128x128xf32>
    tpu.vector_store %arg7[%c0_322, %c11_323, %c0_324, %c0_325], %452 {strides = array<i32>} : memref<1x24x128x128xf32, #tpu.memory_space<vmem>>, vector<1x1x128x128xf32>,
    %c0_326 = arith.constant 0 : index
    %c12_327 = arith.constant 12 : index
    %c0_328 = arith.constant 0 : index
    %453 = vector.load %arg9[%c0_326, %c12_327, %c0_328] : memref<16x24x128xf32, #tpu.memory_space<vmem>>, vector<16x1x128xf32>
    %454 = vector.shape_cast %453 : vector<16x1x128xf32> to vector<16x128xf32>
    %cst_329 = arith.constant dense<0.000000e+00> : vector<128x128xf32>
    %455 = tpu.matmul %380, %454, %cst_329 {dimension_numbers = #tpu.dot_dimension_numbers<[1], [0], [0], [1], [0, 0, 1, 1], [], []>} : vector<128x16xf32>, vector<16x128xf32>, vector<128x128xf32> -> vector<128x128xf32>
    %c0_330 = arith.constant 0 : index
    %c12_331 = arith.constant 12 : index
    %c0_332 = arith.constant 0 : index
    %c0_333 = arith.constant 0 : index
    %456 = vector.load %arg7[%c0_330, %c12_331, %c0_332, %c0_333] : memref<1x24x128x128xf32, #tpu.memory_space<vmem>>, vector<1x1x128x128xf32>
    %457 = vector.shape_cast %456 : vector<1x1x128x128xf32> to vector<128x128xf32>
    %458 = vector.shape_cast %455 : vector<128x128xf32> to vector<1x1x128x128xf32>
    tpu.vector_store %arg7[%c0_330, %c12_331, %c0_332, %c0_333], %458 {strides = array<i32>} : memref<1x24x128x128xf32, #tpu.memory_space<vmem>>, vector<1x1x128x128xf32>,
    %c0_334 = arith.constant 0 : index
    %c13_335 = arith.constant 13 : index
    %c0_336 = arith.constant 0 : index
    %459 = vector.load %arg9[%c0_334, %c13_335, %c0_336] : memref<16x24x128xf32, #tpu.memory_space<vmem>>, vector<16x1x128xf32>
    %460 = vector.shape_cast %459 : vector<16x1x128xf32> to vector<16x128xf32>
    %cst_337 = arith.constant dense<0.000000e+00> : vector<128x128xf32>
    %461 = tpu.matmul %380, %460, %cst_337 {dimension_numbers = #tpu.dot_dimension_numbers<[1], [0], [0], [1], [0, 0, 1, 1], [], []>} : vector<128x16xf32>, vector<16x128xf32>, vector<128x128xf32> -> vector<128x128xf32>
    %c0_338 = arith.constant 0 : index
    %c13_339 = arith.constant 13 : index
    %c0_340 = arith.constant 0 : index
    %c0_341 = arith.constant 0 : index
    %462 = vector.load %arg7[%c0_338, %c13_339, %c0_340, %c0_341] : memref<1x24x128x128xf32, #tpu.memory_space<vmem>>, vector<1x1x128x128xf32>
    %463 = vector.shape_cast %462 : vector<1x1x128x128xf32> to vector<128x128xf32>
    %464 = vector.shape_cast %461 : vector<128x128xf32> to vector<1x1x128x128xf32>
    tpu.vector_store %arg7[%c0_338, %c13_339, %c0_340, %c0_341], %464 {strides = array<i32>} : memref<1x24x128x128xf32, #tpu.memory_space<vmem>>, vector<1x1x128x128xf32>,
    %c0_342 = arith.constant 0 : index
    %c14_343 = arith.constant 14 : index
    %c0_344 = arith.constant 0 : index
    %465 = vector.load %arg9[%c0_342, %c14_343, %c0_344] : memref<16x24x128xf32, #tpu.memory_space<vmem>>, vector<16x1x128xf32>
    %466 = vector.shape_cast %465 : vector<16x1x128xf32> to vector<16x128xf32>
    %cst_345 = arith.constant dense<0.000000e+00> : vector<128x128xf32>
    %467 = tpu.matmul %380, %466, %cst_345 {dimension_numbers = #tpu.dot_dimension_numbers<[1], [0], [0], [1], [0, 0, 1, 1], [], []>} : vector<128x16xf32>, vector<16x128xf32>, vector<128x128xf32> -> vector<128x128xf32>
    %c0_346 = arith.constant 0 : index
    %c14_347 = arith.constant 14 : index
    %c0_348 = arith.constant 0 : index
    %c0_349 = arith.constant 0 : index
    %468 = vector.load %arg7[%c0_346, %c14_347, %c0_348, %c0_349] : memref<1x24x128x128xf32, #tpu.memory_space<vmem>>, vector<1x1x128x128xf32>
    %469 = vector.shape_cast %468 : vector<1x1x128x128xf32> to vector<128x128xf32>
    %470 = vector.shape_cast %467 : vector<128x128xf32> to vector<1x1x128x128xf32>
    tpu.vector_store %arg7[%c0_346, %c14_347, %c0_348, %c0_349], %470 {strides = array<i32>} : memref<1x24x128x128xf32, #tpu.memory_space<vmem>>, vector<1x1x128x128xf32>,
    %c0_350 = arith.constant 0 : index
    %c15_351 = arith.constant 15 : index
    %c0_352 = arith.constant 0 : index
    %471 = vector.load %arg9[%c0_350, %c15_351, %c0_352] : memref<16x24x128xf32, #tpu.memory_space<vmem>>, vector<16x1x128xf32>
    %472 = vector.shape_cast %471 : vector<16x1x128xf32> to vector<16x128xf32>
    %cst_353 = arith.constant dense<0.000000e+00> : vector<128x128xf32>
    %473 = tpu.matmul %380, %472, %cst_353 {dimension_numbers = #tpu.dot_dimension_numbers<[1], [0], [0], [1], [0, 0, 1, 1], [], []>} : vector<128x16xf32>, vector<16x128xf32>, vector<128x128xf32> -> vector<128x128xf32>
    %c0_354 = arith.constant 0 : index
    %c15_355 = arith.constant 15 : index
    %c0_356 = arith.constant 0 : index
    %c0_357 = arith.constant 0 : index
    %474 = vector.load %arg7[%c0_354, %c15_355, %c0_356, %c0_357] : memref<1x24x128x128xf32, #tpu.memory_space<vmem>>, vector<1x1x128x128xf32>
    %475 = vector.shape_cast %474 : vector<1x1x128x128xf32> to vector<128x128xf32>
    %476 = vector.shape_cast %473 : vector<128x128xf32> to vector<1x1x128x128xf32>
    tpu.vector_store %arg7[%c0_354, %c15_355, %c0_356, %c0_357], %476 {strides = array<i32>} : memref<1x24x128x128xf32, #tpu.memory_space<vmem>>, vector<1x1x128x128xf32>,
    %c0_358 = arith.constant 0 : index
    %c16_359 = arith.constant 16 : index
    %c0_360 = arith.constant 0 : index
    %477 = vector.load %arg9[%c0_358, %c16_359, %c0_360] : memref<16x24x128xf32, #tpu.memory_space<vmem>>, vector<16x1x128xf32>
    %478 = vector.shape_cast %477 : vector<16x1x128xf32> to vector<16x128xf32>
    %cst_361 = arith.constant dense<0.000000e+00> : vector<128x128xf32>
    %479 = tpu.matmul %380, %478, %cst_361 {dimension_numbers = #tpu.dot_dimension_numbers<[1], [0], [0], [1], [0, 0, 1, 1], [], []>} : vector<128x16xf32>, vector<16x128xf32>, vector<128x128xf32> -> vector<128x128xf32>
    %c0_362 = arith.constant 0 : index
    %c16_363 = arith.constant 16 : index
    %c0_364 = arith.constant 0 : index
    %c0_365 = arith.constant 0 : index
    %480 = vector.load %arg7[%c0_362, %c16_363, %c0_364, %c0_365] : memref<1x24x128x128xf32, #tpu.memory_space<vmem>>, vector<1x1x128x128xf32>
    %481 = vector.shape_cast %480 : vector<1x1x128x128xf32> to vector<128x128xf32>
    %482 = vector.shape_cast %479 : vector<128x128xf32> to vector<1x1x128x128xf32>
    tpu.vector_store %arg7[%c0_362, %c16_363, %c0_364, %c0_365], %482 {strides = array<i32>} : memref<1x24x128x128xf32, #tpu.memory_space<vmem>>, vector<1x1x128x128xf32>,
    %c0_366 = arith.constant 0 : index
    %c17_367 = arith.constant 17 : index
    %c0_368 = arith.constant 0 : index
    %483 = vector.load %arg9[%c0_366, %c17_367, %c0_368] : memref<16x24x128xf32, #tpu.memory_space<vmem>>, vector<16x1x128xf32>
    %484 = vector.shape_cast %483 : vector<16x1x128xf32> to vector<16x128xf32>
    %cst_369 = arith.constant dense<0.000000e+00> : vector<128x128xf32>
    %485 = tpu.matmul %380, %484, %cst_369 {dimension_numbers = #tpu.dot_dimension_numbers<[1], [0], [0], [1], [0, 0, 1, 1], [], []>} : vector<128x16xf32>, vector<16x128xf32>, vector<128x128xf32> -> vector<128x128xf32>
    %c0_370 = arith.constant 0 : index
    %c17_371 = arith.constant 17 : index
    %c0_372 = arith.constant 0 : index
    %c0_373 = arith.constant 0 : index
    %486 = vector.load %arg7[%c0_370, %c17_371, %c0_372, %c0_373] : memref<1x24x128x128xf32, #tpu.memory_space<vmem>>, vector<1x1x128x128xf32>
    %487 = vector.shape_cast %486 : vector<1x1x128x128xf32> to vector<128x128xf32>
    %488 = vector.shape_cast %485 : vector<128x128xf32> to vector<1x1x128x128xf32>
    tpu.vector_store %arg7[%c0_370, %c17_371, %c0_372, %c0_373], %488 {strides = array<i32>} : memref<1x24x128x128xf32, #tpu.memory_space<vmem>>, vector<1x1x128x128xf32>,
    %c0_374 = arith.constant 0 : index
    %c18_375 = arith.constant 18 : index
    %c0_376 = arith.constant 0 : index
    %489 = vector.load %arg9[%c0_374, %c18_375, %c0_376] : memref<16x24x128xf32, #tpu.memory_space<vmem>>, vector<16x1x128xf32>
    %490 = vector.shape_cast %489 : vector<16x1x128xf32> to vector<16x128xf32>
    %cst_377 = arith.constant dense<0.000000e+00> : vector<128x128xf32>
    %491 = tpu.matmul %380, %490, %cst_377 {dimension_numbers = #tpu.dot_dimension_numbers<[1], [0], [0], [1], [0, 0, 1, 1], [], []>} : vector<128x16xf32>, vector<16x128xf32>, vector<128x128xf32> -> vector<128x128xf32>
    %c0_378 = arith.constant 0 : index
    %c18_379 = arith.constant 18 : index
    %c0_380 = arith.constant 0 : index
    %c0_381 = arith.constant 0 : index
    %492 = vector.load %arg7[%c0_378, %c18_379, %c0_380, %c0_381] : memref<1x24x128x128xf32, #tpu.memory_space<vmem>>, vector<1x1x128x128xf32>
    %493 = vector.shape_cast %492 : vector<1x1x128x128xf32> to vector<128x128xf32>
    %494 = vector.shape_cast %491 : vector<128x128xf32> to vector<1x1x128x128xf32>
    tpu.vector_store %arg7[%c0_378, %c18_379, %c0_380, %c0_381], %494 {strides = array<i32>} : memref<1x24x128x128xf32, #tpu.memory_space<vmem>>, vector<1x1x128x128xf32>,
    %c0_382 = arith.constant 0 : index
    %c19_383 = arith.constant 19 : index
    %c0_384 = arith.constant 0 : index
    %495 = vector.load %arg9[%c0_382, %c19_383, %c0_384] : memref<16x24x128xf32, #tpu.memory_space<vmem>>, vector<16x1x128xf32>
    %496 = vector.shape_cast %495 : vector<16x1x128xf32> to vector<16x128xf32>
    %cst_385 = arith.constant dense<0.000000e+00> : vector<128x128xf32>
    %497 = tpu.matmul %380, %496, %cst_385 {dimension_numbers = #tpu.dot_dimension_numbers<[1], [0], [0], [1], [0, 0, 1, 1], [], []>} : vector<128x16xf32>, vector<16x128xf32>, vector<128x128xf32> -> vector<128x128xf32>
    %c0_386 = arith.constant 0 : index
    %c19_387 = arith.constant 19 : index
    %c0_388 = arith.constant 0 : index
    %c0_389 = arith.constant 0 : index
    %498 = vector.load %arg7[%c0_386, %c19_387, %c0_388, %c0_389] : memref<1x24x128x128xf32, #tpu.memory_space<vmem>>, vector<1x1x128x128xf32>
    %499 = vector.shape_cast %498 : vector<1x1x128x128xf32> to vector<128x128xf32>
    %500 = vector.shape_cast %497 : vector<128x128xf32> to vector<1x1x128x128xf32>
    tpu.vector_store %arg7[%c0_386, %c19_387, %c0_388, %c0_389], %500 {strides = array<i32>} : memref<1x24x128x128xf32, #tpu.memory_space<vmem>>, vector<1x1x128x128xf32>,
    %c0_390 = arith.constant 0 : index
    %c20_391 = arith.constant 20 : index
    %c0_392 = arith.constant 0 : index
    %501 = vector.load %arg9[%c0_390, %c20_391, %c0_392] : memref<16x24x128xf32, #tpu.memory_space<vmem>>, vector<16x1x128xf32>
    %502 = vector.shape_cast %501 : vector<16x1x128xf32> to vector<16x128xf32>
    %cst_393 = arith.constant dense<0.000000e+00> : vector<128x128xf32>
    %503 = tpu.matmul %380, %502, %cst_393 {dimension_numbers = #tpu.dot_dimension_numbers<[1], [0], [0], [1], [0, 0, 1, 1], [], []>} : vector<128x16xf32>, vector<16x128xf32>, vector<128x128xf32> -> vector<128x128xf32>
    %c0_394 = arith.constant 0 : index
    %c20_395 = arith.constant 20 : index
    %c0_396 = arith.constant 0 : index
    %c0_397 = arith.constant 0 : index
    %504 = vector.load %arg7[%c0_394, %c20_395, %c0_396, %c0_397] : memref<1x24x128x128xf32, #tpu.memory_space<vmem>>, vector<1x1x128x128xf32>
    %505 = vector.shape_cast %504 : vector<1x1x128x128xf32> to vector<128x128xf32>
    %506 = vector.shape_cast %503 : vector<128x128xf32> to vector<1x1x128x128xf32>
    tpu.vector_store %arg7[%c0_394, %c20_395, %c0_396, %c0_397], %506 {strides = array<i32>} : memref<1x24x128x128xf32, #tpu.memory_space<vmem>>, vector<1x1x128x128xf32>,
    %c0_398 = arith.constant 0 : index
    %c21_399 = arith.constant 21 : index
    %c0_400 = arith.constant 0 : index
    %507 = vector.load %arg9[%c0_398, %c21_399, %c0_400] : memref<16x24x128xf32, #tpu.memory_space<vmem>>, vector<16x1x128xf32>
    %508 = vector.shape_cast %507 : vector<16x1x128xf32> to vector<16x128xf32>
    %cst_401 = arith.constant dense<0.000000e+00> : vector<128x128xf32>
    %509 = tpu.matmul %380, %508, %cst_401 {dimension_numbers = #tpu.dot_dimension_numbers<[1], [0], [0], [1], [0, 0, 1, 1], [], []>} : vector<128x16xf32>, vector<16x128xf32>, vector<128x128xf32> -> vector<128x128xf32>
    %c0_402 = arith.constant 0 : index
    %c21_403 = arith.constant 21 : index
    %c0_404 = arith.constant 0 : index
    %c0_405 = arith.constant 0 : index
    %510 = vector.load %arg7[%c0_402, %c21_403, %c0_404, %c0_405] : memref<1x24x128x128xf32, #tpu.memory_space<vmem>>, vector<1x1x128x128xf32>
    %511 = vector.shape_cast %510 : vector<1x1x128x128xf32> to vector<128x128xf32>
    %512 = vector.shape_cast %509 : vector<128x128xf32> to vector<1x1x128x128xf32>
    tpu.vector_store %arg7[%c0_402, %c21_403, %c0_404, %c0_405], %512 {strides = array<i32>} : memref<1x24x128x128xf32, #tpu.memory_space<vmem>>, vector<1x1x128x128xf32>,
    %c0_406 = arith.constant 0 : index
    %c22_407 = arith.constant 22 : index
    %c0_408 = arith.constant 0 : index
    %513 = vector.load %arg9[%c0_406, %c22_407, %c0_408] : memref<16x24x128xf32, #tpu.memory_space<vmem>>, vector<16x1x128xf32>
    %514 = vector.shape_cast %513 : vector<16x1x128xf32> to vector<16x128xf32>
    %cst_409 = arith.constant dense<0.000000e+00> : vector<128x128xf32>
    %515 = tpu.matmul %380, %514, %cst_409 {dimension_numbers = #tpu.dot_dimension_numbers<[1], [0], [0], [1], [0, 0, 1, 1], [], []>} : vector<128x16xf32>, vector<16x128xf32>, vector<128x128xf32> -> vector<128x128xf32>
    %c0_410 = arith.constant 0 : index
    %c22_411 = arith.constant 22 : index
    %c0_412 = arith.constant 0 : index
    %c0_413 = arith.constant 0 : index
    %516 = vector.load %arg7[%c0_410, %c22_411, %c0_412, %c0_413] : memref<1x24x128x128xf32, #tpu.memory_space<vmem>>, vector<1x1x128x128xf32>
    %517 = vector.shape_cast %516 : vector<1x1x128x128xf32> to vector<128x128xf32>
    %518 = vector.shape_cast %515 : vector<128x128xf32> to vector<1x1x128x128xf32>
    tpu.vector_store %arg7[%c0_410, %c22_411, %c0_412, %c0_413], %518 {strides = array<i32>} : memref<1x24x128x128xf32, #tpu.memory_space<vmem>>, vector<1x1x128x128xf32>,
    %c0_414 = arith.constant 0 : index
    %c23_415 = arith.constant 23 : index
    %c0_416 = arith.constant 0 : index
    %519 = vector.load %arg9[%c0_414, %c23_415, %c0_416] : memref<16x24x128xf32, #tpu.memory_space<vmem>>, vector<16x1x128xf32>
    %520 = vector.shape_cast %519 : vector<16x1x128xf32> to vector<16x128xf32>
    %cst_417 = arith.constant dense<0.000000e+00> : vector<128x128xf32>
    %521 = tpu.matmul %380, %520, %cst_417 {dimension_numbers = #tpu.dot_dimension_numbers<[1], [0], [0], [1], [0, 0, 1, 1], [], []>} : vector<128x16xf32>, vector<16x128xf32>, vector<128x128xf32> -> vector<128x128xf32>
    %c0_418 = arith.constant 0 : index
    %c23_419 = arith.constant 23 : index
    %c0_420 = arith.constant 0 : index
    %c0_421 = arith.constant 0 : index
    %522 = vector.load %arg7[%c0_418, %c23_419, %c0_420, %c0_421] : memref<1x24x128x128xf32, #tpu.memory_space<vmem>>, vector<1x1x128x128xf32>
    %523 = vector.shape_cast %522 : vector<1x1x128x128xf32> to vector<128x128xf32>
    %524 = vector.shape_cast %521 : vector<128x128xf32> to vector<1x1x128x128xf32>
    tpu.vector_store %arg7[%c0_418, %c23_419, %c0_420, %c0_421], %524 {strides = array<i32>} : memref<1x24x128x128xf32, #tpu.memory_space<vmem>>, vector<1x1x128x128xf32>,
    return
  }
  func.func @transform_0(%arg0: i32, %arg1: i32) -> (i32, i32, i32) {
    %c0_i32 = arith.constant 0 : i32
    %c0_i32_0 = arith.constant 0 : i32
    %c0_i32_1 = arith.constant 0 : i32
    return %arg0, %c0_i32, %c0_i32_0 : i32, i32, i32
  }
  func.func @transform_1(%arg0: i32, %arg1: i32) -> (i32, i32, i32) {
    %c0_i32 = arith.constant 0 : i32
    %c0_i32_0 = arith.constant 0 : i32
    %c0_i32_1 = arith.constant 0 : i32
    return %arg1, %c0_i32, %c0_i32_0 : i32, i32, i32
  }
  func.func @transform_2(%arg0: i32, %arg1: i32) -> (i32, i32, i32) {
    %c0_i32 = arith.constant 0 : i32
    %c0_i32_0 = arith.constant 0 : i32
    %c0_i32_1 = arith.constant 0 : i32
    %c0_i32_2 = arith.constant 0 : i32
    return %c0_i32, %c0_i32_0, %c0_i32_1 : i32, i32, i32
  }
  func.func @transform_3(%arg0: i32, %arg1: i32) -> (i32, i32) {
    %c0_i32 = arith.constant 0 : i32
    %c0_i32_0 = arith.constant 0 : i32
    %c0_i32_1 = arith.constant 0 : i32
    return %c0_i32, %c0_i32_0 : i32, i32
  }
  func.func @transform_4(%arg0: i32, %arg1: i32) -> (i32, i32) {
    %c0_i32 = arith.constant 0 : i32
    %c0_i32_0 = arith.constant 0 : i32
    %c0_i32_1 = arith.constant 0 : i32
    return %c0_i32, %c0_i32_0 : i32, i32
  }
  func.func @transform_5(%arg0: i32, %arg1: i32) -> (i32, i32, i32, i32) {
    %c0_i32 = arith.constant 0 : i32
    %c0_i32_0 = arith.constant 0 : i32
    %c0_i32_1 = arith.constant 0 : i32
    return %arg0, %arg1, %c0_i32, %c0_i32_0 : i32, i32, i32, i32
  }
}

</mosaic_0001>

<llo_original>
// kernel: tpu_custom_call.1
$region0: #{tpu_custom_call.1}
  #allocation0 [shape = 'u32[]', space=smem, size = 0x4, offset = 0x4, fixed_abs, tag = 'smem constant byte address 0x4 - core index']
  #allocation1 [shape = 'u32[144,128]{1,0:T(1,128)}', space=vmem, size = 0x12000, scoped, tag = 'internal scratch']
  #allocation2 [shape = 'f32[392,256]{1,0:T(8,128)}', space=vmem, size = 0x62000, scoped, tag = 'scratch operand']
  #allocation3 [shape = 'f32[16,24,128]{2,1,0:T(8,128)}', space=vmem, size = 0x30000, scoped, tag = 'scratch operand']
  %s0 = inlined_call_operand.hbm [shape: f32[2,8,256], index: 0, kind: input, shape index: {}]
  %s1 = inlined_call_operand.hbm [shape: f32[1,24,392], index: 1, kind: input, shape index: {}]
  %s2 = inlined_call_operand.hbm [shape: f32[49,1,256], index: 2, kind: input, shape index: {}]
  %s3 = inlined_call_operand.vmem [shape: f32[128,16], index: 3, kind: input, shape index: {}]
  %s4 = inlined_call_operand.hbm [shape: f32[16,128], index: 4, kind: input, shape index: {}]
  %s5 = inlined_call_operand.hbm [shape: f32[2,24,128,128], index: 5, kind: output, shape index: {}]
  %s6 = sld [smem:[#allocation0]]
  $region69: #{tpu_custom_call.1} parent=0
    _
  %s8 = ssub.s32 1, %s6
  %s9 = scalar_select 0, %s8, %s6
  $region1: #{tpu_custom_call.1} parent=0
    #allocation4 [shape = 'u8[16384]{0}', space=vmem, size = 0x4000, scoped, tag = 'input window, operand 0']
    #allocation5 [shape = 's32[2]{0}', space=sflag, size = 0x8, scoped, tag = 'scoped memory for tpu_custom_call.1']
    #allocation6 [shape = 's32[2]{0}', space=sflag, size = 0x8, scoped, tag = 'scoped memory for tpu_custom_call.1']
    #allocation7 [shape = 'u8[49152]{0}', space=vmem, size = 0xc000, scoped, tag = 'input window, operand 1, single buffered']
    #allocation8 [shape = 's32[1]{0}', space=sflag, size = 0x4, scoped, tag = 'scoped memory for tpu_custom_call.1']
    #allocation9 [shape = 'u8[50176]{0}', space=vmem, size = 0xc400, scoped, tag = 'input window, operand 2, single buffered']
    #allocation10 [shape = 'u8[8192]{0}', space=vmem, size = 0x2000, scoped, tag = 'input window, operand 4, single buffered']
    #allocation11 [shape = 's32[1]{0}', space=sflag, size = 0x4, scoped, tag = 'scoped memory for tpu_custom_call.1']
    #allocation12 [shape = 'u8[3145728]{0}', space=vmem, size = 0x300000, scoped, tag = 'output window, operand 0']
    %10 = vsyncpa [#allocation5], 0
    %s11 = scalar_lea.sflag [#allocation5], 1
    %12 = vsyncpa %s11, 0
    %13 = vsyncpa [#allocation8], 0
    %14 = vsyncpa [#allocation11], 0
    %15 = vsyncpa [#allocation6], 0
    %s16 = scalar_lea.sflag [#allocation6], 1
    %17 = vsyncpa %s16, 0
    loop: start=0, step=1, limit=4
    $region2: #{tpu_custom_call.1} parent=1 // loop_pre_header
      _
    $region3: #{tpu_custom_call.1} parent=1 // loop_header
      %s19 = sphi 0, %s23
      %p20 = scmp.ge.s32.totalorder %s19, 4
      %s26 = sphi 0, %s38
      %s27 = sphi 0, %s34
      %s28 = sphi 0, %s26
      %s29 = sphi 0, %s27
      %s30 = sphi 0, %s28
      %s31 = sphi 0, %s29
      %s41 = sphi 0, %s43
      %s44 = sphi 0, %s41
      %s45 = sphi 0, %s44
      %s61 = sphi 0, %s45
      %s67 = sphi 0, %s69
      %s70 = sphi 0, %s67
      %s71 = sphi 0, %s70
      %s87 = sphi 0, %s71
      %s91 = sphi 0, %s91
      %s93 = sphi 0, %s91
      %s94 = sphi 0, %s93
      %s108 = sphi 0, %s94
      %s112 = sphi 0, %s112
      %s114 = sphi 0, %s112
      %s115 = sphi 0, %s114
      %s129 = sphi 0, %s115
      %s133 = sphi 0, %s133
      %s135 = sphi 0, %s133
      %s136 = sphi 0, %s135
      %s150 = sphi 0, %s136
      %s158 = sphi 0, %s160
      %s161 = sphi 0, %s158
      %s162 = sphi 0, %s161
      %s178 = sphi 0, %s162
    $region4: #{tpu_custom_call.1} parent=1 // loop_header_branch
      %22 = sbr.rel (%p20) target = $region8
    $region5: #{tpu_custom_call.1} parent=1 // loop_body
      %s24 = ssub.s32 %s19, 1
      %s25 = ssub.s32 %s19, 2
      %s32 = sadd.s32 1, %s27
      %p33 = scmp.ge.s32.totalorder %s32, 1
      %s34 = scalar_select %p33, 0, %s32
      %s35 = sadd.s32 1, %s26
      %s36 = scalar_select %p33, %s35, %s26
      %p37 = scmp.ge.s32.totalorder %s36, 2
      %s38 = scalar_select %p37, 0, %s36
      %s39 = ssub.s32 %s26, %s38
      %p40 = scmp.eq.s32.totalorder %s39, 0
      %s42 = sadd.s32 %s41, 1
      %s43 = scalar_select %p40, %s41, %s42
      %p46 = pneg %p40
      %p47 = scmp.eq.s32.totalorder %s19, 1
      %p48 = por %p46, %p47
      %p49 = scmp.ne.s32.totalorder %s41, %s44
      %p50 = scmp.eq.s32.totalorder %s19, 0
      %p51 = por %p49, %p50
      %p52 = scmp.ne.s32.totalorder %s41, %s44
      %p53 = scmp.eq.s32.totalorder %s24, 1
      %p54 = por %p52, %p53
      %p55 = scmp.ne.s32.totalorder %s44, %s45
      %p56 = scmp.eq.s32.totalorder %s24, 0
      %p57 = por %p55, %p56
      %p58 = scmp.ne.s32.totalorder %s44, %s45
      %p59 = scmp.eq.s32.totalorder %s25, 1
      %p60 = por %p58, %p59
      %p62 = scmp.ne.s32.totalorder %s45, %s61
      %p63 = scmp.eq.s32.totalorder %s25, 0
      %p64 = por %p62, %p63
      %s65 = ssub.s32 %s27, %s34
      %p66 = scmp.eq.s32.totalorder %s65, 0
      %s68 = sadd.s32 %s67, 1
      %s69 = scalar_select %p66, %s67, %s68
      %p72 = pneg %p66
      %p73 = scmp.eq.s32.totalorder %s19, 1
      %p74 = por %p72, %p73
      %p75 = scmp.ne.s32.totalorder %s67, %s70
      %p76 = scmp.eq.s32.totalorder %s19, 0
      %p77 = por %p75, %p76
      %p78 = scmp.ne.s32.totalorder %s67, %s70
      %p79 = scmp.eq.s32.totalorder %s24, 1
      %p80 = por %p78, %p79
      %p81 = scmp.ne.s32.totalorder %s70, %s71
      %p82 = scmp.eq.s32.totalorder %s24, 0
      %p83 = por %p81, %p82
      %p84 = scmp.ne.s32.totalorder %s70, %s71
      %p85 = scmp.eq.s32.totalorder %s25, 1
      %p86 = por %p84, %p85
      %p88 = scmp.ne.s32.totalorder %s71, %s87
      %p89 = scmp.eq.s32.totalorder %s25, 0
      %p90 = por %p88, %p89
      %s92 = sadd.s32 %s91, 1
      %p95 = scmp.eq.s32.totalorder %s19, 1
      %p96 = scmp.ne.s32.totalorder %s91, %s93
      %p97 = scmp.eq.s32.totalorder %s19, 0
      %p98 = por %p96, %p97
      %p99 = scmp.ne.s32.totalorder %s91, %s93
      %p100 = scmp.eq.s32.totalorder %s24, 1
      %p101 = por %p99, %p100
      %p102 = scmp.ne.s32.totalorder %s93, %s94
      %p103 = scmp.eq.s32.totalorder %s24, 0
      %p104 = por %p102, %p103
      %p105 = scmp.ne.s32.totalorder %s93, %s94
      %p106 = scmp.eq.s32.totalorder %s25, 1
      %p107 = por %p105, %p106
      %p109 = scmp.ne.s32.totalorder %s94, %s108
      %p110 = scmp.eq.s32.totalorder %s25, 0
      %p111 = por %p109, %p110
      %s113 = sadd.s32 %s112, 1
      %p116 = scmp.eq.s32.totalorder %s19, 1
      %p117 = scmp.ne.s32.totalorder %s112, %s114
      %p118 = scmp.eq.s32.totalorder %s19, 0
      %p119 = por %p117, %p118
      %p120 = scmp.ne.s32.totalorder %s112, %s114
      %p121 = scmp.eq.s32.totalorder %s24, 1
      %p122 = por %p120, %p121
      %p123 = scmp.ne.s32.totalorder %s114, %s115
      %p124 = scmp.eq.s32.totalorder %s24, 0
      %p125 = por %p123, %p124
      %p126 = scmp.ne.s32.totalorder %s114, %s115
      %p127 = scmp.eq.s32.totalorder %s25, 1
      %p128 = por %p126, %p127
      %p130 = scmp.ne.s32.totalorder %s115, %s129
      %p131 = scmp.eq.s32.totalorder %s25, 0
      %p132 = por %p130, %p131
      %s134 = sadd.s32 %s133, 1
      %p137 = scmp.eq.s32.totalorder %s19, 1
      %p138 = scmp.ne.s32.totalorder %s133, %s135
      %p139 = scmp.eq.s32.totalorder %s19, 0
      %p140 = por %p138, %p139
      %p141 = scmp.ne.s32.totalorder %s133, %s135
      %p142 = scmp.eq.s32.totalorder %s24, 1
      %p143 = por %p141, %p142
      %p144 = scmp.ne.s32.totalorder %s135, %s136
      %p145 = scmp.eq.s32.totalorder %s24, 0
      %p146 = por %p144, %p145
      %p147 = scmp.ne.s32.totalorder %s135, %s136
      %p148 = scmp.eq.s32.totalorder %s25, 1
      %p149 = por %p147, %p148
      %p151 = scmp.ne.s32.totalorder %s136, %s150
      %p152 = scmp.eq.s32.totalorder %s25, 0
      %p153 = por %p151, %p152
      %s154 = ssub.s32 %s26, %s38
      %s155 = ssub.s32 %s27, %s34
      %s156 = sor.u32 %s154, %s155
      %p157 = scmp.eq.s32.totalorder %s156, 0
      %s159 = sadd.s32 %s158, 1
      %s160 = scalar_select %p157, %s158, %s159
      %p163 = pneg %p157
      %p164 = scmp.eq.s32.totalorder %s19, 1
      %p165 = por %p163, %p164
      %p166 = scmp.ne.s32.totalorder %s158, %s161
      %p167 = scmp.eq.s32.totalorder %s19, 0
      %p168 = por %p166, %p167
      %p169 = scmp.ne.s32.totalorder %s158, %s161
      %p170 = scmp.eq.s32.totalorder %s24, 1
      %p171 = por %p169, %p170
      %p172 = scmp.ne.s32.totalorder %s161, %s162
      %p173 = scmp.eq.s32.totalorder %s24, 0
      %p174 = por %p172, %p173
      %p175 = scmp.ne.s32.totalorder %s161, %s162
      %p176 = scmp.eq.s32.totalorder %s25, 1
      %p177 = por %p175, %p176
      %p179 = scmp.ne.s32.totalorder %s162, %s178
      %p180 = scmp.eq.s32.totalorder %s25, 0
      %p181 = por %p179, %p180
      %p182 = scmp.le.s32.totalorder 1, %s19
      %p183 = scmp.lt.s32.totalorder %s19, 3
      %p184 = pnand %p182, %p183
      %p185 = pneg %p184
      // Predicated region
      $region9: #{tpu_custom_call.1} parent=5 // pred_check
        _
      $region10: #{tpu_custom_call.1} parent=5 // pred_check_branch
        %187 = sbr.rel (%p184) target = $region12
      $region11: #{tpu_custom_call.1} parent=5 // pred_region
        %s188 = ssub.s32 %s19, 1
        // Predicated region
        $region13: #{tpu_custom_call.1} parent=11 // pred_check
          %p189 = pneg %p83
        $region14: #{tpu_custom_call.1} parent=11 // pred_check_branch
          %191 = sbr.rel (%p189) target = $region16
        $region15: #{tpu_custom_call.1} parent=11 // pred_region
          %s193 = ssub.s32 1536, 1536
          %194 = vsyncadd [#allocation8], %s193
          %s195 = smul.addr %s29, 12
          %s196 = smul.addr %s195, 128
          %s197 = scalar_lea.hbm %s1, %s196
          %s198 = sshll.u32 [#allocation7], 4
          %s199 = int_to_ptr.vmem [resolvable:$true] %s198
          %204 = dma.hbm_to_vmem [thread:$0]  %s197, 1536, %s199, [#allocation8], 512, 512, 32
        $region16: #{tpu_custom_call.1} parent=11 // pred_fallthru
          _
        // Predicated region
        $region17: #{tpu_custom_call.1} parent=11 // pred_check
          %p205 = pneg %p104
        $region18: #{tpu_custom_call.1} parent=11 // pred_check_branch
          %207 = sbr.rel (%p205) target = $region20
        $region19: #{tpu_custom_call.1} parent=11 // pred_region
          %s209 = ssub.s32 1568, 1568
          %210 = vsyncadd [#allocation8], %s209
          %s211 = sshll.u32 [#allocation9], 4
          %s212 = int_to_ptr.vmem [resolvable:$true] %s211
          %217 = dma.hbm_to_vmem [thread:$0]  %s2, 1568, %s212, [#allocation8], 32, 32, 2
        $region20: #{tpu_custom_call.1} parent=11 // pred_fallthru
          _
        // Predicated region
        $region21: #{tpu_custom_call.1} parent=11 // pred_check
          %p218 = pneg %p125
        $region22: #{tpu_custom_call.1} parent=11 // pred_check_branch
          %220 = sbr.rel (%p218) target = $region24
        $region23: #{tpu_custom_call.1} parent=11 // pred_region
          _
        $region24: #{tpu_custom_call.1} parent=11 // pred_fallthru
          _
        // Predicated region
        $region25: #{tpu_custom_call.1} parent=11 // pred_check
          %p221 = pneg %p146
        $region26: #{tpu_custom_call.1} parent=11 // pred_check_branch
          %223 = sbr.rel (%p221) target = $region28
        $region27: #{tpu_custom_call.1} parent=11 // pred_region
          %s225 = ssub.s32 256, 256
          %226 = vsyncadd [#allocation11], %s225
          %s227 = sshll.u32 [#allocation10], 4
          %s228 = int_to_ptr.vmem [resolvable:$true] %s227
          %233 = dma.hbm_to_vmem [thread:$0]  %s4, 256, %s228, [#allocation11], 128, 128, 8
        $region28: #{tpu_custom_call.1} parent=11 // pred_fallthru
          _
      $region12: #{tpu_custom_call.1} parent=5 // pred_fallthru
        _
      %p234 = scmp.lt.s32.totalorder %s19, 2
      // Predicated region
      $region29: #{tpu_custom_call.1} parent=5 // pred_check
        %p235 = pneg %p234
      $region30: #{tpu_custom_call.1} parent=5 // pred_check_branch
        %237 = sbr.rel (%p235) target = $region32
      $region31: #{tpu_custom_call.1} parent=5 // pred_region
        // Predicated region
        $region33: #{tpu_custom_call.1} parent=31 // pred_check
          %p238 = pneg %p51
        $region34: #{tpu_custom_call.1} parent=31 // pred_check_branch
          %240 = sbr.rel (%p238) target = $region36
        $region35: #{tpu_custom_call.1} parent=31 // pred_region
          %s241 = sand.u32 %s41, 1
          %s242 = scalar_lea.sflag [#allocation5], %s241
          %s243 = sand.u32 %s41, 1
          %s244 = smul.addr %s243, 16
          %s245 = scalar_lea.vmem [#allocation4], %s244
          %s247 = ssub.s32 256, 256
          %248 = vsyncadd %s242, %s247
          %s249 = smul.addr %s26, 2
          %s250 = smul.addr %s249, 128
          %s251 = scalar_lea.hbm %s0, %s250
          %s253 = sshll.u32 %s245, 4
          %s254 = int_to_ptr.vmem [resolvable:$true] %s253
          %256 = dma.hbm_to_vmem [thread:$0]  %s251, 256, %s254, %s242
        $region36: #{tpu_custom_call.1} parent=31 // pred_fallthru
          _
      $region32: #{tpu_custom_call.1} parent=5 // pred_fallthru
        _
      %p257 = scmp.le.s32.totalorder 1, %s19
      %p258 = scmp.lt.s32.totalorder %s19, 3
      %p259 = pnand %p257, %p258
      %p260 = pneg %p259
      // Predicated region
      $region37: #{tpu_custom_call.1} parent=5 // pred_check
        _
      $region38: #{tpu_custom_call.1} parent=5 // pred_check_branch
        %262 = sbr.rel (%p259) target = $region40
      $region39: #{tpu_custom_call.1} parent=5 // pred_region
        %s263 = ssub.s32 %s19, 1
        %s264 = sand.u32 %s44, 1
        %s265 = scalar_lea.sflag [#allocation5], %s264
        %s266 = sand.u32 %s44, 1
        %s267 = smul.addr %s266, 16
        %s268 = scalar_lea.vmem [#allocation4], %s267
        // Predicated region
        $region41: #{tpu_custom_call.1} parent=39 // pred_check
          %p269 = pneg %p57
        $region42: #{tpu_custom_call.1} parent=39 // pred_check_branch
          %271 = sbr.rel (%p269) target = $region44
        $region43: #{tpu_custom_call.1} parent=39 // pred_region
          %272 = dma.done %s265, 256
        $region44: #{tpu_custom_call.1} parent=39 // pred_fallthru
          _
        // Predicated region
        $region45: #{tpu_custom_call.1} parent=39 // pred_check
          %p273 = pneg %p83
        $region46: #{tpu_custom_call.1} parent=39 // pred_check_branch
          %275 = sbr.rel (%p273) target = $region48
        $region47: #{tpu_custom_call.1} parent=39 // pred_region
          %276 = dma.done [#allocation8], 1536
        $region48: #{tpu_custom_call.1} parent=39 // pred_fallthru
          _
        // Predicated region
        $region49: #{tpu_custom_call.1} parent=39 // pred_check
          %p277 = pneg %p104
        $region50: #{tpu_custom_call.1} parent=39 // pred_check_branch
          %279 = sbr.rel (%p277) target = $region52
        $region51: #{tpu_custom_call.1} parent=39 // pred_region
          %280 = dma.done [#allocation8], 1568
        $region52: #{tpu_custom_call.1} parent=39 // pred_fallthru
          _
        // Predicated region
        $region53: #{tpu_custom_call.1} parent=39 // pred_check
          %p281 = pneg %p146
        $region54: #{tpu_custom_call.1} parent=39 // pred_check_branch
          %283 = sbr.rel (%p281) target = $region56
        $region55: #{tpu_custom_call.1} parent=39 // pred_region
          %284 = dma.done [#allocation11], 256
        $region56: #{tpu_custom_call.1} parent=39 // pred_fallthru
          _
        %s285 = sand.u32 %s44, 1
        %s286 = scalar_lea.sflag [#allocation5], %s285
        %s287 = sand.u32 %s44, 1
        %s288 = smul.addr %s287, 16
        %s289 = scalar_lea.vmem [#allocation4], %s288
        %p290 = pneg %p57
        %p291 = pneg %p54
        %p292 = pneg %p83
        %p293 = pneg %p80
        %p294 = pneg %p104
        %p295 = pneg %p101
        %p296 = pneg %p125
        %p297 = pneg %p122
        %p298 = pneg %p146
        %p299 = pneg %p143
        %p300 = pneg %p174
        %p301 = pneg %p171
        %s302 = sand.u32 %s161, 1
        %s303 = scalar_lea.sflag [#allocation6], %s302
        %s304 = sand.u32 %s161, 1
        %s305 = smul.addr %s304, 3072
        %s306 = scalar_lea.vmem [#allocation12], %s305
        %s307 = smul.u32 24, %s29
        %v308 = vld [vmem:[%s268] sm:$0xff]
        %v309 = vld [vmem:[%s268 + $0x8] sm:$0xff]
        %310 = vrot.lane.b32.xlu0 %v308, 51
        %v311 = vpop.permute.xlu0 %310
        %312 = vrot.lane.b32.xlu0 %v309, 51
        %v313 = vpop.permute.xlu0 %312
        %v314 = vlaneseq
        %v315 = vand.u32 %v314, 127
        %vm316 = vcmp.lt.s32.totalorder %v315, 51
        %v317 = vsel %vm316, %v311, %v313
        %v318 = vsel %vm316, %v313, %v311
        %v319 = vld [vmem:[#allocation9] sm:$0x3]
        %v321 = vlaneseq
        %v322 = vshrl.u32 %v321, 7
        %v323 = vsub.s32 0, %v322
        %v324 = vrot.slane %v319, %v323
        %v325 = vlaneseq
        %v326 = vshrl.u32 %v325, 7
        %v327 = vsub.s32 1, %v326
        %v328 = vrot.slane %v319, %v327
        %v331 = vmul.f32 %v318, %v324
        %v332 = vmul.f32 %v317, %v328
        %333 = vst [vmem:[#allocation2] sm:$0xff] %v331
        %334 = vst [vmem:[#allocation2 + $0x8] sm:$0xff] %v332
        %335 = vrot.lane.b32.xlu0 %v308, 50
        %v336 = vpop.permute.xlu0 %335
        %337 = vrot.lane.b32.xlu0 %v309, 50
        %v338 = vpop.permute.xlu0 %337
        %vm339 = vcmp.lt.s32.totalorder %v315, 50
        %v340 = vsel %vm339, %v336, %v338
        %v341 = vsel %vm339, %v338, %v336
        %s342 = scalar_lea.vmem [#allocation9], 2
        %v343 = vld [vmem:[%s342] sm:$0x3]
        %v345 = vlaneseq
        %v346 = vshrl.u32 %v345, 7
        %v347 = vsub.s32 0, %v346
        %v348 = vrot.slane %v343, %v347
        %v349 = vlaneseq
        %v350 = vshrl.u32 %v349, 7
        %v351 = vsub.s32 1, %v350
        %v352 = vrot.slane %v343, %v351
        %v355 = vmul.f32 %v341, %v348
        %v356 = vmul.f32 %v340, %v352
        %357 = vst [vmem:[#allocation2 + $0x10] sm:$0xff] %v355
        %358 = vst [vmem:[#allocation2 + $0x18] sm:$0xff] %v356
        %359 = vrot.lane.b32.xlu0 %v308, 49
        %v360 = vpop.permute.xlu0 %359
        %361 = vrot.lane.b32.xlu0 %v309, 49
        %v362 = vpop.permute.xlu0 %361
        %vm363 = vcmp.lt.s32.totalorder %v315, 49
        %v364 = vsel %vm363, %v360, %v362
        %v365 = vsel %vm363, %v362, %v360
        %s366 = scalar_lea.vmem [#allocation9], 4
        %v367 = vld [vmem:[%s366] sm:$0x3]
        %v369 = vlaneseq
        %v370 = vshrl.u32 %v369, 7
        %v371 = vsub.s32 0, %v370
        %v372 = vrot.slane %v367, %v371
        %v373 = vlaneseq
        %v374 = vshrl.u32 %v373, 7
        %v375 = vsub.s32 1, %v374
        %v376 = vrot.slane %v367, %v375
        %v379 = vmul.f32 %v365, %v372
        %v380 = vmul.f32 %v364, %v376
        %381 = vst [vmem:[#allocation2 + $0x20] sm:$0xff] %v379
        %382 = vst [vmem:[#allocation2 + $0x28] sm:$0xff] %v380
        %383 = vrot.lane.b32.xlu0 %v308, 48
        %v384 = vpop.permute.xlu0 %383
        %385 = vrot.lane.b32.xlu0 %v309, 48
        %v386 = vpop.permute.xlu0 %385
        %vm387 = vcmp.lt.s32.totalorder %v315, 48
        %v388 = vsel %vm387, %v384, %v386
        %v389 = vsel %vm387, %v386, %v384
        %s390 = scalar_lea.vmem [#allocation9], 6
        %v391 = vld [vmem:[%s390] sm:$0x3]
        %v393 = vlaneseq
        %v394 = vshrl.u32 %v393, 7
        %v395 = vsub.s32 0, %v394
        %v396 = vrot.slane %v391, %v395
        %v397 = vlaneseq
        %v398 = vshrl.u32 %v397, 7
        %v399 = vsub.s32 1, %v398
        %v400 = vrot.slane %v391, %v399
        %v403 = vmul.f32 %v389, %v396
        %v404 = vmul.f32 %v388, %v400
        %405 = vst [vmem:[#allocation2 + $0x30] sm:$0xff] %v403
        %406 = vst [vmem:[#allocation2 + $0x38] sm:$0xff] %v404
        %407 = vrot.lane.b32.xlu0 %v308, 47
        %v408 = vpop.permute.xlu0 %407
        %409 = vrot.lane.b32.xlu0 %v309, 47
        %v410 = vpop.permute.xlu0 %409
        %vm411 = vcmp.lt.s32.totalorder %v315, 47
        %v412 = vsel %vm411, %v408, %v410
        %v413 = vsel %vm411, %v410, %v408
        %s414 = scalar_lea.vmem [#allocation9], 8
        %v415 = vld [vmem:[%s414] sm:$0x3]
        %v417 = vlaneseq
        %v418 = vshrl.u32 %v417, 7
        %v419 = vsub.s32 0, %v418
        %v420 = vrot.slane %v415, %v419
        %v421 = vlaneseq
        %v422 = vshrl.u32 %v421, 7
        %v423 = vsub.s32 1, %v422
        %v424 = vrot.slane %v415, %v423
        %v427 = vmul.f32 %v413, %v420
        %v428 = vmul.f32 %v412, %v424
        %429 = vst [vmem:[#allocation2 + $0x40] sm:$0xff] %v427
        %430 = vst [vmem:[#allocation2 + $0x48] sm:$0xff] %v428
        %431 = vrot.lane.b32.xlu0 %v308, 46
        %v432 = vpop.permute.xlu0 %431
        %433 = vrot.lane.b32.xlu0 %v309, 46
        %v434 = vpop.permute.xlu0 %433
        %vm435 = vcmp.lt.s32.totalorder %v315, 46
        %v436 = vsel %vm435, %v432, %v434
        %v437 = vsel %vm435, %v434, %v432
        %s438 = scalar_lea.vmem [#allocation9], 10
        %v439 = vld [vmem:[%s438] sm:$0x3]
        %v441 = vlaneseq
        %v442 = vshrl.u32 %v441, 7
        %v443 = vsub.s32 0, %v442
        %v444 = vrot.slane %v439, %v443
        %v445 = vlaneseq
        %v446 = vshrl.u32 %v445, 7
        %v447 = vsub.s32 1, %v446
        %v448 = vrot.slane %v439, %v447
        %v451 = vmul.f32 %v437, %v444
        %v452 = vmul.f32 %v436, %v448
        %453 = vst [vmem:[#allocation2 + $0x50] sm:$0xff] %v451
        %454 = vst [vmem:[#allocation2 + $0x58] sm:$0xff] %v452
        %455 = vrot.lane.b32.xlu0 %v308, 45
        %v456 = vpop.permute.xlu0 %455
        %457 = vrot.lane.b32.xlu0 %v309, 45
        %v458 = vpop.permute.xlu0 %457
        %vm459 = vcmp.lt.s32.totalorder %v315, 45
        %v460 = vsel %vm459, %v456, %v458
        %v461 = vsel %vm459, %v458, %v456
        %s462 = scalar_lea.vmem [#allocation9], 12
        %v463 = vld [vmem:[%s462] sm:$0x3]
        %v465 = vlaneseq
        %v466 = vshrl.u32 %v465, 7
        %v467 = vsub.s32 0, %v466
        %v468 = vrot.slane %v463, %v467
        %v469 = vlaneseq
        %v470 = vshrl.u32 %v469, 7
        %v471 = vsub.s32 1, %v470
        %v472 = vrot.slane %v463, %v471
        %v475 = vmul.f32 %v461, %v468
        %v476 = vmul.f32 %v460, %v472
        %477 = vst [vmem:[#allocation2 + $0x60] sm:$0xff] %v475
        %478 = vst [vmem:[#allocation2 + $0x68] sm:$0xff] %v476
        %479 = vrot.lane.b32.xlu0 %v308, 35
        %v480 = vpop.permute.xlu0 %479
        %481 = vrot.lane.b32.xlu0 %v309, 35
        %v482 = vpop.permute.xlu0 %481
        %vm483 = vcmp.lt.s32.totalorder %v315, 35
        %v484 = vsel %vm483, %v480, %v482
        %v485 = vsel %vm483, %v482, %v480
        %s486 = scalar_lea.vmem [#allocation9], 14
        %v487 = vld [vmem:[%s486] sm:$0x3]
        %v489 = vlaneseq
        %v490 = vshrl.u32 %v489, 7
        %v491 = vsub.s32 0, %v490
        %v492 = vrot.slane %v487, %v491
        %v493 = vlaneseq
        %v494 = vshrl.u32 %v493, 7
        %v495 = vsub.s32 1, %v494
        %v496 = vrot.slane %v487, %v495
        %v499 = vmul.f32 %v485, %v492
        %v500 = vmul.f32 %v484, %v496
        %501 = vst [vmem:[#allocation2 + $0x70] sm:$0xff] %v499
        %502 = vst [vmem:[#allocation2 + $0x78] sm:$0xff] %v500
        %503 = vrot.lane.b32.xlu0 %v308, 34
        %v504 = vpop.permute.xlu0 %503
        %505 = vrot.lane.b32.xlu0 %v309, 34
        %v506 = vpop.permute.xlu0 %505
        %vm507 = vcmp.lt.s32.totalorder %v315, 34
        %v508 = vsel %vm507, %v504, %v506
        %v509 = vsel %vm507, %v506, %v504
        %s510 = scalar_lea.vmem [#allocation9], 16
        %v511 = vld [vmem:[%s510] sm:$0x3]
        %v513 = vlaneseq
        %v514 = vshrl.u32 %v513, 7
        %v515 = vsub.s32 0, %v514
        %v516 = vrot.slane %v511, %v515
        %v517 = vlaneseq
        %v518 = vshrl.u32 %v517, 7
        %v519 = vsub.s32 1, %v518
        %v520 = vrot.slane %v511, %v519
        %v523 = vmul.f32 %v509, %v516
        %v524 = vmul.f32 %v508, %v520
        %525 = vst [vmem:[#allocation2 + $0x80] sm:$0xff] %v523
        %526 = vst [vmem:[#allocation2 + $0x88] sm:$0xff] %v524
        %527 = vrot.lane.b32.xlu0 %v308, 33
        %v528 = vpop.permute.xlu0 %527
        %529 = vrot.lane.b32.xlu0 %v309, 33
        %v530 = vpop.permute.xlu0 %529
        %vm531 = vcmp.lt.s32.totalorder %v315, 33
        %v532 = vsel %vm531, %v528, %v530
        %v533 = vsel %vm531, %v530, %v528
        %s534 = scalar_lea.vmem [#allocation9], 18
        %v535 = vld [vmem:[%s534] sm:$0x3]
        %v537 = vlaneseq
        %v538 = vshrl.u32 %v537, 7
        %v539 = vsub.s32 0, %v538
        %v540 = vrot.slane %v535, %v539
        %v541 = vlaneseq
        %v542 = vshrl.u32 %v541, 7
        %v543 = vsub.s32 1, %v542
        %v544 = vrot.slane %v535, %v543
        %v547 = vmul.f32 %v533, %v540
        %v548 = vmul.f32 %v532, %v544
        %549 = vst [vmem:[#allocation2 + $0x90] sm:$0xff] %v547
        %550 = vst [vmem:[#allocation2 + $0x98] sm:$0xff] %v548
        %551 = vrot.lane.b32.xlu0 %v308, 32
        %v552 = vpop.permute.xlu0 %551
        %553 = vrot.lane.b32.xlu0 %v309, 32
        %v554 = vpop.permute.xlu0 %553
        %vm555 = vcmp.lt.s32.totalorder %v315, 32
        %v556 = vsel %vm555, %v552, %v554
        %v557 = vsel %vm555, %v554, %v552
        %s558 = scalar_lea.vmem [#allocation9], 20
        %v559 = vld [vmem:[%s558] sm:$0x3]
        %v561 = vlaneseq
        %v562 = vshrl.u32 %v561, 7
        %v563 = vsub.s32 0, %v562
        %v564 = vrot.slane %v559, %v563
        %v565 = vlaneseq
        %v566 = vshrl.u32 %v565, 7
        %v567 = vsub.s32 1, %v566
        %v568 = vrot.slane %v559, %v567
        %v571 = vmul.f32 %v557, %v564
        %v572 = vmul.f32 %v556, %v568
        %573 = vst [vmem:[#allocation2 + $0xa0] sm:$0xff] %v571
        %574 = vst [vmem:[#allocation2 + $0xa8] sm:$0xff] %v572
        %575 = vrot.lane.b32.xlu0 %v308, 31
        %v576 = vpop.permute.xlu0 %575
        %577 = vrot.lane.b32.xlu0 %v309, 31
        %v578 = vpop.permute.xlu0 %577
        %vm579 = vcmp.lt.s32.totalorder %v315, 31
        %v580 = vsel %vm579, %v576, %v578
        %v581 = vsel %vm579, %v578, %v576
        %s582 = scalar_lea.vmem [#allocation9], 22
        %v583 = vld [vmem:[%s582] sm:$0x3]
        %v585 = vlaneseq
        %v586 = vshrl.u32 %v585, 7
        %v587 = vsub.s32 0, %v586
        %v588 = vrot.slane %v583, %v587
        %v589 = vlaneseq
        %v590 = vshrl.u32 %v589, 7
        %v591 = vsub.s32 1, %v590
        %v592 = vrot.slane %v583, %v591
        %v595 = vmul.f32 %v581, %v588
        %v596 = vmul.f32 %v580, %v592
        %597 = vst [vmem:[#allocation2 + $0xb0] sm:$0xff] %v595
        %598 = vst [vmem:[#allocation2 + $0xb8] sm:$0xff] %v596
        %599 = vrot.lane.b32.xlu0 %v308, 30
        %v600 = vpop.permute.xlu0 %599
        %601 = vrot.lane.b32.xlu0 %v309, 30
        %v602 = vpop.permute.xlu0 %601
        %vm603 = vcmp.lt.s32.totalorder %v315, 30
        %v604 = vsel %vm603, %v600, %v602
        %v605 = vsel %vm603, %v602, %v600
        %s606 = scalar_lea.vmem [#allocation9], 24
        %v607 = vld [vmem:[%s606] sm:$0x3]
        %v609 = vlaneseq
        %v610 = vshrl.u32 %v609, 7
        %v611 = vsub.s32 0, %v610
        %v612 = vrot.slane %v607, %v611
        %v613 = vlaneseq
        %v614 = vshrl.u32 %v613, 7
        %v615 = vsub.s32 1, %v614
        %v616 = vrot.slane %v607, %v615
        %v619 = vmul.f32 %v605, %v612
        %v620 = vmul.f32 %v604, %v616
        %621 = vst [vmem:[#allocation2 + $0xc0] sm:$0xff] %v619
        %622 = vst [vmem:[#allocation2 + $0xc8] sm:$0xff] %v620
        %623 = vrot.lane.b32.xlu0 %v308, 29
        %v624 = vpop.permute.xlu0 %623
        %625 = vrot.lane.b32.xlu0 %v309, 29
        %v626 = vpop.permute.xlu0 %625
        %vm627 = vcmp.lt.s32.totalorder %v315, 29
        %v628 = vsel %vm627, %v624, %v626
        %v629 = vsel %vm627, %v626, %v624
        %s630 = scalar_lea.vmem [#allocation9], 26
        %v631 = vld [vmem:[%s630] sm:$0x3]
        %v633 = vlaneseq
        %v634 = vshrl.u32 %v633, 7
        %v635 = vsub.s32 0, %v634
        %v636 = vrot.slane %v631, %v635
        %v637 = vlaneseq
        %v638 = vshrl.u32 %v637, 7
        %v639 = vsub.s32 1, %v638
        %v640 = vrot.slane %v631, %v639
        %v643 = vmul.f32 %v629, %v636
        %v644 = vmul.f32 %v628, %v640
        %645 = vst [vmem:[#allocation2 + $0xd0] sm:$0xff] %v643
        %646 = vst [vmem:[#allocation2 + $0xd8] sm:$0xff] %v644
        %647 = vrot.lane.b32.xlu0 %v308, 19
        %v648 = vpop.permute.xlu0 %647
        %649 = vrot.lane.b32.xlu0 %v309, 19
        %v650 = vpop.permute.xlu0 %649
        %vm651 = vcmp.lt.s32.totalorder %v315, 19
        %v652 = vsel %vm651, %v648, %v650
        %v653 = vsel %vm651, %v650, %v648
        %s654 = scalar_lea.vmem [#allocation9], 28
        %v655 = vld [vmem:[%s654] sm:$0x3]
        %v657 = vlaneseq
        %v658 = vshrl.u32 %v657, 7
        %v659 = vsub.s32 0, %v658
        %v660 = vrot.slane %v655, %v659
        %v661 = vlaneseq
        %v662 = vshrl.u32 %v661, 7
        %v663 = vsub.s32 1, %v662
        %v664 = vrot.slane %v655, %v663
        %v667 = vmul.f32 %v653, %v660
        %v668 = vmul.f32 %v652, %v664
        %669 = vst [vmem:[#allocation2 + $0xe0] sm:$0xff] %v667
        %670 = vst [vmem:[#allocation2 + $0xe8] sm:$0xff] %v668
        %671 = vrot.lane.b32.xlu0 %v308, 18
        %v672 = vpop.permute.xlu0 %671
        %673 = vrot.lane.b32.xlu0 %v309, 18
        %v674 = vpop.permute.xlu0 %673
        %vm675 = vcmp.lt.s32.totalorder %v315, 18
        %v676 = vsel %vm675, %v672, %v674
        %v677 = vsel %vm675, %v674, %v672
        %s678 = scalar_lea.vmem [#allocation9], 30
        %v679 = vld [vmem:[%s678] sm:$0x3]
        %v681 = vlaneseq
        %v682 = vshrl.u32 %v681, 7
        %v683 = vsub.s32 0, %v682
        %v684 = vrot.slane %v679, %v683
        %v685 = vlaneseq
        %v686 = vshrl.u32 %v685, 7
        %v687 = vsub.s32 1, %v686
        %v688 = vrot.slane %v679, %v687
        %v691 = vmul.f32 %v677, %v684
        %v692 = vmul.f32 %v676, %v688
        %693 = vst [vmem:[#allocation2 + $0xf0] sm:$0xff] %v691
        %694 = vst [vmem:[#allocation2 + $0xf8] sm:$0xff] %v692
        %695 = vrot.lane.b32.xlu0 %v308, 17
        %v696 = vpop.permute.xlu0 %695
        %697 = vrot.lane.b32.xlu0 %v309, 17
        %v698 = vpop.permute.xlu0 %697
        %vm699 = vcmp.lt.s32.totalorder %v315, 17
        %v700 = vsel %vm699, %v696, %v698
        %v701 = vsel %vm699, %v698, %v696
        %s702 = scalar_lea.vmem [#allocation9], 32
        %v703 = vld [vmem:[%s702] sm:$0x3]
        %v705 = vlaneseq
        %v706 = vshrl.u32 %v705, 7
        %v707 = vsub.s32 0, %v706
        %v708 = vrot.slane %v703, %v707
        %v709 = vlaneseq
        %v710 = vshrl.u32 %v709, 7
        %v711 = vsub.s32 1, %v710
        %v712 = vrot.slane %v703, %v711
        %v715 = vmul.f32 %v701, %v708
        %v716 = vmul.f32 %v700, %v712
        %717 = vst [vmem:[#allocation2 + $0x100] sm:$0xff] %v715
        %718 = vst [vmem:[#allocation2 + $0x108] sm:$0xff] %v716
        %719 = vrot.lane.b32.xlu0 %v308, 16
        %v720 = vpop.permute.xlu0 %719
        %721 = vrot.lane.b32.xlu0 %v309, 16
        %v722 = vpop.permute.xlu0 %721
        %vm723 = vcmp.lt.s32.totalorder %v315, 16
        %v724 = vsel %vm723, %v720, %v722
        %v725 = vsel %vm723, %v722, %v720
        %s726 = scalar_lea.vmem [#allocation9], 34
        %v727 = vld [vmem:[%s726] sm:$0x3]
        %v729 = vlaneseq
        %v730 = vshrl.u32 %v729, 7
        %v731 = vsub.s32 0, %v730
        %v732 = vrot.slane %v727, %v731
        %v733 = vlaneseq
        %v734 = vshrl.u32 %v733, 7
        %v735 = vsub.s32 1, %v734
        %v736 = vrot.slane %v727, %v735
        %v739 = vmul.f32 %v725, %v732
        %v740 = vmul.f32 %v724, %v736
        %741 = vst [vmem:[#allocation2 + $0x110] sm:$0xff] %v739
        %742 = vst [vmem:[#allocation2 + $0x118] sm:$0xff] %v740
        %743 = vrot.lane.b32.xlu0 %v308, 15
        %v744 = vpop.permute.xlu0 %743
        %745 = vrot.lane.b32.xlu0 %v309, 15
        %v746 = vpop.permute.xlu0 %745
        %vm747 = vcmp.lt.s32.totalorder %v315, 15
        %v748 = vsel %vm747, %v744, %v746
        %v749 = vsel %vm747, %v746, %v744
        %s750 = scalar_lea.vmem [#allocation9], 36
        %v751 = vld [vmem:[%s750] sm:$0x3]
        %v753 = vlaneseq
        %v754 = vshrl.u32 %v753, 7
        %v755 = vsub.s32 0, %v754
        %v756 = vrot.slane %v751, %v755
        %v757 = vlaneseq
        %v758 = vshrl.u32 %v757, 7
        %v759 = vsub.s32 1, %v758
        %v760 = vrot.slane %v751, %v759
        %v763 = vmul.f32 %v749, %v756
        %v764 = vmul.f32 %v748, %v760
        %765 = vst [vmem:[#allocation2 + $0x120] sm:$0xff] %v763
        %766 = vst [vmem:[#allocation2 + $0x128] sm:$0xff] %v764
        %767 = vrot.lane.b32.xlu0 %v308, 14
        %v768 = vpop.permute.xlu0 %767
        %769 = vrot.lane.b32.xlu0 %v309, 14
        %v770 = vpop.permute.xlu0 %769
        %vm771 = vcmp.lt.s32.totalorder %v315, 14
        %v772 = vsel %vm771, %v768, %v770
        %v773 = vsel %vm771, %v770, %v768
        %s774 = scalar_lea.vmem [#allocation9], 38
        %v775 = vld [vmem:[%s774] sm:$0x3]
        %v777 = vlaneseq
        %v778 = vshrl.u32 %v777, 7
        %v779 = vsub.s32 0, %v778
        %v780 = vrot.slane %v775, %v779
        %v781 = vlaneseq
        %v782 = vshrl.u32 %v781, 7
        %v783 = vsub.s32 1, %v782
        %v784 = vrot.slane %v775, %v783
        %v787 = vmul.f32 %v773, %v780
        %v788 = vmul.f32 %v772, %v784
        %789 = vst [vmem:[#allocation2 + $0x130] sm:$0xff] %v787
        %790 = vst [vmem:[#allocation2 + $0x138] sm:$0xff] %v788
        %791 = vrot.lane.b32.xlu0 %v308, 13
        %v792 = vpop.permute.xlu0 %791
        %793 = vrot.lane.b32.xlu0 %v309, 13
        %v794 = vpop.permute.xlu0 %793
        %vm795 = vcmp.lt.s32.totalorder %v315, 13
        %v796 = vsel %vm795, %v792, %v794
        %v797 = vsel %vm795, %v794, %v792
        %s798 = scalar_lea.vmem [#allocation9], 40
        %v799 = vld [vmem:[%s798] sm:$0x3]
        %v801 = vlaneseq
        %v802 = vshrl.u32 %v801, 7
        %v803 = vsub.s32 0, %v802
        %v804 = vrot.slane %v799, %v803
        %v805 = vlaneseq
        %v806 = vshrl.u32 %v805, 7
        %v807 = vsub.s32 1, %v806
        %v808 = vrot.slane %v799, %v807
        %v811 = vmul.f32 %v797, %v804
        %v812 = vmul.f32 %v796, %v808
        %813 = vst [vmem:[#allocation2 + $0x140] sm:$0xff] %v811
        %814 = vst [vmem:[#allocation2 + $0x148] sm:$0xff] %v812
        %815 = vrot.lane.b32.xlu0 %v308, 3
        %v816 = vpop.permute.xlu0 %815
        %817 = vrot.lane.b32.xlu0 %v309, 3
        %v818 = vpop.permute.xlu0 %817
        %vm819 = vcmp.lt.s32.totalorder %v315, 3
        %v820 = vsel %vm819, %v816, %v818
        %v821 = vsel %vm819, %v818, %v816
        %s822 = scalar_lea.vmem [#allocation9], 42
        %v823 = vld [vmem:[%s822] sm:$0x3]
        %v825 = vlaneseq
        %v826 = vshrl.u32 %v825, 7
        %v827 = vsub.s32 0, %v826
        %v828 = vrot.slane %v823, %v827
        %v829 = vlaneseq
        %v830 = vshrl.u32 %v829, 7
        %v831 = vsub.s32 1, %v830
        %v832 = vrot.slane %v823, %v831
        %v835 = vmul.f32 %v821, %v828
        %v836 = vmul.f32 %v820, %v832
        %837 = vst [vmem:[#allocation2 + $0x150] sm:$0xff] %v835
        %838 = vst [vmem:[#allocation2 + $0x158] sm:$0xff] %v836
        %839 = vrot.lane.b32.xlu0 %v308, 2
        %v840 = vpop.permute.xlu0 %839
        %841 = vrot.lane.b32.xlu0 %v309, 2
        %v842 = vpop.permute.xlu0 %841
        %vm843 = vcmp.lt.s32.totalorder %v315, 2
        %v844 = vsel %vm843, %v840, %v842
        %v845 = vsel %vm843, %v842, %v840
        %s846 = scalar_lea.vmem [#allocation9], 44
        %v847 = vld [vmem:[%s846] sm:$0x3]
        %v849 = vlaneseq
        %v850 = vshrl.u32 %v849, 7
        %v851 = vsub.s32 0, %v850
        %v852 = vrot.slane %v847, %v851
        %v853 = vlaneseq
        %v854 = vshrl.u32 %v853, 7
        %v855 = vsub.s32 1, %v854
        %v856 = vrot.slane %v847, %v855
        %v859 = vmul.f32 %v845, %v852
        %v860 = vmul.f32 %v844, %v856
        %861 = vst [vmem:[#allocation2 + $0x160] sm:$0xff] %v859
        %862 = vst [vmem:[#allocation2 + $0x168] sm:$0xff] %v860
        %863 = vrot.lane.b32.xlu0 %v308, 1
        %v864 = vpop.permute.xlu0 %863
        %865 = vrot.lane.b32.xlu0 %v309, 1
        %v866 = vpop.permute.xlu0 %865
        %vm867 = vcmp.lt.s32.totalorder %v315, 1
        %v868 = vsel %vm867, %v864, %v866
        %v869 = vsel %vm867, %v866, %v864
        %s870 = scalar_lea.vmem [#allocation9], 46
        %v871 = vld [vmem:[%s870] sm:$0x3]
        %v873 = vlaneseq
        %v874 = vshrl.u32 %v873, 7
        %v875 = vsub.s32 0, %v874
        %v876 = vrot.slane %v871, %v875
        %v877 = vlaneseq
        %v878 = vshrl.u32 %v877, 7
        %v879 = vsub.s32 1, %v878
        %v880 = vrot.slane %v871, %v879
        %v883 = vmul.f32 %v869, %v876
        %v884 = vmul.f32 %v868, %v880
        %885 = vst [vmem:[#allocation2 + $0x170] sm:$0xff] %v883
        %886 = vst [vmem:[#allocation2 + $0x178] sm:$0xff] %v884
        %s887 = scalar_lea.vmem [#allocation9], 48
        %v888 = vld [vmem:[%s887] sm:$0x3]
        %v890 = vlaneseq
        %v891 = vshrl.u32 %v890, 7
        %v892 = vsub.s32 0, %v891
        %v893 = vrot.slane %v888, %v892
        %v894 = vlaneseq
        %v895 = vshrl.u32 %v894, 7
        %v896 = vsub.s32 1, %v895
        %v897 = vrot.slane %v888, %v896
        %v900 = vmul.f32 %v308, %v893
        %v901 = vmul.f32 %v309, %v897
        %902 = vst [vmem:[#allocation2 + $0x180] sm:$0xff] %v900
        %903 = vst [vmem:[#allocation2 + $0x188] sm:$0xff] %v901
        %904 = vrot.lane.b32.xlu0 %v308, 127
        %v905 = vpop.permute.xlu0 %904
        %906 = vrot.lane.b32.xlu0 %v309, 127
        %v907 = vpop.permute.xlu0 %906
        %vm908 = vcmp.lt.s32.totalorder %v315, 127
        %v909 = vsel %vm908, %v905, %v907
        %v910 = vsel %vm908, %v907, %v905
        %s911 = scalar_lea.vmem [#allocation9], 50
        %v912 = vld [vmem:[%s911] sm:$0x3]
        %v914 = vlaneseq
        %v915 = vshrl.u32 %v914, 7
        %v916 = vsub.s32 0, %v915
        %v917 = vrot.slane %v912, %v916
        %v918 = vlaneseq
        %v919 = vshrl.u32 %v918, 7
        %v920 = vsub.s32 1, %v919
        %v921 = vrot.slane %v912, %v920
        %v924 = vmul.f32 %v909, %v917
        %v925 = vmul.f32 %v910, %v921
        %926 = vst [vmem:[#allocation2 + $0x190] sm:$0xff] %v924
        %927 = vst [vmem:[#allocation2 + $0x198] sm:$0xff] %v925
        %928 = vrot.lane.b32.xlu0 %v308, 126
        %v929 = vpop.permute.xlu0 %928
        %930 = vrot.lane.b32.xlu0 %v309, 126
        %v931 = vpop.permute.xlu0 %930
        %vm932 = vcmp.lt.s32.totalorder %v315, 126
        %v933 = vsel %vm932, %v929, %v931
        %v934 = vsel %vm932, %v931, %v929
        %s935 = scalar_lea.vmem [#allocation9], 52
        %v936 = vld [vmem:[%s935] sm:$0x3]
        %v938 = vlaneseq
        %v939 = vshrl.u32 %v938, 7
        %v940 = vsub.s32 0, %v939
        %v941 = vrot.slane %v936, %v940
        %v942 = vlaneseq
        %v943 = vshrl.u32 %v942, 7
        %v944 = vsub.s32 1, %v943
        %v945 = vrot.slane %v936, %v944
        %v948 = vmul.f32 %v933, %v941
        %v949 = vmul.f32 %v934, %v945
        %950 = vst [vmem:[#allocation2 + $0x1a0] sm:$0xff] %v948
        %951 = vst [vmem:[#allocation2 + $0x1a8] sm:$0xff] %v949
        %952 = vrot.lane.b32.xlu0 %v308, 125
        %v953 = vpop.permute.xlu0 %952
        %954 = vrot.lane.b32.xlu0 %v309, 125
        %v955 = vpop.permute.xlu0 %954
        %vm956 = vcmp.lt.s32.totalorder %v315, 125
        %v957 = vsel %vm956, %v953, %v955
        %v958 = vsel %vm956, %v955, %v953
        %s959 = scalar_lea.vmem [#allocation9], 54
        %v960 = vld [vmem:[%s959] sm:$0x3]
        %v962 = vlaneseq
        %v963 = vshrl.u32 %v962, 7
        %v964 = vsub.s32 0, %v963
        %v965 = vrot.slane %v960, %v964
        %v966 = vlaneseq
        %v967 = vshrl.u32 %v966, 7
        %v968 = vsub.s32 1, %v967
        %v969 = vrot.slane %v960, %v968
        %v972 = vmul.f32 %v957, %v965
        %v973 = vmul.f32 %v958, %v969
        %974 = vst [vmem:[#allocation2 + $0x1b0] sm:$0xff] %v972
        %975 = vst [vmem:[#allocation2 + $0x1b8] sm:$0xff] %v973
        %976 = vrot.lane.b32.xlu0 %v308, 115
        %v977 = vpop.permute.xlu0 %976
        %978 = vrot.lane.b32.xlu0 %v309, 115
        %v979 = vpop.permute.xlu0 %978
        %vm980 = vcmp.lt.s32.totalorder %v315, 115
        %v981 = vsel %vm980, %v977, %v979
        %v982 = vsel %vm980, %v979, %v977
        %s983 = scalar_lea.vmem [#allocation9], 56
        %v984 = vld [vmem:[%s983] sm:$0x3]
        %v986 = vlaneseq
        %v987 = vshrl.u32 %v986, 7
        %v988 = vsub.s32 0, %v987
        %v989 = vrot.slane %v984, %v988
        %v990 = vlaneseq
        %v991 = vshrl.u32 %v990, 7
        %v992 = vsub.s32 1, %v991
        %v993 = vrot.slane %v984, %v992
        %v996 = vmul.f32 %v981, %v989
        %v997 = vmul.f32 %v982, %v993
        %998 = vst [vmem:[#allocation2 + $0x1c0] sm:$0xff] %v996
        %999 = vst [vmem:[#allocation2 + $0x1c8] sm:$0xff] %v997
        %1000 = vrot.lane.b32.xlu0 %v308, 114
        %v1001 = vpop.permute.xlu0 %1000
        %1002 = vrot.lane.b32.xlu0 %v309, 114
        %v1003 = vpop.permute.xlu0 %1002
        %vm1004 = vcmp.lt.s32.totalorder %v315, 114
        %v1005 = vsel %vm1004, %v1001, %v1003
        %v1006 = vsel %vm1004, %v1003, %v1001
        %s1007 = scalar_lea.vmem [#allocation9], 58
        %v1008 = vld [vmem:[%s1007] sm:$0x3]
        %v1010 = vlaneseq
        %v1011 = vshrl.u32 %v1010, 7
        %v1012 = vsub.s32 0, %v1011
        %v1013 = vrot.slane %v1008, %v1012
        %v1014 = vlaneseq
        %v1015 = vshrl.u32 %v1014, 7
        %v1016 = vsub.s32 1, %v1015
        %v1017 = vrot.slane %v1008, %v1016
        %v1020 = vmul.f32 %v1005, %v1013
        %v1021 = vmul.f32 %v1006, %v1017
        %1022 = vst [vmem:[#allocation2 + $0x1d0] sm:$0xff] %v1020
        %1023 = vst [vmem:[#allocation2 + $0x1d8] sm:$0xff] %v1021
        %1024 = vrot.lane.b32.xlu0 %v308, 113
        %v1025 = vpop.permute.xlu0 %1024
        %1026 = vrot.lane.b32.xlu0 %v309, 113
        %v1027 = vpop.permute.xlu0 %1026
        %vm1028 = vcmp.lt.s32.totalorder %v315, 113
        %v1029 = vsel %vm1028, %v1025, %v1027
        %v1030 = vsel %vm1028, %v1027, %v1025
        %s1031 = scalar_lea.vmem [#allocation9], 60
        %v1032 = vld [vmem:[%s1031] sm:$0x3]
        %v1034 = vlaneseq
        %v1035 = vshrl.u32 %v1034, 7
        %v1036 = vsub.s32 0, %v1035
        %v1037 = vrot.slane %v1032, %v1036
        %v1038 = vlaneseq
        %v1039 = vshrl.u32 %v1038, 7
        %v1040 = vsub.s32 1, %v1039
        %v1041 = vrot.slane %v1032, %v1040
        %v1044 = vmul.f32 %v1029, %v1037
        %v1045 = vmul.f32 %v1030, %v1041
        %1046 = vst [vmem:[#allocation2 + $0x1e0] sm:$0xff] %v1044
        %1047 = vst [vmem:[#allocation2 + $0x1e8] sm:$0xff] %v1045
        %1048 = vrot.lane.b32.xlu0 %v308, 112
        %v1049 = vpop.permute.xlu0 %1048
        %1050 = vrot.lane.b32.xlu0 %v309, 112
        %v1051 = vpop.permute.xlu0 %1050
        %vm1052 = vcmp.lt.s32.totalorder %v315, 112
        %v1053 = vsel %vm1052, %v1049, %v1051
        %v1054 = vsel %vm1052, %v1051, %v1049
        %s1055 = scalar_lea.vmem [#allocation9], 62
        %v1056 = vld [vmem:[%s1055] sm:$0x3]
        %v1058 = vlaneseq
        %v1059 = vshrl.u32 %v1058, 7
        %v1060 = vsub.s32 0, %v1059
        %v1061 = vrot.slane %v1056, %v1060
        %v1062 = vlaneseq
        %v1063 = vshrl.u32 %v1062, 7
        %v1064 = vsub.s32 1, %v1063
        %v1065 = vrot.slane %v1056, %v1064
        %v1068 = vmul.f32 %v1053, %v1061
        %v1069 = vmul.f32 %v1054, %v1065
        %1070 = vst [vmem:[#allocation2 + $0x1f0] sm:$0xff] %v1068
        %1071 = vst [vmem:[#allocation2 + $0x1f8] sm:$0xff] %v1069
        %1072 = vrot.lane.b32.xlu0 %v308, 111
        %v1073 = vpop.permute.xlu0 %1072
        %1074 = vrot.lane.b32.xlu0 %v309, 111
        %v1075 = vpop.permute.xlu0 %1074
        %vm1076 = vcmp.lt.s32.totalorder %v315, 111
        %v1077 = vsel %vm1076, %v1073, %v1075
        %v1078 = vsel %vm1076, %v1075, %v1073
        %s1079 = scalar_lea.vmem [#allocation9], 64
        %v1080 = vld [vmem:[%s1079] sm:$0x3]
        %v1082 = vlaneseq
        %v1083 = vshrl.u32 %v1082, 7
        %v1084 = vsub.s32 0, %v1083
        %v1085 = vrot.slane %v1080, %v1084
        %v1086 = vlaneseq
        %v1087 = vshrl.u32 %v1086, 7
        %v1088 = vsub.s32 1, %v1087
        %v1089 = vrot.slane %v1080, %v1088
        %v1092 = vmul.f32 %v1077, %v1085
        %v1093 = vmul.f32 %v1078, %v1089
        %1094 = vst [vmem:[#allocation2 + $0x200] sm:$0xff] %v1092
        %1095 = vst [vmem:[#allocation2 + $0x208] sm:$0xff] %v1093
        %1096 = vrot.lane.b32.xlu0 %v308, 110
        %v1097 = vpop.permute.xlu0 %1096
        %1098 = vrot.lane.b32.xlu0 %v309, 110
        %v1099 = vpop.permute.xlu0 %1098
        %vm1100 = vcmp.lt.s32.totalorder %v315, 110
        %v1101 = vsel %vm1100, %v1097, %v1099
        %v1102 = vsel %vm1100, %v1099, %v1097
        %s1103 = scalar_lea.vmem [#allocation9], 66
        %v1104 = vld [vmem:[%s1103] sm:$0x3]
        %v1106 = vlaneseq
        %v1107 = vshrl.u32 %v1106, 7
        %v1108 = vsub.s32 0, %v1107
        %v1109 = vrot.slane %v1104, %v1108
        %v1110 = vlaneseq
        %v1111 = vshrl.u32 %v1110, 7
        %v1112 = vsub.s32 1, %v1111
        %v1113 = vrot.slane %v1104, %v1112
        %v1116 = vmul.f32 %v1101, %v1109
        %v1117 = vmul.f32 %v1102, %v1113
        %1118 = vst [vmem:[#allocation2 + $0x210] sm:$0xff] %v1116
        %1119 = vst [vmem:[#allocation2 + $0x218] sm:$0xff] %v1117
        %1120 = vrot.lane.b32.xlu0 %v308, 109
        %v1121 = vpop.permute.xlu0 %1120
        %1122 = vrot.lane.b32.xlu0 %v309, 109
        %v1123 = vpop.permute.xlu0 %1122
        %vm1124 = vcmp.lt.s32.totalorder %v315, 109
        %v1125 = vsel %vm1124, %v1121, %v1123
        %v1126 = vsel %vm1124, %v1123, %v1121
        %s1127 = scalar_lea.vmem [#allocation9], 68
        %v1128 = vld [vmem:[%s1127] sm:$0x3]
        %v1130 = vlaneseq
        %v1131 = vshrl.u32 %v1130, 7
        %v1132 = vsub.s32 0, %v1131
        %v1133 = vrot.slane %v1128, %v1132
        %v1134 = vlaneseq
        %v1135 = vshrl.u32 %v1134, 7
        %v1136 = vsub.s32 1, %v1135
        %v1137 = vrot.slane %v1128, %v1136
        %v1140 = vmul.f32 %v1125, %v1133
        %v1141 = vmul.f32 %v1126, %v1137
        %1142 = vst [vmem:[#allocation2 + $0x220] sm:$0xff] %v1140
        %1143 = vst [vmem:[#allocation2 + $0x228] sm:$0xff] %v1141
        %1144 = vrot.lane.b32.xlu0 %v308, 99
        %v1145 = vpop.permute.xlu0 %1144
        %1146 = vrot.lane.b32.xlu0 %v309, 99
        %v1147 = vpop.permute.xlu0 %1146
        %vm1148 = vcmp.lt.s32.totalorder %v315, 99
        %v1149 = vsel %vm1148, %v1145, %v1147
        %v1150 = vsel %vm1148, %v1147, %v1145
        %s1151 = scalar_lea.vmem [#allocation9], 70
        %v1152 = vld [vmem:[%s1151] sm:$0x3]
        %v1154 = vlaneseq
        %v1155 = vshrl.u32 %v1154, 7
        %v1156 = vsub.s32 0, %v1155
        %v1157 = vrot.slane %v1152, %v1156
        %v1158 = vlaneseq
        %v1159 = vshrl.u32 %v1158, 7
        %v1160 = vsub.s32 1, %v1159
        %v1161 = vrot.slane %v1152, %v1160
        %v1164 = vmul.f32 %v1149, %v1157
        %v1165 = vmul.f32 %v1150, %v1161
        %1166 = vst [vmem:[#allocation2 + $0x230] sm:$0xff] %v1164
        %1167 = vst [vmem:[#allocation2 + $0x238] sm:$0xff] %v1165
        %1168 = vrot.lane.b32.xlu0 %v308, 98
        %v1169 = vpop.permute.xlu0 %1168
        %1170 = vrot.lane.b32.xlu0 %v309, 98
        %v1171 = vpop.permute.xlu0 %1170
        %vm1172 = vcmp.lt.s32.totalorder %v315, 98
        %v1173 = vsel %vm1172, %v1169, %v1171
        %v1174 = vsel %vm1172, %v1171, %v1169
        %s1175 = scalar_lea.vmem [#allocation9], 72
        %v1176 = vld [vmem:[%s1175] sm:$0x3]
        %v1178 = vlaneseq
        %v1179 = vshrl.u32 %v1178, 7
        %v1180 = vsub.s32 0, %v1179
        %v1181 = vrot.slane %v1176, %v1180
        %v1182 = vlaneseq
        %v1183 = vshrl.u32 %v1182, 7
        %v1184 = vsub.s32 1, %v1183
        %v1185 = vrot.slane %v1176, %v1184
        %v1188 = vmul.f32 %v1173, %v1181
        %v1189 = vmul.f32 %v1174, %v1185
        %1190 = vst [vmem:[#allocation2 + $0x240] sm:$0xff] %v1188
        %1191 = vst [vmem:[#allocation2 + $0x248] sm:$0xff] %v1189
        %1192 = vrot.lane.b32.xlu0 %v308, 97
        %v1193 = vpop.permute.xlu0 %1192
        %1194 = vrot.lane.b32.xlu0 %v309, 97
        %v1195 = vpop.permute.xlu0 %1194
        %vm1196 = vcmp.lt.s32.totalorder %v315, 97
        %v1197 = vsel %vm1196, %v1193, %v1195
        %v1198 = vsel %vm1196, %v1195, %v1193
        %s1199 = scalar_lea.vmem [#allocation9], 74
        %v1200 = vld [vmem:[%s1199] sm:$0x3]
        %v1202 = vlaneseq
        %v1203 = vshrl.u32 %v1202, 7
        %v1204 = vsub.s32 0, %v1203
        %v1205 = vrot.slane %v1200, %v1204
        %v1206 = vlaneseq
        %v1207 = vshrl.u32 %v1206, 7
        %v1208 = vsub.s32 1, %v1207
        %v1209 = vrot.slane %v1200, %v1208
        %v1212 = vmul.f32 %v1197, %v1205
        %v1213 = vmul.f32 %v1198, %v1209
        %1214 = vst [vmem:[#allocation2 + $0x250] sm:$0xff] %v1212
        %1215 = vst [vmem:[#allocation2 + $0x258] sm:$0xff] %v1213
        %1216 = vrot.lane.b32.xlu0 %v308, 96
        %v1217 = vpop.permute.xlu0 %1216
        %1218 = vrot.lane.b32.xlu0 %v309, 96
        %v1219 = vpop.permute.xlu0 %1218
        %vm1220 = vcmp.lt.s32.totalorder %v315, 96
        %v1221 = vsel %vm1220, %v1217, %v1219
        %v1222 = vsel %vm1220, %v1219, %v1217
        %s1223 = scalar_lea.vmem [#allocation9], 76
        %v1224 = vld [vmem:[%s1223] sm:$0x3]
        %v1226 = vlaneseq
        %v1227 = vshrl.u32 %v1226, 7
        %v1228 = vsub.s32 0, %v1227
        %v1229 = vrot.slane %v1224, %v1228
        %v1230 = vlaneseq
        %v1231 = vshrl.u32 %v1230, 7
        %v1232 = vsub.s32 1, %v1231
        %v1233 = vrot.slane %v1224, %v1232
        %v1236 = vmul.f32 %v1221, %v1229
        %v1237 = vmul.f32 %v1222, %v1233
        %1238 = vst [vmem:[#allocation2 + $0x260] sm:$0xff] %v1236
        %1239 = vst [vmem:[#allocation2 + $0x268] sm:$0xff] %v1237
        %1240 = vrot.lane.b32.xlu0 %v308, 95
        %v1241 = vpop.permute.xlu0 %1240
        %1242 = vrot.lane.b32.xlu0 %v309, 95
        %v1243 = vpop.permute.xlu0 %1242
        %vm1244 = vcmp.lt.s32.totalorder %v315, 95
        %v1245 = vsel %vm1244, %v1241, %v1243
        %v1246 = vsel %vm1244, %v1243, %v1241
        %s1247 = scalar_lea.vmem [#allocation9], 78
        %v1248 = vld [vmem:[%s1247] sm:$0x3]
        %v1250 = vlaneseq
        %v1251 = vshrl.u32 %v1250, 7
        %v1252 = vsub.s32 0, %v1251
        %v1253 = vrot.slane %v1248, %v1252
        %v1254 = vlaneseq
        %v1255 = vshrl.u32 %v1254, 7
        %v1256 = vsub.s32 1, %v1255
        %v1257 = vrot.slane %v1248, %v1256
        %v1260 = vmul.f32 %v1245, %v1253
        %v1261 = vmul.f32 %v1246, %v1257
        %1262 = vst [vmem:[#allocation2 + $0x270] sm:$0xff] %v1260
        %1263 = vst [vmem:[#allocation2 + $0x278] sm:$0xff] %v1261
        %1264 = vrot.lane.b32.xlu0 %v308, 94
        %v1265 = vpop.permute.xlu0 %1264
        %1266 = vrot.lane.b32.xlu0 %v309, 94
        %v1267 = vpop.permute.xlu0 %1266
        %vm1268 = vcmp.lt.s32.totalorder %v315, 94
        %v1269 = vsel %vm1268, %v1265, %v1267
        %v1270 = vsel %vm1268, %v1267, %v1265
        %s1271 = scalar_lea.vmem [#allocation9], 80
        %v1272 = vld [vmem:[%s1271] sm:$0x3]
        %v1274 = vlaneseq
        %v1275 = vshrl.u32 %v1274, 7
        %v1276 = vsub.s32 0, %v1275
        %v1277 = vrot.slane %v1272, %v1276
        %v1278 = vlaneseq
        %v1279 = vshrl.u32 %v1278, 7
        %v1280 = vsub.s32 1, %v1279
        %v1281 = vrot.slane %v1272, %v1280
        %v1284 = vmul.f32 %v1269, %v1277
        %v1285 = vmul.f32 %v1270, %v1281
        %1286 = vst [vmem:[#allocation2 + $0x280] sm:$0xff] %v1284
        %1287 = vst [vmem:[#allocation2 + $0x288] sm:$0xff] %v1285
        %1288 = vrot.lane.b32.xlu0 %v308, 93
        %v1289 = vpop.permute.xlu0 %1288
        %1290 = vrot.lane.b32.xlu0 %v309, 93
        %v1291 = vpop.permute.xlu0 %1290
        %vm1292 = vcmp.lt.s32.totalorder %v315, 93
        %v1293 = vsel %vm1292, %v1289, %v1291
        %v1294 = vsel %vm1292, %v1291, %v1289
        %s1295 = scalar_lea.vmem [#allocation9], 82
        %v1296 = vld [vmem:[%s1295] sm:$0x3]
        %v1298 = vlaneseq
        %v1299 = vshrl.u32 %v1298, 7
        %v1300 = vsub.s32 0, %v1299
        %v1301 = vrot.slane %v1296, %v1300
        %v1302 = vlaneseq
        %v1303 = vshrl.u32 %v1302, 7
        %v1304 = vsub.s32 1, %v1303
        %v1305 = vrot.slane %v1296, %v1304
        %v1308 = vmul.f32 %v1293, %v1301
        %v1309 = vmul.f32 %v1294, %v1305
        %1310 = vst [vmem:[#allocation2 + $0x290] sm:$0xff] %v1308
        %1311 = vst [vmem:[#allocation2 + $0x298] sm:$0xff] %v1309
        %1312 = vrot.lane.b32.xlu0 %v308, 83
        %v1313 = vpop.permute.xlu0 %1312
        %1314 = vrot.lane.b32.xlu0 %v309, 83
        %v1315 = vpop.permute.xlu0 %1314
        %vm1316 = vcmp.lt.s32.totalorder %v315, 83
        %v1317 = vsel %vm1316, %v1313, %v1315
        %v1318 = vsel %vm1316, %v1315, %v1313
        %s1319 = scalar_lea.vmem [#allocation9], 84
        %v1320 = vld [vmem:[%s1319] sm:$0x3]
        %v1322 = vlaneseq
        %v1323 = vshrl.u32 %v1322, 7
        %v1324 = vsub.s32 0, %v1323
        %v1325 = vrot.slane %v1320, %v1324
        %v1326 = vlaneseq
        %v1327 = vshrl.u32 %v1326, 7
        %v1328 = vsub.s32 1, %v1327
        %v1329 = vrot.slane %v1320, %v1328
        %v1332 = vmul.f32 %v1317, %v1325
        %v1333 = vmul.f32 %v1318, %v1329
        %1334 = vst [vmem:[#allocation2 + $0x2a0] sm:$0xff] %v1332
        %1335 = vst [vmem:[#allocation2 + $0x2a8] sm:$0xff] %v1333
        %1336 = vrot.lane.b32.xlu0 %v308, 82
        %v1337 = vpop.permute.xlu0 %1336
        %1338 = vrot.lane.b32.xlu0 %v309, 82
        %v1339 = vpop.permute.xlu0 %1338
        %vm1340 = vcmp.lt.s32.totalorder %v315, 82
        %v1341 = vsel %vm1340, %v1337, %v1339
        %v1342 = vsel %vm1340, %v1339, %v1337
        %s1343 = scalar_lea.vmem [#allocation9], 86
        %v1344 = vld [vmem:[%s1343] sm:$0x3]
        %v1346 = vlaneseq
        %v1347 = vshrl.u32 %v1346, 7
        %v1348 = vsub.s32 0, %v1347
        %v1349 = vrot.slane %v1344, %v1348
        %v1350 = vlaneseq
        %v1351 = vshrl.u32 %v1350, 7
        %v1352 = vsub.s32 1, %v1351
        %v1353 = vrot.slane %v1344, %v1352
        %v1356 = vmul.f32 %v1341, %v1349
        %v1357 = vmul.f32 %v1342, %v1353
        %1358 = vst [vmem:[#allocation2 + $0x2b0] sm:$0xff] %v1356
        %1359 = vst [vmem:[#allocation2 + $0x2b8] sm:$0xff] %v1357
        %1360 = vrot.lane.b32.xlu0 %v308, 81
        %v1361 = vpop.permute.xlu0 %1360
        %1362 = vrot.lane.b32.xlu0 %v309, 81
        %v1363 = vpop.permute.xlu0 %1362
        %vm1364 = vcmp.lt.s32.totalorder %v315, 81
        %v1365 = vsel %vm1364, %v1361, %v1363
        %v1366 = vsel %vm1364, %v1363, %v1361
        %s1367 = scalar_lea.vmem [#allocation9], 88
        %v1368 = vld [vmem:[%s1367] sm:$0x3]
        %v1370 = vlaneseq
        %v1371 = vshrl.u32 %v1370, 7
        %v1372 = vsub.s32 0, %v1371
        %v1373 = vrot.slane %v1368, %v1372
        %v1374 = vlaneseq
        %v1375 = vshrl.u32 %v1374, 7
        %v1376 = vsub.s32 1, %v1375
        %v1377 = vrot.slane %v1368, %v1376
        %v1380 = vmul.f32 %v1365, %v1373
        %v1381 = vmul.f32 %v1366, %v1377
        %1382 = vst [vmem:[#allocation2 + $0x2c0] sm:$0xff] %v1380
        %1383 = vst [vmem:[#allocation2 + $0x2c8] sm:$0xff] %v1381
        %1384 = vrot.lane.b32.xlu0 %v308, 80
        %v1385 = vpop.permute.xlu0 %1384
        %1386 = vrot.lane.b32.xlu0 %v309, 80
        %v1387 = vpop.permute.xlu0 %1386
        %vm1388 = vcmp.lt.s32.totalorder %v315, 80
        %v1389 = vsel %vm1388, %v1385, %v1387
        %v1390 = vsel %vm1388, %v1387, %v1385
        %s1391 = scalar_lea.vmem [#allocation9], 90
        %v1392 = vld [vmem:[%s1391] sm:$0x3]
        %v1394 = vlaneseq
        %v1395 = vshrl.u32 %v1394, 7
        %v1396 = vsub.s32 0, %v1395
        %v1397 = vrot.slane %v1392, %v1396
        %v1398 = vlaneseq
        %v1399 = vshrl.u32 %v1398, 7
        %v1400 = vsub.s32 1, %v1399
        %v1401 = vrot.slane %v1392, %v1400
        %v1404 = vmul.f32 %v1389, %v1397
        %v1405 = vmul.f32 %v1390, %v1401
        %1406 = vst [vmem:[#allocation2 + $0x2d0] sm:$0xff] %v1404
        %1407 = vst [vmem:[#allocation2 + $0x2d8] sm:$0xff] %v1405
        %1408 = vrot.lane.b32.xlu0 %v308, 79
        %v1409 = vpop.permute.xlu0 %1408
        %1410 = vrot.lane.b32.xlu0 %v309, 79
        %v1411 = vpop.permute.xlu0 %1410
        %vm1412 = vcmp.lt.s32.totalorder %v315, 79
        %v1413 = vsel %vm1412, %v1409, %v1411
        %v1414 = vsel %vm1412, %v1411, %v1409
        %s1415 = scalar_lea.vmem [#allocation9], 92
        %v1416 = vld [vmem:[%s1415] sm:$0x3]
        %v1418 = vlaneseq
        %v1419 = vshrl.u32 %v1418, 7
        %v1420 = vsub.s32 0, %v1419
        %v1421 = vrot.slane %v1416, %v1420
        %v1422 = vlaneseq
        %v1423 = vshrl.u32 %v1422, 7
        %v1424 = vsub.s32 1, %v1423
        %v1425 = vrot.slane %v1416, %v1424
        %v1428 = vmul.f32 %v1413, %v1421
        %v1429 = vmul.f32 %v1414, %v1425
        %1430 = vst [vmem:[#allocation2 + $0x2e0] sm:$0xff] %v1428
        %1431 = vst [vmem:[#allocation2 + $0x2e8] sm:$0xff] %v1429
        %1432 = vrot.lane.b32.xlu0 %v308, 78
        %v1433 = vpop.permute.xlu0 %1432
        %1434 = vrot.lane.b32.xlu0 %v309, 78
        %v1435 = vpop.permute.xlu0 %1434
        %vm1436 = vcmp.lt.s32.totalorder %v315, 78
        %v1437 = vsel %vm1436, %v1433, %v1435
        %v1438 = vsel %vm1436, %v1435, %v1433
        %s1439 = scalar_lea.vmem [#allocation9], 94
        %v1440 = vld [vmem:[%s1439] sm:$0x3]
        %v1442 = vlaneseq
        %v1443 = vshrl.u32 %v1442, 7
        %v1444 = vsub.s32 0, %v1443
        %v1445 = vrot.slane %v1440, %v1444
        %v1446 = vlaneseq
        %v1447 = vshrl.u32 %v1446, 7
        %v1448 = vsub.s32 1, %v1447
        %v1449 = vrot.slane %v1440, %v1448
        %v1452 = vmul.f32 %v1437, %v1445
        %v1453 = vmul.f32 %v1438, %v1449
        %1454 = vst [vmem:[#allocation2 + $0x2f0] sm:$0xff] %v1452
        %1455 = vst [vmem:[#allocation2 + $0x2f8] sm:$0xff] %v1453
        %1456 = vrot.lane.b32.xlu0 %v308, 77
        %v1457 = vpop.permute.xlu0 %1456
        %1458 = vrot.lane.b32.xlu0 %v309, 77
        %v1459 = vpop.permute.xlu0 %1458
        %vm1460 = vcmp.lt.s32.totalorder %v315, 77
        %v1461 = vsel %vm1460, %v1457, %v1459
        %v1462 = vsel %vm1460, %v1459, %v1457
        %s1463 = scalar_lea.vmem [#allocation9], 96
        %v1464 = vld [vmem:[%s1463] sm:$0x3]
        %v1466 = vlaneseq
        %v1467 = vshrl.u32 %v1466, 7
        %v1468 = vsub.s32 0, %v1467
        %v1469 = vrot.slane %v1464, %v1468
        %v1470 = vlaneseq
        %v1471 = vshrl.u32 %v1470, 7
        %v1472 = vsub.s32 1, %v1471
        %v1473 = vrot.slane %v1464, %v1472
        %v1476 = vmul.f32 %v1461, %v1469
        %v1477 = vmul.f32 %v1462, %v1473
        %1478 = vst [vmem:[#allocation2 + $0x300] sm:$0xff] %v1476
        %1479 = vst [vmem:[#allocation2 + $0x308] sm:$0xff] %v1477
        %v1480 = vld [vmem:[#allocation7] sm:$0xff]
        %v1481 = vld [vmem:[#allocation7 + $0x8] sm:$0xff]
        %v1482 = vld [vmem:[#allocation7 + $0x10] sm:$0xff]
        %v1483 = vld [vmem:[#allocation7 + $0x18] sm:$0xff]
        %v1484 = vld [vmem:[#allocation7 + $0x20] sm:$0xff]
        %v1485 = vld [vmem:[#allocation7 + $0x28] sm:$0xff]
        %v1486 = vld [vmem:[#allocation7 + $0x30] sm:$0xff]
        %v1487 = vld [vmem:[#allocation7 + $0x38] sm:$0xff]
        %v1488 = vld [vmem:[#allocation7 + $0x40] sm:$0xff]
        %v1489 = vld [vmem:[#allocation7 + $0x48] sm:$0xff]
        %v1490 = vld [vmem:[#allocation7 + $0x50] sm:$0xff]
        %v1491 = vld [vmem:[#allocation7 + $0x58] sm:$0xff]
        %v1492 = vld [vmem:[#allocation2] sm:$0xff]
        %v1493 = vld [vmem:[#allocation2 + $0x8] sm:$0xff]
        %v1494 = vld [vmem:[#allocation2 + $0x10] sm:$0xff]
        %v1495 = vld [vmem:[#allocation2 + $0x18] sm:$0xff]
        %v1496 = vld [vmem:[#allocation2 + $0x20] sm:$0xff]
        %v1497 = vld [vmem:[#allocation2 + $0x28] sm:$0xff]
        %v1498 = vld [vmem:[#allocation2 + $0x30] sm:$0xff]
        %v1499 = vld [vmem:[#allocation2 + $0x38] sm:$0xff]
        %v1500 = vld [vmem:[#allocation2 + $0x40] sm:$0xff]
        %v1501 = vld [vmem:[#allocation2 + $0x48] sm:$0xff]
        %v1502 = vld [vmem:[#allocation2 + $0x50] sm:$0xff]
        %v1503 = vld [vmem:[#allocation2 + $0x58] sm:$0xff]
        %v1504 = vld [vmem:[#allocation2 + $0x60] sm:$0xff]
        %v1505 = vld [vmem:[#allocation2 + $0x68] sm:$0xff]
        %v1506 = vld [vmem:[#allocation2 + $0x70] sm:$0xff]
        %v1507 = vld [vmem:[#allocation2 + $0x78] sm:$0xff]
        %v1508 = vld [vmem:[#allocation2 + $0x80] sm:$0xff]
        %v1509 = vld [vmem:[#allocation2 + $0x88] sm:$0xff]
        %v1510 = vld [vmem:[#allocation2 + $0x90] sm:$0xff]
        %v1511 = vld [vmem:[#allocation2 + $0x98] sm:$0xff]
        %v1512 = vld [vmem:[#allocation2 + $0xa0] sm:$0xff]
        %v1513 = vld [vmem:[#allocation2 + $0xa8] sm:$0xff]
        %v1514 = vld [vmem:[#allocation2 + $0xb0] sm:$0xff]
        %v1515 = vld [vmem:[#allocation2 + $0xb8] sm:$0xff]
        %v1516 = vld [vmem:[#allocation2 + $0xc0] sm:$0xff]
        %v1517 = vld [vmem:[#allocation2 + $0xc8] sm:$0xff]
        %v1518 = vld [vmem:[#allocation2 + $0xd0] sm:$0xff]
        %v1519 = vld [vmem:[#allocation2 + $0xd8] sm:$0xff]
        %v1520 = vld [vmem:[#allocation2 + $0xe0] sm:$0xff]
        %v1521 = vld [vmem:[#allocation2 + $0xe8] sm:$0xff]
        %v1522 = vld [vmem:[#allocation2 + $0xf0] sm:$0xff]
        %v1523 = vld [vmem:[#allocation2 + $0xf8] sm:$0xff]
        %v1524 = vld [vmem:[#allocation2 + $0x100] sm:$0xff]
        %v1525 = vld [vmem:[#allocation2 + $0x108] sm:$0xff]
        %v1526 = vld [vmem:[#allocation2 + $0x110] sm:$0xff]
        %v1527 = vld [vmem:[#allocation2 + $0x118] sm:$0xff]
        %v1528 = vld [vmem:[#allocation2 + $0x120] sm:$0xff]
        %v1529 = vld [vmem:[#allocation2 + $0x128] sm:$0xff]
        %v1530 = vld [vmem:[#allocation2 + $0x130] sm:$0xff]
        %v1531 = vld [vmem:[#allocation2 + $0x138] sm:$0xff]
        %v1532 = vld [vmem:[#allocation2 + $0x140] sm:$0xff]
        %v1533 = vld [vmem:[#allocation2 + $0x148] sm:$0xff]
        %v1534 = vld [vmem:[#allocation2 + $0x150] sm:$0xff]
        %v1535 = vld [vmem:[#allocation2 + $0x158] sm:$0xff]
        %v1536 = vld [vmem:[#allocation2 + $0x160] sm:$0xff]
        %v1537 = vld [vmem:[#allocation2 + $0x168] sm:$0xff]
        %v1538 = vld [vmem:[#allocation2 + $0x170] sm:$0xff]
        %v1539 = vld [vmem:[#allocation2 + $0x178] sm:$0xff]
        %v1540 = vld [vmem:[#allocation2 + $0x180] sm:$0xff]
        %v1541 = vld [vmem:[#allocation2 + $0x188] sm:$0xff]
        %v1542 = vld [vmem:[#allocation2 + $0x190] sm:$0xff]
        %v1543 = vld [vmem:[#allocation2 + $0x198] sm:$0xff]
        %v1544 = vld [vmem:[#allocation2 + $0x1a0] sm:$0xff]
        %v1545 = vld [vmem:[#allocation2 + $0x1a8] sm:$0xff]
        %v1546 = vld [vmem:[#allocation2 + $0x1b0] sm:$0xff]
        %v1547 = vld [vmem:[#allocation2 + $0x1b8] sm:$0xff]
        %v1548 = vld [vmem:[#allocation2 + $0x1c0] sm:$0xff]
        %v1549 = vld [vmem:[#allocation2 + $0x1c8] sm:$0xff]
        %v1550 = vld [vmem:[#allocation2 + $0x1d0] sm:$0xff]
        %v1551 = vld [vmem:[#allocation2 + $0x1d8] sm:$0xff]
        %v1552 = vld [vmem:[#allocation2 + $0x1e0] sm:$0xff]
        %v1553 = vld [vmem:[#allocation2 + $0x1e8] sm:$0xff]
        %v1554 = vld [vmem:[#allocation2 + $0x1f0] sm:$0xff]
        %v1555 = vld [vmem:[#allocation2 + $0x1f8] sm:$0xff]
        %v1556 = vld [vmem:[#allocation2 + $0x200] sm:$0xff]
        %v1557 = vld [vmem:[#allocation2 + $0x208] sm:$0xff]
        %v1558 = vld [vmem:[#allocation2 + $0x210] sm:$0xff]
        %v1559 = vld [vmem:[#allocation2 + $0x218] sm:$0xff]
        %v1560 = vld [vmem:[#allocation2 + $0x220] sm:$0xff]
        %v1561 = vld [vmem:[#allocation2 + $0x228] sm:$0xff]
        %v1562 = vld [vmem:[#allocation2 + $0x230] sm:$0xff]
        %v1563 = vld [vmem:[#allocation2 + $0x238] sm:$0xff]
        %v1564 = vld [vmem:[#allocation2 + $0x240] sm:$0xff]
        %v1565 = vld [vmem:[#allocation2 + $0x248] sm:$0xff]
        %v1566 = vld [vmem:[#allocation2 + $0x250] sm:$0xff]
        %v1567 = vld [vmem:[#allocation2 + $0x258] sm:$0xff]
        %v1568 = vld [vmem:[#allocation2 + $0x260] sm:$0xff]
        %v1569 = vld [vmem:[#allocation2 + $0x268] sm:$0xff]
        %v1570 = vld [vmem:[#allocation2 + $0x270] sm:$0xff]
        %v1571 = vld [vmem:[#allocation2 + $0x278] sm:$0xff]
        %v1572 = vld [vmem:[#allocation2 + $0x280] sm:$0xff]
        %v1573 = vld [vmem:[#allocation2 + $0x288] sm:$0xff]
        %v1574 = vld [vmem:[#allocation2 + $0x290] sm:$0xff]
        %v1575 = vld [vmem:[#allocation2 + $0x298] sm:$0xff]
        %v1576 = vld [vmem:[#allocation2 + $0x2a0] sm:$0xff]
        %v1577 = vld [vmem:[#allocation2 + $0x2a8] sm:$0xff]
        %v1578 = vld [vmem:[#allocation2 + $0x2b0] sm:$0xff]
        %v1579 = vld [vmem:[#allocation2 + $0x2b8] sm:$0xff]
        %v1580 = vld [vmem:[#allocation2 + $0x2c0] sm:$0xff]
        %v1581 = vld [vmem:[#allocation2 + $0x2c8] sm:$0xff]
        %v1582 = vld [vmem:[#allocation2 + $0x2d0] sm:$0xff]
        %v1583 = vld [vmem:[#allocation2 + $0x2d8] sm:$0xff]
        %v1584 = vld [vmem:[#allocation2 + $0x2e0] sm:$0xff]
        %v1585 = vld [vmem:[#allocation2 + $0x2e8] sm:$0xff]
        %v1586 = vld [vmem:[#allocation2 + $0x2f0] sm:$0xff]
        %v1587 = vld [vmem:[#allocation2 + $0x2f8] sm:$0xff]
        %v1588 = vld [vmem:[#allocation2 + $0x300] sm:$0xff]
        %v1589 = vld [vmem:[#allocation2 + $0x308] sm:$0xff]
        %vm1590 = vcmask 64512
        %v1592 = vsel %vm1590, %v1483, 0
        %v1595 = vsel %vm1590, %v1487, 0
        %v1598 = vsel %vm1590, %v1491, 0
        %1600 = vmatprep.subr.mxu0 %v1523
        %1601 = vmatpush1.msra.mxu0 %v1522
        %1602 = vmatprep.subr.mxu0 %v1521
        %1603 = vmatpush1.msra.mxu0 %v1520
        %1604 = vmatprep.subr.mxu0 %v1519
        %1605 = vmatpush1.msra.mxu0 %v1518
        %1606 = vmatprep.subr.mxu0 %v1517
        %1607 = vmatpush1.msra.mxu0 %v1516
        %1608 = vmatprep.subr.mxu0 %v1515
        %1609 = vmatpush1.msra.mxu0 %v1514
        %1610 = vmatprep.subr.mxu0 %v1513
        %1611 = vmatpush1.msra.mxu0 %v1512
        %1612 = vmatprep.subr.mxu0 %v1511
        %1613 = vmatpush1.msra.mxu0 %v1510
        %1614 = vmatprep.subr.mxu0 %v1509
        %1615 = vmatpush1.msra.mxu0 %v1508
        %1616 = vmatprep.subr.mxu0 %v1507
        %1617 = vmatpush1.msra.mxu0 %v1506
        %1618 = vmatprep.subr.mxu0 %v1505
        %1619 = vmatpush1.msra.mxu0 %v1504
        %1620 = vmatprep.subr.mxu0 %v1503
        %1621 = vmatpush1.msra.mxu0 %v1502
        %1622 = vmatprep.subr.mxu0 %v1501
        %1623 = vmatpush1.msra.mxu0 %v1500
        %1624 = vmatprep.subr.mxu0 %v1499
        %1625 = vmatpush1.msra.mxu0 %v1498
        %1626 = vmatprep.subr.mxu0 %v1497
        %1627 = vmatpush1.msra.mxu0 %v1496
        %1628 = vmatprep.subr.mxu0 %v1495
        %1629 = vmatpush1.msra.mxu0 %v1494
        %1630 = vmatprep.subr.mxu0 %v1493
        %1631 = vmatpush1.msra.mxu0 %v1492
        %1632 = vmatprep.subr.mxu0 %v1555
        %1633 = vmatpush2.msra.mxu0 %v1554
        %1634 = vmatprep.subr.mxu0 %v1553
        %1635 = vmatpush2.msra.mxu0 %v1552
        %1636 = vmatprep.subr.mxu0 %v1551
        %1637 = vmatpush2.msra.mxu0 %v1550
        %1638 = vmatprep.subr.mxu0 %v1549
        %1639 = vmatpush2.msra.mxu0 %v1548
        %1640 = vmatprep.subr.mxu0 %v1547
        %1641 = vmatpush2.msra.mxu0 %v1546
        %1642 = vmatprep.subr.mxu0 %v1545
        %1643 = vmatpush2.msra.mxu0 %v1544
        %1644 = vmatprep.subr.mxu0 %v1543
        %1645 = vmatpush2.msra.mxu0 %v1542
        %1646 = vmatprep.subr.mxu0 %v1541
        %1647 = vmatpush2.msra.mxu0 %v1540
        %1648 = vmatprep.subr.mxu0 %v1539
        %1649 = vmatpush2.msra.mxu0 %v1538
        %1650 = vmatprep.subr.mxu0 %v1537
        %1651 = vmatpush2.msra.mxu0 %v1536
        %1652 = vmatprep.subr.mxu0 %v1535
        %1653 = vmatpush2.msra.mxu0 %v1534
        %1654 = vmatprep.subr.mxu0 %v1533
        %1655 = vmatpush2.msra.mxu0 %v1532
        %1656 = vmatprep.subr.mxu0 %v1531
        %1657 = vmatpush2.msra.mxu0 %v1530
        %1658 = vmatprep.subr.mxu0 %v1529
        %1659 = vmatpush2.msra.mxu0 %v1528
        %1660 = vmatprep.subr.mxu0 %v1527
        %1661 = vmatpush2.msra.mxu0 %v1526
        %1662 = vmatprep.subr.mxu0 %v1525
        %1663 = vmatpush2.msra.mxu0 %v1524
        %1664 = vmatprep.mubr.f32.mxu0 %v1481
        %1665 = vmatmul.mubr.f32.gmra.mxu0 %v1480
        %v1666 = vpop.f32.mrf.mxu0
        %v1667 = vadd.f32 0.0, %v1666
        %v1668 = vpop.f32.mrf.mxu0
        %v1669 = vadd.f32 0.0, %v1668
        %1670 = vmatprep.mubr.f32.mxu0 %v1485
        %1671 = vmatmul.mubr.f32.gmra.mxu0 %v1484
        %v1672 = vpop.f32.mrf.mxu0
        %v1673 = vadd.f32 0.0, %v1672
        %v1674 = vpop.f32.mrf.mxu0
        %v1675 = vadd.f32 0.0, %v1674
        %1676 = vmatprep.mubr.f32.mxu0 %v1489
        %1677 = vmatmul.mubr.f32.gmra.mxu0 %v1488
        %v1678 = vpop.f32.mrf.mxu0
        %v1679 = vadd.f32 0.0, %v1678
        %v1680 = vpop.f32.mrf.mxu0
        %v1681 = vadd.f32 0.0, %v1680
        %1682 = vdwg.mxu0
        %1683 = vmatprep.subr.mxu0 %v1587
        %1684 = vmatpush1.msra.mxu0 %v1586
        %1685 = vmatprep.subr.mxu0 %v1585
        %1686 = vmatpush1.msra.mxu0 %v1584
        %1687 = vmatprep.subr.mxu0 %v1583
        %1688 = vmatpush1.msra.mxu0 %v1582
        %1689 = vmatprep.subr.mxu0 %v1581
        %1690 = vmatpush1.msra.mxu0 %v1580
        %1691 = vmatprep.subr.mxu0 %v1579
        %1692 = vmatpush1.msra.mxu0 %v1578
        %1693 = vmatprep.subr.mxu0 %v1577
        %1694 = vmatpush1.msra.mxu0 %v1576
        %1695 = vmatprep.subr.mxu0 %v1575
        %1696 = vmatpush1.msra.mxu0 %v1574
        %1697 = vmatprep.subr.mxu0 %v1573
        %1698 = vmatpush1.msra.mxu0 %v1572
        %1699 = vmatprep.subr.mxu0 %v1571
        %1700 = vmatpush1.msra.mxu0 %v1570
        %1701 = vmatprep.subr.mxu0 %v1569
        %1702 = vmatpush1.msra.mxu0 %v1568
        %1703 = vmatprep.subr.mxu0 %v1567
        %1704 = vmatpush1.msra.mxu0 %v1566
        %1705 = vmatprep.subr.mxu0 %v1565
        %1706 = vmatpush1.msra.mxu0 %v1564
        %1707 = vmatprep.subr.mxu0 %v1563
        %1708 = vmatpush1.msra.mxu0 %v1562
        %1709 = vmatprep.subr.mxu0 %v1561
        %1710 = vmatpush1.msra.mxu0 %v1560
        %1711 = vmatprep.subr.mxu0 %v1559
        %1712 = vmatpush1.msra.mxu0 %v1558
        %1713 = vmatprep.subr.mxu0 %v1557
        %1714 = vmatpush1.msra.mxu0 %v1556
        %1715 = vmatprep.subr.mxu0 0.0
        %1716 = vmatpush2.msra.mxu0 0.0
        %1717 = vmatprep.subr.mxu0 0.0
        %1718 = vmatpush2.msra.mxu0 0.0
        %1719 = vmatprep.subr.mxu0 0.0
        %1720 = vmatpush2.msra.mxu0 0.0
        %1721 = vmatprep.subr.mxu0 0.0
        %1722 = vmatpush2.msra.mxu0 0.0
        %1723 = vmatprep.subr.mxu0 0.0
        %1724 = vmatpush2.msra.mxu0 0.0
        %1725 = vmatprep.subr.mxu0 0.0
        %1726 = vmatpush2.msra.mxu0 0.0
        %1727 = vmatprep.subr.mxu0 0.0
        %1728 = vmatpush2.msra.mxu0 0.0
        %1729 = vmatprep.subr.mxu0 0.0
        %1730 = vmatpush2.msra.mxu0 0.0
        %1731 = vmatprep.subr.mxu0 0.0
        %1732 = vmatpush2.msra.mxu0 0.0
        %1733 = vmatprep.subr.mxu0 0.0
        %1734 = vmatpush2.msra.mxu0 0.0
        %1735 = vmatprep.subr.mxu0 0.0
        %1736 = vmatpush2.msra.mxu0 0.0
        %1737 = vmatprep.subr.mxu0 0.0
        %1738 = vmatpush2.msra.mxu0 0.0
        %1739 = vmatprep.subr.mxu0 0.0
        %1740 = vmatpush2.msra.mxu0 0.0
        %1741 = vmatprep.subr.mxu0 0.0
        %1742 = vmatpush2.msra.mxu0 0.0
        %1743 = vmatprep.subr.mxu0 0.0
        %1744 = vmatpush2.msra.mxu0 0.0
        %1745 = vmatprep.subr.mxu0 %v1589
        %1746 = vmatpush2.msra.mxu0 %v1588
        %1747 = vmatprep.mubr.f32.mxu0 %v1592
        %1748 = vmatmul.mubr.f32.gmra.mxu0 %v1482
        %v1749 = vpop.f32.mrf.mxu0
        %v1750 = vadd.f32 %v1667, %v1749
        %v1751 = vpop.f32.mrf.mxu0
        %v1752 = vadd.f32 %v1669, %v1751
        %1753 = vmatprep.mubr.f32.mxu0 %v1595
        %1754 = vmatmul.mubr.f32.gmra.mxu0 %v1486
        %v1755 = vpop.f32.mrf.mxu0
        %v1756 = vadd.f32 %v1673, %v1755
        %v1757 = vpop.f32.mrf.mxu0
        %v1758 = vadd.f32 %v1675, %v1757
        %1759 = vmatprep.mubr.f32.mxu0 %v1598
        %1760 = vmatmul.mubr.f32.gmra.mxu0 %v1490
        %v1761 = vpop.f32.mrf.mxu0
        %v1762 = vadd.f32 %v1679, %v1761
        %v1763 = vpop.f32.mrf.mxu0
        %v1764 = vadd.f32 %v1681, %v1763
        %1765 = vdwg.mxu0
        %v1766 = vld [vmem:[#allocation10] sm:$0xff]
        %v1767 = vld [vmem:[#allocation10 + $0x8] sm:$0xff]
        %vm1768 = vcmask 130048
        %v1770 = vsel %vm1768, %v1750, 0
        %v1773 = vsel %vm1768, %v1756, 0
        %v1776 = vsel %vm1768, %v1762, 0
        %1778 = vmatprep.subr.mxu0 0.0
        %1779 = vmatpush1.msra.mxu0 0.0
        %1780 = vmatprep.subr.mxu0 0.0
        %1781 = vmatpush1.msra.mxu0 0.0
        %1782 = vmatprep.subr.mxu0 0.0
        %1783 = vmatpush1.msra.mxu0 0.0
        %1784 = vmatprep.subr.mxu0 0.0
        %1785 = vmatpush1.msra.mxu0 0.0
        %1786 = vmatprep.subr.mxu0 0.0
        %1787 = vmatpush1.msra.mxu0 0.0
        %1788 = vmatprep.subr.mxu0 0.0
        %1789 = vmatpush1.msra.mxu0 0.0
        %1790 = vmatprep.subr.mxu0 0.0
        %1791 = vmatpush1.msra.mxu0 0.0
        %1792 = vmatprep.subr.mxu0 0.0
        %1793 = vmatpush1.msra.mxu0 0.0
        %1794 = vmatprep.subr.mxu0 0.0
        %1795 = vmatpush1.msra.mxu0 0.0
        %1796 = vmatprep.subr.mxu0 0.0
        %1797 = vmatpush1.msra.mxu0 0.0
        %1798 = vmatprep.subr.mxu0 0.0
        %1799 = vmatpush1.msra.mxu0 0.0
        %1800 = vmatprep.subr.mxu0 0.0
        %1801 = vmatpush1.msra.mxu0 0.0
        %1802 = vmatprep.subr.mxu0 0.0
        %1803 = vmatpush1.msra.mxu0 0.0
        %1804 = vmatprep.subr.mxu0 0.0
        %1805 = vmatpush1.msra.mxu0 0.0
        %1806 = vmatprep.subr.mxu0 0.0
        %1807 = vmatpush1.msra.mxu0 %v1767
        %1808 = vmatprep.subr.mxu0 0.0
        %1809 = vmatpush1.msra.mxu0 %v1766
        %1810 = vmatprep.subr.mxu0 0.0
        %1811 = vmatpush2.msra.mxu0 0.0
        %1812 = vmatprep.subr.mxu0 0.0
        %1813 = vmatpush2.msra.mxu0 0.0
        %1814 = vmatprep.subr.mxu0 0.0
        %1815 = vmatpush2.msra.mxu0 0.0
        %1816 = vmatprep.subr.mxu0 0.0
        %1817 = vmatpush2.msra.mxu0 0.0
        %1818 = vmatprep.subr.mxu0 0.0
        %1819 = vmatpush2.msra.mxu0 0.0
        %1820 = vmatprep.subr.mxu0 0.0
        %1821 = vmatpush2.msra.mxu0 0.0
        %1822 = vmatprep.subr.mxu0 0.0
        %1823 = vmatpush2.msra.mxu0 0.0
        %1824 = vmatprep.subr.mxu0 0.0
        %1825 = vmatpush2.msra.mxu0 0.0
        %1826 = vmatprep.subr.mxu0 0.0
        %1827 = vmatpush2.msra.mxu0 0.0
        %1828 = vmatprep.subr.mxu0 0.0
        %1829 = vmatpush2.msra.mxu0 0.0
        %1830 = vmatprep.subr.mxu0 0.0
        %1831 = vmatpush2.msra.mxu0 0.0
        %1832 = vmatprep.subr.mxu0 0.0
        %1833 = vmatpush2.msra.mxu0 0.0
        %1834 = vmatprep.subr.mxu0 0.0
        %1835 = vmatpush2.msra.mxu0 0.0
        %1836 = vmatprep.subr.mxu0 0.0
        %1837 = vmatpush2.msra.mxu0 0.0
        %1838 = vmatprep.subr.mxu0 0.0
        %1839 = vmatpush2.msra.mxu0 0.0
        %1840 = vmatprep.subr.mxu0 0.0
        %1841 = vmatpush2.msra.mxu0 0.0
        %1842 = vmatprep.mubr.f32.mxu0 0.0
        %1843 = vmatmul.mubr.f32.gmra.mxu0 %v1770
        %v1844 = vpop.f32.mrf.mxu0
        %v1845 = vadd.f32 0.0, %v1844
        %v1846 = vpop.f32.mrf.mxu0
        %1847 = vmatprep.mubr.f32.mxu0 0.0
        %1848 = vmatmul.mubr.f32.gmra.mxu0 %v1773
        %v1849 = vpop.f32.mrf.mxu0
        %v1850 = vadd.f32 0.0, %v1849
        %v1851 = vpop.f32.mrf.mxu0
        %1852 = vmatprep.mubr.f32.mxu0 0.0
        %1853 = vmatmul.mubr.f32.gmra.mxu0 %v1776
        %v1854 = vpop.f32.mrf.mxu0
        %v1855 = vadd.f32 0.0, %v1854
        %v1856 = vpop.f32.mrf.mxu0
        %1857 = vdwg.mxu0
        %1858 = vst [vmem:[#allocation3] sm:$0xff] %v1845
        %1859 = vst [vmem:[#allocation3 + $0x8] sm:$0xff] %v1850
        %1860 = vst [vmem:[#allocation3 + $0x10] sm:$0xff] %v1855
        %1861 = vrot.lane.b32.xlu0 %v1750, 112
        %v1862 = vpop.permute.xlu0 %1861
        %1863 = vrot.lane.b32.xlu0 %v1756, 112
        %v1864 = vpop.permute.xlu0 %1863
        %1865 = vrot.lane.b32.xlu0 %v1762, 112
        %v1866 = vpop.permute.xlu0 %1865
        %v1867 = vsel %vm1768, %v1862, 0
        %v1869 = vsel %vm1768, %v1864, 0
        %v1871 = vsel %vm1768, %v1866, 0
        %1873 = vmatprep.subr.mxu0 0.0
        %1874 = vmatpush1.msra.mxu0 0.0
        %1875 = vmatprep.subr.mxu0 0.0
        %1876 = vmatpush1.msra.mxu0 0.0
        %1877 = vmatprep.subr.mxu0 0.0
        %1878 = vmatpush1.msra.mxu0 0.0
        %1879 = vmatprep.subr.mxu0 0.0
        %1880 = vmatpush1.msra.mxu0 0.0
        %1881 = vmatprep.subr.mxu0 0.0
        %1882 = vmatpush1.msra.mxu0 0.0
        %1883 = vmatprep.subr.mxu0 0.0
        %1884 = vmatpush1.msra.mxu0 0.0
        %1885 = vmatprep.subr.mxu0 0.0
        %1886 = vmatpush1.msra.mxu0 0.0
        %1887 = vmatprep.subr.mxu0 0.0
        %1888 = vmatpush1.msra.mxu0 0.0
        %1889 = vmatprep.subr.mxu0 0.0
        %1890 = vmatpush1.msra.mxu0 0.0
        %1891 = vmatprep.subr.mxu0 0.0
        %1892 = vmatpush1.msra.mxu0 0.0
        %1893 = vmatprep.subr.mxu0 0.0
        %1894 = vmatpush1.msra.mxu0 0.0
        %1895 = vmatprep.subr.mxu0 0.0
        %1896 = vmatpush1.msra.mxu0 0.0
        %1897 = vmatprep.subr.mxu0 0.0
        %1898 = vmatpush1.msra.mxu0 0.0
        %1899 = vmatprep.subr.mxu0 0.0
        %1900 = vmatpush1.msra.mxu0 0.0
        %1901 = vmatprep.subr.mxu0 0.0
        %1902 = vmatpush1.msra.mxu0 %v1767
        %1903 = vmatprep.subr.mxu0 0.0
        %1904 = vmatpush1.msra.mxu0 %v1766
        %1905 = vmatprep.subr.mxu0 0.0
        %1906 = vmatpush2.msra.mxu0 0.0
        %1907 = vmatprep.subr.mxu0 0.0
        %1908 = vmatpush2.msra.mxu0 0.0
        %1909 = vmatprep.subr.mxu0 0.0
        %1910 = vmatpush2.msra.mxu0 0.0
        %1911 = vmatprep.subr.mxu0 0.0
        %1912 = vmatpush2.msra.mxu0 0.0
        %1913 = vmatprep.subr.mxu0 0.0
        %1914 = vmatpush2.msra.mxu0 0.0
        %1915 = vmatprep.subr.mxu0 0.0
        %1916 = vmatpush2.msra.mxu0 0.0
        %1917 = vmatprep.subr.mxu0 0.0
        %1918 = vmatpush2.msra.mxu0 0.0
        %1919 = vmatprep.subr.mxu0 0.0
        %1920 = vmatpush2.msra.mxu0 0.0
        %1921 = vmatprep.subr.mxu0 0.0
        %1922 = vmatpush2.msra.mxu0 0.0
        %1923 = vmatprep.subr.mxu0 0.0
        %1924 = vmatpush2.msra.mxu0 0.0
        %1925 = vmatprep.subr.mxu0 0.0
        %1926 = vmatpush2.msra.mxu0 0.0
        %1927 = vmatprep.subr.mxu0 0.0
        %1928 = vmatpush2.msra.mxu0 0.0
        %1929 = vmatprep.subr.mxu0 0.0
        %1930 = vmatpush2.msra.mxu0 0.0
        %1931 = vmatprep.subr.mxu0 0.0
        %1932 = vmatpush2.msra.mxu0 0.0
        %1933 = vmatprep.subr.mxu0 0.0
        %1934 = vmatpush2.msra.mxu0 0.0
        %1935 = vmatprep.subr.mxu0 0.0
        %1936 = vmatpush2.msra.mxu0 0.0
        %1937 = vmatprep.mubr.f32.mxu0 0.0
        %1938 = vmatmul.mubr.f32.gmra.mxu0 %v1867
        %v1939 = vpop.f32.mrf.mxu0
        %v1940 = vadd.f32 0.0, %v1939
        %v1941 = vpop.f32.mrf.mxu0
        %1942 = vmatprep.mubr.f32.mxu0 0.0
        %1943 = vmatmul.mubr.f32.gmra.mxu0 %v1869
        %v1944 = vpop.f32.mrf.mxu0
        %v1945 = vadd.f32 0.0, %v1944
        %v1946 = vpop.f32.mrf.mxu0
        %1947 = vmatprep.mubr.f32.mxu0 0.0
        %1948 = vmatmul.mubr.f32.gmra.mxu0 %v1871
        %v1949 = vpop.f32.mrf.mxu0
        %v1950 = vadd.f32 0.0, %v1949
        %v1951 = vpop.f32.mrf.mxu0
        %1952 = vdwg.mxu0
        %s1953 = scalar_lea.vmem [#allocation3], 24
        %1954 = vst [vmem:[%s1953] sm:$0xff] %v1940
        %1955 = vst [vmem:[%s1953 + $0x8] sm:$0xff] %v1945
        %1956 = vst [vmem:[%s1953 + $0x10] sm:$0xff] %v1950
        %1957 = vrot.lane.b32.xlu0 %v1750, 96
        %v1958 = vpop.permute.xlu0 %1957
        %1959 = vrot.lane.b32.xlu0 %v1756, 96
        %v1960 = vpop.permute.xlu0 %1959
        %1961 = vrot.lane.b32.xlu0 %v1762, 96
        %v1962 = vpop.permute.xlu0 %1961
        %v1963 = vsel %vm1768, %v1958, 0
        %v1965 = vsel %vm1768, %v1960, 0
        %v1967 = vsel %vm1768, %v1962, 0
        %1969 = vmatprep.subr.mxu0 0.0
        %1970 = vmatpush1.msra.mxu0 0.0
        %1971 = vmatprep.subr.mxu0 0.0
        %1972 = vmatpush1.msra.mxu0 0.0
        %1973 = vmatprep.subr.mxu0 0.0
        %1974 = vmatpush1.msra.mxu0 0.0
        %1975 = vmatprep.subr.mxu0 0.0
        %1976 = vmatpush1.msra.mxu0 0.0
        %1977 = vmatprep.subr.mxu0 0.0
        %1978 = vmatpush1.msra.mxu0 0.0
        %1979 = vmatprep.subr.mxu0 0.0
        %1980 = vmatpush1.msra.mxu0 0.0
        %1981 = vmatprep.subr.mxu0 0.0
        %1982 = vmatpush1.msra.mxu0 0.0
        %1983 = vmatprep.subr.mxu0 0.0
        %1984 = vmatpush1.msra.mxu0 0.0
        %1985 = vmatprep.subr.mxu0 0.0
        %1986 = vmatpush1.msra.mxu0 0.0
        %1987 = vmatprep.subr.mxu0 0.0
        %1988 = vmatpush1.msra.mxu0 0.0
        %1989 = vmatprep.subr.mxu0 0.0
        %1990 = vmatpush1.msra.mxu0 0.0
        %1991 = vmatprep.subr.mxu0 0.0
        %1992 = vmatpush1.msra.mxu0 0.0
        %1993 = vmatprep.subr.mxu0 0.0
        %1994 = vmatpush1.msra.mxu0 0.0
        %1995 = vmatprep.subr.mxu0 0.0
        %1996 = vmatpush1.msra.mxu0 0.0
        %1997 = vmatprep.subr.mxu0 0.0
        %1998 = vmatpush1.msra.mxu0 %v1767
        %1999 = vmatprep.subr.mxu0 0.0
        %2000 = vmatpush1.msra.mxu0 %v1766
        %2001 = vmatprep.subr.mxu0 0.0
        %2002 = vmatpush2.msra.mxu0 0.0
        %2003 = vmatprep.subr.mxu0 0.0
        %2004 = vmatpush2.msra.mxu0 0.0
        %2005 = vmatprep.subr.mxu0 0.0
        %2006 = vmatpush2.msra.mxu0 0.0
        %2007 = vmatprep.subr.mxu0 0.0
        %2008 = vmatpush2.msra.mxu0 0.0
        %2009 = vmatprep.subr.mxu0 0.0
        %2010 = vmatpush2.msra.mxu0 0.0
        %2011 = vmatprep.subr.mxu0 0.0
        %2012 = vmatpush2.msra.mxu0 0.0
        %2013 = vmatprep.subr.mxu0 0.0
        %2014 = vmatpush2.msra.mxu0 0.0
        %2015 = vmatprep.subr.mxu0 0.0
        %2016 = vmatpush2.msra.mxu0 0.0
        %2017 = vmatprep.subr.mxu0 0.0
        %2018 = vmatpush2.msra.mxu0 0.0
        %2019 = vmatprep.subr.mxu0 0.0
        %2020 = vmatpush2.msra.mxu0 0.0
        %2021 = vmatprep.subr.mxu0 0.0
        %2022 = vmatpush2.msra.mxu0 0.0
        %2023 = vmatprep.subr.mxu0 0.0
        %2024 = vmatpush2.msra.mxu0 0.0
        %2025 = vmatprep.subr.mxu0 0.0
        %2026 = vmatpush2.msra.mxu0 0.0
        %2027 = vmatprep.subr.mxu0 0.0
        %2028 = vmatpush2.msra.mxu0 0.0
        %2029 = vmatprep.subr.mxu0 0.0
        %2030 = vmatpush2.msra.mxu0 0.0
        %2031 = vmatprep.subr.mxu0 0.0
        %2032 = vmatpush2.msra.mxu0 0.0
        %2033 = vmatprep.mubr.f32.mxu0 0.0
        %2034 = vmatmul.mubr.f32.gmra.mxu0 %v1963
        %v2035 = vpop.f32.mrf.mxu0
        %v2036 = vadd.f32 0.0, %v2035
        %v2037 = vpop.f32.mrf.mxu0
        %2038 = vmatprep.mubr.f32.mxu0 0.0
        %2039 = vmatmul.mubr.f32.gmra.mxu0 %v1965
        %v2040 = vpop.f32.mrf.mxu0
        %v2041 = vadd.f32 0.0, %v2040
        %v2042 = vpop.f32.mrf.mxu0
        %2043 = vmatprep.mubr.f32.mxu0 0.0
        %2044 = vmatmul.mubr.f32.gmra.mxu0 %v1967
        %v2045 = vpop.f32.mrf.mxu0
        %v2046 = vadd.f32 0.0, %v2045
        %v2047 = vpop.f32.mrf.mxu0
        %2048 = vdwg.mxu0
        %s2049 = scalar_lea.vmem [#allocation3], 48
        %2050 = vst [vmem:[%s2049] sm:$0xff] %v2036
        %2051 = vst [vmem:[%s2049 + $0x8] sm:$0xff] %v2041
        %2052 = vst [vmem:[%s2049 + $0x10] sm:$0xff] %v2046
        %2053 = vrot.lane.b32.xlu0 %v1750, 80
        %v2054 = vpop.permute.xlu0 %2053
        %2055 = vrot.lane.b32.xlu0 %v1756, 80
        %v2056 = vpop.permute.xlu0 %2055
        %2057 = vrot.lane.b32.xlu0 %v1762, 80
        %v2058 = vpop.permute.xlu0 %2057
        %v2059 = vsel %vm1768, %v2054, 0
        %v2061 = vsel %vm1768, %v2056, 0
        %v2063 = vsel %vm1768, %v2058, 0
        %2065 = vmatprep.subr.mxu0 0.0
        %2066 = vmatpush1.msra.mxu0 0.0
        %2067 = vmatprep.subr.mxu0 0.0
        %2068 = vmatpush1.msra.mxu0 0.0
        %2069 = vmatprep.subr.mxu0 0.0
        %2070 = vmatpush1.msra.mxu0 0.0
        %2071 = vmatprep.subr.mxu0 0.0
        %2072 = vmatpush1.msra.mxu0 0.0
        %2073 = vmatprep.subr.mxu0 0.0
        %2074 = vmatpush1.msra.mxu0 0.0
        %2075 = vmatprep.subr.mxu0 0.0
        %2076 = vmatpush1.msra.mxu0 0.0
        %2077 = vmatprep.subr.mxu0 0.0
        %2078 = vmatpush1.msra.mxu0 0.0
        %2079 = vmatprep.subr.mxu0 0.0
        %2080 = vmatpush1.msra.mxu0 0.0
        %2081 = vmatprep.subr.mxu0 0.0
        %2082 = vmatpush1.msra.mxu0 0.0
        %2083 = vmatprep.subr.mxu0 0.0
        %2084 = vmatpush1.msra.mxu0 0.0
        %2085 = vmatprep.subr.mxu0 0.0
        %2086 = vmatpush1.msra.mxu0 0.0
        %2087 = vmatprep.subr.mxu0 0.0
        %2088 = vmatpush1.msra.mxu0 0.0
        %2089 = vmatprep.subr.mxu0 0.0
        %2090 = vmatpush1.msra.mxu0 0.0
        %2091 = vmatprep.subr.mxu0 0.0
        %2092 = vmatpush1.msra.mxu0 0.0
        %2093 = vmatprep.subr.mxu0 0.0
        %2094 = vmatpush1.msra.mxu0 %v1767
        %2095 = vmatprep.subr.mxu0 0.0
        %2096 = vmatpush1.msra.mxu0 %v1766
        %2097 = vmatprep.subr.mxu0 0.0
        %2098 = vmatpush2.msra.mxu0 0.0
        %2099 = vmatprep.subr.mxu0 0.0
        %2100 = vmatpush2.msra.mxu0 0.0
        %2101 = vmatprep.subr.mxu0 0.0
        %2102 = vmatpush2.msra.mxu0 0.0
        %2103 = vmatprep.subr.mxu0 0.0
        %2104 = vmatpush2.msra.mxu0 0.0
        %2105 = vmatprep.subr.mxu0 0.0
        %2106 = vmatpush2.msra.mxu0 0.0
        %2107 = vmatprep.subr.mxu0 0.0
        %2108 = vmatpush2.msra.mxu0 0.0
        %2109 = vmatprep.subr.mxu0 0.0
        %2110 = vmatpush2.msra.mxu0 0.0
        %2111 = vmatprep.subr.mxu0 0.0
        %2112 = vmatpush2.msra.mxu0 0.0
        %2113 = vmatprep.subr.mxu0 0.0
        %2114 = vmatpush2.msra.mxu0 0.0
        %2115 = vmatprep.subr.mxu0 0.0
        %2116 = vmatpush2.msra.mxu0 0.0
        %2117 = vmatprep.subr.mxu0 0.0
        %2118 = vmatpush2.msra.mxu0 0.0
        %2119 = vmatprep.subr.mxu0 0.0
        %2120 = vmatpush2.msra.mxu0 0.0
        %2121 = vmatprep.subr.mxu0 0.0
        %2122 = vmatpush2.msra.mxu0 0.0
        %2123 = vmatprep.subr.mxu0 0.0
        %2124 = vmatpush2.msra.mxu0 0.0
        %2125 = vmatprep.subr.mxu0 0.0
        %2126 = vmatpush2.msra.mxu0 0.0
        %2127 = vmatprep.subr.mxu0 0.0
        %2128 = vmatpush2.msra.mxu0 0.0
        %2129 = vmatprep.mubr.f32.mxu0 0.0
        %2130 = vmatmul.mubr.f32.gmra.mxu0 %v2059
        %v2131 = vpop.f32.mrf.mxu0
        %v2132 = vadd.f32 0.0, %v2131
        %v2133 = vpop.f32.mrf.mxu0
        %2134 = vmatprep.mubr.f32.mxu0 0.0
        %2135 = vmatmul.mubr.f32.gmra.mxu0 %v2061
        %v2136 = vpop.f32.mrf.mxu0
        %v2137 = vadd.f32 0.0, %v2136
        %v2138 = vpop.f32.mrf.mxu0
        %2139 = vmatprep.mubr.f32.mxu0 0.0
        %2140 = vmatmul.mubr.f32.gmra.mxu0 %v2063
        %v2141 = vpop.f32.mrf.mxu0
        %v2142 = vadd.f32 0.0, %v2141
        %v2143 = vpop.f32.mrf.mxu0
        %2144 = vdwg.mxu0
        %s2145 = scalar_lea.vmem [#allocation3], 72
        %2146 = vst [vmem:[%s2145] sm:$0xff] %v2132
        %2147 = vst [vmem:[%s2145 + $0x8] sm:$0xff] %v2137
        %2148 = vst [vmem:[%s2145 + $0x10] sm:$0xff] %v2142
        %2149 = vrot.lane.b32.xlu0 %v1750, 64
        %v2150 = vpop.permute.xlu0 %2149
        %2151 = vrot.lane.b32.xlu0 %v1756, 64
        %v2152 = vpop.permute.xlu0 %2151
        %2153 = vrot.lane.b32.xlu0 %v1762, 64
        %v2154 = vpop.permute.xlu0 %2153
        %v2155 = vsel %vm1768, %v2150, 0
        %v2157 = vsel %vm1768, %v2152, 0
        %v2159 = vsel %vm1768, %v2154, 0
        %2161 = vmatprep.subr.mxu0 0.0
        %2162 = vmatpush1.msra.mxu0 0.0
        %2163 = vmatprep.subr.mxu0 0.0
        %2164 = vmatpush1.msra.mxu0 0.0
        %2165 = vmatprep.subr.mxu0 0.0
        %2166 = vmatpush1.msra.mxu0 0.0
        %2167 = vmatprep.subr.mxu0 0.0
        %2168 = vmatpush1.msra.mxu0 0.0
        %2169 = vmatprep.subr.mxu0 0.0
        %2170 = vmatpush1.msra.mxu0 0.0
        %2171 = vmatprep.subr.mxu0 0.0
        %2172 = vmatpush1.msra.mxu0 0.0
        %2173 = vmatprep.subr.mxu0 0.0
        %2174 = vmatpush1.msra.mxu0 0.0
        %2175 = vmatprep.subr.mxu0 0.0
        %2176 = vmatpush1.msra.mxu0 0.0
        %2177 = vmatprep.subr.mxu0 0.0
        %2178 = vmatpush1.msra.mxu0 0.0
        %2179 = vmatprep.subr.mxu0 0.0
        %2180 = vmatpush1.msra.mxu0 0.0
        %2181 = vmatprep.subr.mxu0 0.0
        %2182 = vmatpush1.msra.mxu0 0.0
        %2183 = vmatprep.subr.mxu0 0.0
        %2184 = vmatpush1.msra.mxu0 0.0
        %2185 = vmatprep.subr.mxu0 0.0
        %2186 = vmatpush1.msra.mxu0 0.0
        %2187 = vmatprep.subr.mxu0 0.0
        %2188 = vmatpush1.msra.mxu0 0.0
        %2189 = vmatprep.subr.mxu0 0.0
        %2190 = vmatpush1.msra.mxu0 %v1767
        %2191 = vmatprep.subr.mxu0 0.0
        %2192 = vmatpush1.msra.mxu0 %v1766
        %2193 = vmatprep.subr.mxu0 0.0
        %2194 = vmatpush2.msra.mxu0 0.0
        %2195 = vmatprep.subr.mxu0 0.0
        %2196 = vmatpush2.msra.mxu0 0.0
        %2197 = vmatprep.subr.mxu0 0.0
        %2198 = vmatpush2.msra.mxu0 0.0
        %2199 = vmatprep.subr.mxu0 0.0
        %2200 = vmatpush2.msra.mxu0 0.0
        %2201 = vmatprep.subr.mxu0 0.0
        %2202 = vmatpush2.msra.mxu0 0.0
        %2203 = vmatprep.subr.mxu0 0.0
        %2204 = vmatpush2.msra.mxu0 0.0
        %2205 = vmatprep.subr.mxu0 0.0
        %2206 = vmatpush2.msra.mxu0 0.0
        %2207 = vmatprep.subr.mxu0 0.0
        %2208 = vmatpush2.msra.mxu0 0.0
        %2209 = vmatprep.subr.mxu0 0.0
        %2210 = vmatpush2.msra.mxu0 0.0
        %2211 = vmatprep.subr.mxu0 0.0
        %2212 = vmatpush2.msra.mxu0 0.0
        %2213 = vmatprep.subr.mxu0 0.0
        %2214 = vmatpush2.msra.mxu0 0.0
        %2215 = vmatprep.subr.mxu0 0.0
        %2216 = vmatpush2.msra.mxu0 0.0
        %2217 = vmatprep.subr.mxu0 0.0
        %2218 = vmatpush2.msra.mxu0 0.0
        %2219 = vmatprep.subr.mxu0 0.0
        %2220 = vmatpush2.msra.mxu0 0.0
        %2221 = vmatprep.subr.mxu0 0.0
        %2222 = vmatpush2.msra.mxu0 0.0
        %2223 = vmatprep.subr.mxu0 0.0
        %2224 = vmatpush2.msra.mxu0 0.0
        %2225 = vmatprep.mubr.f32.mxu0 0.0
        %2226 = vmatmul.mubr.f32.gmra.mxu0 %v2155
        %v2227 = vpop.f32.mrf.mxu0
        %v2228 = vadd.f32 0.0, %v2227
        %v2229 = vpop.f32.mrf.mxu0
        %2230 = vmatprep.mubr.f32.mxu0 0.0
        %2231 = vmatmul.mubr.f32.gmra.mxu0 %v2157
        %v2232 = vpop.f32.mrf.mxu0
        %v2233 = vadd.f32 0.0, %v2232
        %v2234 = vpop.f32.mrf.mxu0
        %2235 = vmatprep.mubr.f32.mxu0 0.0
        %2236 = vmatmul.mubr.f32.gmra.mxu0 %v2159
        %v2237 = vpop.f32.mrf.mxu0
        %v2238 = vadd.f32 0.0, %v2237
        %v2239 = vpop.f32.mrf.mxu0
        %2240 = vdwg.mxu0
        %s2241 = scalar_lea.vmem [#allocation3], 96
        %2242 = vst [vmem:[%s2241] sm:$0xff] %v2228
        %2243 = vst [vmem:[%s2241 + $0x8] sm:$0xff] %v2233
        %2244 = vst [vmem:[%s2241 + $0x10] sm:$0xff] %v2238
        %2245 = vrot.lane.b32.xlu0 %v1750, 48
        %v2246 = vpop.permute.xlu0 %2245
        %2247 = vrot.lane.b32.xlu0 %v1756, 48
        %v2248 = vpop.permute.xlu0 %2247
        %2249 = vrot.lane.b32.xlu0 %v1762, 48
        %v2250 = vpop.permute.xlu0 %2249
        %v2251 = vsel %vm1768, %v2246, 0
        %v2253 = vsel %vm1768, %v2248, 0
        %v2255 = vsel %vm1768, %v2250, 0
        %2257 = vmatprep.subr.mxu0 0.0
        %2258 = vmatpush1.msra.mxu0 0.0
        %2259 = vmatprep.subr.mxu0 0.0
        %2260 = vmatpush1.msra.mxu0 0.0
        %2261 = vmatprep.subr.mxu0 0.0
        %2262 = vmatpush1.msra.mxu0 0.0
        %2263 = vmatprep.subr.mxu0 0.0
        %2264 = vmatpush1.msra.mxu0 0.0
        %2265 = vmatprep.subr.mxu0 0.0
        %2266 = vmatpush1.msra.mxu0 0.0
        %2267 = vmatprep.subr.mxu0 0.0
        %2268 = vmatpush1.msra.mxu0 0.0
        %2269 = vmatprep.subr.mxu0 0.0
        %2270 = vmatpush1.msra.mxu0 0.0
        %2271 = vmatprep.subr.mxu0 0.0
        %2272 = vmatpush1.msra.mxu0 0.0
        %2273 = vmatprep.subr.mxu0 0.0
        %2274 = vmatpush1.msra.mxu0 0.0
        %2275 = vmatprep.subr.mxu0 0.0
        %2276 = vmatpush1.msra.mxu0 0.0
        %2277 = vmatprep.subr.mxu0 0.0
        %2278 = vmatpush1.msra.mxu0 0.0
        %2279 = vmatprep.subr.mxu0 0.0
        %2280 = vmatpush1.msra.mxu0 0.0
        %2281 = vmatprep.subr.mxu0 0.0
        %2282 = vmatpush1.msra.mxu0 0.0
        %2283 = vmatprep.subr.mxu0 0.0
        %2284 = vmatpush1.msra.mxu0 0.0
        %2285 = vmatprep.subr.mxu0 0.0
        %2286 = vmatpush1.msra.mxu0 %v1767
        %2287 = vmatprep.subr.mxu0 0.0
        %2288 = vmatpush1.msra.mxu0 %v1766
        %2289 = vmatprep.subr.mxu0 0.0
        %2290 = vmatpush2.msra.mxu0 0.0
        %2291 = vmatprep.subr.mxu0 0.0
        %2292 = vmatpush2.msra.mxu0 0.0
        %2293 = vmatprep.subr.mxu0 0.0
        %2294 = vmatpush2.msra.mxu0 0.0
        %2295 = vmatprep.subr.mxu0 0.0
        %2296 = vmatpush2.msra.mxu0 0.0
        %2297 = vmatprep.subr.mxu0 0.0
        %2298 = vmatpush2.msra.mxu0 0.0
        %2299 = vmatprep.subr.mxu0 0.0
        %2300 = vmatpush2.msra.mxu0 0.0
        %2301 = vmatprep.subr.mxu0 0.0
        %2302 = vmatpush2.msra.mxu0 0.0
        %2303 = vmatprep.subr.mxu0 0.0
        %2304 = vmatpush2.msra.mxu0 0.0
        %2305 = vmatprep.subr.mxu0 0.0
        %2306 = vmatpush2.msra.mxu0 0.0
        %2307 = vmatprep.subr.mxu0 0.0
        %2308 = vmatpush2.msra.mxu0 0.0
        %2309 = vmatprep.subr.mxu0 0.0
        %2310 = vmatpush2.msra.mxu0 0.0
        %2311 = vmatprep.subr.mxu0 0.0
        %2312 = vmatpush2.msra.mxu0 0.0
        %2313 = vmatprep.subr.mxu0 0.0
        %2314 = vmatpush2.msra.mxu0 0.0
        %2315 = vmatprep.subr.mxu0 0.0
        %2316 = vmatpush2.msra.mxu0 0.0
        %2317 = vmatprep.subr.mxu0 0.0
        %2318 = vmatpush2.msra.mxu0 0.0
        %2319 = vmatprep.subr.mxu0 0.0
        %2320 = vmatpush2.msra.mxu0 0.0
        %2321 = vmatprep.mubr.f32.mxu0 0.0
        %2322 = vmatmul.mubr.f32.gmra.mxu0 %v2251
        %v2323 = vpop.f32.mrf.mxu0
        %v2324 = vadd.f32 0.0, %v2323
        %v2325 = vpop.f32.mrf.mxu0
        %2326 = vmatprep.mubr.f32.mxu0 0.0
        %2327 = vmatmul.mubr.f32.gmra.mxu0 %v2253
        %v2328 = vpop.f32.mrf.mxu0
        %v2329 = vadd.f32 0.0, %v2328
        %v2330 = vpop.f32.mrf.mxu0
        %2331 = vmatprep.mubr.f32.mxu0 0.0
        %2332 = vmatmul.mubr.f32.gmra.mxu0 %v2255
        %v2333 = vpop.f32.mrf.mxu0
        %v2334 = vadd.f32 0.0, %v2333
        %v2335 = vpop.f32.mrf.mxu0
        %2336 = vdwg.mxu0
        %s2337 = scalar_lea.vmem [#allocation3], 120
        %2338 = vst [vmem:[%s2337] sm:$0xff] %v2324
        %2339 = vst [vmem:[%s2337 + $0x8] sm:$0xff] %v2329
        %2340 = vst [vmem:[%s2337 + $0x10] sm:$0xff] %v2334
        %2341 = vrot.lane.b32.xlu0 %v1750, 32
        %v2342 = vpop.permute.xlu0 %2341
        %2343 = vrot.lane.b32.xlu0 %v1756, 32
        %v2344 = vpop.permute.xlu0 %2343
        %2345 = vrot.lane.b32.xlu0 %v1762, 32
        %v2346 = vpop.permute.xlu0 %2345
        %v2347 = vsel %vm1768, %v2342, 0
        %v2349 = vsel %vm1768, %v2344, 0
        %v2351 = vsel %vm1768, %v2346, 0
        %2353 = vmatprep.subr.mxu0 0.0
        %2354 = vmatpush1.msra.mxu0 0.0
        %2355 = vmatprep.subr.mxu0 0.0
        %2356 = vmatpush1.msra.mxu0 0.0
        %2357 = vmatprep.subr.mxu0 0.0
        %2358 = vmatpush1.msra.mxu0 0.0
        %2359 = vmatprep.subr.mxu0 0.0
        %2360 = vmatpush1.msra.mxu0 0.0
        %2361 = vmatprep.subr.mxu0 0.0
        %2362 = vmatpush1.msra.mxu0 0.0
        %2363 = vmatprep.subr.mxu0 0.0
        %2364 = vmatpush1.msra.mxu0 0.0
        %2365 = vmatprep.subr.mxu0 0.0
        %2366 = vmatpush1.msra.mxu0 0.0
        %2367 = vmatprep.subr.mxu0 0.0
        %2368 = vmatpush1.msra.mxu0 0.0
        %2369 = vmatprep.subr.mxu0 0.0
        %2370 = vmatpush1.msra.mxu0 0.0
        %2371 = vmatprep.subr.mxu0 0.0
        %2372 = vmatpush1.msra.mxu0 0.0
        %2373 = vmatprep.subr.mxu0 0.0
        %2374 = vmatpush1.msra.mxu0 0.0
        %2375 = vmatprep.subr.mxu0 0.0
        %2376 = vmatpush1.msra.mxu0 0.0
        %2377 = vmatprep.subr.mxu0 0.0
        %2378 = vmatpush1.msra.mxu0 0.0
        %2379 = vmatprep.subr.mxu0 0.0
        %2380 = vmatpush1.msra.mxu0 0.0
        %2381 = vmatprep.subr.mxu0 0.0
        %2382 = vmatpush1.msra.mxu0 %v1767
        %2383 = vmatprep.subr.mxu0 0.0
        %2384 = vmatpush1.msra.mxu0 %v1766
        %2385 = vmatprep.subr.mxu0 0.0
        %2386 = vmatpush2.msra.mxu0 0.0
        %2387 = vmatprep.subr.mxu0 0.0
        %2388 = vmatpush2.msra.mxu0 0.0
        %2389 = vmatprep.subr.mxu0 0.0
        %2390 = vmatpush2.msra.mxu0 0.0
        %2391 = vmatprep.subr.mxu0 0.0
        %2392 = vmatpush2.msra.mxu0 0.0
        %2393 = vmatprep.subr.mxu0 0.0
        %2394 = vmatpush2.msra.mxu0 0.0
        %2395 = vmatprep.subr.mxu0 0.0
        %2396 = vmatpush2.msra.mxu0 0.0
        %2397 = vmatprep.subr.mxu0 0.0
        %2398 = vmatpush2.msra.mxu0 0.0
        %2399 = vmatprep.subr.mxu0 0.0
        %2400 = vmatpush2.msra.mxu0 0.0
        %2401 = vmatprep.subr.mxu0 0.0
        %2402 = vmatpush2.msra.mxu0 0.0
        %2403 = vmatprep.subr.mxu0 0.0
        %2404 = vmatpush2.msra.mxu0 0.0
        %2405 = vmatprep.subr.mxu0 0.0
        %2406 = vmatpush2.msra.mxu0 0.0
        %2407 = vmatprep.subr.mxu0 0.0
        %2408 = vmatpush2.msra.mxu0 0.0
        %2409 = vmatprep.subr.mxu0 0.0
        %2410 = vmatpush2.msra.mxu0 0.0
        %2411 = vmatprep.subr.mxu0 0.0
        %2412 = vmatpush2.msra.mxu0 0.0
        %2413 = vmatprep.subr.mxu0 0.0
        %2414 = vmatpush2.msra.mxu0 0.0
        %2415 = vmatprep.subr.mxu0 0.0
        %2416 = vmatpush2.msra.mxu0 0.0
        %2417 = vmatprep.mubr.f32.mxu0 0.0
        %2418 = vmatmul.mubr.f32.gmra.mxu0 %v2347
        %v2419 = vpop.f32.mrf.mxu0
        %v2420 = vadd.f32 0.0, %v2419
        %v2421 = vpop.f32.mrf.mxu0
        %2422 = vmatprep.mubr.f32.mxu0 0.0
        %2423 = vmatmul.mubr.f32.gmra.mxu0 %v2349
        %v2424 = vpop.f32.mrf.mxu0
        %v2425 = vadd.f32 0.0, %v2424
        %v2426 = vpop.f32.mrf.mxu0
        %2427 = vmatprep.mubr.f32.mxu0 0.0
        %2428 = vmatmul.mubr.f32.gmra.mxu0 %v2351
        %v2429 = vpop.f32.mrf.mxu0
        %v2430 = vadd.f32 0.0, %v2429
        %v2431 = vpop.f32.mrf.mxu0
        %2432 = vdwg.mxu0
        %s2433 = scalar_lea.vmem [#allocation3], 144
        %2434 = vst [vmem:[%s2433] sm:$0xff] %v2420
        %2435 = vst [vmem:[%s2433 + $0x8] sm:$0xff] %v2425
        %2436 = vst [vmem:[%s2433 + $0x10] sm:$0xff] %v2430
        %2437 = vrot.lane.b32.xlu0 %v1750, 16
        %v2438 = vpop.permute.xlu0 %2437
        %2439 = vrot.lane.b32.xlu0 %v1756, 16
        %v2440 = vpop.permute.xlu0 %2439
        %2441 = vrot.lane.b32.xlu0 %v1762, 16
        %v2442 = vpop.permute.xlu0 %2441
        %v2443 = vsel %vm1768, %v2438, 0
        %v2445 = vsel %vm1768, %v2440, 0
        %v2447 = vsel %vm1768, %v2442, 0
        %2449 = vmatprep.subr.mxu0 0.0
        %2450 = vmatpush1.msra.mxu0 0.0
        %2451 = vmatprep.subr.mxu0 0.0
        %2452 = vmatpush1.msra.mxu0 0.0
        %2453 = vmatprep.subr.mxu0 0.0
        %2454 = vmatpush1.msra.mxu0 0.0
        %2455 = vmatprep.subr.mxu0 0.0
        %2456 = vmatpush1.msra.mxu0 0.0
        %2457 = vmatprep.subr.mxu0 0.0
        %2458 = vmatpush1.msra.mxu0 0.0
        %2459 = vmatprep.subr.mxu0 0.0
        %2460 = vmatpush1.msra.mxu0 0.0
        %2461 = vmatprep.subr.mxu0 0.0
        %2462 = vmatpush1.msra.mxu0 0.0
        %2463 = vmatprep.subr.mxu0 0.0
        %2464 = vmatpush1.msra.mxu0 0.0
        %2465 = vmatprep.subr.mxu0 0.0
        %2466 = vmatpush1.msra.mxu0 0.0
        %2467 = vmatprep.subr.mxu0 0.0
        %2468 = vmatpush1.msra.mxu0 0.0
        %2469 = vmatprep.subr.mxu0 0.0
        %2470 = vmatpush1.msra.mxu0 0.0
        %2471 = vmatprep.subr.mxu0 0.0
        %2472 = vmatpush1.msra.mxu0 0.0
        %2473 = vmatprep.subr.mxu0 0.0
        %2474 = vmatpush1.msra.mxu0 0.0
        %2475 = vmatprep.subr.mxu0 0.0
        %2476 = vmatpush1.msra.mxu0 0.0
        %2477 = vmatprep.subr.mxu0 0.0
        %2478 = vmatpush1.msra.mxu0 %v1767
        %2479 = vmatprep.subr.mxu0 0.0
        %2480 = vmatpush1.msra.mxu0 %v1766
        %2481 = vmatprep.subr.mxu0 0.0
        %2482 = vmatpush2.msra.mxu0 0.0
        %2483 = vmatprep.subr.mxu0 0.0
        %2484 = vmatpush2.msra.mxu0 0.0
        %2485 = vmatprep.subr.mxu0 0.0
        %2486 = vmatpush2.msra.mxu0 0.0
        %2487 = vmatprep.subr.mxu0 0.0
        %2488 = vmatpush2.msra.mxu0 0.0
        %2489 = vmatprep.subr.mxu0 0.0
        %2490 = vmatpush2.msra.mxu0 0.0
        %2491 = vmatprep.subr.mxu0 0.0
        %2492 = vmatpush2.msra.mxu0 0.0
        %2493 = vmatprep.subr.mxu0 0.0
        %2494 = vmatpush2.msra.mxu0 0.0
        %2495 = vmatprep.subr.mxu0 0.0
        %2496 = vmatpush2.msra.mxu0 0.0
        %2497 = vmatprep.subr.mxu0 0.0
        %2498 = vmatpush2.msra.mxu0 0.0
        %2499 = vmatprep.subr.mxu0 0.0
        %2500 = vmatpush2.msra.mxu0 0.0
        %2501 = vmatprep.subr.mxu0 0.0
        %2502 = vmatpush2.msra.mxu0 0.0
        %2503 = vmatprep.subr.mxu0 0.0
        %2504 = vmatpush2.msra.mxu0 0.0
        %2505 = vmatprep.subr.mxu0 0.0
        %2506 = vmatpush2.msra.mxu0 0.0
        %2507 = vmatprep.subr.mxu0 0.0
        %2508 = vmatpush2.msra.mxu0 0.0
        %2509 = vmatprep.subr.mxu0 0.0
        %2510 = vmatpush2.msra.mxu0 0.0
        %2511 = vmatprep.subr.mxu0 0.0
        %2512 = vmatpush2.msra.mxu0 0.0
        %2513 = vmatprep.mubr.f32.mxu0 0.0
        %2514 = vmatmul.mubr.f32.gmra.mxu0 %v2443
        %v2515 = vpop.f32.mrf.mxu0
        %v2516 = vadd.f32 0.0, %v2515
        %v2517 = vpop.f32.mrf.mxu0
        %2518 = vmatprep.mubr.f32.mxu0 0.0
        %2519 = vmatmul.mubr.f32.gmra.mxu0 %v2445
        %v2520 = vpop.f32.mrf.mxu0
        %v2521 = vadd.f32 0.0, %v2520
        %v2522 = vpop.f32.mrf.mxu0
        %2523 = vmatprep.mubr.f32.mxu0 0.0
        %2524 = vmatmul.mubr.f32.gmra.mxu0 %v2447
        %v2525 = vpop.f32.mrf.mxu0
        %v2526 = vadd.f32 0.0, %v2525
        %v2527 = vpop.f32.mrf.mxu0
        %2528 = vdwg.mxu0
        %s2529 = scalar_lea.vmem [#allocation3], 168
        %2530 = vst [vmem:[%s2529] sm:$0xff] %v2516
        %2531 = vst [vmem:[%s2529 + $0x8] sm:$0xff] %v2521
        %2532 = vst [vmem:[%s2529 + $0x10] sm:$0xff] %v2526
        %v2534 = vsel %vm1768, %v1752, 0
        %v2537 = vsel %vm1768, %v1758, 0
        %v2540 = vsel %vm1768, %v1764, 0
        %2542 = vmatprep.subr.mxu0 0.0
        %2543 = vmatpush1.msra.mxu0 0.0
        %2544 = vmatprep.subr.mxu0 0.0
        %2545 = vmatpush1.msra.mxu0 0.0
        %2546 = vmatprep.subr.mxu0 0.0
        %2547 = vmatpush1.msra.mxu0 0.0
        %2548 = vmatprep.subr.mxu0 0.0
        %2549 = vmatpush1.msra.mxu0 0.0
        %2550 = vmatprep.subr.mxu0 0.0
        %2551 = vmatpush1.msra.mxu0 0.0
        %2552 = vmatprep.subr.mxu0 0.0
        %2553 = vmatpush1.msra.mxu0 0.0
        %2554 = vmatprep.subr.mxu0 0.0
        %2555 = vmatpush1.msra.mxu0 0.0
        %2556 = vmatprep.subr.mxu0 0.0
        %2557 = vmatpush1.msra.mxu0 0.0
        %2558 = vmatprep.subr.mxu0 0.0
        %2559 = vmatpush1.msra.mxu0 0.0
        %2560 = vmatprep.subr.mxu0 0.0
        %2561 = vmatpush1.msra.mxu0 0.0
        %2562 = vmatprep.subr.mxu0 0.0
        %2563 = vmatpush1.msra.mxu0 0.0
        %2564 = vmatprep.subr.mxu0 0.0
        %2565 = vmatpush1.msra.mxu0 0.0
        %2566 = vmatprep.subr.mxu0 0.0
        %2567 = vmatpush1.msra.mxu0 0.0
        %2568 = vmatprep.subr.mxu0 0.0
        %2569 = vmatpush1.msra.mxu0 0.0
        %2570 = vmatprep.subr.mxu0 0.0
        %2571 = vmatpush1.msra.mxu0 %v1767
        %2572 = vmatprep.subr.mxu0 0.0
        %2573 = vmatpush1.msra.mxu0 %v1766
        %2574 = vmatprep.subr.mxu0 0.0
        %2575 = vmatpush2.msra.mxu0 0.0
        %2576 = vmatprep.subr.mxu0 0.0
        %2577 = vmatpush2.msra.mxu0 0.0
        %2578 = vmatprep.subr.mxu0 0.0
        %2579 = vmatpush2.msra.mxu0 0.0
        %2580 = vmatprep.subr.mxu0 0.0
        %2581 = vmatpush2.msra.mxu0 0.0
        %2582 = vmatprep.subr.mxu0 0.0
        %2583 = vmatpush2.msra.mxu0 0.0
        %2584 = vmatprep.subr.mxu0 0.0
        %2585 = vmatpush2.msra.mxu0 0.0
        %2586 = vmatprep.subr.mxu0 0.0
        %2587 = vmatpush2.msra.mxu0 0.0
        %2588 = vmatprep.subr.mxu0 0.0
        %2589 = vmatpush2.msra.mxu0 0.0
        %2590 = vmatprep.subr.mxu0 0.0
        %2591 = vmatpush2.msra.mxu0 0.0
        %2592 = vmatprep.subr.mxu0 0.0
        %2593 = vmatpush2.msra.mxu0 0.0
        %2594 = vmatprep.subr.mxu0 0.0
        %2595 = vmatpush2.msra.mxu0 0.0
        %2596 = vmatprep.subr.mxu0 0.0
        %2597 = vmatpush2.msra.mxu0 0.0
        %2598 = vmatprep.subr.mxu0 0.0
        %2599 = vmatpush2.msra.mxu0 0.0
        %2600 = vmatprep.subr.mxu0 0.0
        %2601 = vmatpush2.msra.mxu0 0.0
        %2602 = vmatprep.subr.mxu0 0.0
        %2603 = vmatpush2.msra.mxu0 0.0
        %2604 = vmatprep.subr.mxu0 0.0
        %2605 = vmatpush2.msra.mxu0 0.0
        %2606 = vmatprep.mubr.f32.mxu0 0.0
        %2607 = vmatmul.mubr.f32.gmra.mxu0 %v2534
        %v2608 = vpop.f32.mrf.mxu0
        %v2609 = vadd.f32 0.0, %v2608
        %v2610 = vpop.f32.mrf.mxu0
        %2611 = vmatprep.mubr.f32.mxu0 0.0
        %2612 = vmatmul.mubr.f32.gmra.mxu0 %v2537
        %v2613 = vpop.f32.mrf.mxu0
        %v2614 = vadd.f32 0.0, %v2613
        %v2615 = vpop.f32.mrf.mxu0
        %2616 = vmatprep.mubr.f32.mxu0 0.0
        %2617 = vmatmul.mubr.f32.gmra.mxu0 %v2540
        %v2618 = vpop.f32.mrf.mxu0
        %v2619 = vadd.f32 0.0, %v2618
        %v2620 = vpop.f32.mrf.mxu0
        %2621 = vdwg.mxu0
        %s2622 = scalar_lea.vmem [#allocation3], 192
        %2623 = vst [vmem:[%s2622] sm:$0xff] %v2609
        %2624 = vst [vmem:[%s2622 + $0x8] sm:$0xff] %v2614
        %2625 = vst [vmem:[%s2622 + $0x10] sm:$0xff] %v2619
        %2626 = vrot.lane.b32.xlu0 %v1752, 112
        %v2627 = vpop.permute.xlu0 %2626
        %2628 = vrot.lane.b32.xlu0 %v1758, 112
        %v2629 = vpop.permute.xlu0 %2628
        %2630 = vrot.lane.b32.xlu0 %v1764, 112
        %v2631 = vpop.permute.xlu0 %2630
        %v2632 = vsel %vm1768, %v2627, 0
        %v2634 = vsel %vm1768, %v2629, 0
        %v2636 = vsel %vm1768, %v2631, 0
        %2638 = vmatprep.subr.mxu0 0.0
        %2639 = vmatpush1.msra.mxu0 0.0
        %2640 = vmatprep.subr.mxu0 0.0
        %2641 = vmatpush1.msra.mxu0 0.0
        %2642 = vmatprep.subr.mxu0 0.0
        %2643 = vmatpush1.msra.mxu0 0.0
        %2644 = vmatprep.subr.mxu0 0.0
        %2645 = vmatpush1.msra.mxu0 0.0
        %2646 = vmatprep.subr.mxu0 0.0
        %2647 = vmatpush1.msra.mxu0 0.0
        %2648 = vmatprep.subr.mxu0 0.0
        %2649 = vmatpush1.msra.mxu0 0.0
        %2650 = vmatprep.subr.mxu0 0.0
        %2651 = vmatpush1.msra.mxu0 0.0
        %2652 = vmatprep.subr.mxu0 0.0
        %2653 = vmatpush1.msra.mxu0 0.0
        %2654 = vmatprep.subr.mxu0 0.0
        %2655 = vmatpush1.msra.mxu0 0.0
        %2656 = vmatprep.subr.mxu0 0.0
        %2657 = vmatpush1.msra.mxu0 0.0
        %2658 = vmatprep.subr.mxu0 0.0
        %2659 = vmatpush1.msra.mxu0 0.0
        %2660 = vmatprep.subr.mxu0 0.0
        %2661 = vmatpush1.msra.mxu0 0.0
        %2662 = vmatprep.subr.mxu0 0.0
        %2663 = vmatpush1.msra.mxu0 0.0
        %2664 = vmatprep.subr.mxu0 0.0
        %2665 = vmatpush1.msra.mxu0 0.0
        %2666 = vmatprep.subr.mxu0 0.0
        %2667 = vmatpush1.msra.mxu0 %v1767
        %2668 = vmatprep.subr.mxu0 0.0
        %2669 = vmatpush1.msra.mxu0 %v1766
        %2670 = vmatprep.subr.mxu0 0.0
        %2671 = vmatpush2.msra.mxu0 0.0
        %2672 = vmatprep.subr.mxu0 0.0
        %2673 = vmatpush2.msra.mxu0 0.0
        %2674 = vmatprep.subr.mxu0 0.0
        %2675 = vmatpush2.msra.mxu0 0.0
        %2676 = vmatprep.subr.mxu0 0.0
        %2677 = vmatpush2.msra.mxu0 0.0
        %2678 = vmatprep.subr.mxu0 0.0
        %2679 = vmatpush2.msra.mxu0 0.0
        %2680 = vmatprep.subr.mxu0 0.0
        %2681 = vmatpush2.msra.mxu0 0.0
        %2682 = vmatprep.subr.mxu0 0.0
        %2683 = vmatpush2.msra.mxu0 0.0
        %2684 = vmatprep.subr.mxu0 0.0
        %2685 = vmatpush2.msra.mxu0 0.0
        %2686 = vmatprep.subr.mxu0 0.0
        %2687 = vmatpush2.msra.mxu0 0.0
        %2688 = vmatprep.subr.mxu0 0.0
        %2689 = vmatpush2.msra.mxu0 0.0
        %2690 = vmatprep.subr.mxu0 0.0
        %2691 = vmatpush2.msra.mxu0 0.0
        %2692 = vmatprep.subr.mxu0 0.0
        %2693 = vmatpush2.msra.mxu0 0.0
        %2694 = vmatprep.subr.mxu0 0.0
        %2695 = vmatpush2.msra.mxu0 0.0
        %2696 = vmatprep.subr.mxu0 0.0
        %2697 = vmatpush2.msra.mxu0 0.0
        %2698 = vmatprep.subr.mxu0 0.0
        %2699 = vmatpush2.msra.mxu0 0.0
        %2700 = vmatprep.subr.mxu0 0.0
        %2701 = vmatpush2.msra.mxu0 0.0
        %2702 = vmatprep.mubr.f32.mxu0 0.0
        %2703 = vmatmul.mubr.f32.gmra.mxu0 %v2632
        %v2704 = vpop.f32.mrf.mxu0
        %v2705 = vadd.f32 0.0, %v2704
        %v2706 = vpop.f32.mrf.mxu0
        %2707 = vmatprep.mubr.f32.mxu0 0.0
        %2708 = vmatmul.mubr.f32.gmra.mxu0 %v2634
        %v2709 = vpop.f32.mrf.mxu0
        %v2710 = vadd.f32 0.0, %v2709
        %v2711 = vpop.f32.mrf.mxu0
        %2712 = vmatprep.mubr.f32.mxu0 0.0
        %2713 = vmatmul.mubr.f32.gmra.mxu0 %v2636
        %v2714 = vpop.f32.mrf.mxu0
        %v2715 = vadd.f32 0.0, %v2714
        %v2716 = vpop.f32.mrf.mxu0
        %2717 = vdwg.mxu0
        %s2718 = scalar_lea.vmem [#allocation3], 216
        %2719 = vst [vmem:[%s2718] sm:$0xff] %v2705
        %2720 = vst [vmem:[%s2718 + $0x8] sm:$0xff] %v2710
        %2721 = vst [vmem:[%s2718 + $0x10] sm:$0xff] %v2715
        %2722 = vrot.lane.b32.xlu0 %v1752, 96
        %v2723 = vpop.permute.xlu0 %2722
        %2724 = vrot.lane.b32.xlu0 %v1758, 96
        %v2725 = vpop.permute.xlu0 %2724
        %2726 = vrot.lane.b32.xlu0 %v1764, 96
        %v2727 = vpop.permute.xlu0 %2726
        %v2728 = vsel %vm1768, %v2723, 0
        %v2730 = vsel %vm1768, %v2725, 0
        %v2732 = vsel %vm1768, %v2727, 0
        %2734 = vmatprep.subr.mxu0 0.0
        %2735 = vmatpush1.msra.mxu0 0.0
        %2736 = vmatprep.subr.mxu0 0.0
        %2737 = vmatpush1.msra.mxu0 0.0
        %2738 = vmatprep.subr.mxu0 0.0
        %2739 = vmatpush1.msra.mxu0 0.0
        %2740 = vmatprep.subr.mxu0 0.0
        %2741 = vmatpush1.msra.mxu0 0.0
        %2742 = vmatprep.subr.mxu0 0.0
        %2743 = vmatpush1.msra.mxu0 0.0
        %2744 = vmatprep.subr.mxu0 0.0
        %2745 = vmatpush1.msra.mxu0 0.0
        %2746 = vmatprep.subr.mxu0 0.0
        %2747 = vmatpush1.msra.mxu0 0.0
        %2748 = vmatprep.subr.mxu0 0.0
        %2749 = vmatpush1.msra.mxu0 0.0
        %2750 = vmatprep.subr.mxu0 0.0
        %2751 = vmatpush1.msra.mxu0 0.0
        %2752 = vmatprep.subr.mxu0 0.0
        %2753 = vmatpush1.msra.mxu0 0.0
        %2754 = vmatprep.subr.mxu0 0.0
        %2755 = vmatpush1.msra.mxu0 0.0
        %2756 = vmatprep.subr.mxu0 0.0
        %2757 = vmatpush1.msra.mxu0 0.0
        %2758 = vmatprep.subr.mxu0 0.0
        %2759 = vmatpush1.msra.mxu0 0.0
        %2760 = vmatprep.subr.mxu0 0.0
        %2761 = vmatpush1.msra.mxu0 0.0
        %2762 = vmatprep.subr.mxu0 0.0
        %2763 = vmatpush1.msra.mxu0 %v1767
        %2764 = vmatprep.subr.mxu0 0.0
        %2765 = vmatpush1.msra.mxu0 %v1766
        %2766 = vmatprep.subr.mxu0 0.0
        %2767 = vmatpush2.msra.mxu0 0.0
        %2768 = vmatprep.subr.mxu0 0.0
        %2769 = vmatpush2.msra.mxu0 0.0
        %2770 = vmatprep.subr.mxu0 0.0
        %2771 = vmatpush2.msra.mxu0 0.0
        %2772 = vmatprep.subr.mxu0 0.0
        %2773 = vmatpush2.msra.mxu0 0.0
        %2774 = vmatprep.subr.mxu0 0.0
        %2775 = vmatpush2.msra.mxu0 0.0
        %2776 = vmatprep.subr.mxu0 0.0
        %2777 = vmatpush2.msra.mxu0 0.0
        %2778 = vmatprep.subr.mxu0 0.0
        %2779 = vmatpush2.msra.mxu0 0.0
        %2780 = vmatprep.subr.mxu0 0.0
        %2781 = vmatpush2.msra.mxu0 0.0
        %2782 = vmatprep.subr.mxu0 0.0
        %2783 = vmatpush2.msra.mxu0 0.0
        %2784 = vmatprep.subr.mxu0 0.0
        %2785 = vmatpush2.msra.mxu0 0.0
        %2786 = vmatprep.subr.mxu0 0.0
        %2787 = vmatpush2.msra.mxu0 0.0
        %2788 = vmatprep.subr.mxu0 0.0
        %2789 = vmatpush2.msra.mxu0 0.0
        %2790 = vmatprep.subr.mxu0 0.0
        %2791 = vmatpush2.msra.mxu0 0.0
        %2792 = vmatprep.subr.mxu0 0.0
        %2793 = vmatpush2.msra.mxu0 0.0
        %2794 = vmatprep.subr.mxu0 0.0
        %2795 = vmatpush2.msra.mxu0 0.0
        %2796 = vmatprep.subr.mxu0 0.0
        %2797 = vmatpush2.msra.mxu0 0.0
        %2798 = vmatprep.mubr.f32.mxu0 0.0
        %2799 = vmatmul.mubr.f32.gmra.mxu0 %v2728
        %v2800 = vpop.f32.mrf.mxu0
        %v2801 = vadd.f32 0.0, %v2800
        %v2802 = vpop.f32.mrf.mxu0
        %2803 = vmatprep.mubr.f32.mxu0 0.0
        %2804 = vmatmul.mubr.f32.gmra.mxu0 %v2730
        %v2805 = vpop.f32.mrf.mxu0
        %v2806 = vadd.f32 0.0, %v2805
        %v2807 = vpop.f32.mrf.mxu0
        %2808 = vmatprep.mubr.f32.mxu0 0.0
        %2809 = vmatmul.mubr.f32.gmra.mxu0 %v2732
        %v2810 = vpop.f32.mrf.mxu0
        %v2811 = vadd.f32 0.0, %v2810
        %v2812 = vpop.f32.mrf.mxu0
        %2813 = vdwg.mxu0
        %s2814 = scalar_lea.vmem [#allocation3], 240
        %2815 = vst [vmem:[%s2814] sm:$0xff] %v2801
        %2816 = vst [vmem:[%s2814 + $0x8] sm:$0xff] %v2806
        %2817 = vst [vmem:[%s2814 + $0x10] sm:$0xff] %v2811
        %2818 = vrot.lane.b32.xlu0 %v1752, 80
        %v2819 = vpop.permute.xlu0 %2818
        %2820 = vrot.lane.b32.xlu0 %v1758, 80
        %v2821 = vpop.permute.xlu0 %2820
        %2822 = vrot.lane.b32.xlu0 %v1764, 80
        %v2823 = vpop.permute.xlu0 %2822
        %v2824 = vsel %vm1768, %v2819, 0
        %v2826 = vsel %vm1768, %v2821, 0
        %v2828 = vsel %vm1768, %v2823, 0
        %2830 = vmatprep.subr.mxu0 0.0
        %2831 = vmatpush1.msra.mxu0 0.0
        %2832 = vmatprep.subr.mxu0 0.0
        %2833 = vmatpush1.msra.mxu0 0.0
        %2834 = vmatprep.subr.mxu0 0.0
        %2835 = vmatpush1.msra.mxu0 0.0
        %2836 = vmatprep.subr.mxu0 0.0
        %2837 = vmatpush1.msra.mxu0 0.0
        %2838 = vmatprep.subr.mxu0 0.0
        %2839 = vmatpush1.msra.mxu0 0.0
        %2840 = vmatprep.subr.mxu0 0.0
        %2841 = vmatpush1.msra.mxu0 0.0
        %2842 = vmatprep.subr.mxu0 0.0
        %2843 = vmatpush1.msra.mxu0 0.0
        %2844 = vmatprep.subr.mxu0 0.0
        %2845 = vmatpush1.msra.mxu0 0.0
        %2846 = vmatprep.subr.mxu0 0.0
        %2847 = vmatpush1.msra.mxu0 0.0
        %2848 = vmatprep.subr.mxu0 0.0
        %2849 = vmatpush1.msra.mxu0 0.0
        %2850 = vmatprep.subr.mxu0 0.0
        %2851 = vmatpush1.msra.mxu0 0.0
        %2852 = vmatprep.subr.mxu0 0.0
        %2853 = vmatpush1.msra.mxu0 0.0
        %2854 = vmatprep.subr.mxu0 0.0
        %2855 = vmatpush1.msra.mxu0 0.0
        %2856 = vmatprep.subr.mxu0 0.0
        %2857 = vmatpush1.msra.mxu0 0.0
        %2858 = vmatprep.subr.mxu0 0.0
        %2859 = vmatpush1.msra.mxu0 %v1767
        %2860 = vmatprep.subr.mxu0 0.0
        %2861 = vmatpush1.msra.mxu0 %v1766
        %2862 = vmatprep.subr.mxu0 0.0
        %2863 = vmatpush2.msra.mxu0 0.0
        %2864 = vmatprep.subr.mxu0 0.0
        %2865 = vmatpush2.msra.mxu0 0.0
        %2866 = vmatprep.subr.mxu0 0.0
        %2867 = vmatpush2.msra.mxu0 0.0
        %2868 = vmatprep.subr.mxu0 0.0
        %2869 = vmatpush2.msra.mxu0 0.0
        %2870 = vmatprep.subr.mxu0 0.0
        %2871 = vmatpush2.msra.mxu0 0.0
        %2872 = vmatprep.subr.mxu0 0.0
        %2873 = vmatpush2.msra.mxu0 0.0
        %2874 = vmatprep.subr.mxu0 0.0
        %2875 = vmatpush2.msra.mxu0 0.0
        %2876 = vmatprep.subr.mxu0 0.0
        %2877 = vmatpush2.msra.mxu0 0.0
        %2878 = vmatprep.subr.mxu0 0.0
        %2879 = vmatpush2.msra.mxu0 0.0
        %2880 = vmatprep.subr.mxu0 0.0
        %2881 = vmatpush2.msra.mxu0 0.0
        %2882 = vmatprep.subr.mxu0 0.0
        %2883 = vmatpush2.msra.mxu0 0.0
        %2884 = vmatprep.subr.mxu0 0.0
        %2885 = vmatpush2.msra.mxu0 0.0
        %2886 = vmatprep.subr.mxu0 0.0
        %2887 = vmatpush2.msra.mxu0 0.0
        %2888 = vmatprep.subr.mxu0 0.0
        %2889 = vmatpush2.msra.mxu0 0.0
        %2890 = vmatprep.subr.mxu0 0.0
        %2891 = vmatpush2.msra.mxu0 0.0
        %2892 = vmatprep.subr.mxu0 0.0
        %2893 = vmatpush2.msra.mxu0 0.0
        %2894 = vmatprep.mubr.f32.mxu0 0.0
        %2895 = vmatmul.mubr.f32.gmra.mxu0 %v2824
        %v2896 = vpop.f32.mrf.mxu0
        %v2897 = vadd.f32 0.0, %v2896
        %v2898 = vpop.f32.mrf.mxu0
        %2899 = vmatprep.mubr.f32.mxu0 0.0
        %2900 = vmatmul.mubr.f32.gmra.mxu0 %v2826
        %v2901 = vpop.f32.mrf.mxu0
        %v2902 = vadd.f32 0.0, %v2901
        %v2903 = vpop.f32.mrf.mxu0
        %2904 = vmatprep.mubr.f32.mxu0 0.0
        %2905 = vmatmul.mubr.f32.gmra.mxu0 %v2828
        %v2906 = vpop.f32.mrf.mxu0
        %v2907 = vadd.f32 0.0, %v2906
        %v2908 = vpop.f32.mrf.mxu0
        %2909 = vdwg.mxu0
        %s2910 = scalar_lea.vmem [#allocation3], 264
        %2911 = vst [vmem:[%s2910] sm:$0xff] %v2897
        %2912 = vst [vmem:[%s2910 + $0x8] sm:$0xff] %v2902
        %2913 = vst [vmem:[%s2910 + $0x10] sm:$0xff] %v2907
        %2914 = vrot.lane.b32.xlu0 %v1752, 64
        %v2915 = vpop.permute.xlu0 %2914
        %2916 = vrot.lane.b32.xlu0 %v1758, 64
        %v2917 = vpop.permute.xlu0 %2916
        %2918 = vrot.lane.b32.xlu0 %v1764, 64
        %v2919 = vpop.permute.xlu0 %2918
        %v2920 = vsel %vm1768, %v2915, 0
        %v2922 = vsel %vm1768, %v2917, 0
        %v2924 = vsel %vm1768, %v2919, 0
        %2926 = vmatprep.subr.mxu0 0.0
        %2927 = vmatpush1.msra.mxu0 0.0
        %2928 = vmatprep.subr.mxu0 0.0
        %2929 = vmatpush1.msra.mxu0 0.0
        %2930 = vmatprep.subr.mxu0 0.0
        %2931 = vmatpush1.msra.mxu0 0.0
        %2932 = vmatprep.subr.mxu0 0.0
        %2933 = vmatpush1.msra.mxu0 0.0
        %2934 = vmatprep.subr.mxu0 0.0
        %2935 = vmatpush1.msra.mxu0 0.0
        %2936 = vmatprep.subr.mxu0 0.0
        %2937 = vmatpush1.msra.mxu0 0.0
        %2938 = vmatprep.subr.mxu0 0.0
        %2939 = vmatpush1.msra.mxu0 0.0
        %2940 = vmatprep.subr.mxu0 0.0
        %2941 = vmatpush1.msra.mxu0 0.0
        %2942 = vmatprep.subr.mxu0 0.0
        %2943 = vmatpush1.msra.mxu0 0.0
        %2944 = vmatprep.subr.mxu0 0.0
        %2945 = vmatpush1.msra.mxu0 0.0
        %2946 = vmatprep.subr.mxu0 0.0
        %2947 = vmatpush1.msra.mxu0 0.0
        %2948 = vmatprep.subr.mxu0 0.0
        %2949 = vmatpush1.msra.mxu0 0.0
        %2950 = vmatprep.subr.mxu0 0.0
        %2951 = vmatpush1.msra.mxu0 0.0
        %2952 = vmatprep.subr.mxu0 0.0
        %2953 = vmatpush1.msra.mxu0 0.0
        %2954 = vmatprep.subr.mxu0 0.0
        %2955 = vmatpush1.msra.mxu0 %v1767
        %2956 = vmatprep.subr.mxu0 0.0
        %2957 = vmatpush1.msra.mxu0 %v1766
        %2958 = vmatprep.subr.mxu0 0.0
        %2959 = vmatpush2.msra.mxu0 0.0
        %2960 = vmatprep.subr.mxu0 0.0
        %2961 = vmatpush2.msra.mxu0 0.0
        %2962 = vmatprep.subr.mxu0 0.0
        %2963 = vmatpush2.msra.mxu0 0.0
        %2964 = vmatprep.subr.mxu0 0.0
        %2965 = vmatpush2.msra.mxu0 0.0
        %2966 = vmatprep.subr.mxu0 0.0
        %2967 = vmatpush2.msra.mxu0 0.0
        %2968 = vmatprep.subr.mxu0 0.0
        %2969 = vmatpush2.msra.mxu0 0.0
        %2970 = vmatprep.subr.mxu0 0.0
        %2971 = vmatpush2.msra.mxu0 0.0
        %2972 = vmatprep.subr.mxu0 0.0
        %2973 = vmatpush2.msra.mxu0 0.0
        %2974 = vmatprep.subr.mxu0 0.0
        %2975 = vmatpush2.msra.mxu0 0.0
        %2976 = vmatprep.subr.mxu0 0.0
        %2977 = vmatpush2.msra.mxu0 0.0
        %2978 = vmatprep.subr.mxu0 0.0
        %2979 = vmatpush2.msra.mxu0 0.0
        %2980 = vmatprep.subr.mxu0 0.0
        %2981 = vmatpush2.msra.mxu0 0.0
        %2982 = vmatprep.subr.mxu0 0.0
        %2983 = vmatpush2.msra.mxu0 0.0
        %2984 = vmatprep.subr.mxu0 0.0
        %2985 = vmatpush2.msra.mxu0 0.0
        %2986 = vmatprep.subr.mxu0 0.0
        %2987 = vmatpush2.msra.mxu0 0.0
        %2988 = vmatprep.subr.mxu0 0.0
        %2989 = vmatpush2.msra.mxu0 0.0
        %2990 = vmatprep.mubr.f32.mxu0 0.0
        %2991 = vmatmul.mubr.f32.gmra.mxu0 %v2920
        %v2992 = vpop.f32.mrf.mxu0
        %v2993 = vadd.f32 0.0, %v2992
        %v2994 = vpop.f32.mrf.mxu0
        %2995 = vmatprep.mubr.f32.mxu0 0.0
        %2996 = vmatmul.mubr.f32.gmra.mxu0 %v2922
        %v2997 = vpop.f32.mrf.mxu0
        %v2998 = vadd.f32 0.0, %v2997
        %v2999 = vpop.f32.mrf.mxu0
        %3000 = vmatprep.mubr.f32.mxu0 0.0
        %3001 = vmatmul.mubr.f32.gmra.mxu0 %v2924
        %v3002 = vpop.f32.mrf.mxu0
        %v3003 = vadd.f32 0.0, %v3002
        %v3004 = vpop.f32.mrf.mxu0
        %3005 = vdwg.mxu0
        %s3006 = scalar_lea.vmem [#allocation3], 288
        %3007 = vst [vmem:[%s3006] sm:$0xff] %v2993
        %3008 = vst [vmem:[%s3006 + $0x8] sm:$0xff] %v2998
        %3009 = vst [vmem:[%s3006 + $0x10] sm:$0xff] %v3003
        %3010 = vrot.lane.b32.xlu0 %v1752, 48
        %v3011 = vpop.permute.xlu0 %3010
        %3012 = vrot.lane.b32.xlu0 %v1758, 48
        %v3013 = vpop.permute.xlu0 %3012
        %3014 = vrot.lane.b32.xlu0 %v1764, 48
        %v3015 = vpop.permute.xlu0 %3014
        %v3016 = vsel %vm1768, %v3011, 0
        %v3018 = vsel %vm1768, %v3013, 0
        %v3020 = vsel %vm1768, %v3015, 0
        %3022 = vmatprep.subr.mxu0 0.0
        %3023 = vmatpush1.msra.mxu0 0.0
        %3024 = vmatprep.subr.mxu0 0.0
        %3025 = vmatpush1.msra.mxu0 0.0
        %3026 = vmatprep.subr.mxu0 0.0
        %3027 = vmatpush1.msra.mxu0 0.0
        %3028 = vmatprep.subr.mxu0 0.0
        %3029 = vmatpush1.msra.mxu0 0.0
        %3030 = vmatprep.subr.mxu0 0.0
        %3031 = vmatpush1.msra.mxu0 0.0
        %3032 = vmatprep.subr.mxu0 0.0
        %3033 = vmatpush1.msra.mxu0 0.0
        %3034 = vmatprep.subr.mxu0 0.0
        %3035 = vmatpush1.msra.mxu0 0.0
        %3036 = vmatprep.subr.mxu0 0.0
        %3037 = vmatpush1.msra.mxu0 0.0
        %3038 = vmatprep.subr.mxu0 0.0
        %3039 = vmatpush1.msra.mxu0 0.0
        %3040 = vmatprep.subr.mxu0 0.0
        %3041 = vmatpush1.msra.mxu0 0.0
        %3042 = vmatprep.subr.mxu0 0.0
        %3043 = vmatpush1.msra.mxu0 0.0
        %3044 = vmatprep.subr.mxu0 0.0
        %3045 = vmatpush1.msra.mxu0 0.0
        %3046 = vmatprep.subr.mxu0 0.0
        %3047 = vmatpush1.msra.mxu0 0.0
        %3048 = vmatprep.subr.mxu0 0.0
        %3049 = vmatpush1.msra.mxu0 0.0
        %3050 = vmatprep.subr.mxu0 0.0
        %3051 = vmatpush1.msra.mxu0 %v1767
        %3052 = vmatprep.subr.mxu0 0.0
        %3053 = vmatpush1.msra.mxu0 %v1766
        %3054 = vmatprep.subr.mxu0 0.0
        %3055 = vmatpush2.msra.mxu0 0.0
        %3056 = vmatprep.subr.mxu0 0.0
        %3057 = vmatpush2.msra.mxu0 0.0
        %3058 = vmatprep.subr.mxu0 0.0
        %3059 = vmatpush2.msra.mxu0 0.0
        %3060 = vmatprep.subr.mxu0 0.0
        %3061 = vmatpush2.msra.mxu0 0.0
        %3062 = vmatprep.subr.mxu0 0.0
        %3063 = vmatpush2.msra.mxu0 0.0
        %3064 = vmatprep.subr.mxu0 0.0
        %3065 = vmatpush2.msra.mxu0 0.0
        %3066 = vmatprep.subr.mxu0 0.0
        %3067 = vmatpush2.msra.mxu0 0.0
        %3068 = vmatprep.subr.mxu0 0.0
        %3069 = vmatpush2.msra.mxu0 0.0
        %3070 = vmatprep.subr.mxu0 0.0
        %3071 = vmatpush2.msra.mxu0 0.0
        %3072 = vmatprep.subr.mxu0 0.0
        %3073 = vmatpush2.msra.mxu0 0.0
        %3074 = vmatprep.subr.mxu0 0.0
        %3075 = vmatpush2.msra.mxu0 0.0
        %3076 = vmatprep.subr.mxu0 0.0
        %3077 = vmatpush2.msra.mxu0 0.0
        %3078 = vmatprep.subr.mxu0 0.0
        %3079 = vmatpush2.msra.mxu0 0.0
        %3080 = vmatprep.subr.mxu0 0.0
        %3081 = vmatpush2.msra.mxu0 0.0
        %3082 = vmatprep.subr.mxu0 0.0
        %3083 = vmatpush2.msra.mxu0 0.0
        %3084 = vmatprep.subr.mxu0 0.0
        %3085 = vmatpush2.msra.mxu0 0.0
        %3086 = vmatprep.mubr.f32.mxu0 0.0
        %3087 = vmatmul.mubr.f32.gmra.mxu0 %v3016
        %v3088 = vpop.f32.mrf.mxu0
        %v3089 = vadd.f32 0.0, %v3088
        %v3090 = vpop.f32.mrf.mxu0
        %3091 = vmatprep.mubr.f32.mxu0 0.0
        %3092 = vmatmul.mubr.f32.gmra.mxu0 %v3018
        %v3093 = vpop.f32.mrf.mxu0
        %v3094 = vadd.f32 0.0, %v3093
        %v3095 = vpop.f32.mrf.mxu0
        %3096 = vmatprep.mubr.f32.mxu0 0.0
        %3097 = vmatmul.mubr.f32.gmra.mxu0 %v3020
        %v3098 = vpop.f32.mrf.mxu0
        %v3099 = vadd.f32 0.0, %v3098
        %v3100 = vpop.f32.mrf.mxu0
        %3101 = vdwg.mxu0
        %s3102 = scalar_lea.vmem [#allocation3], 312
        %3103 = vst [vmem:[%s3102] sm:$0xff] %v3089
        %3104 = vst [vmem:[%s3102 + $0x8] sm:$0xff] %v3094
        %3105 = vst [vmem:[%s3102 + $0x10] sm:$0xff] %v3099
        %3106 = vrot.lane.b32.xlu0 %v1752, 32
        %v3107 = vpop.permute.xlu0 %3106
        %3108 = vrot.lane.b32.xlu0 %v1758, 32
        %v3109 = vpop.permute.xlu0 %3108
        %3110 = vrot.lane.b32.xlu0 %v1764, 32
        %v3111 = vpop.permute.xlu0 %3110
        %v3112 = vsel %vm1768, %v3107, 0
        %v3114 = vsel %vm1768, %v3109, 0
        %v3116 = vsel %vm1768, %v3111, 0
        %3118 = vmatprep.subr.mxu0 0.0
        %3119 = vmatpush1.msra.mxu0 0.0
        %3120 = vmatprep.subr.mxu0 0.0
        %3121 = vmatpush1.msra.mxu0 0.0
        %3122 = vmatprep.subr.mxu0 0.0
        %3123 = vmatpush1.msra.mxu0 0.0
        %3124 = vmatprep.subr.mxu0 0.0
        %3125 = vmatpush1.msra.mxu0 0.0
        %3126 = vmatprep.subr.mxu0 0.0
        %3127 = vmatpush1.msra.mxu0 0.0
        %3128 = vmatprep.subr.mxu0 0.0
        %3129 = vmatpush1.msra.mxu0 0.0
        %3130 = vmatprep.subr.mxu0 0.0
        %3131 = vmatpush1.msra.mxu0 0.0
        %3132 = vmatprep.subr.mxu0 0.0
        %3133 = vmatpush1.msra.mxu0 0.0
        %3134 = vmatprep.subr.mxu0 0.0
        %3135 = vmatpush1.msra.mxu0 0.0
        %3136 = vmatprep.subr.mxu0 0.0
        %3137 = vmatpush1.msra.mxu0 0.0
        %3138 = vmatprep.subr.mxu0 0.0
        %3139 = vmatpush1.msra.mxu0 0.0
        %3140 = vmatprep.subr.mxu0 0.0
        %3141 = vmatpush1.msra.mxu0 0.0
        %3142 = vmatprep.subr.mxu0 0.0
        %3143 = vmatpush1.msra.mxu0 0.0
        %3144 = vmatprep.subr.mxu0 0.0
        %3145 = vmatpush1.msra.mxu0 0.0
        %3146 = vmatprep.subr.mxu0 0.0
        %3147 = vmatpush1.msra.mxu0 %v1767
        %3148 = vmatprep.subr.mxu0 0.0
        %3149 = vmatpush1.msra.mxu0 %v1766
        %3150 = vmatprep.subr.mxu0 0.0
        %3151 = vmatpush2.msra.mxu0 0.0
        %3152 = vmatprep.subr.mxu0 0.0
        %3153 = vmatpush2.msra.mxu0 0.0
        %3154 = vmatprep.subr.mxu0 0.0
        %3155 = vmatpush2.msra.mxu0 0.0
        %3156 = vmatprep.subr.mxu0 0.0
        %3157 = vmatpush2.msra.mxu0 0.0
        %3158 = vmatprep.subr.mxu0 0.0
        %3159 = vmatpush2.msra.mxu0 0.0
        %3160 = vmatprep.subr.mxu0 0.0
        %3161 = vmatpush2.msra.mxu0 0.0
        %3162 = vmatprep.subr.mxu0 0.0
        %3163 = vmatpush2.msra.mxu0 0.0
        %3164 = vmatprep.subr.mxu0 0.0
        %3165 = vmatpush2.msra.mxu0 0.0
        %3166 = vmatprep.subr.mxu0 0.0
        %3167 = vmatpush2.msra.mxu0 0.0
        %3168 = vmatprep.subr.mxu0 0.0
        %3169 = vmatpush2.msra.mxu0 0.0
        %3170 = vmatprep.subr.mxu0 0.0
        %3171 = vmatpush2.msra.mxu0 0.0
        %3172 = vmatprep.subr.mxu0 0.0
        %3173 = vmatpush2.msra.mxu0 0.0
        %3174 = vmatprep.subr.mxu0 0.0
        %3175 = vmatpush2.msra.mxu0 0.0
        %3176 = vmatprep.subr.mxu0 0.0
        %3177 = vmatpush2.msra.mxu0 0.0
        %3178 = vmatprep.subr.mxu0 0.0
        %3179 = vmatpush2.msra.mxu0 0.0
        %3180 = vmatprep.subr.mxu0 0.0
        %3181 = vmatpush2.msra.mxu0 0.0
        %3182 = vmatprep.mubr.f32.mxu0 0.0
        %3183 = vmatmul.mubr.f32.gmra.mxu0 %v3112
        %v3184 = vpop.f32.mrf.mxu0
        %v3185 = vadd.f32 0.0, %v3184
        %v3186 = vpop.f32.mrf.mxu0
        %3187 = vmatprep.mubr.f32.mxu0 0.0
        %3188 = vmatmul.mubr.f32.gmra.mxu0 %v3114
        %v3189 = vpop.f32.mrf.mxu0
        %v3190 = vadd.f32 0.0, %v3189
        %v3191 = vpop.f32.mrf.mxu0
        %3192 = vmatprep.mubr.f32.mxu0 0.0
        %3193 = vmatmul.mubr.f32.gmra.mxu0 %v3116
        %v3194 = vpop.f32.mrf.mxu0
        %v3195 = vadd.f32 0.0, %v3194
        %v3196 = vpop.f32.mrf.mxu0
        %3197 = vdwg.mxu0
        %s3198 = scalar_lea.vmem [#allocation3], 336
        %3199 = vst [vmem:[%s3198] sm:$0xff] %v3185
        %3200 = vst [vmem:[%s3198 + $0x8] sm:$0xff] %v3190
        %3201 = vst [vmem:[%s3198 + $0x10] sm:$0xff] %v3195
        %3202 = vrot.lane.b32.xlu0 %v1752, 16
        %v3203 = vpop.permute.xlu0 %3202
        %3204 = vrot.lane.b32.xlu0 %v1758, 16
        %v3205 = vpop.permute.xlu0 %3204
        %3206 = vrot.lane.b32.xlu0 %v1764, 16
        %v3207 = vpop.permute.xlu0 %3206
        %v3208 = vsel %vm1768, %v3203, 0
        %v3210 = vsel %vm1768, %v3205, 0
        %v3212 = vsel %vm1768, %v3207, 0
        %3214 = vmatprep.subr.mxu0 0.0
        %3215 = vmatpush1.msra.mxu0 0.0
        %3216 = vmatprep.subr.mxu0 0.0
        %3217 = vmatpush1.msra.mxu0 0.0
        %3218 = vmatprep.subr.mxu0 0.0
        %3219 = vmatpush1.msra.mxu0 0.0
        %3220 = vmatprep.subr.mxu0 0.0
        %3221 = vmatpush1.msra.mxu0 0.0
        %3222 = vmatprep.subr.mxu0 0.0
        %3223 = vmatpush1.msra.mxu0 0.0
        %3224 = vmatprep.subr.mxu0 0.0
        %3225 = vmatpush1.msra.mxu0 0.0
        %3226 = vmatprep.subr.mxu0 0.0
        %3227 = vmatpush1.msra.mxu0 0.0
        %3228 = vmatprep.subr.mxu0 0.0
        %3229 = vmatpush1.msra.mxu0 0.0
        %3230 = vmatprep.subr.mxu0 0.0
        %3231 = vmatpush1.msra.mxu0 0.0
        %3232 = vmatprep.subr.mxu0 0.0
        %3233 = vmatpush1.msra.mxu0 0.0
        %3234 = vmatprep.subr.mxu0 0.0
        %3235 = vmatpush1.msra.mxu0 0.0
        %3236 = vmatprep.subr.mxu0 0.0
        %3237 = vmatpush1.msra.mxu0 0.0
        %3238 = vmatprep.subr.mxu0 0.0
        %3239 = vmatpush1.msra.mxu0 0.0
        %3240 = vmatprep.subr.mxu0 0.0
        %3241 = vmatpush1.msra.mxu0 0.0
        %3242 = vmatprep.subr.mxu0 0.0
        %3243 = vmatpush1.msra.mxu0 %v1767
        %3244 = vmatprep.subr.mxu0 0.0
        %3245 = vmatpush1.msra.mxu0 %v1766
        %3246 = vmatprep.subr.mxu0 0.0
        %3247 = vmatpush2.msra.mxu0 0.0
        %3248 = vmatprep.subr.mxu0 0.0
        %3249 = vmatpush2.msra.mxu0 0.0
        %3250 = vmatprep.subr.mxu0 0.0
        %3251 = vmatpush2.msra.mxu0 0.0
        %3252 = vmatprep.subr.mxu0 0.0
        %3253 = vmatpush2.msra.mxu0 0.0
        %3254 = vmatprep.subr.mxu0 0.0
        %3255 = vmatpush2.msra.mxu0 0.0
        %3256 = vmatprep.subr.mxu0 0.0
        %3257 = vmatpush2.msra.mxu0 0.0
        %3258 = vmatprep.subr.mxu0 0.0
        %3259 = vmatpush2.msra.mxu0 0.0
        %3260 = vmatprep.subr.mxu0 0.0
        %3261 = vmatpush2.msra.mxu0 0.0
        %3262 = vmatprep.subr.mxu0 0.0
        %3263 = vmatpush2.msra.mxu0 0.0
        %3264 = vmatprep.subr.mxu0 0.0
        %3265 = vmatpush2.msra.mxu0 0.0
        %3266 = vmatprep.subr.mxu0 0.0
        %3267 = vmatpush2.msra.mxu0 0.0
        %3268 = vmatprep.subr.mxu0 0.0
        %3269 = vmatpush2.msra.mxu0 0.0
        %3270 = vmatprep.subr.mxu0 0.0
        %3271 = vmatpush2.msra.mxu0 0.0
        %3272 = vmatprep.subr.mxu0 0.0
        %3273 = vmatpush2.msra.mxu0 0.0
        %3274 = vmatprep.subr.mxu0 0.0
        %3275 = vmatpush2.msra.mxu0 0.0
        %3276 = vmatprep.subr.mxu0 0.0
        %3277 = vmatpush2.msra.mxu0 0.0
        %3278 = vmatprep.mubr.f32.mxu0 0.0
        %3279 = vmatmul.mubr.f32.gmra.mxu0 %v3208
        %v3280 = vpop.f32.mrf.mxu0
        %v3281 = vadd.f32 0.0, %v3280
        %v3282 = vpop.f32.mrf.mxu0
        %3283 = vmatprep.mubr.f32.mxu0 0.0
        %3284 = vmatmul.mubr.f32.gmra.mxu0 %v3210
        %v3285 = vpop.f32.mrf.mxu0
        %v3286 = vadd.f32 0.0, %v3285
        %v3287 = vpop.f32.mrf.mxu0
        %3288 = vmatprep.mubr.f32.mxu0 0.0
        %3289 = vmatmul.mubr.f32.gmra.mxu0 %v3212
        %v3290 = vpop.f32.mrf.mxu0
        %v3291 = vadd.f32 0.0, %v3290
        %v3292 = vpop.f32.mrf.mxu0
        %3293 = vdwg.mxu0
        %s3294 = scalar_lea.vmem [#allocation3], 360
        %3295 = vst [vmem:[%s3294] sm:$0xff] %v3281
        %3296 = vst [vmem:[%s3294 + $0x8] sm:$0xff] %v3286
        %3297 = vst [vmem:[%s3294 + $0x10] sm:$0xff] %v3291
        %v3298 = vld [vmem:[%s3] sm:$0xff]
        %v3299 = vld [vmem:[%s3 + $0x8] sm:$0xff]
        %v3300 = vld [vmem:[%s3 + $0x10] sm:$0xff]
        %v3301 = vld [vmem:[%s3 + $0x18] sm:$0xff]
        %v3302 = vld [vmem:[%s3 + $0x20] sm:$0xff]
        %v3303 = vld [vmem:[%s3 + $0x28] sm:$0xff]
        %v3304 = vld [vmem:[%s3 + $0x30] sm:$0xff]
        %v3305 = vld [vmem:[%s3 + $0x38] sm:$0xff]
        %v3306 = vld [vmem:[%s3 + $0x40] sm:$0xff]
        %v3307 = vld [vmem:[%s3 + $0x48] sm:$0xff]
        %v3308 = vld [vmem:[%s3 + $0x50] sm:$0xff]
        %v3309 = vld [vmem:[%s3 + $0x58] sm:$0xff]
        %v3310 = vld [vmem:[%s3 + $0x60] sm:$0xff]
        %v3311 = vld [vmem:[%s3 + $0x68] sm:$0xff]
        %v3312 = vld [vmem:[%s3 + $0x70] sm:$0xff]
        %v3313 = vld [vmem:[%s3 + $0x78] sm:$0xff]
        %v3314 = vld [vmem:[#allocation3] sm:$0x1]
        %v3315 = vld [vmem:[#allocation3 + $0x18] sm:$0x1]
        %v3316 = vld [vmem:[#allocation3 + $0x30] sm:$0x1]
        %v3317 = vld [vmem:[#allocation3 + $0x48] sm:$0x1]
        %v3318 = vld [vmem:[#allocation3 + $0x60] sm:$0x1]
        %v3319 = vld [vmem:[#allocation3 + $0x78] sm:$0x1]
        %v3320 = vld [vmem:[#allocation3 + $0x90] sm:$0x1]
        %v3321 = vld [vmem:[#allocation3 + $0xa8] sm:$0x1]
        %v3322 = vld [vmem:[#allocation3 + $0xc0] sm:$0x1]
        %v3323 = vld [vmem:[#allocation3 + $0xd8] sm:$0x1]
        %v3324 = vld [vmem:[#allocation3 + $0xf0] sm:$0x1]
        %v3325 = vld [vmem:[#allocation3 + $0x108] sm:$0x1]
        %v3326 = vld [vmem:[#allocation3 + $0x120] sm:$0x1]
        %v3327 = vld [vmem:[#allocation3 + $0x138] sm:$0x1]
        %v3328 = vld [vmem:[#allocation3 + $0x150] sm:$0x1]
        %v3329 = vld [vmem:[#allocation3 + $0x168] sm:$0x1]
        %v3346 = vrot.slane %v3315, 7
        %vm3347 = vcmask 1041409
        %v3348 = vsel %vm3347, %v3346, %v3314
        %v3349 = vrot.slane %v3316, 6
        %vm3350 = vcmask 1042434
        %v3351 = vsel %vm3350, %v3349, %v3348
        %v3352 = vrot.slane %v3317, 5
        %vm3353 = vcmask 1043459
        %v3354 = vsel %vm3353, %v3352, %v3351
        %v3355 = vrot.slane %v3318, 4
        %vm3356 = vcmask 1044484
        %v3357 = vsel %vm3356, %v3355, %v3354
        %v3358 = vrot.slane %v3319, 3
        %vm3359 = vcmask 1045509
        %v3360 = vsel %vm3359, %v3358, %v3357
        %v3361 = vrot.slane %v3320, 2
        %vm3362 = vcmask 1046534
        %v3363 = vsel %vm3362, %v3361, %v3360
        %v3364 = vrot.slane %v3321, 1
        %vm3365 = vcmask 1047559
        %v3366 = vsel %vm3365, %v3364, %v3363
        %v3367 = vrot.slane %v3323, 7
        %v3368 = vsel %vm3347, %v3367, %v3322
        %v3369 = vrot.slane %v3324, 6
        %v3370 = vsel %vm3350, %v3369, %v3368
        %v3371 = vrot.slane %v3325, 5
        %v3372 = vsel %vm3353, %v3371, %v3370
        %v3373 = vrot.slane %v3326, 4
        %v3374 = vsel %vm3356, %v3373, %v3372
        %v3375 = vrot.slane %v3327, 3
        %v3376 = vsel %vm3359, %v3375, %v3374
        %v3377 = vrot.slane %v3328, 2
        %v3378 = vsel %vm3362, %v3377, %v3376
        %v3379 = vrot.slane %v3329, 1
        %v3380 = vsel %vm3365, %v3379, %v3378
        %v3384 = vsel %vm1768, %v3298, 0
        %v3387 = vsel %vm1768, %v3299, 0
        %v3390 = vsel %vm1768, %v3300, 0
        %v3393 = vsel %vm1768, %v3301, 0
        %v3396 = vsel %vm1768, %v3302, 0
        %v3399 = vsel %vm1768, %v3303, 0
        %v3402 = vsel %vm1768, %v3304, 0
        %v3405 = vsel %vm1768, %v3305, 0
        %v3408 = vsel %vm1768, %v3306, 0
        %v3411 = vsel %vm1768, %v3307, 0
        %v3414 = vsel %vm1768, %v3308, 0
        %v3417 = vsel %vm1768, %v3309, 0
        %v3420 = vsel %vm1768, %v3310, 0
        %v3423 = vsel %vm1768, %v3311, 0
        %v3426 = vsel %vm1768, %v3312, 0
        %v3429 = vsel %vm1768, %v3313, 0
        %3431 = vmatprep.subr.mxu0 0.0
        %3432 = vmatpush1.msra.mxu0 0.0
        %3433 = vmatprep.subr.mxu0 0.0
        %3434 = vmatpush1.msra.mxu0 0.0
        %3435 = vmatprep.subr.mxu0 0.0
        %3436 = vmatpush1.msra.mxu0 0.0
        %3437 = vmatprep.subr.mxu0 0.0
        %3438 = vmatpush1.msra.mxu0 0.0
        %3439 = vmatprep.subr.mxu0 0.0
        %3440 = vmatpush1.msra.mxu0 0.0
        %3441 = vmatprep.subr.mxu0 0.0
        %3442 = vmatpush1.msra.mxu0 0.0
        %3443 = vmatprep.subr.mxu0 0.0
        %3444 = vmatpush1.msra.mxu0 0.0
        %3445 = vmatprep.subr.mxu0 0.0
        %3446 = vmatpush1.msra.mxu0 0.0
        %3447 = vmatprep.subr.mxu0 0.0
        %3448 = vmatpush1.msra.mxu0 0.0
        %3449 = vmatprep.subr.mxu0 0.0
        %3450 = vmatpush1.msra.mxu0 0.0
        %3451 = vmatprep.subr.mxu0 0.0
        %3452 = vmatpush1.msra.mxu0 0.0
        %3453 = vmatprep.subr.mxu0 0.0
        %3454 = vmatpush1.msra.mxu0 0.0
        %3455 = vmatprep.subr.mxu0 0.0
        %3456 = vmatpush1.msra.mxu0 0.0
        %3457 = vmatprep.subr.mxu0 0.0
        %3458 = vmatpush1.msra.mxu0 0.0
        %3459 = vmatprep.subr.mxu0 0.0
        %3460 = vmatpush1.msra.mxu0 %v3380
        %3461 = vmatprep.subr.mxu0 0.0
        %3462 = vmatpush1.msra.mxu0 %v3366
        %3463 = vmatprep.subr.mxu0 0.0
        %3464 = vmatpush2.msra.mxu0 0.0
        %3465 = vmatprep.subr.mxu0 0.0
        %3466 = vmatpush2.msra.mxu0 0.0
        %3467 = vmatprep.subr.mxu0 0.0
        %3468 = vmatpush2.msra.mxu0 0.0
        %3469 = vmatprep.subr.mxu0 0.0
        %3470 = vmatpush2.msra.mxu0 0.0
        %3471 = vmatprep.subr.mxu0 0.0
        %3472 = vmatpush2.msra.mxu0 0.0
        %3473 = vmatprep.subr.mxu0 0.0
        %3474 = vmatpush2.msra.mxu0 0.0
        %3475 = vmatprep.subr.mxu0 0.0
        %3476 = vmatpush2.msra.mxu0 0.0
        %3477 = vmatprep.subr.mxu0 0.0
        %3478 = vmatpush2.msra.mxu0 0.0
        %3479 = vmatprep.subr.mxu0 0.0
        %3480 = vmatpush2.msra.mxu0 0.0
        %3481 = vmatprep.subr.mxu0 0.0
        %3482 = vmatpush2.msra.mxu0 0.0
        %3483 = vmatprep.subr.mxu0 0.0
        %3484 = vmatpush2.msra.mxu0 0.0
        %3485 = vmatprep.subr.mxu0 0.0
        %3486 = vmatpush2.msra.mxu0 0.0
        %3487 = vmatprep.subr.mxu0 0.0
        %3488 = vmatpush2.msra.mxu0 0.0
        %3489 = vmatprep.subr.mxu0 0.0
        %3490 = vmatpush2.msra.mxu0 0.0
        %3491 = vmatprep.subr.mxu0 0.0
        %3492 = vmatpush2.msra.mxu0 0.0
        %3493 = vmatprep.subr.mxu0 0.0
        %3494 = vmatpush2.msra.mxu0 0.0
        %3495 = vmatprep.mubr.f32.mxu0 0.0
        %3496 = vmatmul.mubr.f32.gmra.mxu0 %v3384
        %v3497 = vpop.f32.mrf.mxu0
        %v3498 = vadd.f32 0.0, %v3497
        %v3499 = vpop.f32.mrf.mxu0
        %3500 = vmatprep.mubr.f32.mxu0 0.0
        %3501 = vmatmul.mubr.f32.gmra.mxu0 %v3387
        %v3502 = vpop.f32.mrf.mxu0
        %v3503 = vadd.f32 0.0, %v3502
        %v3504 = vpop.f32.mrf.mxu0
        %3505 = vmatprep.mubr.f32.mxu0 0.0
        %3506 = vmatmul.mubr.f32.gmra.mxu0 %v3390
        %v3507 = vpop.f32.mrf.mxu0
        %v3508 = vadd.f32 0.0, %v3507
        %v3509 = vpop.f32.mrf.mxu0
        %3510 = vmatprep.mubr.f32.mxu0 0.0
        %3511 = vmatmul.mubr.f32.gmra.mxu0 %v3393
        %v3512 = vpop.f32.mrf.mxu0
        %v3513 = vadd.f32 0.0, %v3512
        %v3514 = vpop.f32.mrf.mxu0
        %3515 = vmatprep.mubr.f32.mxu0 0.0
        %3516 = vmatmul.mubr.f32.gmra.mxu0 %v3396
        %v3517 = vpop.f32.mrf.mxu0
        %v3518 = vadd.f32 0.0, %v3517
        %v3519 = vpop.f32.mrf.mxu0
        %3520 = vmatprep.mubr.f32.mxu0 0.0
        %3521 = vmatmul.mubr.f32.gmra.mxu0 %v3399
        %v3522 = vpop.f32.mrf.mxu0
        %v3523 = vadd.f32 0.0, %v3522
        %v3524 = vpop.f32.mrf.mxu0
        %3525 = vmatprep.mubr.f32.mxu0 0.0
        %3526 = vmatmul.mubr.f32.gmra.mxu0 %v3402
        %v3527 = vpop.f32.mrf.mxu0
        %v3528 = vadd.f32 0.0, %v3527
        %v3529 = vpop.f32.mrf.mxu0
        %3530 = vmatprep.mubr.f32.mxu0 0.0
        %3531 = vmatmul.mubr.f32.gmra.mxu0 %v3405
        %v3532 = vpop.f32.mrf.mxu0
        %v3533 = vadd.f32 0.0, %v3532
        %v3534 = vpop.f32.mrf.mxu0
        %3535 = vmatprep.mubr.f32.mxu0 0.0
        %3536 = vmatmul.mubr.f32.gmra.mxu0 %v3408
        %v3537 = vpop.f32.mrf.mxu0
        %v3538 = vadd.f32 0.0, %v3537
        %v3539 = vpop.f32.mrf.mxu0
        %3540 = vmatprep.mubr.f32.mxu0 0.0
        %3541 = vmatmul.mubr.f32.gmra.mxu0 %v3411
        %v3542 = vpop.f32.mrf.mxu0
        %v3543 = vadd.f32 0.0, %v3542
        %v3544 = vpop.f32.mrf.mxu0
        %3545 = vmatprep.mubr.f32.mxu0 0.0
        %3546 = vmatmul.mubr.f32.gmra.mxu0 %v3414
        %v3547 = vpop.f32.mrf.mxu0
        %v3548 = vadd.f32 0.0, %v3547
        %v3549 = vpop.f32.mrf.mxu0
        %3550 = vmatprep.mubr.f32.mxu0 0.0
        %3551 = vmatmul.mubr.f32.gmra.mxu0 %v3417
        %v3552 = vpop.f32.mrf.mxu0
        %v3553 = vadd.f32 0.0, %v3552
        %v3554 = vpop.f32.mrf.mxu0
        %3555 = vmatprep.mubr.f32.mxu0 0.0
        %3556 = vmatmul.mubr.f32.gmra.mxu0 %v3420
        %v3557 = vpop.f32.mrf.mxu0
        %v3558 = vadd.f32 0.0, %v3557
        %v3559 = vpop.f32.mrf.mxu0
        %3560 = vmatprep.mubr.f32.mxu0 0.0
        %3561 = vmatmul.mubr.f32.gmra.mxu0 %v3423
        %v3562 = vpop.f32.mrf.mxu0
        %v3563 = vadd.f32 0.0, %v3562
        %v3564 = vpop.f32.mrf.mxu0
        %3565 = vmatprep.mubr.f32.mxu0 0.0
        %3566 = vmatmul.mubr.f32.gmra.mxu0 %v3426
        %v3567 = vpop.f32.mrf.mxu0
        %v3568 = vadd.f32 0.0, %v3567
        %v3569 = vpop.f32.mrf.mxu0
        %3570 = vmatprep.mubr.f32.mxu0 0.0
        %3571 = vmatmul.mubr.f32.gmra.mxu0 %v3429
        %v3572 = vpop.f32.mrf.mxu0
        %v3573 = vadd.f32 0.0, %v3572
        %v3574 = vpop.f32.mrf.mxu0
        %3575 = vdwg.mxu0
        %3576 = vst [vmem:[%s306] sm:$0xff] %v3498
        %3577 = vst [vmem:[%s306 + $0x8] sm:$0xff] %v3503
        %3578 = vst [vmem:[%s306 + $0x10] sm:$0xff] %v3508
        %3579 = vst [vmem:[%s306 + $0x18] sm:$0xff] %v3513
        %3580 = vst [vmem:[%s306 + $0x20] sm:$0xff] %v3518
        %3581 = vst [vmem:[%s306 + $0x28] sm:$0xff] %v3523
        %3582 = vst [vmem:[%s306 + $0x30] sm:$0xff] %v3528
        %3583 = vst [vmem:[%s306 + $0x38] sm:$0xff] %v3533
        %3584 = vst [vmem:[%s306 + $0x40] sm:$0xff] %v3538
        %3585 = vst [vmem:[%s306 + $0x48] sm:$0xff] %v3543
        %3586 = vst [vmem:[%s306 + $0x50] sm:$0xff] %v3548
        %3587 = vst [vmem:[%s306 + $0x58] sm:$0xff] %v3553
        %3588 = vst [vmem:[%s306 + $0x60] sm:$0xff] %v3558
        %3589 = vst [vmem:[%s306 + $0x68] sm:$0xff] %v3563
        %3590 = vst [vmem:[%s306 + $0x70] sm:$0xff] %v3568
        %3591 = vst [vmem:[%s306 + $0x78] sm:$0xff] %v3573
        %v3592 = vld [vmem:[#allocation3 + $0x1] sm:$0x1]
        %v3593 = vld [vmem:[#allocation3 + $0x19] sm:$0x1]
        %v3594 = vld [vmem:[#allocation3 + $0x31] sm:$0x1]
        %v3595 = vld [vmem:[#allocation3 + $0x49] sm:$0x1]
        %v3596 = vld [vmem:[#allocation3 + $0x61] sm:$0x1]
        %v3597 = vld [vmem:[#allocation3 + $0x79] sm:$0x1]
        %v3598 = vld [vmem:[#allocation3 + $0x91] sm:$0x1]
        %v3599 = vld [vmem:[#allocation3 + $0xa9] sm:$0x1]
        %v3600 = vld [vmem:[#allocation3 + $0xc1] sm:$0x1]
        %v3601 = vld [vmem:[#allocation3 + $0xd9] sm:$0x1]
        %v3602 = vld [vmem:[#allocation3 + $0xf1] sm:$0x1]
        %v3603 = vld [vmem:[#allocation3 + $0x109] sm:$0x1]
        %v3604 = vld [vmem:[#allocation3 + $0x121] sm:$0x1]
        %v3605 = vld [vmem:[#allocation3 + $0x139] sm:$0x1]
        %v3606 = vld [vmem:[#allocation3 + $0x151] sm:$0x1]
        %v3607 = vld [vmem:[#allocation3 + $0x169] sm:$0x1]
        %v3624 = vrot.slane %v3593, 7
        %v3625 = vsel %vm3347, %v3624, %v3592
        %v3626 = vrot.slane %v3594, 6
        %v3627 = vsel %vm3350, %v3626, %v3625
        %v3628 = vrot.slane %v3595, 5
        %v3629 = vsel %vm3353, %v3628, %v3627
        %v3630 = vrot.slane %v3596, 4
        %v3631 = vsel %vm3356, %v3630, %v3629
        %v3632 = vrot.slane %v3597, 3
        %v3633 = vsel %vm3359, %v3632, %v3631
        %v3634 = vrot.slane %v3598, 2
        %v3635 = vsel %vm3362, %v3634, %v3633
        %v3636 = vrot.slane %v3599, 1
        %v3637 = vsel %vm3365, %v3636, %v3635
        %v3638 = vrot.slane %v3601, 7
        %v3639 = vsel %vm3347, %v3638, %v3600
        %v3640 = vrot.slane %v3602, 6
        %v3641 = vsel %vm3350, %v3640, %v3639
        %v3642 = vrot.slane %v3603, 5
        %v3643 = vsel %vm3353, %v3642, %v3641
        %v3644 = vrot.slane %v3604, 4
        %v3645 = vsel %vm3356, %v3644, %v3643
        %v3646 = vrot.slane %v3605, 3
        %v3647 = vsel %vm3359, %v3646, %v3645
        %v3648 = vrot.slane %v3606, 2
        %v3649 = vsel %vm3362, %v3648, %v3647
        %v3650 = vrot.slane %v3607, 1
        %v3651 = vsel %vm3365, %v3650, %v3649
        %3654 = vmatprep.subr.mxu0 0.0
        %3655 = vmatpush1.msra.mxu0 0.0
        %3656 = vmatprep.subr.mxu0 0.0
        %3657 = vmatpush1.msra.mxu0 0.0
        %3658 = vmatprep.subr.mxu0 0.0
        %3659 = vmatpush1.msra.mxu0 0.0
        %3660 = vmatprep.subr.mxu0 0.0
        %3661 = vmatpush1.msra.mxu0 0.0
        %3662 = vmatprep.subr.mxu0 0.0
        %3663 = vmatpush1.msra.mxu0 0.0
        %3664 = vmatprep.subr.mxu0 0.0
        %3665 = vmatpush1.msra.mxu0 0.0
        %3666 = vmatprep.subr.mxu0 0.0
        %3667 = vmatpush1.msra.mxu0 0.0
        %3668 = vmatprep.subr.mxu0 0.0
        %3669 = vmatpush1.msra.mxu0 0.0
        %3670 = vmatprep.subr.mxu0 0.0
        %3671 = vmatpush1.msra.mxu0 0.0
        %3672 = vmatprep.subr.mxu0 0.0
        %3673 = vmatpush1.msra.mxu0 0.0
        %3674 = vmatprep.subr.mxu0 0.0
        %3675 = vmatpush1.msra.mxu0 0.0
        %3676 = vmatprep.subr.mxu0 0.0
        %3677 = vmatpush1.msra.mxu0 0.0
        %3678 = vmatprep.subr.mxu0 0.0
        %3679 = vmatpush1.msra.mxu0 0.0
        %3680 = vmatprep.subr.mxu0 0.0
        %3681 = vmatpush1.msra.mxu0 0.0
        %3682 = vmatprep.subr.mxu0 0.0
        %3683 = vmatpush1.msra.mxu0 %v3651
        %3684 = vmatprep.subr.mxu0 0.0
        %3685 = vmatpush1.msra.mxu0 %v3637
        %3686 = vmatprep.subr.mxu0 0.0
        %3687 = vmatpush2.msra.mxu0 0.0
        %3688 = vmatprep.subr.mxu0 0.0
        %3689 = vmatpush2.msra.mxu0 0.0
        %3690 = vmatprep.subr.mxu0 0.0
        %3691 = vmatpush2.msra.mxu0 0.0
        %3692 = vmatprep.subr.mxu0 0.0
        %3693 = vmatpush2.msra.mxu0 0.0
        %3694 = vmatprep.subr.mxu0 0.0
        %3695 = vmatpush2.msra.mxu0 0.0
        %3696 = vmatprep.subr.mxu0 0.0
        %3697 = vmatpush2.msra.mxu0 0.0
        %3698 = vmatprep.subr.mxu0 0.0
        %3699 = vmatpush2.msra.mxu0 0.0
        %3700 = vmatprep.subr.mxu0 0.0
        %3701 = vmatpush2.msra.mxu0 0.0
        %3702 = vmatprep.subr.mxu0 0.0
        %3703 = vmatpush2.msra.mxu0 0.0
        %3704 = vmatprep.subr.mxu0 0.0
        %3705 = vmatpush2.msra.mxu0 0.0
        %3706 = vmatprep.subr.mxu0 0.0
        %3707 = vmatpush2.msra.mxu0 0.0
        %3708 = vmatprep.subr.mxu0 0.0
        %3709 = vmatpush2.msra.mxu0 0.0
        %3710 = vmatprep.subr.mxu0 0.0
        %3711 = vmatpush2.msra.mxu0 0.0
        %3712 = vmatprep.subr.mxu0 0.0
        %3713 = vmatpush2.msra.mxu0 0.0
        %3714 = vmatprep.subr.mxu0 0.0
        %3715 = vmatpush2.msra.mxu0 0.0
        %3716 = vmatprep.subr.mxu0 0.0
        %3717 = vmatpush2.msra.mxu0 0.0
        %3718 = vmatprep.mubr.f32.mxu0 0.0
        %3719 = vmatmul.mubr.f32.gmra.mxu0 %v3384
        %v3720 = vpop.f32.mrf.mxu0
        %v3721 = vadd.f32 0.0, %v3720
        %v3722 = vpop.f32.mrf.mxu0
        %3723 = vmatprep.mubr.f32.mxu0 0.0
        %3724 = vmatmul.mubr.f32.gmra.mxu0 %v3387
        %v3725 = vpop.f32.mrf.mxu0
        %v3726 = vadd.f32 0.0, %v3725
        %v3727 = vpop.f32.mrf.mxu0
        %3728 = vmatprep.mubr.f32.mxu0 0.0
        %3729 = vmatmul.mubr.f32.gmra.mxu0 %v3390
        %v3730 = vpop.f32.mrf.mxu0
        %v3731 = vadd.f32 0.0, %v3730
        %v3732 = vpop.f32.mrf.mxu0
        %3733 = vmatprep.mubr.f32.mxu0 0.0
        %3734 = vmatmul.mubr.f32.gmra.mxu0 %v3393
        %v3735 = vpop.f32.mrf.mxu0
        %v3736 = vadd.f32 0.0, %v3735
        %v3737 = vpop.f32.mrf.mxu0
        %3738 = vmatprep.mubr.f32.mxu0 0.0
        %3739 = vmatmul.mubr.f32.gmra.mxu0 %v3396
        %v3740 = vpop.f32.mrf.mxu0
        %v3741 = vadd.f32 0.0, %v3740
        %v3742 = vpop.f32.mrf.mxu0
        %3743 = vmatprep.mubr.f32.mxu0 0.0
        %3744 = vmatmul.mubr.f32.gmra.mxu0 %v3399
        %v3745 = vpop.f32.mrf.mxu0
        %v3746 = vadd.f32 0.0, %v3745
        %v3747 = vpop.f32.mrf.mxu0
        %3748 = vmatprep.mubr.f32.mxu0 0.0
        %3749 = vmatmul.mubr.f32.gmra.mxu0 %v3402
        %v3750 = vpop.f32.mrf.mxu0
        %v3751 = vadd.f32 0.0, %v3750
        %v3752 = vpop.f32.mrf.mxu0
        %3753 = vmatprep.mubr.f32.mxu0 0.0
        %3754 = vmatmul.mubr.f32.gmra.mxu0 %v3405
        %v3755 = vpop.f32.mrf.mxu0
        %v3756 = vadd.f32 0.0, %v3755
        %v3757 = vpop.f32.mrf.mxu0
        %3758 = vmatprep.mubr.f32.mxu0 0.0
        %3759 = vmatmul.mubr.f32.gmra.mxu0 %v3408
        %v3760 = vpop.f32.mrf.mxu0
        %v3761 = vadd.f32 0.0, %v3760
        %v3762 = vpop.f32.mrf.mxu0
        %3763 = vmatprep.mubr.f32.mxu0 0.0
        %3764 = vmatmul.mubr.f32.gmra.mxu0 %v3411
        %v3765 = vpop.f32.mrf.mxu0
        %v3766 = vadd.f32 0.0, %v3765
        %v3767 = vpop.f32.mrf.mxu0
        %3768 = vmatprep.mubr.f32.mxu0 0.0
        %3769 = vmatmul.mubr.f32.gmra.mxu0 %v3414
        %v3770 = vpop.f32.mrf.mxu0
        %v3771 = vadd.f32 0.0, %v3770
        %v3772 = vpop.f32.mrf.mxu0
        %3773 = vmatprep.mubr.f32.mxu0 0.0
        %3774 = vmatmul.mubr.f32.gmra.mxu0 %v3417
        %v3775 = vpop.f32.mrf.mxu0
        %v3776 = vadd.f32 0.0, %v3775
        %v3777 = vpop.f32.mrf.mxu0
        %3778 = vmatprep.mubr.f32.mxu0 0.0
        %3779 = vmatmul.mubr.f32.gmra.mxu0 %v3420
        %v3780 = vpop.f32.mrf.mxu0
        %v3781 = vadd.f32 0.0, %v3780
        %v3782 = vpop.f32.mrf.mxu0
        %3783 = vmatprep.mubr.f32.mxu0 0.0
        %3784 = vmatmul.mubr.f32.gmra.mxu0 %v3423
        %v3785 = vpop.f32.mrf.mxu0
        %v3786 = vadd.f32 0.0, %v3785
        %v3787 = vpop.f32.mrf.mxu0
        %3788 = vmatprep.mubr.f32.mxu0 0.0
        %3789 = vmatmul.mubr.f32.gmra.mxu0 %v3426
        %v3790 = vpop.f32.mrf.mxu0
        %v3791 = vadd.f32 0.0, %v3790
        %v3792 = vpop.f32.mrf.mxu0
        %3793 = vmatprep.mubr.f32.mxu0 0.0
        %3794 = vmatmul.mubr.f32.gmra.mxu0 %v3429
        %v3795 = vpop.f32.mrf.mxu0
        %v3796 = vadd.f32 0.0, %v3795
        %v3797 = vpop.f32.mrf.mxu0
        %3798 = vdwg.mxu0
        %s3799 = scalar_lea.vmem %s306, 128 [#allocation12]
        %3800 = vst [vmem:[%s3799] sm:$0xff] %v3721
        %3801 = vst [vmem:[%s3799 + $0x8] sm:$0xff] %v3726
        %3802 = vst [vmem:[%s3799 + $0x10] sm:$0xff] %v3731
        %3803 = vst [vmem:[%s3799 + $0x18] sm:$0xff] %v3736
        %3804 = vst [vmem:[%s3799 + $0x20] sm:$0xff] %v3741
        %3805 = vst [vmem:[%s3799 + $0x28] sm:$0xff] %v3746
        %3806 = vst [vmem:[%s3799 + $0x30] sm:$0xff] %v3751
        %3807 = vst [vmem:[%s3799 + $0x38] sm:$0xff] %v3756
        %3808 = vst [vmem:[%s3799 + $0x40] sm:$0xff] %v3761
        %3809 = vst [vmem:[%s3799 + $0x48] sm:$0xff] %v3766
        %3810 = vst [vmem:[%s3799 + $0x50] sm:$0xff] %v3771
        %3811 = vst [vmem:[%s3799 + $0x58] sm:$0xff] %v3776
        %3812 = vst [vmem:[%s3799 + $0x60] sm:$0xff] %v3781
        %3813 = vst [vmem:[%s3799 + $0x68] sm:$0xff] %v3786
        %3814 = vst [vmem:[%s3799 + $0x70] sm:$0xff] %v3791
        %3815 = vst [vmem:[%s3799 + $0x78] sm:$0xff] %v3796
        %v3816 = vld [vmem:[#allocation3 + $0x2] sm:$0x1]
        %v3817 = vld [vmem:[#allocation3 + $0x1a] sm:$0x1]
        %v3818 = vld [vmem:[#allocation3 + $0x32] sm:$0x1]
        %v3819 = vld [vmem:[#allocation3 + $0x4a] sm:$0x1]
        %v3820 = vld [vmem:[#allocation3 + $0x62] sm:$0x1]
        %v3821 = vld [vmem:[#allocation3 + $0x7a] sm:$0x1]
        %v3822 = vld [vmem:[#allocation3 + $0x92] sm:$0x1]
        %v3823 = vld [vmem:[#allocation3 + $0xaa] sm:$0x1]
        %v3824 = vld [vmem:[#allocation3 + $0xc2] sm:$0x1]
        %v3825 = vld [vmem:[#allocation3 + $0xda] sm:$0x1]
        %v3826 = vld [vmem:[#allocation3 + $0xf2] sm:$0x1]
        %v3827 = vld [vmem:[#allocation3 + $0x10a] sm:$0x1]
        %v3828 = vld [vmem:[#allocation3 + $0x122] sm:$0x1]
        %v3829 = vld [vmem:[#allocation3 + $0x13a] sm:$0x1]
        %v3830 = vld [vmem:[#allocation3 + $0x152] sm:$0x1]
        %v3831 = vld [vmem:[#allocation3 + $0x16a] sm:$0x1]
        %v3848 = vrot.slane %v3817, 7
        %v3849 = vsel %vm3347, %v3848, %v3816
        %v3850 = vrot.slane %v3818, 6
        %v3851 = vsel %vm3350, %v3850, %v3849
        %v3852 = vrot.slane %v3819, 5
        %v3853 = vsel %vm3353, %v3852, %v3851
        %v3854 = vrot.slane %v3820, 4
        %v3855 = vsel %vm3356, %v3854, %v3853
        %v3856 = vrot.slane %v3821, 3
        %v3857 = vsel %vm3359, %v3856, %v3855
        %v3858 = vrot.slane %v3822, 2
        %v3859 = vsel %vm3362, %v3858, %v3857
        %v3860 = vrot.slane %v3823, 1
        %v3861 = vsel %vm3365, %v3860, %v3859
        %v3862 = vrot.slane %v3825, 7
        %v3863 = vsel %vm3347, %v3862, %v3824
        %v3864 = vrot.slane %v3826, 6
        %v3865 = vsel %vm3350, %v3864, %v3863
        %v3866 = vrot.slane %v3827, 5
        %v3867 = vsel %vm3353, %v3866, %v3865
        %v3868 = vrot.slane %v3828, 4
        %v3869 = vsel %vm3356, %v3868, %v3867
        %v3870 = vrot.slane %v3829, 3
        %v3871 = vsel %vm3359, %v3870, %v3869
        %v3872 = vrot.slane %v3830, 2
        %v3873 = vsel %vm3362, %v3872, %v3871
        %v3874 = vrot.slane %v3831, 1
        %v3875 = vsel %vm3365, %v3874, %v3873
        %3878 = vmatprep.subr.mxu0 0.0
        %3879 = vmatpush1.msra.mxu0 0.0
        %3880 = vmatprep.subr.mxu0 0.0
        %3881 = vmatpush1.msra.mxu0 0.0
        %3882 = vmatprep.subr.mxu0 0.0
        %3883 = vmatpush1.msra.mxu0 0.0
        %3884 = vmatprep.subr.mxu0 0.0
        %3885 = vmatpush1.msra.mxu0 0.0
        %3886 = vmatprep.subr.mxu0 0.0
        %3887 = vmatpush1.msra.mxu0 0.0
        %3888 = vmatprep.subr.mxu0 0.0
        %3889 = vmatpush1.msra.mxu0 0.0
        %3890 = vmatprep.subr.mxu0 0.0
        %3891 = vmatpush1.msra.mxu0 0.0
        %3892 = vmatprep.subr.mxu0 0.0
        %3893 = vmatpush1.msra.mxu0 0.0
        %3894 = vmatprep.subr.mxu0 0.0
        %3895 = vmatpush1.msra.mxu0 0.0
        %3896 = vmatprep.subr.mxu0 0.0
        %3897 = vmatpush1.msra.mxu0 0.0
        %3898 = vmatprep.subr.mxu0 0.0
        %3899 = vmatpush1.msra.mxu0 0.0
        %3900 = vmatprep.subr.mxu0 0.0
        %3901 = vmatpush1.msra.mxu0 0.0
        %3902 = vmatprep.subr.mxu0 0.0
        %3903 = vmatpush1.msra.mxu0 0.0
        %3904 = vmatprep.subr.mxu0 0.0
        %3905 = vmatpush1.msra.mxu0 0.0
        %3906 = vmatprep.subr.mxu0 0.0
        %3907 = vmatpush1.msra.mxu0 %v3875
        %3908 = vmatprep.subr.mxu0 0.0
        %3909 = vmatpush1.msra.mxu0 %v3861
        %3910 = vmatprep.subr.mxu0 0.0
        %3911 = vmatpush2.msra.mxu0 0.0
        %3912 = vmatprep.subr.mxu0 0.0
        %3913 = vmatpush2.msra.mxu0 0.0
        %3914 = vmatprep.subr.mxu0 0.0
        %3915 = vmatpush2.msra.mxu0 0.0
        %3916 = vmatprep.subr.mxu0 0.0
        %3917 = vmatpush2.msra.mxu0 0.0
        %3918 = vmatprep.subr.mxu0 0.0
        %3919 = vmatpush2.msra.mxu0 0.0
        %3920 = vmatprep.subr.mxu0 0.0
        %3921 = vmatpush2.msra.mxu0 0.0
        %3922 = vmatprep.subr.mxu0 0.0
        %3923 = vmatpush2.msra.mxu0 0.0
        %3924 = vmatprep.subr.mxu0 0.0
        %3925 = vmatpush2.msra.mxu0 0.0
        %3926 = vmatprep.subr.mxu0 0.0
        %3927 = vmatpush2.msra.mxu0 0.0
        %3928 = vmatprep.subr.mxu0 0.0
        %3929 = vmatpush2.msra.mxu0 0.0
        %3930 = vmatprep.subr.mxu0 0.0
        %3931 = vmatpush2.msra.mxu0 0.0
        %3932 = vmatprep.subr.mxu0 0.0
        %3933 = vmatpush2.msra.mxu0 0.0
        %3934 = vmatprep.subr.mxu0 0.0
        %3935 = vmatpush2.msra.mxu0 0.0
        %3936 = vmatprep.subr.mxu0 0.0
        %3937 = vmatpush2.msra.mxu0 0.0
        %3938 = vmatprep.subr.mxu0 0.0
        %3939 = vmatpush2.msra.mxu0 0.0
        %3940 = vmatprep.subr.mxu0 0.0
        %3941 = vmatpush2.msra.mxu0 0.0
        %3942 = vmatprep.mubr.f32.mxu0 0.0
        %3943 = vmatmul.mubr.f32.gmra.mxu0 %v3384
        %v3944 = vpop.f32.mrf.mxu0
        %v3945 = vadd.f32 0.0, %v3944
        %v3946 = vpop.f32.mrf.mxu0
        %3947 = vmatprep.mubr.f32.mxu0 0.0
        %3948 = vmatmul.mubr.f32.gmra.mxu0 %v3387
        %v3949 = vpop.f32.mrf.mxu0
        %v3950 = vadd.f32 0.0, %v3949
        %v3951 = vpop.f32.mrf.mxu0
        %3952 = vmatprep.mubr.f32.mxu0 0.0
        %3953 = vmatmul.mubr.f32.gmra.mxu0 %v3390
        %v3954 = vpop.f32.mrf.mxu0
        %v3955 = vadd.f32 0.0, %v3954
        %v3956 = vpop.f32.mrf.mxu0
        %3957 = vmatprep.mubr.f32.mxu0 0.0
        %3958 = vmatmul.mubr.f32.gmra.mxu0 %v3393
        %v3959 = vpop.f32.mrf.mxu0
        %v3960 = vadd.f32 0.0, %v3959
        %v3961 = vpop.f32.mrf.mxu0
        %3962 = vmatprep.mubr.f32.mxu0 0.0
        %3963 = vmatmul.mubr.f32.gmra.mxu0 %v3396
        %v3964 = vpop.f32.mrf.mxu0
        %v3965 = vadd.f32 0.0, %v3964
        %v3966 = vpop.f32.mrf.mxu0
        %3967 = vmatprep.mubr.f32.mxu0 0.0
        %3968 = vmatmul.mubr.f32.gmra.mxu0 %v3399
        %v3969 = vpop.f32.mrf.mxu0
        %v3970 = vadd.f32 0.0, %v3969
        %v3971 = vpop.f32.mrf.mxu0
        %3972 = vmatprep.mubr.f32.mxu0 0.0
        %3973 = vmatmul.mubr.f32.gmra.mxu0 %v3402
        %v3974 = vpop.f32.mrf.mxu0
        %v3975 = vadd.f32 0.0, %v3974
        %v3976 = vpop.f32.mrf.mxu0
        %3977 = vmatprep.mubr.f32.mxu0 0.0
        %3978 = vmatmul.mubr.f32.gmra.mxu0 %v3405
        %v3979 = vpop.f32.mrf.mxu0
        %v3980 = vadd.f32 0.0, %v3979
        %v3981 = vpop.f32.mrf.mxu0
        %3982 = vmatprep.mubr.f32.mxu0 0.0
        %3983 = vmatmul.mubr.f32.gmra.mxu0 %v3408
        %v3984 = vpop.f32.mrf.mxu0
        %v3985 = vadd.f32 0.0, %v3984
        %v3986 = vpop.f32.mrf.mxu0
        %3987 = vmatprep.mubr.f32.mxu0 0.0
        %3988 = vmatmul.mubr.f32.gmra.mxu0 %v3411
        %v3989 = vpop.f32.mrf.mxu0
        %v3990 = vadd.f32 0.0, %v3989
        %v3991 = vpop.f32.mrf.mxu0
        %3992 = vmatprep.mubr.f32.mxu0 0.0
        %3993 = vmatmul.mubr.f32.gmra.mxu0 %v3414
        %v3994 = vpop.f32.mrf.mxu0
        %v3995 = vadd.f32 0.0, %v3994
        %v3996 = vpop.f32.mrf.mxu0
        %3997 = vmatprep.mubr.f32.mxu0 0.0
        %3998 = vmatmul.mubr.f32.gmra.mxu0 %v3417
        %v3999 = vpop.f32.mrf.mxu0
        %v4000 = vadd.f32 0.0, %v3999
        %v4001 = vpop.f32.mrf.mxu0
        %4002 = vmatprep.mubr.f32.mxu0 0.0
        %4003 = vmatmul.mubr.f32.gmra.mxu0 %v3420
        %v4004 = vpop.f32.mrf.mxu0
        %v4005 = vadd.f32 0.0, %v4004
        %v4006 = vpop.f32.mrf.mxu0
        %4007 = vmatprep.mubr.f32.mxu0 0.0
        %4008 = vmatmul.mubr.f32.gmra.mxu0 %v3423
        %v4009 = vpop.f32.mrf.mxu0
        %v4010 = vadd.f32 0.0, %v4009
        %v4011 = vpop.f32.mrf.mxu0
        %4012 = vmatprep.mubr.f32.mxu0 0.0
        %4013 = vmatmul.mubr.f32.gmra.mxu0 %v3426
        %v4014 = vpop.f32.mrf.mxu0
        %v4015 = vadd.f32 0.0, %v4014
        %v4016 = vpop.f32.mrf.mxu0
        %4017 = vmatprep.mubr.f32.mxu0 0.0
        %4018 = vmatmul.mubr.f32.gmra.mxu0 %v3429
        %v4019 = vpop.f32.mrf.mxu0
        %v4020 = vadd.f32 0.0, %v4019
        %v4021 = vpop.f32.mrf.mxu0
        %4022 = vdwg.mxu0
        %s4023 = scalar_lea.vmem %s306, 256 [#allocation12]
        %4024 = vst [vmem:[%s4023] sm:$0xff] %v3945
        %4025 = vst [vmem:[%s4023 + $0x8] sm:$0xff] %v3950
        %4026 = vst [vmem:[%s4023 + $0x10] sm:$0xff] %v3955
        %4027 = vst [vmem:[%s4023 + $0x18] sm:$0xff] %v3960
        %4028 = vst [vmem:[%s4023 + $0x20] sm:$0xff] %v3965
        %4029 = vst [vmem:[%s4023 + $0x28] sm:$0xff] %v3970
        %4030 = vst [vmem:[%s4023 + $0x30] sm:$0xff] %v3975
        %4031 = vst [vmem:[%s4023 + $0x38] sm:$0xff] %v3980
        %4032 = vst [vmem:[%s4023 + $0x40] sm:$0xff] %v3985
        %4033 = vst [vmem:[%s4023 + $0x48] sm:$0xff] %v3990
        %4034 = vst [vmem:[%s4023 + $0x50] sm:$0xff] %v3995
        %4035 = vst [vmem:[%s4023 + $0x58] sm:$0xff] %v4000
        %4036 = vst [vmem:[%s4023 + $0x60] sm:$0xff] %v4005
        %4037 = vst [vmem:[%s4023 + $0x68] sm:$0xff] %v4010
        %4038 = vst [vmem:[%s4023 + $0x70] sm:$0xff] %v4015
        %4039 = vst [vmem:[%s4023 + $0x78] sm:$0xff] %v4020
        %v4040 = vld [vmem:[#allocation3 + $0x3] sm:$0x1]
        %v4041 = vld [vmem:[#allocation3 + $0x1b] sm:$0x1]
        %v4042 = vld [vmem:[#allocation3 + $0x33] sm:$0x1]
        %v4043 = vld [vmem:[#allocation3 + $0x4b] sm:$0x1]
        %v4044 = vld [vmem:[#allocation3 + $0x63] sm:$0x1]
        %v4045 = vld [vmem:[#allocation3 + $0x7b] sm:$0x1]
        %v4046 = vld [vmem:[#allocation3 + $0x93] sm:$0x1]
        %v4047 = vld [vmem:[#allocation3 + $0xab] sm:$0x1]
        %v4048 = vld [vmem:[#allocation3 + $0xc3] sm:$0x1]
        %v4049 = vld [vmem:[#allocation3 + $0xdb] sm:$0x1]
        %v4050 = vld [vmem:[#allocation3 + $0xf3] sm:$0x1]
        %v4051 = vld [vmem:[#allocation3 + $0x10b] sm:$0x1]
        %v4052 = vld [vmem:[#allocation3 + $0x123] sm:$0x1]
        %v4053 = vld [vmem:[#allocation3 + $0x13b] sm:$0x1]
        %v4054 = vld [vmem:[#allocation3 + $0x153] sm:$0x1]
        %v4055 = vld [vmem:[#allocation3 + $0x16b] sm:$0x1]
        %v4072 = vrot.slane %v4041, 7
        %v4073 = vsel %vm3347, %v4072, %v4040
        %v4074 = vrot.slane %v4042, 6
        %v4075 = vsel %vm3350, %v4074, %v4073
        %v4076 = vrot.slane %v4043, 5
        %v4077 = vsel %vm3353, %v4076, %v4075
        %v4078 = vrot.slane %v4044, 4
        %v4079 = vsel %vm3356, %v4078, %v4077
        %v4080 = vrot.slane %v4045, 3
        %v4081 = vsel %vm3359, %v4080, %v4079
        %v4082 = vrot.slane %v4046, 2
        %v4083 = vsel %vm3362, %v4082, %v4081
        %v4084 = vrot.slane %v4047, 1
        %v4085 = vsel %vm3365, %v4084, %v4083
        %v4086 = vrot.slane %v4049, 7
        %v4087 = vsel %vm3347, %v4086, %v4048
        %v4088 = vrot.slane %v4050, 6
        %v4089 = vsel %vm3350, %v4088, %v4087
        %v4090 = vrot.slane %v4051, 5
        %v4091 = vsel %vm3353, %v4090, %v4089
        %v4092 = vrot.slane %v4052, 4
        %v4093 = vsel %vm3356, %v4092, %v4091
        %v4094 = vrot.slane %v4053, 3
        %v4095 = vsel %vm3359, %v4094, %v4093
        %v4096 = vrot.slane %v4054, 2
        %v4097 = vsel %vm3362, %v4096, %v4095
        %v4098 = vrot.slane %v4055, 1
        %v4099 = vsel %vm3365, %v4098, %v4097
        %4102 = vmatprep.subr.mxu0 0.0
        %4103 = vmatpush1.msra.mxu0 0.0
        %4104 = vmatprep.subr.mxu0 0.0
        %4105 = vmatpush1.msra.mxu0 0.0
        %4106 = vmatprep.subr.mxu0 0.0
        %4107 = vmatpush1.msra.mxu0 0.0
        %4108 = vmatprep.subr.mxu0 0.0
        %4109 = vmatpush1.msra.mxu0 0.0
        %4110 = vmatprep.subr.mxu0 0.0
        %4111 = vmatpush1.msra.mxu0 0.0
        %4112 = vmatprep.subr.mxu0 0.0
        %4113 = vmatpush1.msra.mxu0 0.0
        %4114 = vmatprep.subr.mxu0 0.0
        %4115 = vmatpush1.msra.mxu0 0.0
        %4116 = vmatprep.subr.mxu0 0.0
        %4117 = vmatpush1.msra.mxu0 0.0
        %4118 = vmatprep.subr.mxu0 0.0
        %4119 = vmatpush1.msra.mxu0 0.0
        %4120 = vmatprep.subr.mxu0 0.0
        %4121 = vmatpush1.msra.mxu0 0.0
        %4122 = vmatprep.subr.mxu0 0.0
        %4123 = vmatpush1.msra.mxu0 0.0
        %4124 = vmatprep.subr.mxu0 0.0
        %4125 = vmatpush1.msra.mxu0 0.0
        %4126 = vmatprep.subr.mxu0 0.0
        %4127 = vmatpush1.msra.mxu0 0.0
        %4128 = vmatprep.subr.mxu0 0.0
        %4129 = vmatpush1.msra.mxu0 0.0
        %4130 = vmatprep.subr.mxu0 0.0
        %4131 = vmatpush1.msra.mxu0 %v4099
        %4132 = vmatprep.subr.mxu0 0.0
        %4133 = vmatpush1.msra.mxu0 %v4085
        %4134 = vmatprep.subr.mxu0 0.0
        %4135 = vmatpush2.msra.mxu0 0.0
        %4136 = vmatprep.subr.mxu0 0.0
        %4137 = vmatpush2.msra.mxu0 0.0
        %4138 = vmatprep.subr.mxu0 0.0
        %4139 = vmatpush2.msra.mxu0 0.0
        %4140 = vmatprep.subr.mxu0 0.0
        %4141 = vmatpush2.msra.mxu0 0.0
        %4142 = vmatprep.subr.mxu0 0.0
        %4143 = vmatpush2.msra.mxu0 0.0
        %4144 = vmatprep.subr.mxu0 0.0
        %4145 = vmatpush2.msra.mxu0 0.0
        %4146 = vmatprep.subr.mxu0 0.0
        %4147 = vmatpush2.msra.mxu0 0.0
        %4148 = vmatprep.subr.mxu0 0.0
        %4149 = vmatpush2.msra.mxu0 0.0
        %4150 = vmatprep.subr.mxu0 0.0
        %4151 = vmatpush2.msra.mxu0 0.0
        %4152 = vmatprep.subr.mxu0 0.0
        %4153 = vmatpush2.msra.mxu0 0.0
        %4154 = vmatprep.subr.mxu0 0.0
        %4155 = vmatpush2.msra.mxu0 0.0
        %4156 = vmatprep.subr.mxu0 0.0
        %4157 = vmatpush2.msra.mxu0 0.0
        %4158 = vmatprep.subr.mxu0 0.0
        %4159 = vmatpush2.msra.mxu0 0.0
        %4160 = vmatprep.subr.mxu0 0.0
        %4161 = vmatpush2.msra.mxu0 0.0
        %4162 = vmatprep.subr.mxu0 0.0
        %4163 = vmatpush2.msra.mxu0 0.0
        %4164 = vmatprep.subr.mxu0 0.0
        %4165 = vmatpush2.msra.mxu0 0.0
        %4166 = vmatprep.mubr.f32.mxu0 0.0
        %4167 = vmatmul.mubr.f32.gmra.mxu0 %v3384
        %v4168 = vpop.f32.mrf.mxu0
        %v4169 = vadd.f32 0.0, %v4168
        %v4170 = vpop.f32.mrf.mxu0
        %4171 = vmatprep.mubr.f32.mxu0 0.0
        %4172 = vmatmul.mubr.f32.gmra.mxu0 %v3387
        %v4173 = vpop.f32.mrf.mxu0
        %v4174 = vadd.f32 0.0, %v4173
        %v4175 = vpop.f32.mrf.mxu0
        %4176 = vmatprep.mubr.f32.mxu0 0.0
        %4177 = vmatmul.mubr.f32.gmra.mxu0 %v3390
        %v4178 = vpop.f32.mrf.mxu0
        %v4179 = vadd.f32 0.0, %v4178
        %v4180 = vpop.f32.mrf.mxu0
        %4181 = vmatprep.mubr.f32.mxu0 0.0
        %4182 = vmatmul.mubr.f32.gmra.mxu0 %v3393
        %v4183 = vpop.f32.mrf.mxu0
        %v4184 = vadd.f32 0.0, %v4183
        %v4185 = vpop.f32.mrf.mxu0
        %4186 = vmatprep.mubr.f32.mxu0 0.0
        %4187 = vmatmul.mubr.f32.gmra.mxu0 %v3396
        %v4188 = vpop.f32.mrf.mxu0
        %v4189 = vadd.f32 0.0, %v4188
        %v4190 = vpop.f32.mrf.mxu0
        %4191 = vmatprep.mubr.f32.mxu0 0.0
        %4192 = vmatmul.mubr.f32.gmra.mxu0 %v3399
        %v4193 = vpop.f32.mrf.mxu0
        %v4194 = vadd.f32 0.0, %v4193
        %v4195 = vpop.f32.mrf.mxu0
        %4196 = vmatprep.mubr.f32.mxu0 0.0
        %4197 = vmatmul.mubr.f32.gmra.mxu0 %v3402
        %v4198 = vpop.f32.mrf.mxu0
        %v4199 = vadd.f32 0.0, %v4198
        %v4200 = vpop.f32.mrf.mxu0
        %4201 = vmatprep.mubr.f32.mxu0 0.0
        %4202 = vmatmul.mubr.f32.gmra.mxu0 %v3405
        %v4203 = vpop.f32.mrf.mxu0
        %v4204 = vadd.f32 0.0, %v4203
        %v4205 = vpop.f32.mrf.mxu0
        %4206 = vmatprep.mubr.f32.mxu0 0.0
        %4207 = vmatmul.mubr.f32.gmra.mxu0 %v3408
        %v4208 = vpop.f32.mrf.mxu0
        %v4209 = vadd.f32 0.0, %v4208
        %v4210 = vpop.f32.mrf.mxu0
        %4211 = vmatprep.mubr.f32.mxu0 0.0
        %4212 = vmatmul.mubr.f32.gmra.mxu0 %v3411
        %v4213 = vpop.f32.mrf.mxu0
        %v4214 = vadd.f32 0.0, %v4213
        %v4215 = vpop.f32.mrf.mxu0
        %4216 = vmatprep.mubr.f32.mxu0 0.0
        %4217 = vmatmul.mubr.f32.gmra.mxu0 %v3414
        %v4218 = vpop.f32.mrf.mxu0
        %v4219 = vadd.f32 0.0, %v4218
        %v4220 = vpop.f32.mrf.mxu0
        %4221 = vmatprep.mubr.f32.mxu0 0.0
        %4222 = vmatmul.mubr.f32.gmra.mxu0 %v3417
        %v4223 = vpop.f32.mrf.mxu0
        %v4224 = vadd.f32 0.0, %v4223
        %v4225 = vpop.f32.mrf.mxu0
        %4226 = vmatprep.mubr.f32.mxu0 0.0
        %4227 = vmatmul.mubr.f32.gmra.mxu0 %v3420
        %v4228 = vpop.f32.mrf.mxu0
        %v4229 = vadd.f32 0.0, %v4228
        %v4230 = vpop.f32.mrf.mxu0
        %4231 = vmatprep.mubr.f32.mxu0 0.0
        %4232 = vmatmul.mubr.f32.gmra.mxu0 %v3423
        %v4233 = vpop.f32.mrf.mxu0
        %v4234 = vadd.f32 0.0, %v4233
        %v4235 = vpop.f32.mrf.mxu0
        %4236 = vmatprep.mubr.f32.mxu0 0.0
        %4237 = vmatmul.mubr.f32.gmra.mxu0 %v3426
        %v4238 = vpop.f32.mrf.mxu0
        %v4239 = vadd.f32 0.0, %v4238
        %v4240 = vpop.f32.mrf.mxu0
        %4241 = vmatprep.mubr.f32.mxu0 0.0
        %4242 = vmatmul.mubr.f32.gmra.mxu0 %v3429
        %v4243 = vpop.f32.mrf.mxu0
        %v4244 = vadd.f32 0.0, %v4243
        %v4245 = vpop.f32.mrf.mxu0
        %4246 = vdwg.mxu0
        %s4247 = scalar_lea.vmem %s306, 384 [#allocation12]
        %4248 = vst [vmem:[%s4247] sm:$0xff] %v4169
        %4249 = vst [vmem:[%s4247 + $0x8] sm:$0xff] %v4174
        %4250 = vst [vmem:[%s4247 + $0x10] sm:$0xff] %v4179
        %4251 = vst [vmem:[%s4247 + $0x18] sm:$0xff] %v4184
        %4252 = vst [vmem:[%s4247 + $0x20] sm:$0xff] %v4189
        %4253 = vst [vmem:[%s4247 + $0x28] sm:$0xff] %v4194
        %4254 = vst [vmem:[%s4247 + $0x30] sm:$0xff] %v4199
        %4255 = vst [vmem:[%s4247 + $0x38] sm:$0xff] %v4204
        %4256 = vst [vmem:[%s4247 + $0x40] sm:$0xff] %v4209
        %4257 = vst [vmem:[%s4247 + $0x48] sm:$0xff] %v4214
        %4258 = vst [vmem:[%s4247 + $0x50] sm:$0xff] %v4219
        %4259 = vst [vmem:[%s4247 + $0x58] sm:$0xff] %v4224
        %4260 = vst [vmem:[%s4247 + $0x60] sm:$0xff] %v4229
        %4261 = vst [vmem:[%s4247 + $0x68] sm:$0xff] %v4234
        %4262 = vst [vmem:[%s4247 + $0x70] sm:$0xff] %v4239
        %4263 = vst [vmem:[%s4247 + $0x78] sm:$0xff] %v4244
        %v4264 = vld [vmem:[#allocation3 + $0x4] sm:$0x1]
        %v4265 = vld [vmem:[#allocation3 + $0x1c] sm:$0x1]
        %v4266 = vld [vmem:[#allocation3 + $0x34] sm:$0x1]
        %v4267 = vld [vmem:[#allocation3 + $0x4c] sm:$0x1]
        %v4268 = vld [vmem:[#allocation3 + $0x64] sm:$0x1]
        %v4269 = vld [vmem:[#allocation3 + $0x7c] sm:$0x1]
        %v4270 = vld [vmem:[#allocation3 + $0x94] sm:$0x1]
        %v4271 = vld [vmem:[#allocation3 + $0xac] sm:$0x1]
        %v4272 = vld [vmem:[#allocation3 + $0xc4] sm:$0x1]
        %v4273 = vld [vmem:[#allocation3 + $0xdc] sm:$0x1]
        %v4274 = vld [vmem:[#allocation3 + $0xf4] sm:$0x1]
        %v4275 = vld [vmem:[#allocation3 + $0x10c] sm:$0x1]
        %v4276 = vld [vmem:[#allocation3 + $0x124] sm:$0x1]
        %v4277 = vld [vmem:[#allocation3 + $0x13c] sm:$0x1]
        %v4278 = vld [vmem:[#allocation3 + $0x154] sm:$0x1]
        %v4279 = vld [vmem:[#allocation3 + $0x16c] sm:$0x1]
        %v4296 = vrot.slane %v4265, 7
        %v4297 = vsel %vm3347, %v4296, %v4264
        %v4298 = vrot.slane %v4266, 6
        %v4299 = vsel %vm3350, %v4298, %v4297
        %v4300 = vrot.slane %v4267, 5
        %v4301 = vsel %vm3353, %v4300, %v4299
        %v4302 = vrot.slane %v4268, 4
        %v4303 = vsel %vm3356, %v4302, %v4301
        %v4304 = vrot.slane %v4269, 3
        %v4305 = vsel %vm3359, %v4304, %v4303
        %v4306 = vrot.slane %v4270, 2
        %v4307 = vsel %vm3362, %v4306, %v4305
        %v4308 = vrot.slane %v4271, 1
        %v4309 = vsel %vm3365, %v4308, %v4307
        %v4310 = vrot.slane %v4273, 7
        %v4311 = vsel %vm3347, %v4310, %v4272
        %v4312 = vrot.slane %v4274, 6
        %v4313 = vsel %vm3350, %v4312, %v4311
        %v4314 = vrot.slane %v4275, 5
        %v4315 = vsel %vm3353, %v4314, %v4313
        %v4316 = vrot.slane %v4276, 4
        %v4317 = vsel %vm3356, %v4316, %v4315
        %v4318 = vrot.slane %v4277, 3
        %v4319 = vsel %vm3359, %v4318, %v4317
        %v4320 = vrot.slane %v4278, 2
        %v4321 = vsel %vm3362, %v4320, %v4319
        %v4322 = vrot.slane %v4279, 1
        %v4323 = vsel %vm3365, %v4322, %v4321
        %4326 = vmatprep.subr.mxu0 0.0
        %4327 = vmatpush1.msra.mxu0 0.0
        %4328 = vmatprep.subr.mxu0 0.0
        %4329 = vmatpush1.msra.mxu0 0.0
        %4330 = vmatprep.subr.mxu0 0.0
        %4331 = vmatpush1.msra.mxu0 0.0
        %4332 = vmatprep.subr.mxu0 0.0
        %4333 = vmatpush1.msra.mxu0 0.0
        %4334 = vmatprep.subr.mxu0 0.0
        %4335 = vmatpush1.msra.mxu0 0.0
        %4336 = vmatprep.subr.mxu0 0.0
        %4337 = vmatpush1.msra.mxu0 0.0
        %4338 = vmatprep.subr.mxu0 0.0
        %4339 = vmatpush1.msra.mxu0 0.0
        %4340 = vmatprep.subr.mxu0 0.0
        %4341 = vmatpush1.msra.mxu0 0.0
        %4342 = vmatprep.subr.mxu0 0.0
        %4343 = vmatpush1.msra.mxu0 0.0
        %4344 = vmatprep.subr.mxu0 0.0
        %4345 = vmatpush1.msra.mxu0 0.0
        %4346 = vmatprep.subr.mxu0 0.0
        %4347 = vmatpush1.msra.mxu0 0.0
        %4348 = vmatprep.subr.mxu0 0.0
        %4349 = vmatpush1.msra.mxu0 0.0
        %4350 = vmatprep.subr.mxu0 0.0
        %4351 = vmatpush1.msra.mxu0 0.0
        %4352 = vmatprep.subr.mxu0 0.0
        %4353 = vmatpush1.msra.mxu0 0.0
        %4354 = vmatprep.subr.mxu0 0.0
        %4355 = vmatpush1.msra.mxu0 %v4323
        %4356 = vmatprep.subr.mxu0 0.0
        %4357 = vmatpush1.msra.mxu0 %v4309
        %4358 = vmatprep.subr.mxu0 0.0
        %4359 = vmatpush2.msra.mxu0 0.0
        %4360 = vmatprep.subr.mxu0 0.0
        %4361 = vmatpush2.msra.mxu0 0.0
        %4362 = vmatprep.subr.mxu0 0.0
        %4363 = vmatpush2.msra.mxu0 0.0
        %4364 = vmatprep.subr.mxu0 0.0
        %4365 = vmatpush2.msra.mxu0 0.0
        %4366 = vmatprep.subr.mxu0 0.0
        %4367 = vmatpush2.msra.mxu0 0.0
        %4368 = vmatprep.subr.mxu0 0.0
        %4369 = vmatpush2.msra.mxu0 0.0
        %4370 = vmatprep.subr.mxu0 0.0
        %4371 = vmatpush2.msra.mxu0 0.0
        %4372 = vmatprep.subr.mxu0 0.0
        %4373 = vmatpush2.msra.mxu0 0.0
        %4374 = vmatprep.subr.mxu0 0.0
        %4375 = vmatpush2.msra.mxu0 0.0
        %4376 = vmatprep.subr.mxu0 0.0
        %4377 = vmatpush2.msra.mxu0 0.0
        %4378 = vmatprep.subr.mxu0 0.0
        %4379 = vmatpush2.msra.mxu0 0.0
        %4380 = vmatprep.subr.mxu0 0.0
        %4381 = vmatpush2.msra.mxu0 0.0
        %4382 = vmatprep.subr.mxu0 0.0
        %4383 = vmatpush2.msra.mxu0 0.0
        %4384 = vmatprep.subr.mxu0 0.0
        %4385 = vmatpush2.msra.mxu0 0.0
        %4386 = vmatprep.subr.mxu0 0.0
        %4387 = vmatpush2.msra.mxu0 0.0
        %4388 = vmatprep.subr.mxu0 0.0
        %4389 = vmatpush2.msra.mxu0 0.0
        %4390 = vmatprep.mubr.f32.mxu0 0.0
        %4391 = vmatmul.mubr.f32.gmra.mxu0 %v3384
        %v4392 = vpop.f32.mrf.mxu0
        %v4393 = vadd.f32 0.0, %v4392
        %v4394 = vpop.f32.mrf.mxu0
        %4395 = vmatprep.mubr.f32.mxu0 0.0
        %4396 = vmatmul.mubr.f32.gmra.mxu0 %v3387
        %v4397 = vpop.f32.mrf.mxu0
        %v4398 = vadd.f32 0.0, %v4397
        %v4399 = vpop.f32.mrf.mxu0
        %4400 = vmatprep.mubr.f32.mxu0 0.0
        %4401 = vmatmul.mubr.f32.gmra.mxu0 %v3390
        %v4402 = vpop.f32.mrf.mxu0
        %v4403 = vadd.f32 0.0, %v4402
        %v4404 = vpop.f32.mrf.mxu0
        %4405 = vmatprep.mubr.f32.mxu0 0.0
        %4406 = vmatmul.mubr.f32.gmra.mxu0 %v3393
        %v4407 = vpop.f32.mrf.mxu0
        %v4408 = vadd.f32 0.0, %v4407
        %v4409 = vpop.f32.mrf.mxu0
        %4410 = vmatprep.mubr.f32.mxu0 0.0
        %4411 = vmatmul.mubr.f32.gmra.mxu0 %v3396
        %v4412 = vpop.f32.mrf.mxu0
        %v4413 = vadd.f32 0.0, %v4412
        %v4414 = vpop.f32.mrf.mxu0
        %4415 = vmatprep.mubr.f32.mxu0 0.0
        %4416 = vmatmul.mubr.f32.gmra.mxu0 %v3399
        %v4417 = vpop.f32.mrf.mxu0
        %v4418 = vadd.f32 0.0, %v4417
        %v4419 = vpop.f32.mrf.mxu0
        %4420 = vmatprep.mubr.f32.mxu0 0.0
        %4421 = vmatmul.mubr.f32.gmra.mxu0 %v3402
        %v4422 = vpop.f32.mrf.mxu0
        %v4423 = vadd.f32 0.0, %v4422
        %v4424 = vpop.f32.mrf.mxu0
        %4425 = vmatprep.mubr.f32.mxu0 0.0
        %4426 = vmatmul.mubr.f32.gmra.mxu0 %v3405
        %v4427 = vpop.f32.mrf.mxu0
        %v4428 = vadd.f32 0.0, %v4427
        %v4429 = vpop.f32.mrf.mxu0
        %4430 = vmatprep.mubr.f32.mxu0 0.0
        %4431 = vmatmul.mubr.f32.gmra.mxu0 %v3408
        %v4432 = vpop.f32.mrf.mxu0
        %v4433 = vadd.f32 0.0, %v4432
        %v4434 = vpop.f32.mrf.mxu0
        %4435 = vmatprep.mubr.f32.mxu0 0.0
        %4436 = vmatmul.mubr.f32.gmra.mxu0 %v3411
        %v4437 = vpop.f32.mrf.mxu0
        %v4438 = vadd.f32 0.0, %v4437
        %v4439 = vpop.f32.mrf.mxu0
        %4440 = vmatprep.mubr.f32.mxu0 0.0
        %4441 = vmatmul.mubr.f32.gmra.mxu0 %v3414
        %v4442 = vpop.f32.mrf.mxu0
        %v4443 = vadd.f32 0.0, %v4442
        %v4444 = vpop.f32.mrf.mxu0
        %4445 = vmatprep.mubr.f32.mxu0 0.0
        %4446 = vmatmul.mubr.f32.gmra.mxu0 %v3417
        %v4447 = vpop.f32.mrf.mxu0
        %v4448 = vadd.f32 0.0, %v4447
        %v4449 = vpop.f32.mrf.mxu0
        %4450 = vmatprep.mubr.f32.mxu0 0.0
        %4451 = vmatmul.mubr.f32.gmra.mxu0 %v3420
        %v4452 = vpop.f32.mrf.mxu0
        %v4453 = vadd.f32 0.0, %v4452
        %v4454 = vpop.f32.mrf.mxu0
        %4455 = vmatprep.mubr.f32.mxu0 0.0
        %4456 = vmatmul.mubr.f32.gmra.mxu0 %v3423
        %v4457 = vpop.f32.mrf.mxu0
        %v4458 = vadd.f32 0.0, %v4457
        %v4459 = vpop.f32.mrf.mxu0
        %4460 = vmatprep.mubr.f32.mxu0 0.0
        %4461 = vmatmul.mubr.f32.gmra.mxu0 %v3426
        %v4462 = vpop.f32.mrf.mxu0
        %v4463 = vadd.f32 0.0, %v4462
        %v4464 = vpop.f32.mrf.mxu0
        %4465 = vmatprep.mubr.f32.mxu0 0.0
        %4466 = vmatmul.mubr.f32.gmra.mxu0 %v3429
        %v4467 = vpop.f32.mrf.mxu0
        %v4468 = vadd.f32 0.0, %v4467
        %v4469 = vpop.f32.mrf.mxu0
        %4470 = vdwg.mxu0
        %s4471 = scalar_lea.vmem %s306, 512 [#allocation12]
        %4472 = vst [vmem:[%s4471] sm:$0xff] %v4393
        %4473 = vst [vmem:[%s4471 + $0x8] sm:$0xff] %v4398
        %4474 = vst [vmem:[%s4471 + $0x10] sm:$0xff] %v4403
        %4475 = vst [vmem:[%s4471 + $0x18] sm:$0xff] %v4408
        %4476 = vst [vmem:[%s4471 + $0x20] sm:$0xff] %v4413
        %4477 = vst [vmem:[%s4471 + $0x28] sm:$0xff] %v4418
        %4478 = vst [vmem:[%s4471 + $0x30] sm:$0xff] %v4423
        %4479 = vst [vmem:[%s4471 + $0x38] sm:$0xff] %v4428
        %4480 = vst [vmem:[%s4471 + $0x40] sm:$0xff] %v4433
        %4481 = vst [vmem:[%s4471 + $0x48] sm:$0xff] %v4438
        %4482 = vst [vmem:[%s4471 + $0x50] sm:$0xff] %v4443
        %4483 = vst [vmem:[%s4471 + $0x58] sm:$0xff] %v4448
        %4484 = vst [vmem:[%s4471 + $0x60] sm:$0xff] %v4453
        %4485 = vst [vmem:[%s4471 + $0x68] sm:$0xff] %v4458
        %4486 = vst [vmem:[%s4471 + $0x70] sm:$0xff] %v4463
        %4487 = vst [vmem:[%s4471 + $0x78] sm:$0xff] %v4468
        %v4488 = vld [vmem:[#allocation3 + $0x5] sm:$0x1]
        %v4489 = vld [vmem:[#allocation3 + $0x1d] sm:$0x1]
        %v4490 = vld [vmem:[#allocation3 + $0x35] sm:$0x1]
        %v4491 = vld [vmem:[#allocation3 + $0x4d] sm:$0x1]
        %v4492 = vld [vmem:[#allocation3 + $0x65] sm:$0x1]
        %v4493 = vld [vmem:[#allocation3 + $0x7d] sm:$0x1]
        %v4494 = vld [vmem:[#allocation3 + $0x95] sm:$0x1]
        %v4495 = vld [vmem:[#allocation3 + $0xad] sm:$0x1]
        %v4496 = vld [vmem:[#allocation3 + $0xc5] sm:$0x1]
        %v4497 = vld [vmem:[#allocation3 + $0xdd] sm:$0x1]
        %v4498 = vld [vmem:[#allocation3 + $0xf5] sm:$0x1]
        %v4499 = vld [vmem:[#allocation3 + $0x10d] sm:$0x1]
        %v4500 = vld [vmem:[#allocation3 + $0x125] sm:$0x1]
        %v4501 = vld [vmem:[#allocation3 + $0x13d] sm:$0x1]
        %v4502 = vld [vmem:[#allocation3 + $0x155] sm:$0x1]
        %v4503 = vld [vmem:[#allocation3 + $0x16d] sm:$0x1]
        %v4520 = vrot.slane %v4489, 7
        %v4521 = vsel %vm3347, %v4520, %v4488
        %v4522 = vrot.slane %v4490, 6
        %v4523 = vsel %vm3350, %v4522, %v4521
        %v4524 = vrot.slane %v4491, 5
        %v4525 = vsel %vm3353, %v4524, %v4523
        %v4526 = vrot.slane %v4492, 4
        %v4527 = vsel %vm3356, %v4526, %v4525
        %v4528 = vrot.slane %v4493, 3
        %v4529 = vsel %vm3359, %v4528, %v4527
        %v4530 = vrot.slane %v4494, 2
        %v4531 = vsel %vm3362, %v4530, %v4529
        %v4532 = vrot.slane %v4495, 1
        %v4533 = vsel %vm3365, %v4532, %v4531
        %v4534 = vrot.slane %v4497, 7
        %v4535 = vsel %vm3347, %v4534, %v4496
        %v4536 = vrot.slane %v4498, 6
        %v4537 = vsel %vm3350, %v4536, %v4535
        %v4538 = vrot.slane %v4499, 5
        %v4539 = vsel %vm3353, %v4538, %v4537
        %v4540 = vrot.slane %v4500, 4
        %v4541 = vsel %vm3356, %v4540, %v4539
        %v4542 = vrot.slane %v4501, 3
        %v4543 = vsel %vm3359, %v4542, %v4541
        %v4544 = vrot.slane %v4502, 2
        %v4545 = vsel %vm3362, %v4544, %v4543
        %v4546 = vrot.slane %v4503, 1
        %v4547 = vsel %vm3365, %v4546, %v4545
        %4550 = vmatprep.subr.mxu0 0.0
        %4551 = vmatpush1.msra.mxu0 0.0
        %4552 = vmatprep.subr.mxu0 0.0
        %4553 = vmatpush1.msra.mxu0 0.0
        %4554 = vmatprep.subr.mxu0 0.0
        %4555 = vmatpush1.msra.mxu0 0.0
        %4556 = vmatprep.subr.mxu0 0.0
        %4557 = vmatpush1.msra.mxu0 0.0
        %4558 = vmatprep.subr.mxu0 0.0
        %4559 = vmatpush1.msra.mxu0 0.0
        %4560 = vmatprep.subr.mxu0 0.0
        %4561 = vmatpush1.msra.mxu0 0.0
        %4562 = vmatprep.subr.mxu0 0.0
        %4563 = vmatpush1.msra.mxu0 0.0
        %4564 = vmatprep.subr.mxu0 0.0
        %4565 = vmatpush1.msra.mxu0 0.0
        %4566 = vmatprep.subr.mxu0 0.0
        %4567 = vmatpush1.msra.mxu0 0.0
        %4568 = vmatprep.subr.mxu0 0.0
        %4569 = vmatpush1.msra.mxu0 0.0
        %4570 = vmatprep.subr.mxu0 0.0
        %4571 = vmatpush1.msra.mxu0 0.0
        %4572 = vmatprep.subr.mxu0 0.0
        %4573 = vmatpush1.msra.mxu0 0.0
        %4574 = vmatprep.subr.mxu0 0.0
        %4575 = vmatpush1.msra.mxu0 0.0
        %4576 = vmatprep.subr.mxu0 0.0
        %4577 = vmatpush1.msra.mxu0 0.0
        %4578 = vmatprep.subr.mxu0 0.0
        %4579 = vmatpush1.msra.mxu0 %v4547
        %4580 = vmatprep.subr.mxu0 0.0
        %4581 = vmatpush1.msra.mxu0 %v4533
        %4582 = vmatprep.subr.mxu0 0.0
        %4583 = vmatpush2.msra.mxu0 0.0
        %4584 = vmatprep.subr.mxu0 0.0
        %4585 = vmatpush2.msra.mxu0 0.0
        %4586 = vmatprep.subr.mxu0 0.0
        %4587 = vmatpush2.msra.mxu0 0.0
        %4588 = vmatprep.subr.mxu0 0.0
        %4589 = vmatpush2.msra.mxu0 0.0
        %4590 = vmatprep.subr.mxu0 0.0
        %4591 = vmatpush2.msra.mxu0 0.0
        %4592 = vmatprep.subr.mxu0 0.0
        %4593 = vmatpush2.msra.mxu0 0.0
        %4594 = vmatprep.subr.mxu0 0.0
        %4595 = vmatpush2.msra.mxu0 0.0
        %4596 = vmatprep.subr.mxu0 0.0
        %4597 = vmatpush2.msra.mxu0 0.0
        %4598 = vmatprep.subr.mxu0 0.0
        %4599 = vmatpush2.msra.mxu0 0.0
        %4600 = vmatprep.subr.mxu0 0.0
        %4601 = vmatpush2.msra.mxu0 0.0
        %4602 = vmatprep.subr.mxu0 0.0
        %4603 = vmatpush2.msra.mxu0 0.0
        %4604 = vmatprep.subr.mxu0 0.0
        %4605 = vmatpush2.msra.mxu0 0.0
        %4606 = vmatprep.subr.mxu0 0.0
        %4607 = vmatpush2.msra.mxu0 0.0
        %4608 = vmatprep.subr.mxu0 0.0
        %4609 = vmatpush2.msra.mxu0 0.0
        %4610 = vmatprep.subr.mxu0 0.0
        %4611 = vmatpush2.msra.mxu0 0.0
        %4612 = vmatprep.subr.mxu0 0.0
        %4613 = vmatpush2.msra.mxu0 0.0
        %4614 = vmatprep.mubr.f32.mxu0 0.0
        %4615 = vmatmul.mubr.f32.gmra.mxu0 %v3384
        %v4616 = vpop.f32.mrf.mxu0
        %v4617 = vadd.f32 0.0, %v4616
        %v4618 = vpop.f32.mrf.mxu0
        %4619 = vmatprep.mubr.f32.mxu0 0.0
        %4620 = vmatmul.mubr.f32.gmra.mxu0 %v3387
        %v4621 = vpop.f32.mrf.mxu0
        %v4622 = vadd.f32 0.0, %v4621
        %v4623 = vpop.f32.mrf.mxu0
        %4624 = vmatprep.mubr.f32.mxu0 0.0
        %4625 = vmatmul.mubr.f32.gmra.mxu0 %v3390
        %v4626 = vpop.f32.mrf.mxu0
        %v4627 = vadd.f32 0.0, %v4626
        %v4628 = vpop.f32.mrf.mxu0
        %4629 = vmatprep.mubr.f32.mxu0 0.0
        %4630 = vmatmul.mubr.f32.gmra.mxu0 %v3393
        %v4631 = vpop.f32.mrf.mxu0
        %v4632 = vadd.f32 0.0, %v4631
        %v4633 = vpop.f32.mrf.mxu0
        %4634 = vmatprep.mubr.f32.mxu0 0.0
        %4635 = vmatmul.mubr.f32.gmra.mxu0 %v3396
        %v4636 = vpop.f32.mrf.mxu0
        %v4637 = vadd.f32 0.0, %v4636
        %v4638 = vpop.f32.mrf.mxu0
        %4639 = vmatprep.mubr.f32.mxu0 0.0
        %4640 = vmatmul.mubr.f32.gmra.mxu0 %v3399
        %v4641 = vpop.f32.mrf.mxu0
        %v4642 = vadd.f32 0.0, %v4641
        %v4643 = vpop.f32.mrf.mxu0
        %4644 = vmatprep.mubr.f32.mxu0 0.0
        %4645 = vmatmul.mubr.f32.gmra.mxu0 %v3402
        %v4646 = vpop.f32.mrf.mxu0
        %v4647 = vadd.f32 0.0, %v4646
        %v4648 = vpop.f32.mrf.mxu0
        %4649 = vmatprep.mubr.f32.mxu0 0.0
        %4650 = vmatmul.mubr.f32.gmra.mxu0 %v3405
        %v4651 = vpop.f32.mrf.mxu0
        %v4652 = vadd.f32 0.0, %v4651
        %v4653 = vpop.f32.mrf.mxu0
        %4654 = vmatprep.mubr.f32.mxu0 0.0
        %4655 = vmatmul.mubr.f32.gmra.mxu0 %v3408
        %v4656 = vpop.f32.mrf.mxu0
        %v4657 = vadd.f32 0.0, %v4656
        %v4658 = vpop.f32.mrf.mxu0
        %4659 = vmatprep.mubr.f32.mxu0 0.0
        %4660 = vmatmul.mubr.f32.gmra.mxu0 %v3411
        %v4661 = vpop.f32.mrf.mxu0
        %v4662 = vadd.f32 0.0, %v4661
        %v4663 = vpop.f32.mrf.mxu0
        %4664 = vmatprep.mubr.f32.mxu0 0.0
        %4665 = vmatmul.mubr.f32.gmra.mxu0 %v3414
        %v4666 = vpop.f32.mrf.mxu0
        %v4667 = vadd.f32 0.0, %v4666
        %v4668 = vpop.f32.mrf.mxu0
        %4669 = vmatprep.mubr.f32.mxu0 0.0
        %4670 = vmatmul.mubr.f32.gmra.mxu0 %v3417
        %v4671 = vpop.f32.mrf.mxu0
        %v4672 = vadd.f32 0.0, %v4671
        %v4673 = vpop.f32.mrf.mxu0
        %4674 = vmatprep.mubr.f32.mxu0 0.0
        %4675 = vmatmul.mubr.f32.gmra.mxu0 %v3420
        %v4676 = vpop.f32.mrf.mxu0
        %v4677 = vadd.f32 0.0, %v4676
        %v4678 = vpop.f32.mrf.mxu0
        %4679 = vmatprep.mubr.f32.mxu0 0.0
        %4680 = vmatmul.mubr.f32.gmra.mxu0 %v3423
        %v4681 = vpop.f32.mrf.mxu0
        %v4682 = vadd.f32 0.0, %v4681
        %v4683 = vpop.f32.mrf.mxu0
        %4684 = vmatprep.mubr.f32.mxu0 0.0
        %4685 = vmatmul.mubr.f32.gmra.mxu0 %v3426
        %v4686 = vpop.f32.mrf.mxu0
        %v4687 = vadd.f32 0.0, %v4686
        %v4688 = vpop.f32.mrf.mxu0
        %4689 = vmatprep.mubr.f32.mxu0 0.0
        %4690 = vmatmul.mubr.f32.gmra.mxu0 %v3429
        %v4691 = vpop.f32.mrf.mxu0
        %v4692 = vadd.f32 0.0, %v4691
        %v4693 = vpop.f32.mrf.mxu0
        %4694 = vdwg.mxu0
        %s4695 = scalar_lea.vmem %s306, 640 [#allocation12]
        %4696 = vst [vmem:[%s4695] sm:$0xff] %v4617
        %4697 = vst [vmem:[%s4695 + $0x8] sm:$0xff] %v4622
        %4698 = vst [vmem:[%s4695 + $0x10] sm:$0xff] %v4627
        %4699 = vst [vmem:[%s4695 + $0x18] sm:$0xff] %v4632
        %4700 = vst [vmem:[%s4695 + $0x20] sm:$0xff] %v4637
        %4701 = vst [vmem:[%s4695 + $0x28] sm:$0xff] %v4642
        %4702 = vst [vmem:[%s4695 + $0x30] sm:$0xff] %v4647
        %4703 = vst [vmem:[%s4695 + $0x38] sm:$0xff] %v4652
        %4704 = vst [vmem:[%s4695 + $0x40] sm:$0xff] %v4657
        %4705 = vst [vmem:[%s4695 + $0x48] sm:$0xff] %v4662
        %4706 = vst [vmem:[%s4695 + $0x50] sm:$0xff] %v4667
        %4707 = vst [vmem:[%s4695 + $0x58] sm:$0xff] %v4672
        %4708 = vst [vmem:[%s4695 + $0x60] sm:$0xff] %v4677
        %4709 = vst [vmem:[%s4695 + $0x68] sm:$0xff] %v4682
        %4710 = vst [vmem:[%s4695 + $0x70] sm:$0xff] %v4687
        %4711 = vst [vmem:[%s4695 + $0x78] sm:$0xff] %v4692
        %v4712 = vld [vmem:[#allocation3 + $0x6] sm:$0x1]
        %v4713 = vld [vmem:[#allocation3 + $0x1e] sm:$0x1]
        %v4714 = vld [vmem:[#allocation3 + $0x36] sm:$0x1]
        %v4715 = vld [vmem:[#allocation3 + $0x4e] sm:$0x1]
        %v4716 = vld [vmem:[#allocation3 + $0x66] sm:$0x1]
        %v4717 = vld [vmem:[#allocation3 + $0x7e] sm:$0x1]
        %v4718 = vld [vmem:[#allocation3 + $0x96] sm:$0x1]
        %v4719 = vld [vmem:[#allocation3 + $0xae] sm:$0x1]
        %v4720 = vld [vmem:[#allocation3 + $0xc6] sm:$0x1]
        %v4721 = vld [vmem:[#allocation3 + $0xde] sm:$0x1]
        %v4722 = vld [vmem:[#allocation3 + $0xf6] sm:$0x1]
        %v4723 = vld [vmem:[#allocation3 + $0x10e] sm:$0x1]
        %v4724 = vld [vmem:[#allocation3 + $0x126] sm:$0x1]
        %v4725 = vld [vmem:[#allocation3 + $0x13e] sm:$0x1]
        %v4726 = vld [vmem:[#allocation3 + $0x156] sm:$0x1]
        %v4727 = vld [vmem:[#allocation3 + $0x16e] sm:$0x1]
        %v4744 = vrot.slane %v4713, 7
        %v4745 = vsel %vm3347, %v4744, %v4712
        %v4746 = vrot.slane %v4714, 6
        %v4747 = vsel %vm3350, %v4746, %v4745
        %v4748 = vrot.slane %v4715, 5
        %v4749 = vsel %vm3353, %v4748, %v4747
        %v4750 = vrot.slane %v4716, 4
        %v4751 = vsel %vm3356, %v4750, %v4749
        %v4752 = vrot.slane %v4717, 3
        %v4753 = vsel %vm3359, %v4752, %v4751
        %v4754 = vrot.slane %v4718, 2
        %v4755 = vsel %vm3362, %v4754, %v4753
        %v4756 = vrot.slane %v4719, 1
        %v4757 = vsel %vm3365, %v4756, %v4755
        %v4758 = vrot.slane %v4721, 7
        %v4759 = vsel %vm3347, %v4758, %v4720
        %v4760 = vrot.slane %v4722, 6
        %v4761 = vsel %vm3350, %v4760, %v4759
        %v4762 = vrot.slane %v4723, 5
        %v4763 = vsel %vm3353, %v4762, %v4761
        %v4764 = vrot.slane %v4724, 4
        %v4765 = vsel %vm3356, %v4764, %v4763
        %v4766 = vrot.slane %v4725, 3
        %v4767 = vsel %vm3359, %v4766, %v4765
        %v4768 = vrot.slane %v4726, 2
        %v4769 = vsel %vm3362, %v4768, %v4767
        %v4770 = vrot.slane %v4727, 1
        %v4771 = vsel %vm3365, %v4770, %v4769
        %4774 = vmatprep.subr.mxu0 0.0
        %4775 = vmatpush1.msra.mxu0 0.0
        %4776 = vmatprep.subr.mxu0 0.0
        %4777 = vmatpush1.msra.mxu0 0.0
        %4778 = vmatprep.subr.mxu0 0.0
        %4779 = vmatpush1.msra.mxu0 0.0
        %4780 = vmatprep.subr.mxu0 0.0
        %4781 = vmatpush1.msra.mxu0 0.0
        %4782 = vmatprep.subr.mxu0 0.0
        %4783 = vmatpush1.msra.mxu0 0.0
        %4784 = vmatprep.subr.mxu0 0.0
        %4785 = vmatpush1.msra.mxu0 0.0
        %4786 = vmatprep.subr.mxu0 0.0
        %4787 = vmatpush1.msra.mxu0 0.0
        %4788 = vmatprep.subr.mxu0 0.0
        %4789 = vmatpush1.msra.mxu0 0.0
        %4790 = vmatprep.subr.mxu0 0.0
        %4791 = vmatpush1.msra.mxu0 0.0
        %4792 = vmatprep.subr.mxu0 0.0
        %4793 = vmatpush1.msra.mxu0 0.0
        %4794 = vmatprep.subr.mxu0 0.0
        %4795 = vmatpush1.msra.mxu0 0.0
        %4796 = vmatprep.subr.mxu0 0.0
        %4797 = vmatpush1.msra.mxu0 0.0
        %4798 = vmatprep.subr.mxu0 0.0
        %4799 = vmatpush1.msra.mxu0 0.0
        %4800 = vmatprep.subr.mxu0 0.0
        %4801 = vmatpush1.msra.mxu0 0.0
        %4802 = vmatprep.subr.mxu0 0.0
        %4803 = vmatpush1.msra.mxu0 %v4771
        %4804 = vmatprep.subr.mxu0 0.0
        %4805 = vmatpush1.msra.mxu0 %v4757
        %4806 = vmatprep.subr.mxu0 0.0
        %4807 = vmatpush2.msra.mxu0 0.0
        %4808 = vmatprep.subr.mxu0 0.0
        %4809 = vmatpush2.msra.mxu0 0.0
        %4810 = vmatprep.subr.mxu0 0.0
        %4811 = vmatpush2.msra.mxu0 0.0
        %4812 = vmatprep.subr.mxu0 0.0
        %4813 = vmatpush2.msra.mxu0 0.0
        %4814 = vmatprep.subr.mxu0 0.0
        %4815 = vmatpush2.msra.mxu0 0.0
        %4816 = vmatprep.subr.mxu0 0.0
        %4817 = vmatpush2.msra.mxu0 0.0
        %4818 = vmatprep.subr.mxu0 0.0
        %4819 = vmatpush2.msra.mxu0 0.0
        %4820 = vmatprep.subr.mxu0 0.0
        %4821 = vmatpush2.msra.mxu0 0.0
        %4822 = vmatprep.subr.mxu0 0.0
        %4823 = vmatpush2.msra.mxu0 0.0
        %4824 = vmatprep.subr.mxu0 0.0
        %4825 = vmatpush2.msra.mxu0 0.0
        %4826 = vmatprep.subr.mxu0 0.0
        %4827 = vmatpush2.msra.mxu0 0.0
        %4828 = vmatprep.subr.mxu0 0.0
        %4829 = vmatpush2.msra.mxu0 0.0
        %4830 = vmatprep.subr.mxu0 0.0
        %4831 = vmatpush2.msra.mxu0 0.0
        %4832 = vmatprep.subr.mxu0 0.0
        %4833 = vmatpush2.msra.mxu0 0.0
        %4834 = vmatprep.subr.mxu0 0.0
        %4835 = vmatpush2.msra.mxu0 0.0
        %4836 = vmatprep.subr.mxu0 0.0
        %4837 = vmatpush2.msra.mxu0 0.0
        %4838 = vmatprep.mubr.f32.mxu0 0.0
        %4839 = vmatmul.mubr.f32.gmra.mxu0 %v3384
        %v4840 = vpop.f32.mrf.mxu0
        %v4841 = vadd.f32 0.0, %v4840
        %v4842 = vpop.f32.mrf.mxu0
        %4843 = vmatprep.mubr.f32.mxu0 0.0
        %4844 = vmatmul.mubr.f32.gmra.mxu0 %v3387
        %v4845 = vpop.f32.mrf.mxu0
        %v4846 = vadd.f32 0.0, %v4845
        %v4847 = vpop.f32.mrf.mxu0
        %4848 = vmatprep.mubr.f32.mxu0 0.0
        %4849 = vmatmul.mubr.f32.gmra.mxu0 %v3390
        %v4850 = vpop.f32.mrf.mxu0
        %v4851 = vadd.f32 0.0, %v4850
        %v4852 = vpop.f32.mrf.mxu0
        %4853 = vmatprep.mubr.f32.mxu0 0.0
        %4854 = vmatmul.mubr.f32.gmra.mxu0 %v3393
        %v4855 = vpop.f32.mrf.mxu0
        %v4856 = vadd.f32 0.0, %v4855
        %v4857 = vpop.f32.mrf.mxu0
        %4858 = vmatprep.mubr.f32.mxu0 0.0
        %4859 = vmatmul.mubr.f32.gmra.mxu0 %v3396
        %v4860 = vpop.f32.mrf.mxu0
        %v4861 = vadd.f32 0.0, %v4860
        %v4862 = vpop.f32.mrf.mxu0
        %4863 = vmatprep.mubr.f32.mxu0 0.0
        %4864 = vmatmul.mubr.f32.gmra.mxu0 %v3399
        %v4865 = vpop.f32.mrf.mxu0
        %v4866 = vadd.f32 0.0, %v4865
        %v4867 = vpop.f32.mrf.mxu0
        %4868 = vmatprep.mubr.f32.mxu0 0.0
        %4869 = vmatmul.mubr.f32.gmra.mxu0 %v3402
        %v4870 = vpop.f32.mrf.mxu0
        %v4871 = vadd.f32 0.0, %v4870
        %v4872 = vpop.f32.mrf.mxu0
        %4873 = vmatprep.mubr.f32.mxu0 0.0
        %4874 = vmatmul.mubr.f32.gmra.mxu0 %v3405
        %v4875 = vpop.f32.mrf.mxu0
        %v4876 = vadd.f32 0.0, %v4875
        %v4877 = vpop.f32.mrf.mxu0
        %4878 = vmatprep.mubr.f32.mxu0 0.0
        %4879 = vmatmul.mubr.f32.gmra.mxu0 %v3408
        %v4880 = vpop.f32.mrf.mxu0
        %v4881 = vadd.f32 0.0, %v4880
        %v4882 = vpop.f32.mrf.mxu0
        %4883 = vmatprep.mubr.f32.mxu0 0.0
        %4884 = vmatmul.mubr.f32.gmra.mxu0 %v3411
        %v4885 = vpop.f32.mrf.mxu0
        %v4886 = vadd.f32 0.0, %v4885
        %v4887 = vpop.f32.mrf.mxu0
        %4888 = vmatprep.mubr.f32.mxu0 0.0
        %4889 = vmatmul.mubr.f32.gmra.mxu0 %v3414
        %v4890 = vpop.f32.mrf.mxu0
        %v4891 = vadd.f32 0.0, %v4890
        %v4892 = vpop.f32.mrf.mxu0
        %4893 = vmatprep.mubr.f32.mxu0 0.0
        %4894 = vmatmul.mubr.f32.gmra.mxu0 %v3417
        %v4895 = vpop.f32.mrf.mxu0
        %v4896 = vadd.f32 0.0, %v4895
        %v4897 = vpop.f32.mrf.mxu0
        %4898 = vmatprep.mubr.f32.mxu0 0.0
        %4899 = vmatmul.mubr.f32.gmra.mxu0 %v3420
        %v4900 = vpop.f32.mrf.mxu0
        %v4901 = vadd.f32 0.0, %v4900
        %v4902 = vpop.f32.mrf.mxu0
        %4903 = vmatprep.mubr.f32.mxu0 0.0
        %4904 = vmatmul.mubr.f32.gmra.mxu0 %v3423
        %v4905 = vpop.f32.mrf.mxu0
        %v4906 = vadd.f32 0.0, %v4905
        %v4907 = vpop.f32.mrf.mxu0
        %4908 = vmatprep.mubr.f32.mxu0 0.0
        %4909 = vmatmul.mubr.f32.gmra.mxu0 %v3426
        %v4910 = vpop.f32.mrf.mxu0
        %v4911 = vadd.f32 0.0, %v4910
        %v4912 = vpop.f32.mrf.mxu0
        %4913 = vmatprep.mubr.f32.mxu0 0.0
        %4914 = vmatmul.mubr.f32.gmra.mxu0 %v3429
        %v4915 = vpop.f32.mrf.mxu0
        %v4916 = vadd.f32 0.0, %v4915
        %v4917 = vpop.f32.mrf.mxu0
        %4918 = vdwg.mxu0
        %s4919 = scalar_lea.vmem %s306, 768 [#allocation12]
        %4920 = vst [vmem:[%s4919] sm:$0xff] %v4841
        %4921 = vst [vmem:[%s4919 + $0x8] sm:$0xff] %v4846
        %4922 = vst [vmem:[%s4919 + $0x10] sm:$0xff] %v4851
        %4923 = vst [vmem:[%s4919 + $0x18] sm:$0xff] %v4856
        %4924 = vst [vmem:[%s4919 + $0x20] sm:$0xff] %v4861
        %4925 = vst [vmem:[%s4919 + $0x28] sm:$0xff] %v4866
        %4926 = vst [vmem:[%s4919 + $0x30] sm:$0xff] %v4871
        %4927 = vst [vmem:[%s4919 + $0x38] sm:$0xff] %v4876
        %4928 = vst [vmem:[%s4919 + $0x40] sm:$0xff] %v4881
        %4929 = vst [vmem:[%s4919 + $0x48] sm:$0xff] %v4886
        %4930 = vst [vmem:[%s4919 + $0x50] sm:$0xff] %v4891
        %4931 = vst [vmem:[%s4919 + $0x58] sm:$0xff] %v4896
        %4932 = vst [vmem:[%s4919 + $0x60] sm:$0xff] %v4901
        %4933 = vst [vmem:[%s4919 + $0x68] sm:$0xff] %v4906
        %4934 = vst [vmem:[%s4919 + $0x70] sm:$0xff] %v4911
        %4935 = vst [vmem:[%s4919 + $0x78] sm:$0xff] %v4916
        %v4936 = vld [vmem:[#allocation3 + $0x7] sm:$0x1]
        %v4937 = vld [vmem:[#allocation3 + $0x1f] sm:$0x1]
        %v4938 = vld [vmem:[#allocation3 + $0x37] sm:$0x1]
        %v4939 = vld [vmem:[#allocation3 + $0x4f] sm:$0x1]
        %v4940 = vld [vmem:[#allocation3 + $0x67] sm:$0x1]
        %v4941 = vld [vmem:[#allocation3 + $0x7f] sm:$0x1]
        %v4942 = vld [vmem:[#allocation3 + $0x97] sm:$0x1]
        %v4943 = vld [vmem:[#allocation3 + $0xaf] sm:$0x1]
        %v4944 = vld [vmem:[#allocation3 + $0xc7] sm:$0x1]
        %v4945 = vld [vmem:[#allocation3 + $0xdf] sm:$0x1]
        %v4946 = vld [vmem:[#allocation3 + $0xf7] sm:$0x1]
        %v4947 = vld [vmem:[#allocation3 + $0x10f] sm:$0x1]
        %v4948 = vld [vmem:[#allocation3 + $0x127] sm:$0x1]
        %v4949 = vld [vmem:[#allocation3 + $0x13f] sm:$0x1]
        %v4950 = vld [vmem:[#allocation3 + $0x157] sm:$0x1]
        %v4951 = vld [vmem:[#allocation3 + $0x16f] sm:$0x1]
        %v4968 = vrot.slane %v4937, 7
        %v4969 = vsel %vm3347, %v4968, %v4936
        %v4970 = vrot.slane %v4938, 6
        %v4971 = vsel %vm3350, %v4970, %v4969
        %v4972 = vrot.slane %v4939, 5
        %v4973 = vsel %vm3353, %v4972, %v4971
        %v4974 = vrot.slane %v4940, 4
        %v4975 = vsel %vm3356, %v4974, %v4973
        %v4976 = vrot.slane %v4941, 3
        %v4977 = vsel %vm3359, %v4976, %v4975
        %v4978 = vrot.slane %v4942, 2
        %v4979 = vsel %vm3362, %v4978, %v4977
        %v4980 = vrot.slane %v4943, 1
        %v4981 = vsel %vm3365, %v4980, %v4979
        %v4982 = vrot.slane %v4945, 7
        %v4983 = vsel %vm3347, %v4982, %v4944
        %v4984 = vrot.slane %v4946, 6
        %v4985 = vsel %vm3350, %v4984, %v4983
        %v4986 = vrot.slane %v4947, 5
        %v4987 = vsel %vm3353, %v4986, %v4985
        %v4988 = vrot.slane %v4948, 4
        %v4989 = vsel %vm3356, %v4988, %v4987
        %v4990 = vrot.slane %v4949, 3
        %v4991 = vsel %vm3359, %v4990, %v4989
        %v4992 = vrot.slane %v4950, 2
        %v4993 = vsel %vm3362, %v4992, %v4991
        %v4994 = vrot.slane %v4951, 1
        %v4995 = vsel %vm3365, %v4994, %v4993
        %4998 = vmatprep.subr.mxu0 0.0
        %4999 = vmatpush1.msra.mxu0 0.0
        %5000 = vmatprep.subr.mxu0 0.0
        %5001 = vmatpush1.msra.mxu0 0.0
        %5002 = vmatprep.subr.mxu0 0.0
        %5003 = vmatpush1.msra.mxu0 0.0
        %5004 = vmatprep.subr.mxu0 0.0
        %5005 = vmatpush1.msra.mxu0 0.0
        %5006 = vmatprep.subr.mxu0 0.0
        %5007 = vmatpush1.msra.mxu0 0.0
        %5008 = vmatprep.subr.mxu0 0.0
        %5009 = vmatpush1.msra.mxu0 0.0
        %5010 = vmatprep.subr.mxu0 0.0
        %5011 = vmatpush1.msra.mxu0 0.0
        %5012 = vmatprep.subr.mxu0 0.0
        %5013 = vmatpush1.msra.mxu0 0.0
        %5014 = vmatprep.subr.mxu0 0.0
        %5015 = vmatpush1.msra.mxu0 0.0
        %5016 = vmatprep.subr.mxu0 0.0
        %5017 = vmatpush1.msra.mxu0 0.0
        %5018 = vmatprep.subr.mxu0 0.0
        %5019 = vmatpush1.msra.mxu0 0.0
        %5020 = vmatprep.subr.mxu0 0.0
        %5021 = vmatpush1.msra.mxu0 0.0
        %5022 = vmatprep.subr.mxu0 0.0
        %5023 = vmatpush1.msra.mxu0 0.0
        %5024 = vmatprep.subr.mxu0 0.0
        %5025 = vmatpush1.msra.mxu0 0.0
        %5026 = vmatprep.subr.mxu0 0.0
        %5027 = vmatpush1.msra.mxu0 %v4995
        %5028 = vmatprep.subr.mxu0 0.0
        %5029 = vmatpush1.msra.mxu0 %v4981
        %5030 = vmatprep.subr.mxu0 0.0
        %5031 = vmatpush2.msra.mxu0 0.0
        %5032 = vmatprep.subr.mxu0 0.0
        %5033 = vmatpush2.msra.mxu0 0.0
        %5034 = vmatprep.subr.mxu0 0.0
        %5035 = vmatpush2.msra.mxu0 0.0
        %5036 = vmatprep.subr.mxu0 0.0
        %5037 = vmatpush2.msra.mxu0 0.0
        %5038 = vmatprep.subr.mxu0 0.0
        %5039 = vmatpush2.msra.mxu0 0.0
        %5040 = vmatprep.subr.mxu0 0.0
        %5041 = vmatpush2.msra.mxu0 0.0
        %5042 = vmatprep.subr.mxu0 0.0
        %5043 = vmatpush2.msra.mxu0 0.0
        %5044 = vmatprep.subr.mxu0 0.0
        %5045 = vmatpush2.msra.mxu0 0.0
        %5046 = vmatprep.subr.mxu0 0.0
        %5047 = vmatpush2.msra.mxu0 0.0
        %5048 = vmatprep.subr.mxu0 0.0
        %5049 = vmatpush2.msra.mxu0 0.0
        %5050 = vmatprep.subr.mxu0 0.0
        %5051 = vmatpush2.msra.mxu0 0.0
        %5052 = vmatprep.subr.mxu0 0.0
        %5053 = vmatpush2.msra.mxu0 0.0
        %5054 = vmatprep.subr.mxu0 0.0
        %5055 = vmatpush2.msra.mxu0 0.0
        %5056 = vmatprep.subr.mxu0 0.0
        %5057 = vmatpush2.msra.mxu0 0.0
        %5058 = vmatprep.subr.mxu0 0.0
        %5059 = vmatpush2.msra.mxu0 0.0
        %5060 = vmatprep.subr.mxu0 0.0
        %5061 = vmatpush2.msra.mxu0 0.0
        %5062 = vmatprep.mubr.f32.mxu0 0.0
        %5063 = vmatmul.mubr.f32.gmra.mxu0 %v3384
        %v5064 = vpop.f32.mrf.mxu0
        %v5065 = vadd.f32 0.0, %v5064
        %v5066 = vpop.f32.mrf.mxu0
        %5067 = vmatprep.mubr.f32.mxu0 0.0
        %5068 = vmatmul.mubr.f32.gmra.mxu0 %v3387
        %v5069 = vpop.f32.mrf.mxu0
        %v5070 = vadd.f32 0.0, %v5069
        %v5071 = vpop.f32.mrf.mxu0
        %5072 = vmatprep.mubr.f32.mxu0 0.0
        %5073 = vmatmul.mubr.f32.gmra.mxu0 %v3390
        %v5074 = vpop.f32.mrf.mxu0
        %v5075 = vadd.f32 0.0, %v5074
        %v5076 = vpop.f32.mrf.mxu0
        %5077 = vmatprep.mubr.f32.mxu0 0.0
        %5078 = vmatmul.mubr.f32.gmra.mxu0 %v3393
        %v5079 = vpop.f32.mrf.mxu0
        %v5080 = vadd.f32 0.0, %v5079
        %v5081 = vpop.f32.mrf.mxu0
        %5082 = vmatprep.mubr.f32.mxu0 0.0
        %5083 = vmatmul.mubr.f32.gmra.mxu0 %v3396
        %v5084 = vpop.f32.mrf.mxu0
        %v5085 = vadd.f32 0.0, %v5084
        %v5086 = vpop.f32.mrf.mxu0
        %5087 = vmatprep.mubr.f32.mxu0 0.0
        %5088 = vmatmul.mubr.f32.gmra.mxu0 %v3399
        %v5089 = vpop.f32.mrf.mxu0
        %v5090 = vadd.f32 0.0, %v5089
        %v5091 = vpop.f32.mrf.mxu0
        %5092 = vmatprep.mubr.f32.mxu0 0.0
        %5093 = vmatmul.mubr.f32.gmra.mxu0 %v3402
        %v5094 = vpop.f32.mrf.mxu0
        %v5095 = vadd.f32 0.0, %v5094
        %v5096 = vpop.f32.mrf.mxu0
        %5097 = vmatprep.mubr.f32.mxu0 0.0
        %5098 = vmatmul.mubr.f32.gmra.mxu0 %v3405
        %v5099 = vpop.f32.mrf.mxu0
        %v5100 = vadd.f32 0.0, %v5099
        %v5101 = vpop.f32.mrf.mxu0
        %5102 = vmatprep.mubr.f32.mxu0 0.0
        %5103 = vmatmul.mubr.f32.gmra.mxu0 %v3408
        %v5104 = vpop.f32.mrf.mxu0
        %v5105 = vadd.f32 0.0, %v5104
        %v5106 = vpop.f32.mrf.mxu0
        %5107 = vmatprep.mubr.f32.mxu0 0.0
        %5108 = vmatmul.mubr.f32.gmra.mxu0 %v3411
        %v5109 = vpop.f32.mrf.mxu0
        %v5110 = vadd.f32 0.0, %v5109
        %v5111 = vpop.f32.mrf.mxu0
        %5112 = vmatprep.mubr.f32.mxu0 0.0
        %5113 = vmatmul.mubr.f32.gmra.mxu0 %v3414
        %v5114 = vpop.f32.mrf.mxu0
        %v5115 = vadd.f32 0.0, %v5114
        %v5116 = vpop.f32.mrf.mxu0
        %5117 = vmatprep.mubr.f32.mxu0 0.0
        %5118 = vmatmul.mubr.f32.gmra.mxu0 %v3417
        %v5119 = vpop.f32.mrf.mxu0
        %v5120 = vadd.f32 0.0, %v5119
        %v5121 = vpop.f32.mrf.mxu0
        %5122 = vmatprep.mubr.f32.mxu0 0.0
        %5123 = vmatmul.mubr.f32.gmra.mxu0 %v3420
        %v5124 = vpop.f32.mrf.mxu0
        %v5125 = vadd.f32 0.0, %v5124
        %v5126 = vpop.f32.mrf.mxu0
        %5127 = vmatprep.mubr.f32.mxu0 0.0
        %5128 = vmatmul.mubr.f32.gmra.mxu0 %v3423
        %v5129 = vpop.f32.mrf.mxu0
        %v5130 = vadd.f32 0.0, %v5129
        %v5131 = vpop.f32.mrf.mxu0
        %5132 = vmatprep.mubr.f32.mxu0 0.0
        %5133 = vmatmul.mubr.f32.gmra.mxu0 %v3426
        %v5134 = vpop.f32.mrf.mxu0
        %v5135 = vadd.f32 0.0, %v5134
        %v5136 = vpop.f32.mrf.mxu0
        %5137 = vmatprep.mubr.f32.mxu0 0.0
        %5138 = vmatmul.mubr.f32.gmra.mxu0 %v3429
        %v5139 = vpop.f32.mrf.mxu0
        %v5140 = vadd.f32 0.0, %v5139
        %v5141 = vpop.f32.mrf.mxu0
        %5142 = vdwg.mxu0
        %s5143 = scalar_lea.vmem %s306, 896 [#allocation12]
        %5144 = vst [vmem:[%s5143] sm:$0xff] %v5065
        %5145 = vst [vmem:[%s5143 + $0x8] sm:$0xff] %v5070
        %5146 = vst [vmem:[%s5143 + $0x10] sm:$0xff] %v5075
        %5147 = vst [vmem:[%s5143 + $0x18] sm:$0xff] %v5080
        %5148 = vst [vmem:[%s5143 + $0x20] sm:$0xff] %v5085
        %5149 = vst [vmem:[%s5143 + $0x28] sm:$0xff] %v5090
        %5150 = vst [vmem:[%s5143 + $0x30] sm:$0xff] %v5095
        %5151 = vst [vmem:[%s5143 + $0x38] sm:$0xff] %v5100
        %5152 = vst [vmem:[%s5143 + $0x40] sm:$0xff] %v5105
        %5153 = vst [vmem:[%s5143 + $0x48] sm:$0xff] %v5110
        %5154 = vst [vmem:[%s5143 + $0x50] sm:$0xff] %v5115
        %5155 = vst [vmem:[%s5143 + $0x58] sm:$0xff] %v5120
        %5156 = vst [vmem:[%s5143 + $0x60] sm:$0xff] %v5125
        %5157 = vst [vmem:[%s5143 + $0x68] sm:$0xff] %v5130
        %5158 = vst [vmem:[%s5143 + $0x70] sm:$0xff] %v5135
        %5159 = vst [vmem:[%s5143 + $0x78] sm:$0xff] %v5140
        %v5160 = vld [vmem:[#allocation3 + $0x8] sm:$0x1]
        %v5161 = vld [vmem:[#allocation3 + $0x20] sm:$0x1]
        %v5162 = vld [vmem:[#allocation3 + $0x38] sm:$0x1]
        %v5163 = vld [vmem:[#allocation3 + $0x50] sm:$0x1]
        %v5164 = vld [vmem:[#allocation3 + $0x68] sm:$0x1]
        %v5165 = vld [vmem:[#allocation3 + $0x80] sm:$0x1]
        %v5166 = vld [vmem:[#allocation3 + $0x98] sm:$0x1]
        %v5167 = vld [vmem:[#allocation3 + $0xb0] sm:$0x1]
        %v5168 = vld [vmem:[#allocation3 + $0xc8] sm:$0x1]
        %v5169 = vld [vmem:[#allocation3 + $0xe0] sm:$0x1]
        %v5170 = vld [vmem:[#allocation3 + $0xf8] sm:$0x1]
        %v5171 = vld [vmem:[#allocation3 + $0x110] sm:$0x1]
        %v5172 = vld [vmem:[#allocation3 + $0x128] sm:$0x1]
        %v5173 = vld [vmem:[#allocation3 + $0x140] sm:$0x1]
        %v5174 = vld [vmem:[#allocation3 + $0x158] sm:$0x1]
        %v5175 = vld [vmem:[#allocation3 + $0x170] sm:$0x1]
        %v5192 = vrot.slane %v5161, 7
        %v5193 = vsel %vm3347, %v5192, %v5160
        %v5194 = vrot.slane %v5162, 6
        %v5195 = vsel %vm3350, %v5194, %v5193
        %v5196 = vrot.slane %v5163, 5
        %v5197 = vsel %vm3353, %v5196, %v5195
        %v5198 = vrot.slane %v5164, 4
        %v5199 = vsel %vm3356, %v5198, %v5197
        %v5200 = vrot.slane %v5165, 3
        %v5201 = vsel %vm3359, %v5200, %v5199
        %v5202 = vrot.slane %v5166, 2
        %v5203 = vsel %vm3362, %v5202, %v5201
        %v5204 = vrot.slane %v5167, 1
        %v5205 = vsel %vm3365, %v5204, %v5203
        %v5206 = vrot.slane %v5169, 7
        %v5207 = vsel %vm3347, %v5206, %v5168
        %v5208 = vrot.slane %v5170, 6
        %v5209 = vsel %vm3350, %v5208, %v5207
        %v5210 = vrot.slane %v5171, 5
        %v5211 = vsel %vm3353, %v5210, %v5209
        %v5212 = vrot.slane %v5172, 4
        %v5213 = vsel %vm3356, %v5212, %v5211
        %v5214 = vrot.slane %v5173, 3
        %v5215 = vsel %vm3359, %v5214, %v5213
        %v5216 = vrot.slane %v5174, 2
        %v5217 = vsel %vm3362, %v5216, %v5215
        %v5218 = vrot.slane %v5175, 1
        %v5219 = vsel %vm3365, %v5218, %v5217
        %5222 = vmatprep.subr.mxu0 0.0
        %5223 = vmatpush1.msra.mxu0 0.0
        %5224 = vmatprep.subr.mxu0 0.0
        %5225 = vmatpush1.msra.mxu0 0.0
        %5226 = vmatprep.subr.mxu0 0.0
        %5227 = vmatpush1.msra.mxu0 0.0
        %5228 = vmatprep.subr.mxu0 0.0
        %5229 = vmatpush1.msra.mxu0 0.0
        %5230 = vmatprep.subr.mxu0 0.0
        %5231 = vmatpush1.msra.mxu0 0.0
        %5232 = vmatprep.subr.mxu0 0.0
        %5233 = vmatpush1.msra.mxu0 0.0
        %5234 = vmatprep.subr.mxu0 0.0
        %5235 = vmatpush1.msra.mxu0 0.0
        %5236 = vmatprep.subr.mxu0 0.0
        %5237 = vmatpush1.msra.mxu0 0.0
        %5238 = vmatprep.subr.mxu0 0.0
        %5239 = vmatpush1.msra.mxu0 0.0
        %5240 = vmatprep.subr.mxu0 0.0
        %5241 = vmatpush1.msra.mxu0 0.0
        %5242 = vmatprep.subr.mxu0 0.0
        %5243 = vmatpush1.msra.mxu0 0.0
        %5244 = vmatprep.subr.mxu0 0.0
        %5245 = vmatpush1.msra.mxu0 0.0
        %5246 = vmatprep.subr.mxu0 0.0
        %5247 = vmatpush1.msra.mxu0 0.0
        %5248 = vmatprep.subr.mxu0 0.0
        %5249 = vmatpush1.msra.mxu0 0.0
        %5250 = vmatprep.subr.mxu0 0.0
        %5251 = vmatpush1.msra.mxu0 %v5219
        %5252 = vmatprep.subr.mxu0 0.0
        %5253 = vmatpush1.msra.mxu0 %v5205
        %5254 = vmatprep.subr.mxu0 0.0
        %5255 = vmatpush2.msra.mxu0 0.0
        %5256 = vmatprep.subr.mxu0 0.0
        %5257 = vmatpush2.msra.mxu0 0.0
        %5258 = vmatprep.subr.mxu0 0.0
        %5259 = vmatpush2.msra.mxu0 0.0
        %5260 = vmatprep.subr.mxu0 0.0
        %5261 = vmatpush2.msra.mxu0 0.0
        %5262 = vmatprep.subr.mxu0 0.0
        %5263 = vmatpush2.msra.mxu0 0.0
        %5264 = vmatprep.subr.mxu0 0.0
        %5265 = vmatpush2.msra.mxu0 0.0
        %5266 = vmatprep.subr.mxu0 0.0
        %5267 = vmatpush2.msra.mxu0 0.0
        %5268 = vmatprep.subr.mxu0 0.0
        %5269 = vmatpush2.msra.mxu0 0.0
        %5270 = vmatprep.subr.mxu0 0.0
        %5271 = vmatpush2.msra.mxu0 0.0
        %5272 = vmatprep.subr.mxu0 0.0
        %5273 = vmatpush2.msra.mxu0 0.0
        %5274 = vmatprep.subr.mxu0 0.0
        %5275 = vmatpush2.msra.mxu0 0.0
        %5276 = vmatprep.subr.mxu0 0.0
        %5277 = vmatpush2.msra.mxu0 0.0
        %5278 = vmatprep.subr.mxu0 0.0
        %5279 = vmatpush2.msra.mxu0 0.0
        %5280 = vmatprep.subr.mxu0 0.0
        %5281 = vmatpush2.msra.mxu0 0.0
        %5282 = vmatprep.subr.mxu0 0.0
        %5283 = vmatpush2.msra.mxu0 0.0
        %5284 = vmatprep.subr.mxu0 0.0
        %5285 = vmatpush2.msra.mxu0 0.0
        %5286 = vmatprep.mubr.f32.mxu0 0.0
        %5287 = vmatmul.mubr.f32.gmra.mxu0 %v3384
        %v5288 = vpop.f32.mrf.mxu0
        %v5289 = vadd.f32 0.0, %v5288
        %v5290 = vpop.f32.mrf.mxu0
        %5291 = vmatprep.mubr.f32.mxu0 0.0
        %5292 = vmatmul.mubr.f32.gmra.mxu0 %v3387
        %v5293 = vpop.f32.mrf.mxu0
        %v5294 = vadd.f32 0.0, %v5293
        %v5295 = vpop.f32.mrf.mxu0
        %5296 = vmatprep.mubr.f32.mxu0 0.0
        %5297 = vmatmul.mubr.f32.gmra.mxu0 %v3390
        %v5298 = vpop.f32.mrf.mxu0
        %v5299 = vadd.f32 0.0, %v5298
        %v5300 = vpop.f32.mrf.mxu0
        %5301 = vmatprep.mubr.f32.mxu0 0.0
        %5302 = vmatmul.mubr.f32.gmra.mxu0 %v3393
        %v5303 = vpop.f32.mrf.mxu0
        %v5304 = vadd.f32 0.0, %v5303
        %v5305 = vpop.f32.mrf.mxu0
        %5306 = vmatprep.mubr.f32.mxu0 0.0
        %5307 = vmatmul.mubr.f32.gmra.mxu0 %v3396
        %v5308 = vpop.f32.mrf.mxu0
        %v5309 = vadd.f32 0.0, %v5308
        %v5310 = vpop.f32.mrf.mxu0
        %5311 = vmatprep.mubr.f32.mxu0 0.0
        %5312 = vmatmul.mubr.f32.gmra.mxu0 %v3399
        %v5313 = vpop.f32.mrf.mxu0
        %v5314 = vadd.f32 0.0, %v5313
        %v5315 = vpop.f32.mrf.mxu0
        %5316 = vmatprep.mubr.f32.mxu0 0.0
        %5317 = vmatmul.mubr.f32.gmra.mxu0 %v3402
        %v5318 = vpop.f32.mrf.mxu0
        %v5319 = vadd.f32 0.0, %v5318
        %v5320 = vpop.f32.mrf.mxu0
        %5321 = vmatprep.mubr.f32.mxu0 0.0
        %5322 = vmatmul.mubr.f32.gmra.mxu0 %v3405
        %v5323 = vpop.f32.mrf.mxu0
        %v5324 = vadd.f32 0.0, %v5323
        %v5325 = vpop.f32.mrf.mxu0
        %5326 = vmatprep.mubr.f32.mxu0 0.0
        %5327 = vmatmul.mubr.f32.gmra.mxu0 %v3408
        %v5328 = vpop.f32.mrf.mxu0
        %v5329 = vadd.f32 0.0, %v5328
        %v5330 = vpop.f32.mrf.mxu0
        %5331 = vmatprep.mubr.f32.mxu0 0.0
        %5332 = vmatmul.mubr.f32.gmra.mxu0 %v3411
        %v5333 = vpop.f32.mrf.mxu0
        %v5334 = vadd.f32 0.0, %v5333
        %v5335 = vpop.f32.mrf.mxu0
        %5336 = vmatprep.mubr.f32.mxu0 0.0
        %5337 = vmatmul.mubr.f32.gmra.mxu0 %v3414
        %v5338 = vpop.f32.mrf.mxu0
        %v5339 = vadd.f32 0.0, %v5338
        %v5340 = vpop.f32.mrf.mxu0
        %5341 = vmatprep.mubr.f32.mxu0 0.0
        %5342 = vmatmul.mubr.f32.gmra.mxu0 %v3417
        %v5343 = vpop.f32.mrf.mxu0
        %v5344 = vadd.f32 0.0, %v5343
        %v5345 = vpop.f32.mrf.mxu0
        %5346 = vmatprep.mubr.f32.mxu0 0.0
        %5347 = vmatmul.mubr.f32.gmra.mxu0 %v3420
        %v5348 = vpop.f32.mrf.mxu0
        %v5349 = vadd.f32 0.0, %v5348
        %v5350 = vpop.f32.mrf.mxu0
        %5351 = vmatprep.mubr.f32.mxu0 0.0
        %5352 = vmatmul.mubr.f32.gmra.mxu0 %v3423
        %v5353 = vpop.f32.mrf.mxu0
        %v5354 = vadd.f32 0.0, %v5353
        %v5355 = vpop.f32.mrf.mxu0
        %5356 = vmatprep.mubr.f32.mxu0 0.0
        %5357 = vmatmul.mubr.f32.gmra.mxu0 %v3426
        %v5358 = vpop.f32.mrf.mxu0
        %v5359 = vadd.f32 0.0, %v5358
        %v5360 = vpop.f32.mrf.mxu0
        %5361 = vmatprep.mubr.f32.mxu0 0.0
        %5362 = vmatmul.mubr.f32.gmra.mxu0 %v3429
        %v5363 = vpop.f32.mrf.mxu0
        %v5364 = vadd.f32 0.0, %v5363
        %v5365 = vpop.f32.mrf.mxu0
        %5366 = vdwg.mxu0
        %s5367 = scalar_lea.vmem %s306, 1024 [#allocation12]
        %5368 = vst [vmem:[%s5367] sm:$0xff] %v5289
        %5369 = vst [vmem:[%s5367 + $0x8] sm:$0xff] %v5294
        %5370 = vst [vmem:[%s5367 + $0x10] sm:$0xff] %v5299
        %5371 = vst [vmem:[%s5367 + $0x18] sm:$0xff] %v5304
        %5372 = vst [vmem:[%s5367 + $0x20] sm:$0xff] %v5309
        %5373 = vst [vmem:[%s5367 + $0x28] sm:$0xff] %v5314
        %5374 = vst [vmem:[%s5367 + $0x30] sm:$0xff] %v5319
        %5375 = vst [vmem:[%s5367 + $0x38] sm:$0xff] %v5324
        %5376 = vst [vmem:[%s5367 + $0x40] sm:$0xff] %v5329
        %5377 = vst [vmem:[%s5367 + $0x48] sm:$0xff] %v5334
        %5378 = vst [vmem:[%s5367 + $0x50] sm:$0xff] %v5339
        %5379 = vst [vmem:[%s5367 + $0x58] sm:$0xff] %v5344
        %5380 = vst [vmem:[%s5367 + $0x60] sm:$0xff] %v5349
        %5381 = vst [vmem:[%s5367 + $0x68] sm:$0xff] %v5354
        %5382 = vst [vmem:[%s5367 + $0x70] sm:$0xff] %v5359
        %5383 = vst [vmem:[%s5367 + $0x78] sm:$0xff] %v5364
        %v5384 = vld [vmem:[#allocation3 + $0x9] sm:$0x1]
        %v5385 = vld [vmem:[#allocation3 + $0x21] sm:$0x1]
        %v5386 = vld [vmem:[#allocation3 + $0x39] sm:$0x1]
        %v5387 = vld [vmem:[#allocation3 + $0x51] sm:$0x1]
        %v5388 = vld [vmem:[#allocation3 + $0x69] sm:$0x1]
        %v5389 = vld [vmem:[#allocation3 + $0x81] sm:$0x1]
        %v5390 = vld [vmem:[#allocation3 + $0x99] sm:$0x1]
        %v5391 = vld [vmem:[#allocation3 + $0xb1] sm:$0x1]
        %v5392 = vld [vmem:[#allocation3 + $0xc9] sm:$0x1]
        %v5393 = vld [vmem:[#allocation3 + $0xe1] sm:$0x1]
        %v5394 = vld [vmem:[#allocation3 + $0xf9] sm:$0x1]
        %v5395 = vld [vmem:[#allocation3 + $0x111] sm:$0x1]
        %v5396 = vld [vmem:[#allocation3 + $0x129] sm:$0x1]
        %v5397 = vld [vmem:[#allocation3 + $0x141] sm:$0x1]
        %v5398 = vld [vmem:[#allocation3 + $0x159] sm:$0x1]
        %v5399 = vld [vmem:[#allocation3 + $0x171] sm:$0x1]
        %v5416 = vrot.slane %v5385, 7
        %v5417 = vsel %vm3347, %v5416, %v5384
        %v5418 = vrot.slane %v5386, 6
        %v5419 = vsel %vm3350, %v5418, %v5417
        %v5420 = vrot.slane %v5387, 5
        %v5421 = vsel %vm3353, %v5420, %v5419
        %v5422 = vrot.slane %v5388, 4
        %v5423 = vsel %vm3356, %v5422, %v5421
        %v5424 = vrot.slane %v5389, 3
        %v5425 = vsel %vm3359, %v5424, %v5423
        %v5426 = vrot.slane %v5390, 2
        %v5427 = vsel %vm3362, %v5426, %v5425
        %v5428 = vrot.slane %v5391, 1
        %v5429 = vsel %vm3365, %v5428, %v5427
        %v5430 = vrot.slane %v5393, 7
        %v5431 = vsel %vm3347, %v5430, %v5392
        %v5432 = vrot.slane %v5394, 6
        %v5433 = vsel %vm3350, %v5432, %v5431
        %v5434 = vrot.slane %v5395, 5
        %v5435 = vsel %vm3353, %v5434, %v5433
        %v5436 = vrot.slane %v5396, 4
        %v5437 = vsel %vm3356, %v5436, %v5435
        %v5438 = vrot.slane %v5397, 3
        %v5439 = vsel %vm3359, %v5438, %v5437
        %v5440 = vrot.slane %v5398, 2
        %v5441 = vsel %vm3362, %v5440, %v5439
        %v5442 = vrot.slane %v5399, 1
        %v5443 = vsel %vm3365, %v5442, %v5441
        %5446 = vmatprep.subr.mxu0 0.0
        %5447 = vmatpush1.msra.mxu0 0.0
        %5448 = vmatprep.subr.mxu0 0.0
        %5449 = vmatpush1.msra.mxu0 0.0
        %5450 = vmatprep.subr.mxu0 0.0
        %5451 = vmatpush1.msra.mxu0 0.0
        %5452 = vmatprep.subr.mxu0 0.0
        %5453 = vmatpush1.msra.mxu0 0.0
        %5454 = vmatprep.subr.mxu0 0.0
        %5455 = vmatpush1.msra.mxu0 0.0
        %5456 = vmatprep.subr.mxu0 0.0
        %5457 = vmatpush1.msra.mxu0 0.0
        %5458 = vmatprep.subr.mxu0 0.0
        %5459 = vmatpush1.msra.mxu0 0.0
        %5460 = vmatprep.subr.mxu0 0.0
        %5461 = vmatpush1.msra.mxu0 0.0
        %5462 = vmatprep.subr.mxu0 0.0
        %5463 = vmatpush1.msra.mxu0 0.0
        %5464 = vmatprep.subr.mxu0 0.0
        %5465 = vmatpush1.msra.mxu0 0.0
        %5466 = vmatprep.subr.mxu0 0.0
        %5467 = vmatpush1.msra.mxu0 0.0
        %5468 = vmatprep.subr.mxu0 0.0
        %5469 = vmatpush1.msra.mxu0 0.0
        %5470 = vmatprep.subr.mxu0 0.0
        %5471 = vmatpush1.msra.mxu0 0.0
        %5472 = vmatprep.subr.mxu0 0.0
        %5473 = vmatpush1.msra.mxu0 0.0
        %5474 = vmatprep.subr.mxu0 0.0
        %5475 = vmatpush1.msra.mxu0 %v5443
        %5476 = vmatprep.subr.mxu0 0.0
        %5477 = vmatpush1.msra.mxu0 %v5429
        %5478 = vmatprep.subr.mxu0 0.0
        %5479 = vmatpush2.msra.mxu0 0.0
        %5480 = vmatprep.subr.mxu0 0.0
        %5481 = vmatpush2.msra.mxu0 0.0
        %5482 = vmatprep.subr.mxu0 0.0
        %5483 = vmatpush2.msra.mxu0 0.0
        %5484 = vmatprep.subr.mxu0 0.0
        %5485 = vmatpush2.msra.mxu0 0.0
        %5486 = vmatprep.subr.mxu0 0.0
        %5487 = vmatpush2.msra.mxu0 0.0
        %5488 = vmatprep.subr.mxu0 0.0
        %5489 = vmatpush2.msra.mxu0 0.0
        %5490 = vmatprep.subr.mxu0 0.0
        %5491 = vmatpush2.msra.mxu0 0.0
        %5492 = vmatprep.subr.mxu0 0.0
        %5493 = vmatpush2.msra.mxu0 0.0
        %5494 = vmatprep.subr.mxu0 0.0
        %5495 = vmatpush2.msra.mxu0 0.0
        %5496 = vmatprep.subr.mxu0 0.0
        %5497 = vmatpush2.msra.mxu0 0.0
        %5498 = vmatprep.subr.mxu0 0.0
        %5499 = vmatpush2.msra.mxu0 0.0
        %5500 = vmatprep.subr.mxu0 0.0
        %5501 = vmatpush2.msra.mxu0 0.0
        %5502 = vmatprep.subr.mxu0 0.0
        %5503 = vmatpush2.msra.mxu0 0.0
        %5504 = vmatprep.subr.mxu0 0.0
        %5505 = vmatpush2.msra.mxu0 0.0
        %5506 = vmatprep.subr.mxu0 0.0
        %5507 = vmatpush2.msra.mxu0 0.0
        %5508 = vmatprep.subr.mxu0 0.0
        %5509 = vmatpush2.msra.mxu0 0.0
        %5510 = vmatprep.mubr.f32.mxu0 0.0
        %5511 = vmatmul.mubr.f32.gmra.mxu0 %v3384
        %v5512 = vpop.f32.mrf.mxu0
        %v5513 = vadd.f32 0.0, %v5512
        %v5514 = vpop.f32.mrf.mxu0
        %5515 = vmatprep.mubr.f32.mxu0 0.0
        %5516 = vmatmul.mubr.f32.gmra.mxu0 %v3387
        %v5517 = vpop.f32.mrf.mxu0
        %v5518 = vadd.f32 0.0, %v5517
        %v5519 = vpop.f32.mrf.mxu0
        %5520 = vmatprep.mubr.f32.mxu0 0.0
        %5521 = vmatmul.mubr.f32.gmra.mxu0 %v3390
        %v5522 = vpop.f32.mrf.mxu0
        %v5523 = vadd.f32 0.0, %v5522
        %v5524 = vpop.f32.mrf.mxu0
        %5525 = vmatprep.mubr.f32.mxu0 0.0
        %5526 = vmatmul.mubr.f32.gmra.mxu0 %v3393
        %v5527 = vpop.f32.mrf.mxu0
        %v5528 = vadd.f32 0.0, %v5527
        %v5529 = vpop.f32.mrf.mxu0
        %5530 = vmatprep.mubr.f32.mxu0 0.0
        %5531 = vmatmul.mubr.f32.gmra.mxu0 %v3396
        %v5532 = vpop.f32.mrf.mxu0
        %v5533 = vadd.f32 0.0, %v5532
        %v5534 = vpop.f32.mrf.mxu0
        %5535 = vmatprep.mubr.f32.mxu0 0.0
        %5536 = vmatmul.mubr.f32.gmra.mxu0 %v3399
        %v5537 = vpop.f32.mrf.mxu0
        %v5538 = vadd.f32 0.0, %v5537
        %v5539 = vpop.f32.mrf.mxu0
        %5540 = vmatprep.mubr.f32.mxu0 0.0
        %5541 = vmatmul.mubr.f32.gmra.mxu0 %v3402
        %v5542 = vpop.f32.mrf.mxu0
        %v5543 = vadd.f32 0.0, %v5542
        %v5544 = vpop.f32.mrf.mxu0
        %5545 = vmatprep.mubr.f32.mxu0 0.0
        %5546 = vmatmul.mubr.f32.gmra.mxu0 %v3405
        %v5547 = vpop.f32.mrf.mxu0
        %v5548 = vadd.f32 0.0, %v5547
        %v5549 = vpop.f32.mrf.mxu0
        %5550 = vmatprep.mubr.f32.mxu0 0.0
        %5551 = vmatmul.mubr.f32.gmra.mxu0 %v3408
        %v5552 = vpop.f32.mrf.mxu0
        %v5553 = vadd.f32 0.0, %v5552
        %v5554 = vpop.f32.mrf.mxu0
        %5555 = vmatprep.mubr.f32.mxu0 0.0
        %5556 = vmatmul.mubr.f32.gmra.mxu0 %v3411
        %v5557 = vpop.f32.mrf.mxu0
        %v5558 = vadd.f32 0.0, %v5557
        %v5559 = vpop.f32.mrf.mxu0
        %5560 = vmatprep.mubr.f32.mxu0 0.0
        %5561 = vmatmul.mubr.f32.gmra.mxu0 %v3414
        %v5562 = vpop.f32.mrf.mxu0
        %v5563 = vadd.f32 0.0, %v5562
        %v5564 = vpop.f32.mrf.mxu0
        %5565 = vmatprep.mubr.f32.mxu0 0.0
        %5566 = vmatmul.mubr.f32.gmra.mxu0 %v3417
        %v5567 = vpop.f32.mrf.mxu0
        %v5568 = vadd.f32 0.0, %v5567
        %v5569 = vpop.f32.mrf.mxu0
        %5570 = vmatprep.mubr.f32.mxu0 0.0
        %5571 = vmatmul.mubr.f32.gmra.mxu0 %v3420
        %v5572 = vpop.f32.mrf.mxu0
        %v5573 = vadd.f32 0.0, %v5572
        %v5574 = vpop.f32.mrf.mxu0
        %5575 = vmatprep.mubr.f32.mxu0 0.0
        %5576 = vmatmul.mubr.f32.gmra.mxu0 %v3423
        %v5577 = vpop.f32.mrf.mxu0
        %v5578 = vadd.f32 0.0, %v5577
        %v5579 = vpop.f32.mrf.mxu0
        %5580 = vmatprep.mubr.f32.mxu0 0.0
        %5581 = vmatmul.mubr.f32.gmra.mxu0 %v3426
        %v5582 = vpop.f32.mrf.mxu0
        %v5583 = vadd.f32 0.0, %v5582
        %v5584 = vpop.f32.mrf.mxu0
        %5585 = vmatprep.mubr.f32.mxu0 0.0
        %5586 = vmatmul.mubr.f32.gmra.mxu0 %v3429
        %v5587 = vpop.f32.mrf.mxu0
        %v5588 = vadd.f32 0.0, %v5587
        %v5589 = vpop.f32.mrf.mxu0
        %5590 = vdwg.mxu0
        %s5591 = scalar_lea.vmem %s306, 1152 [#allocation12]
        %5592 = vst [vmem:[%s5591] sm:$0xff] %v5513
        %5593 = vst [vmem:[%s5591 + $0x8] sm:$0xff] %v5518
        %5594 = vst [vmem:[%s5591 + $0x10] sm:$0xff] %v5523
        %5595 = vst [vmem:[%s5591 + $0x18] sm:$0xff] %v5528
        %5596 = vst [vmem:[%s5591 + $0x20] sm:$0xff] %v5533
        %5597 = vst [vmem:[%s5591 + $0x28] sm:$0xff] %v5538
        %5598 = vst [vmem:[%s5591 + $0x30] sm:$0xff] %v5543
        %5599 = vst [vmem:[%s5591 + $0x38] sm:$0xff] %v5548
        %5600 = vst [vmem:[%s5591 + $0x40] sm:$0xff] %v5553
        %5601 = vst [vmem:[%s5591 + $0x48] sm:$0xff] %v5558
        %5602 = vst [vmem:[%s5591 + $0x50] sm:$0xff] %v5563
        %5603 = vst [vmem:[%s5591 + $0x58] sm:$0xff] %v5568
        %5604 = vst [vmem:[%s5591 + $0x60] sm:$0xff] %v5573
        %5605 = vst [vmem:[%s5591 + $0x68] sm:$0xff] %v5578
        %5606 = vst [vmem:[%s5591 + $0x70] sm:$0xff] %v5583
        %5607 = vst [vmem:[%s5591 + $0x78] sm:$0xff] %v5588
        %v5608 = vld [vmem:[#allocation3 + $0xa] sm:$0x1]
        %v5609 = vld [vmem:[#allocation3 + $0x22] sm:$0x1]
        %v5610 = vld [vmem:[#allocation3 + $0x3a] sm:$0x1]
        %v5611 = vld [vmem:[#allocation3 + $0x52] sm:$0x1]
        %v5612 = vld [vmem:[#allocation3 + $0x6a] sm:$0x1]
        %v5613 = vld [vmem:[#allocation3 + $0x82] sm:$0x1]
        %v5614 = vld [vmem:[#allocation3 + $0x9a] sm:$0x1]
        %v5615 = vld [vmem:[#allocation3 + $0xb2] sm:$0x1]
        %v5616 = vld [vmem:[#allocation3 + $0xca] sm:$0x1]
        %v5617 = vld [vmem:[#allocation3 + $0xe2] sm:$0x1]
        %v5618 = vld [vmem:[#allocation3 + $0xfa] sm:$0x1]
        %v5619 = vld [vmem:[#allocation3 + $0x112] sm:$0x1]
        %v5620 = vld [vmem:[#allocation3 + $0x12a] sm:$0x1]
        %v5621 = vld [vmem:[#allocation3 + $0x142] sm:$0x1]
        %v5622 = vld [vmem:[#allocation3 + $0x15a] sm:$0x1]
        %v5623 = vld [vmem:[#allocation3 + $0x172] sm:$0x1]
        %v5640 = vrot.slane %v5609, 7
        %v5641 = vsel %vm3347, %v5640, %v5608
        %v5642 = vrot.slane %v5610, 6
        %v5643 = vsel %vm3350, %v5642, %v5641
        %v5644 = vrot.slane %v5611, 5
        %v5645 = vsel %vm3353, %v5644, %v5643
        %v5646 = vrot.slane %v5612, 4
        %v5647 = vsel %vm3356, %v5646, %v5645
        %v5648 = vrot.slane %v5613, 3
        %v5649 = vsel %vm3359, %v5648, %v5647
        %v5650 = vrot.slane %v5614, 2
        %v5651 = vsel %vm3362, %v5650, %v5649
        %v5652 = vrot.slane %v5615, 1
        %v5653 = vsel %vm3365, %v5652, %v5651
        %v5654 = vrot.slane %v5617, 7
        %v5655 = vsel %vm3347, %v5654, %v5616
        %v5656 = vrot.slane %v5618, 6
        %v5657 = vsel %vm3350, %v5656, %v5655
        %v5658 = vrot.slane %v5619, 5
        %v5659 = vsel %vm3353, %v5658, %v5657
        %v5660 = vrot.slane %v5620, 4
        %v5661 = vsel %vm3356, %v5660, %v5659
        %v5662 = vrot.slane %v5621, 3
        %v5663 = vsel %vm3359, %v5662, %v5661
        %v5664 = vrot.slane %v5622, 2
        %v5665 = vsel %vm3362, %v5664, %v5663
        %v5666 = vrot.slane %v5623, 1
        %v5667 = vsel %vm3365, %v5666, %v5665
        %5670 = vmatprep.subr.mxu0 0.0
        %5671 = vmatpush1.msra.mxu0 0.0
        %5672 = vmatprep.subr.mxu0 0.0
        %5673 = vmatpush1.msra.mxu0 0.0
        %5674 = vmatprep.subr.mxu0 0.0
        %5675 = vmatpush1.msra.mxu0 0.0
        %5676 = vmatprep.subr.mxu0 0.0
        %5677 = vmatpush1.msra.mxu0 0.0
        %5678 = vmatprep.subr.mxu0 0.0
        %5679 = vmatpush1.msra.mxu0 0.0
        %5680 = vmatprep.subr.mxu0 0.0
        %5681 = vmatpush1.msra.mxu0 0.0
        %5682 = vmatprep.subr.mxu0 0.0
        %5683 = vmatpush1.msra.mxu0 0.0
        %5684 = vmatprep.subr.mxu0 0.0
        %5685 = vmatpush1.msra.mxu0 0.0
        %5686 = vmatprep.subr.mxu0 0.0
        %5687 = vmatpush1.msra.mxu0 0.0
        %5688 = vmatprep.subr.mxu0 0.0
        %5689 = vmatpush1.msra.mxu0 0.0
        %5690 = vmatprep.subr.mxu0 0.0
        %5691 = vmatpush1.msra.mxu0 0.0
        %5692 = vmatprep.subr.mxu0 0.0
        %5693 = vmatpush1.msra.mxu0 0.0
        %5694 = vmatprep.subr.mxu0 0.0
        %5695 = vmatpush1.msra.mxu0 0.0
        %5696 = vmatprep.subr.mxu0 0.0
        %5697 = vmatpush1.msra.mxu0 0.0
        %5698 = vmatprep.subr.mxu0 0.0
        %5699 = vmatpush1.msra.mxu0 %v5667
        %5700 = vmatprep.subr.mxu0 0.0
        %5701 = vmatpush1.msra.mxu0 %v5653
        %5702 = vmatprep.subr.mxu0 0.0
        %5703 = vmatpush2.msra.mxu0 0.0
        %5704 = vmatprep.subr.mxu0 0.0
        %5705 = vmatpush2.msra.mxu0 0.0
        %5706 = vmatprep.subr.mxu0 0.0
        %5707 = vmatpush2.msra.mxu0 0.0
        %5708 = vmatprep.subr.mxu0 0.0
        %5709 = vmatpush2.msra.mxu0 0.0
        %5710 = vmatprep.subr.mxu0 0.0
        %5711 = vmatpush2.msra.mxu0 0.0
        %5712 = vmatprep.subr.mxu0 0.0
        %5713 = vmatpush2.msra.mxu0 0.0
        %5714 = vmatprep.subr.mxu0 0.0
        %5715 = vmatpush2.msra.mxu0 0.0
        %5716 = vmatprep.subr.mxu0 0.0
        %5717 = vmatpush2.msra.mxu0 0.0
        %5718 = vmatprep.subr.mxu0 0.0
        %5719 = vmatpush2.msra.mxu0 0.0
        %5720 = vmatprep.subr.mxu0 0.0
        %5721 = vmatpush2.msra.mxu0 0.0
        %5722 = vmatprep.subr.mxu0 0.0
        %5723 = vmatpush2.msra.mxu0 0.0
        %5724 = vmatprep.subr.mxu0 0.0
        %5725 = vmatpush2.msra.mxu0 0.0
        %5726 = vmatprep.subr.mxu0 0.0
        %5727 = vmatpush2.msra.mxu0 0.0
        %5728 = vmatprep.subr.mxu0 0.0
        %5729 = vmatpush2.msra.mxu0 0.0
        %5730 = vmatprep.subr.mxu0 0.0
        %5731 = vmatpush2.msra.mxu0 0.0
        %5732 = vmatprep.subr.mxu0 0.0
        %5733 = vmatpush2.msra.mxu0 0.0
        %5734 = vmatprep.mubr.f32.mxu0 0.0
        %5735 = vmatmul.mubr.f32.gmra.mxu0 %v3384
        %v5736 = vpop.f32.mrf.mxu0
        %v5737 = vadd.f32 0.0, %v5736
        %v5738 = vpop.f32.mrf.mxu0
        %5739 = vmatprep.mubr.f32.mxu0 0.0
        %5740 = vmatmul.mubr.f32.gmra.mxu0 %v3387
        %v5741 = vpop.f32.mrf.mxu0
        %v5742 = vadd.f32 0.0, %v5741
        %v5743 = vpop.f32.mrf.mxu0
        %5744 = vmatprep.mubr.f32.mxu0 0.0
        %5745 = vmatmul.mubr.f32.gmra.mxu0 %v3390
        %v5746 = vpop.f32.mrf.mxu0
        %v5747 = vadd.f32 0.0, %v5746
        %v5748 = vpop.f32.mrf.mxu0
        %5749 = vmatprep.mubr.f32.mxu0 0.0
        %5750 = vmatmul.mubr.f32.gmra.mxu0 %v3393
        %v5751 = vpop.f32.mrf.mxu0
        %v5752 = vadd.f32 0.0, %v5751
        %v5753 = vpop.f32.mrf.mxu0
        %5754 = vmatprep.mubr.f32.mxu0 0.0
        %5755 = vmatmul.mubr.f32.gmra.mxu0 %v3396
        %v5756 = vpop.f32.mrf.mxu0
        %v5757 = vadd.f32 0.0, %v5756
        %v5758 = vpop.f32.mrf.mxu0
        %5759 = vmatprep.mubr.f32.mxu0 0.0
        %5760 = vmatmul.mubr.f32.gmra.mxu0 %v3399
        %v5761 = vpop.f32.mrf.mxu0
        %v5762 = vadd.f32 0.0, %v5761
        %v5763 = vpop.f32.mrf.mxu0
        %5764 = vmatprep.mubr.f32.mxu0 0.0
        %5765 = vmatmul.mubr.f32.gmra.mxu0 %v3402
        %v5766 = vpop.f32.mrf.mxu0
        %v5767 = vadd.f32 0.0, %v5766
        %v5768 = vpop.f32.mrf.mxu0
        %5769 = vmatprep.mubr.f32.mxu0 0.0
        %5770 = vmatmul.mubr.f32.gmra.mxu0 %v3405
        %v5771 = vpop.f32.mrf.mxu0
        %v5772 = vadd.f32 0.0, %v5771
        %v5773 = vpop.f32.mrf.mxu0
        %5774 = vmatprep.mubr.f32.mxu0 0.0
        %5775 = vmatmul.mubr.f32.gmra.mxu0 %v3408
        %v5776 = vpop.f32.mrf.mxu0
        %v5777 = vadd.f32 0.0, %v5776
        %v5778 = vpop.f32.mrf.mxu0
        %5779 = vmatprep.mubr.f32.mxu0 0.0
        %5780 = vmatmul.mubr.f32.gmra.mxu0 %v3411
        %v5781 = vpop.f32.mrf.mxu0
        %v5782 = vadd.f32 0.0, %v5781
        %v5783 = vpop.f32.mrf.mxu0
        %5784 = vmatprep.mubr.f32.mxu0 0.0
        %5785 = vmatmul.mubr.f32.gmra.mxu0 %v3414
        %v5786 = vpop.f32.mrf.mxu0
        %v5787 = vadd.f32 0.0, %v5786
        %v5788 = vpop.f32.mrf.mxu0
        %5789 = vmatprep.mubr.f32.mxu0 0.0
        %5790 = vmatmul.mubr.f32.gmra.mxu0 %v3417
        %v5791 = vpop.f32.mrf.mxu0
        %v5792 = vadd.f32 0.0, %v5791
        %v5793 = vpop.f32.mrf.mxu0
        %5794 = vmatprep.mubr.f32.mxu0 0.0
        %5795 = vmatmul.mubr.f32.gmra.mxu0 %v3420
        %v5796 = vpop.f32.mrf.mxu0
        %v5797 = vadd.f32 0.0, %v5796
        %v5798 = vpop.f32.mrf.mxu0
        %5799 = vmatprep.mubr.f32.mxu0 0.0
        %5800 = vmatmul.mubr.f32.gmra.mxu0 %v3423
        %v5801 = vpop.f32.mrf.mxu0
        %v5802 = vadd.f32 0.0, %v5801
        %v5803 = vpop.f32.mrf.mxu0
        %5804 = vmatprep.mubr.f32.mxu0 0.0
        %5805 = vmatmul.mubr.f32.gmra.mxu0 %v3426
        %v5806 = vpop.f32.mrf.mxu0
        %v5807 = vadd.f32 0.0, %v5806
        %v5808 = vpop.f32.mrf.mxu0
        %5809 = vmatprep.mubr.f32.mxu0 0.0
        %5810 = vmatmul.mubr.f32.gmra.mxu0 %v3429
        %v5811 = vpop.f32.mrf.mxu0
        %v5812 = vadd.f32 0.0, %v5811
        %v5813 = vpop.f32.mrf.mxu0
        %5814 = vdwg.mxu0
        %s5815 = scalar_lea.vmem %s306, 1280 [#allocation12]
        %5816 = vst [vmem:[%s5815] sm:$0xff] %v5737
        %5817 = vst [vmem:[%s5815 + $0x8] sm:$0xff] %v5742
        %5818 = vst [vmem:[%s5815 + $0x10] sm:$0xff] %v5747
        %5819 = vst [vmem:[%s5815 + $0x18] sm:$0xff] %v5752
        %5820 = vst [vmem:[%s5815 + $0x20] sm:$0xff] %v5757
        %5821 = vst [vmem:[%s5815 + $0x28] sm:$0xff] %v5762
        %5822 = vst [vmem:[%s5815 + $0x30] sm:$0xff] %v5767
        %5823 = vst [vmem:[%s5815 + $0x38] sm:$0xff] %v5772
        %5824 = vst [vmem:[%s5815 + $0x40] sm:$0xff] %v5777
        %5825 = vst [vmem:[%s5815 + $0x48] sm:$0xff] %v5782
        %5826 = vst [vmem:[%s5815 + $0x50] sm:$0xff] %v5787
        %5827 = vst [vmem:[%s5815 + $0x58] sm:$0xff] %v5792
        %5828 = vst [vmem:[%s5815 + $0x60] sm:$0xff] %v5797
        %5829 = vst [vmem:[%s5815 + $0x68] sm:$0xff] %v5802
        %5830 = vst [vmem:[%s5815 + $0x70] sm:$0xff] %v5807
        %5831 = vst [vmem:[%s5815 + $0x78] sm:$0xff] %v5812
        %v5832 = vld [vmem:[#allocation3 + $0xb] sm:$0x1]
        %v5833 = vld [vmem:[#allocation3 + $0x23] sm:$0x1]
        %v5834 = vld [vmem:[#allocation3 + $0x3b] sm:$0x1]
        %v5835 = vld [vmem:[#allocation3 + $0x53] sm:$0x1]
        %v5836 = vld [vmem:[#allocation3 + $0x6b] sm:$0x1]
        %v5837 = vld [vmem:[#allocation3 + $0x83] sm:$0x1]
        %v5838 = vld [vmem:[#allocation3 + $0x9b] sm:$0x1]
        %v5839 = vld [vmem:[#allocation3 + $0xb3] sm:$0x1]
        %v5840 = vld [vmem:[#allocation3 + $0xcb] sm:$0x1]
        %v5841 = vld [vmem:[#allocation3 + $0xe3] sm:$0x1]
        %v5842 = vld [vmem:[#allocation3 + $0xfb] sm:$0x1]
        %v5843 = vld [vmem:[#allocation3 + $0x113] sm:$0x1]
        %v5844 = vld [vmem:[#allocation3 + $0x12b] sm:$0x1]
        %v5845 = vld [vmem:[#allocation3 + $0x143] sm:$0x1]
        %v5846 = vld [vmem:[#allocation3 + $0x15b] sm:$0x1]
        %v5847 = vld [vmem:[#allocation3 + $0x173] sm:$0x1]
        %v5864 = vrot.slane %v5833, 7
        %v5865 = vsel %vm3347, %v5864, %v5832
        %v5866 = vrot.slane %v5834, 6
        %v5867 = vsel %vm3350, %v5866, %v5865
        %v5868 = vrot.slane %v5835, 5
        %v5869 = vsel %vm3353, %v5868, %v5867
        %v5870 = vrot.slane %v5836, 4
        %v5871 = vsel %vm3356, %v5870, %v5869
        %v5872 = vrot.slane %v5837, 3
        %v5873 = vsel %vm3359, %v5872, %v5871
        %v5874 = vrot.slane %v5838, 2
        %v5875 = vsel %vm3362, %v5874, %v5873
        %v5876 = vrot.slane %v5839, 1
        %v5877 = vsel %vm3365, %v5876, %v5875
        %v5878 = vrot.slane %v5841, 7
        %v5879 = vsel %vm3347, %v5878, %v5840
        %v5880 = vrot.slane %v5842, 6
        %v5881 = vsel %vm3350, %v5880, %v5879
        %v5882 = vrot.slane %v5843, 5
        %v5883 = vsel %vm3353, %v5882, %v5881
        %v5884 = vrot.slane %v5844, 4
        %v5885 = vsel %vm3356, %v5884, %v5883
        %v5886 = vrot.slane %v5845, 3
        %v5887 = vsel %vm3359, %v5886, %v5885
        %v5888 = vrot.slane %v5846, 2
        %v5889 = vsel %vm3362, %v5888, %v5887
        %v5890 = vrot.slane %v5847, 1
        %v5891 = vsel %vm3365, %v5890, %v5889
        %5894 = vmatprep.subr.mxu0 0.0
        %5895 = vmatpush1.msra.mxu0 0.0
        %5896 = vmatprep.subr.mxu0 0.0
        %5897 = vmatpush1.msra.mxu0 0.0
        %5898 = vmatprep.subr.mxu0 0.0
        %5899 = vmatpush1.msra.mxu0 0.0
        %5900 = vmatprep.subr.mxu0 0.0
        %5901 = vmatpush1.msra.mxu0 0.0
        %5902 = vmatprep.subr.mxu0 0.0
        %5903 = vmatpush1.msra.mxu0 0.0
        %5904 = vmatprep.subr.mxu0 0.0
        %5905 = vmatpush1.msra.mxu0 0.0
        %5906 = vmatprep.subr.mxu0 0.0
        %5907 = vmatpush1.msra.mxu0 0.0
        %5908 = vmatprep.subr.mxu0 0.0
        %5909 = vmatpush1.msra.mxu0 0.0
        %5910 = vmatprep.subr.mxu0 0.0
        %5911 = vmatpush1.msra.mxu0 0.0
        %5912 = vmatprep.subr.mxu0 0.0
        %5913 = vmatpush1.msra.mxu0 0.0
        %5914 = vmatprep.subr.mxu0 0.0
        %5915 = vmatpush1.msra.mxu0 0.0
        %5916 = vmatprep.subr.mxu0 0.0
        %5917 = vmatpush1.msra.mxu0 0.0
        %5918 = vmatprep.subr.mxu0 0.0
        %5919 = vmatpush1.msra.mxu0 0.0
        %5920 = vmatprep.subr.mxu0 0.0
        %5921 = vmatpush1.msra.mxu0 0.0
        %5922 = vmatprep.subr.mxu0 0.0
        %5923 = vmatpush1.msra.mxu0 %v5891
        %5924 = vmatprep.subr.mxu0 0.0
        %5925 = vmatpush1.msra.mxu0 %v5877
        %5926 = vmatprep.subr.mxu0 0.0
        %5927 = vmatpush2.msra.mxu0 0.0
        %5928 = vmatprep.subr.mxu0 0.0
        %5929 = vmatpush2.msra.mxu0 0.0
        %5930 = vmatprep.subr.mxu0 0.0
        %5931 = vmatpush2.msra.mxu0 0.0
        %5932 = vmatprep.subr.mxu0 0.0
        %5933 = vmatpush2.msra.mxu0 0.0
        %5934 = vmatprep.subr.mxu0 0.0
        %5935 = vmatpush2.msra.mxu0 0.0
        %5936 = vmatprep.subr.mxu0 0.0
        %5937 = vmatpush2.msra.mxu0 0.0
        %5938 = vmatprep.subr.mxu0 0.0
        %5939 = vmatpush2.msra.mxu0 0.0
        %5940 = vmatprep.subr.mxu0 0.0
        %5941 = vmatpush2.msra.mxu0 0.0
        %5942 = vmatprep.subr.mxu0 0.0
        %5943 = vmatpush2.msra.mxu0 0.0
        %5944 = vmatprep.subr.mxu0 0.0
        %5945 = vmatpush2.msra.mxu0 0.0
        %5946 = vmatprep.subr.mxu0 0.0
        %5947 = vmatpush2.msra.mxu0 0.0
        %5948 = vmatprep.subr.mxu0 0.0
        %5949 = vmatpush2.msra.mxu0 0.0
        %5950 = vmatprep.subr.mxu0 0.0
        %5951 = vmatpush2.msra.mxu0 0.0
        %5952 = vmatprep.subr.mxu0 0.0
        %5953 = vmatpush2.msra.mxu0 0.0
        %5954 = vmatprep.subr.mxu0 0.0
        %5955 = vmatpush2.msra.mxu0 0.0
        %5956 = vmatprep.subr.mxu0 0.0
        %5957 = vmatpush2.msra.mxu0 0.0
        %5958 = vmatprep.mubr.f32.mxu0 0.0
        %5959 = vmatmul.mubr.f32.gmra.mxu0 %v3384
        %v5960 = vpop.f32.mrf.mxu0
        %v5961 = vadd.f32 0.0, %v5960
        %v5962 = vpop.f32.mrf.mxu0
        %5963 = vmatprep.mubr.f32.mxu0 0.0
        %5964 = vmatmul.mubr.f32.gmra.mxu0 %v3387
        %v5965 = vpop.f32.mrf.mxu0
        %v5966 = vadd.f32 0.0, %v5965
        %v5967 = vpop.f32.mrf.mxu0
        %5968 = vmatprep.mubr.f32.mxu0 0.0
        %5969 = vmatmul.mubr.f32.gmra.mxu0 %v3390
        %v5970 = vpop.f32.mrf.mxu0
        %v5971 = vadd.f32 0.0, %v5970
        %v5972 = vpop.f32.mrf.mxu0
        %5973 = vmatprep.mubr.f32.mxu0 0.0
        %5974 = vmatmul.mubr.f32.gmra.mxu0 %v3393
        %v5975 = vpop.f32.mrf.mxu0
        %v5976 = vadd.f32 0.0, %v5975
        %v5977 = vpop.f32.mrf.mxu0
        %5978 = vmatprep.mubr.f32.mxu0 0.0
        %5979 = vmatmul.mubr.f32.gmra.mxu0 %v3396
        %v5980 = vpop.f32.mrf.mxu0
        %v5981 = vadd.f32 0.0, %v5980
        %v5982 = vpop.f32.mrf.mxu0
        %5983 = vmatprep.mubr.f32.mxu0 0.0
        %5984 = vmatmul.mubr.f32.gmra.mxu0 %v3399
        %v5985 = vpop.f32.mrf.mxu0
        %v5986 = vadd.f32 0.0, %v5985
        %v5987 = vpop.f32.mrf.mxu0
        %5988 = vmatprep.mubr.f32.mxu0 0.0
        %5989 = vmatmul.mubr.f32.gmra.mxu0 %v3402
        %v5990 = vpop.f32.mrf.mxu0
        %v5991 = vadd.f32 0.0, %v5990
        %v5992 = vpop.f32.mrf.mxu0
        %5993 = vmatprep.mubr.f32.mxu0 0.0
        %5994 = vmatmul.mubr.f32.gmra.mxu0 %v3405
        %v5995 = vpop.f32.mrf.mxu0
        %v5996 = vadd.f32 0.0, %v5995
        %v5997 = vpop.f32.mrf.mxu0
        %5998 = vmatprep.mubr.f32.mxu0 0.0
        %5999 = vmatmul.mubr.f32.gmra.mxu0 %v3408
        %v6000 = vpop.f32.mrf.mxu0
        %v6001 = vadd.f32 0.0, %v6000
        %v6002 = vpop.f32.mrf.mxu0
        %6003 = vmatprep.mubr.f32.mxu0 0.0
        %6004 = vmatmul.mubr.f32.gmra.mxu0 %v3411
        %v6005 = vpop.f32.mrf.mxu0
        %v6006 = vadd.f32 0.0, %v6005
        %v6007 = vpop.f32.mrf.mxu0
        %6008 = vmatprep.mubr.f32.mxu0 0.0
        %6009 = vmatmul.mubr.f32.gmra.mxu0 %v3414
        %v6010 = vpop.f32.mrf.mxu0
        %v6011 = vadd.f32 0.0, %v6010
        %v6012 = vpop.f32.mrf.mxu0
        %6013 = vmatprep.mubr.f32.mxu0 0.0
        %6014 = vmatmul.mubr.f32.gmra.mxu0 %v3417
        %v6015 = vpop.f32.mrf.mxu0
        %v6016 = vadd.f32 0.0, %v6015
        %v6017 = vpop.f32.mrf.mxu0
        %6018 = vmatprep.mubr.f32.mxu0 0.0
        %6019 = vmatmul.mubr.f32.gmra.mxu0 %v3420
        %v6020 = vpop.f32.mrf.mxu0
        %v6021 = vadd.f32 0.0, %v6020
        %v6022 = vpop.f32.mrf.mxu0
        %6023 = vmatprep.mubr.f32.mxu0 0.0
        %6024 = vmatmul.mubr.f32.gmra.mxu0 %v3423
        %v6025 = vpop.f32.mrf.mxu0
        %v6026 = vadd.f32 0.0, %v6025
        %v6027 = vpop.f32.mrf.mxu0
        %6028 = vmatprep.mubr.f32.mxu0 0.0
        %6029 = vmatmul.mubr.f32.gmra.mxu0 %v3426
        %v6030 = vpop.f32.mrf.mxu0
        %v6031 = vadd.f32 0.0, %v6030
        %v6032 = vpop.f32.mrf.mxu0
        %6033 = vmatprep.mubr.f32.mxu0 0.0
        %6034 = vmatmul.mubr.f32.gmra.mxu0 %v3429
        %v6035 = vpop.f32.mrf.mxu0
        %v6036 = vadd.f32 0.0, %v6035
        %v6037 = vpop.f32.mrf.mxu0
        %6038 = vdwg.mxu0
        %s6039 = scalar_lea.vmem %s306, 1408 [#allocation12]
        %6040 = vst [vmem:[%s6039] sm:$0xff] %v5961
        %6041 = vst [vmem:[%s6039 + $0x8] sm:$0xff] %v5966
        %6042 = vst [vmem:[%s6039 + $0x10] sm:$0xff] %v5971
        %6043 = vst [vmem:[%s6039 + $0x18] sm:$0xff] %v5976
        %6044 = vst [vmem:[%s6039 + $0x20] sm:$0xff] %v5981
        %6045 = vst [vmem:[%s6039 + $0x28] sm:$0xff] %v5986
        %6046 = vst [vmem:[%s6039 + $0x30] sm:$0xff] %v5991
        %6047 = vst [vmem:[%s6039 + $0x38] sm:$0xff] %v5996
        %6048 = vst [vmem:[%s6039 + $0x40] sm:$0xff] %v6001
        %6049 = vst [vmem:[%s6039 + $0x48] sm:$0xff] %v6006
        %6050 = vst [vmem:[%s6039 + $0x50] sm:$0xff] %v6011
        %6051 = vst [vmem:[%s6039 + $0x58] sm:$0xff] %v6016
        %6052 = vst [vmem:[%s6039 + $0x60] sm:$0xff] %v6021
        %6053 = vst [vmem:[%s6039 + $0x68] sm:$0xff] %v6026
        %6054 = vst [vmem:[%s6039 + $0x70] sm:$0xff] %v6031
        %6055 = vst [vmem:[%s6039 + $0x78] sm:$0xff] %v6036
        %v6056 = vld [vmem:[#allocation3 + $0xc] sm:$0x1]
        %v6057 = vld [vmem:[#allocation3 + $0x24] sm:$0x1]
        %v6058 = vld [vmem:[#allocation3 + $0x3c] sm:$0x1]
        %v6059 = vld [vmem:[#allocation3 + $0x54] sm:$0x1]
        %v6060 = vld [vmem:[#allocation3 + $0x6c] sm:$0x1]
        %v6061 = vld [vmem:[#allocation3 + $0x84] sm:$0x1]
        %v6062 = vld [vmem:[#allocation3 + $0x9c] sm:$0x1]
        %v6063 = vld [vmem:[#allocation3 + $0xb4] sm:$0x1]
        %v6064 = vld [vmem:[#allocation3 + $0xcc] sm:$0x1]
        %v6065 = vld [vmem:[#allocation3 + $0xe4] sm:$0x1]
        %v6066 = vld [vmem:[#allocation3 + $0xfc] sm:$0x1]
        %v6067 = vld [vmem:[#allocation3 + $0x114] sm:$0x1]
        %v6068 = vld [vmem:[#allocation3 + $0x12c] sm:$0x1]
        %v6069 = vld [vmem:[#allocation3 + $0x144] sm:$0x1]
        %v6070 = vld [vmem:[#allocation3 + $0x15c] sm:$0x1]
        %v6071 = vld [vmem:[#allocation3 + $0x174] sm:$0x1]
        %v6088 = vrot.slane %v6057, 7
        %v6089 = vsel %vm3347, %v6088, %v6056
        %v6090 = vrot.slane %v6058, 6
        %v6091 = vsel %vm3350, %v6090, %v6089
        %v6092 = vrot.slane %v6059, 5
        %v6093 = vsel %vm3353, %v6092, %v6091
        %v6094 = vrot.slane %v6060, 4
        %v6095 = vsel %vm3356, %v6094, %v6093
        %v6096 = vrot.slane %v6061, 3
        %v6097 = vsel %vm3359, %v6096, %v6095
        %v6098 = vrot.slane %v6062, 2
        %v6099 = vsel %vm3362, %v6098, %v6097
        %v6100 = vrot.slane %v6063, 1
        %v6101 = vsel %vm3365, %v6100, %v6099
        %v6102 = vrot.slane %v6065, 7
        %v6103 = vsel %vm3347, %v6102, %v6064
        %v6104 = vrot.slane %v6066, 6
        %v6105 = vsel %vm3350, %v6104, %v6103
        %v6106 = vrot.slane %v6067, 5
        %v6107 = vsel %vm3353, %v6106, %v6105
        %v6108 = vrot.slane %v6068, 4
        %v6109 = vsel %vm3356, %v6108, %v6107
        %v6110 = vrot.slane %v6069, 3
        %v6111 = vsel %vm3359, %v6110, %v6109
        %v6112 = vrot.slane %v6070, 2
        %v6113 = vsel %vm3362, %v6112, %v6111
        %v6114 = vrot.slane %v6071, 1
        %v6115 = vsel %vm3365, %v6114, %v6113
        %6118 = vmatprep.subr.mxu0 0.0
        %6119 = vmatpush1.msra.mxu0 0.0
        %6120 = vmatprep.subr.mxu0 0.0
        %6121 = vmatpush1.msra.mxu0 0.0
        %6122 = vmatprep.subr.mxu0 0.0
        %6123 = vmatpush1.msra.mxu0 0.0
        %6124 = vmatprep.subr.mxu0 0.0
        %6125 = vmatpush1.msra.mxu0 0.0
        %6126 = vmatprep.subr.mxu0 0.0
        %6127 = vmatpush1.msra.mxu0 0.0
        %6128 = vmatprep.subr.mxu0 0.0
        %6129 = vmatpush1.msra.mxu0 0.0
        %6130 = vmatprep.subr.mxu0 0.0
        %6131 = vmatpush1.msra.mxu0 0.0
        %6132 = vmatprep.subr.mxu0 0.0
        %6133 = vmatpush1.msra.mxu0 0.0
        %6134 = vmatprep.subr.mxu0 0.0
        %6135 = vmatpush1.msra.mxu0 0.0
        %6136 = vmatprep.subr.mxu0 0.0
        %6137 = vmatpush1.msra.mxu0 0.0
        %6138 = vmatprep.subr.mxu0 0.0
        %6139 = vmatpush1.msra.mxu0 0.0
        %6140 = vmatprep.subr.mxu0 0.0
        %6141 = vmatpush1.msra.mxu0 0.0
        %6142 = vmatprep.subr.mxu0 0.0
        %6143 = vmatpush1.msra.mxu0 0.0
        %6144 = vmatprep.subr.mxu0 0.0
        %6145 = vmatpush1.msra.mxu0 0.0
        %6146 = vmatprep.subr.mxu0 0.0
        %6147 = vmatpush1.msra.mxu0 %v6115
        %6148 = vmatprep.subr.mxu0 0.0
        %6149 = vmatpush1.msra.mxu0 %v6101
        %6150 = vmatprep.subr.mxu0 0.0
        %6151 = vmatpush2.msra.mxu0 0.0
        %6152 = vmatprep.subr.mxu0 0.0
        %6153 = vmatpush2.msra.mxu0 0.0
        %6154 = vmatprep.subr.mxu0 0.0
        %6155 = vmatpush2.msra.mxu0 0.0
        %6156 = vmatprep.subr.mxu0 0.0
        %6157 = vmatpush2.msra.mxu0 0.0
        %6158 = vmatprep.subr.mxu0 0.0
        %6159 = vmatpush2.msra.mxu0 0.0
        %6160 = vmatprep.subr.mxu0 0.0
        %6161 = vmatpush2.msra.mxu0 0.0
        %6162 = vmatprep.subr.mxu0 0.0
        %6163 = vmatpush2.msra.mxu0 0.0
        %6164 = vmatprep.subr.mxu0 0.0
        %6165 = vmatpush2.msra.mxu0 0.0
        %6166 = vmatprep.subr.mxu0 0.0
        %6167 = vmatpush2.msra.mxu0 0.0
        %6168 = vmatprep.subr.mxu0 0.0
        %6169 = vmatpush2.msra.mxu0 0.0
        %6170 = vmatprep.subr.mxu0 0.0
        %6171 = vmatpush2.msra.mxu0 0.0
        %6172 = vmatprep.subr.mxu0 0.0
        %6173 = vmatpush2.msra.mxu0 0.0
        %6174 = vmatprep.subr.mxu0 0.0
        %6175 = vmatpush2.msra.mxu0 0.0
        %6176 = vmatprep.subr.mxu0 0.0
        %6177 = vmatpush2.msra.mxu0 0.0
        %6178 = vmatprep.subr.mxu0 0.0
        %6179 = vmatpush2.msra.mxu0 0.0
        %6180 = vmatprep.subr.mxu0 0.0
        %6181 = vmatpush2.msra.mxu0 0.0
        %6182 = vmatprep.mubr.f32.mxu0 0.0
        %6183 = vmatmul.mubr.f32.gmra.mxu0 %v3384
        %v6184 = vpop.f32.mrf.mxu0
        %v6185 = vadd.f32 0.0, %v6184
        %v6186 = vpop.f32.mrf.mxu0
        %6187 = vmatprep.mubr.f32.mxu0 0.0
        %6188 = vmatmul.mubr.f32.gmra.mxu0 %v3387
        %v6189 = vpop.f32.mrf.mxu0
        %v6190 = vadd.f32 0.0, %v6189
        %v6191 = vpop.f32.mrf.mxu0
        %6192 = vmatprep.mubr.f32.mxu0 0.0
        %6193 = vmatmul.mubr.f32.gmra.mxu0 %v3390
        %v6194 = vpop.f32.mrf.mxu0
        %v6195 = vadd.f32 0.0, %v6194
        %v6196 = vpop.f32.mrf.mxu0
        %6197 = vmatprep.mubr.f32.mxu0 0.0
        %6198 = vmatmul.mubr.f32.gmra.mxu0 %v3393
        %v6199 = vpop.f32.mrf.mxu0
        %v6200 = vadd.f32 0.0, %v6199
        %v6201 = vpop.f32.mrf.mxu0
        %6202 = vmatprep.mubr.f32.mxu0 0.0
        %6203 = vmatmul.mubr.f32.gmra.mxu0 %v3396
        %v6204 = vpop.f32.mrf.mxu0
        %v6205 = vadd.f32 0.0, %v6204
        %v6206 = vpop.f32.mrf.mxu0
        %6207 = vmatprep.mubr.f32.mxu0 0.0
        %6208 = vmatmul.mubr.f32.gmra.mxu0 %v3399
        %v6209 = vpop.f32.mrf.mxu0
        %v6210 = vadd.f32 0.0, %v6209
        %v6211 = vpop.f32.mrf.mxu0
        %6212 = vmatprep.mubr.f32.mxu0 0.0
        %6213 = vmatmul.mubr.f32.gmra.mxu0 %v3402
        %v6214 = vpop.f32.mrf.mxu0
        %v6215 = vadd.f32 0.0, %v6214
        %v6216 = vpop.f32.mrf.mxu0
        %6217 = vmatprep.mubr.f32.mxu0 0.0
        %6218 = vmatmul.mubr.f32.gmra.mxu0 %v3405
        %v6219 = vpop.f32.mrf.mxu0
        %v6220 = vadd.f32 0.0, %v6219
        %v6221 = vpop.f32.mrf.mxu0
        %6222 = vmatprep.mubr.f32.mxu0 0.0
        %6223 = vmatmul.mubr.f32.gmra.mxu0 %v3408
        %v6224 = vpop.f32.mrf.mxu0
        %v6225 = vadd.f32 0.0, %v6224
        %v6226 = vpop.f32.mrf.mxu0
        %6227 = vmatprep.mubr.f32.mxu0 0.0
        %6228 = vmatmul.mubr.f32.gmra.mxu0 %v3411
        %v6229 = vpop.f32.mrf.mxu0
        %v6230 = vadd.f32 0.0, %v6229
        %v6231 = vpop.f32.mrf.mxu0
        %6232 = vmatprep.mubr.f32.mxu0 0.0
        %6233 = vmatmul.mubr.f32.gmra.mxu0 %v3414
        %v6234 = vpop.f32.mrf.mxu0
        %v6235 = vadd.f32 0.0, %v6234
        %v6236 = vpop.f32.mrf.mxu0
        %6237 = vmatprep.mubr.f32.mxu0 0.0
        %6238 = vmatmul.mubr.f32.gmra.mxu0 %v3417
        %v6239 = vpop.f32.mrf.mxu0
        %v6240 = vadd.f32 0.0, %v6239
        %v6241 = vpop.f32.mrf.mxu0
        %6242 = vmatprep.mubr.f32.mxu0 0.0
        %6243 = vmatmul.mubr.f32.gmra.mxu0 %v3420
        %v6244 = vpop.f32.mrf.mxu0
        %v6245 = vadd.f32 0.0, %v6244
        %v6246 = vpop.f32.mrf.mxu0
        %6247 = vmatprep.mubr.f32.mxu0 0.0
        %6248 = vmatmul.mubr.f32.gmra.mxu0 %v3423
        %v6249 = vpop.f32.mrf.mxu0
        %v6250 = vadd.f32 0.0, %v6249
        %v6251 = vpop.f32.mrf.mxu0
        %6252 = vmatprep.mubr.f32.mxu0 0.0
        %6253 = vmatmul.mubr.f32.gmra.mxu0 %v3426
        %v6254 = vpop.f32.mrf.mxu0
        %v6255 = vadd.f32 0.0, %v6254
        %v6256 = vpop.f32.mrf.mxu0
        %6257 = vmatprep.mubr.f32.mxu0 0.0
        %6258 = vmatmul.mubr.f32.gmra.mxu0 %v3429
        %v6259 = vpop.f32.mrf.mxu0
        %v6260 = vadd.f32 0.0, %v6259
        %v6261 = vpop.f32.mrf.mxu0
        %6262 = vdwg.mxu0
        %s6263 = scalar_lea.vmem %s306, 1536 [#allocation12]
        %6264 = vst [vmem:[%s6263] sm:$0xff] %v6185
        %6265 = vst [vmem:[%s6263 + $0x8] sm:$0xff] %v6190
        %6266 = vst [vmem:[%s6263 + $0x10] sm:$0xff] %v6195
        %6267 = vst [vmem:[%s6263 + $0x18] sm:$0xff] %v6200
        %6268 = vst [vmem:[%s6263 + $0x20] sm:$0xff] %v6205
        %6269 = vst [vmem:[%s6263 + $0x28] sm:$0xff] %v6210
        %6270 = vst [vmem:[%s6263 + $0x30] sm:$0xff] %v6215
        %6271 = vst [vmem:[%s6263 + $0x38] sm:$0xff] %v6220
        %6272 = vst [vmem:[%s6263 + $0x40] sm:$0xff] %v6225
        %6273 = vst [vmem:[%s6263 + $0x48] sm:$0xff] %v6230
        %6274 = vst [vmem:[%s6263 + $0x50] sm:$0xff] %v6235
        %6275 = vst [vmem:[%s6263 + $0x58] sm:$0xff] %v6240
        %6276 = vst [vmem:[%s6263 + $0x60] sm:$0xff] %v6245
        %6277 = vst [vmem:[%s6263 + $0x68] sm:$0xff] %v6250
        %6278 = vst [vmem:[%s6263 + $0x70] sm:$0xff] %v6255
        %6279 = vst [vmem:[%s6263 + $0x78] sm:$0xff] %v6260
        %v6280 = vld [vmem:[#allocation3 + $0xd] sm:$0x1]
        %v6281 = vld [vmem:[#allocation3 + $0x25] sm:$0x1]
        %v6282 = vld [vmem:[#allocation3 + $0x3d] sm:$0x1]
        %v6283 = vld [vmem:[#allocation3 + $0x55] sm:$0x1]
        %v6284 = vld [vmem:[#allocation3 + $0x6d] sm:$0x1]
        %v6285 = vld [vmem:[#allocation3 + $0x85] sm:$0x1]
        %v6286 = vld [vmem:[#allocation3 + $0x9d] sm:$0x1]
        %v6287 = vld [vmem:[#allocation3 + $0xb5] sm:$0x1]
        %v6288 = vld [vmem:[#allocation3 + $0xcd] sm:$0x1]
        %v6289 = vld [vmem:[#allocation3 + $0xe5] sm:$0x1]
        %v6290 = vld [vmem:[#allocation3 + $0xfd] sm:$0x1]
        %v6291 = vld [vmem:[#allocation3 + $0x115] sm:$0x1]
        %v6292 = vld [vmem:[#allocation3 + $0x12d] sm:$0x1]
        %v6293 = vld [vmem:[#allocation3 + $0x145] sm:$0x1]
        %v6294 = vld [vmem:[#allocation3 + $0x15d] sm:$0x1]
        %v6295 = vld [vmem:[#allocation3 + $0x175] sm:$0x1]
        %v6312 = vrot.slane %v6281, 7
        %v6313 = vsel %vm3347, %v6312, %v6280
        %v6314 = vrot.slane %v6282, 6
        %v6315 = vsel %vm3350, %v6314, %v6313
        %v6316 = vrot.slane %v6283, 5
        %v6317 = vsel %vm3353, %v6316, %v6315
        %v6318 = vrot.slane %v6284, 4
        %v6319 = vsel %vm3356, %v6318, %v6317
        %v6320 = vrot.slane %v6285, 3
        %v6321 = vsel %vm3359, %v6320, %v6319
        %v6322 = vrot.slane %v6286, 2
        %v6323 = vsel %vm3362, %v6322, %v6321
        %v6324 = vrot.slane %v6287, 1
        %v6325 = vsel %vm3365, %v6324, %v6323
        %v6326 = vrot.slane %v6289, 7
        %v6327 = vsel %vm3347, %v6326, %v6288
        %v6328 = vrot.slane %v6290, 6
        %v6329 = vsel %vm3350, %v6328, %v6327
        %v6330 = vrot.slane %v6291, 5
        %v6331 = vsel %vm3353, %v6330, %v6329
        %v6332 = vrot.slane %v6292, 4
        %v6333 = vsel %vm3356, %v6332, %v6331
        %v6334 = vrot.slane %v6293, 3
        %v6335 = vsel %vm3359, %v6334, %v6333
        %v6336 = vrot.slane %v6294, 2
        %v6337 = vsel %vm3362, %v6336, %v6335
        %v6338 = vrot.slane %v6295, 1
        %v6339 = vsel %vm3365, %v6338, %v6337
        %6342 = vmatprep.subr.mxu0 0.0
        %6343 = vmatpush1.msra.mxu0 0.0
        %6344 = vmatprep.subr.mxu0 0.0
        %6345 = vmatpush1.msra.mxu0 0.0
        %6346 = vmatprep.subr.mxu0 0.0
        %6347 = vmatpush1.msra.mxu0 0.0
        %6348 = vmatprep.subr.mxu0 0.0
        %6349 = vmatpush1.msra.mxu0 0.0
        %6350 = vmatprep.subr.mxu0 0.0
        %6351 = vmatpush1.msra.mxu0 0.0
        %6352 = vmatprep.subr.mxu0 0.0
        %6353 = vmatpush1.msra.mxu0 0.0
        %6354 = vmatprep.subr.mxu0 0.0
        %6355 = vmatpush1.msra.mxu0 0.0
        %6356 = vmatprep.subr.mxu0 0.0
        %6357 = vmatpush1.msra.mxu0 0.0
        %6358 = vmatprep.subr.mxu0 0.0
        %6359 = vmatpush1.msra.mxu0 0.0
        %6360 = vmatprep.subr.mxu0 0.0
        %6361 = vmatpush1.msra.mxu0 0.0
        %6362 = vmatprep.subr.mxu0 0.0
        %6363 = vmatpush1.msra.mxu0 0.0
        %6364 = vmatprep.subr.mxu0 0.0
        %6365 = vmatpush1.msra.mxu0 0.0
        %6366 = vmatprep.subr.mxu0 0.0
        %6367 = vmatpush1.msra.mxu0 0.0
        %6368 = vmatprep.subr.mxu0 0.0
        %6369 = vmatpush1.msra.mxu0 0.0
        %6370 = vmatprep.subr.mxu0 0.0
        %6371 = vmatpush1.msra.mxu0 %v6339
        %6372 = vmatprep.subr.mxu0 0.0
        %6373 = vmatpush1.msra.mxu0 %v6325
        %6374 = vmatprep.subr.mxu0 0.0
        %6375 = vmatpush2.msra.mxu0 0.0
        %6376 = vmatprep.subr.mxu0 0.0
        %6377 = vmatpush2.msra.mxu0 0.0
        %6378 = vmatprep.subr.mxu0 0.0
        %6379 = vmatpush2.msra.mxu0 0.0
        %6380 = vmatprep.subr.mxu0 0.0
        %6381 = vmatpush2.msra.mxu0 0.0
        %6382 = vmatprep.subr.mxu0 0.0
        %6383 = vmatpush2.msra.mxu0 0.0
        %6384 = vmatprep.subr.mxu0 0.0
        %6385 = vmatpush2.msra.mxu0 0.0
        %6386 = vmatprep.subr.mxu0 0.0
        %6387 = vmatpush2.msra.mxu0 0.0
        %6388 = vmatprep.subr.mxu0 0.0
        %6389 = vmatpush2.msra.mxu0 0.0
        %6390 = vmatprep.subr.mxu0 0.0
        %6391 = vmatpush2.msra.mxu0 0.0
        %6392 = vmatprep.subr.mxu0 0.0
        %6393 = vmatpush2.msra.mxu0 0.0
        %6394 = vmatprep.subr.mxu0 0.0
        %6395 = vmatpush2.msra.mxu0 0.0
        %6396 = vmatprep.subr.mxu0 0.0
        %6397 = vmatpush2.msra.mxu0 0.0
        %6398 = vmatprep.subr.mxu0 0.0
        %6399 = vmatpush2.msra.mxu0 0.0
        %6400 = vmatprep.subr.mxu0 0.0
        %6401 = vmatpush2.msra.mxu0 0.0
        %6402 = vmatprep.subr.mxu0 0.0
        %6403 = vmatpush2.msra.mxu0 0.0
        %6404 = vmatprep.subr.mxu0 0.0
        %6405 = vmatpush2.msra.mxu0 0.0
        %6406 = vmatprep.mubr.f32.mxu0 0.0
        %6407 = vmatmul.mubr.f32.gmra.mxu0 %v3384
        %v6408 = vpop.f32.mrf.mxu0
        %v6409 = vadd.f32 0.0, %v6408
        %v6410 = vpop.f32.mrf.mxu0
        %6411 = vmatprep.mubr.f32.mxu0 0.0
        %6412 = vmatmul.mubr.f32.gmra.mxu0 %v3387
        %v6413 = vpop.f32.mrf.mxu0
        %v6414 = vadd.f32 0.0, %v6413
        %v6415 = vpop.f32.mrf.mxu0
        %6416 = vmatprep.mubr.f32.mxu0 0.0
        %6417 = vmatmul.mubr.f32.gmra.mxu0 %v3390
        %v6418 = vpop.f32.mrf.mxu0
        %v6419 = vadd.f32 0.0, %v6418
        %v6420 = vpop.f32.mrf.mxu0
        %6421 = vmatprep.mubr.f32.mxu0 0.0
        %6422 = vmatmul.mubr.f32.gmra.mxu0 %v3393
        %v6423 = vpop.f32.mrf.mxu0
        %v6424 = vadd.f32 0.0, %v6423
        %v6425 = vpop.f32.mrf.mxu0
        %6426 = vmatprep.mubr.f32.mxu0 0.0
        %6427 = vmatmul.mubr.f32.gmra.mxu0 %v3396
        %v6428 = vpop.f32.mrf.mxu0
        %v6429 = vadd.f32 0.0, %v6428
        %v6430 = vpop.f32.mrf.mxu0
        %6431 = vmatprep.mubr.f32.mxu0 0.0
        %6432 = vmatmul.mubr.f32.gmra.mxu0 %v3399
        %v6433 = vpop.f32.mrf.mxu0
        %v6434 = vadd.f32 0.0, %v6433
        %v6435 = vpop.f32.mrf.mxu0
        %6436 = vmatprep.mubr.f32.mxu0 0.0
        %6437 = vmatmul.mubr.f32.gmra.mxu0 %v3402
        %v6438 = vpop.f32.mrf.mxu0
        %v6439 = vadd.f32 0.0, %v6438
        %v6440 = vpop.f32.mrf.mxu0
        %6441 = vmatprep.mubr.f32.mxu0 0.0
        %6442 = vmatmul.mubr.f32.gmra.mxu0 %v3405
        %v6443 = vpop.f32.mrf.mxu0
        %v6444 = vadd.f32 0.0, %v6443
        %v6445 = vpop.f32.mrf.mxu0
        %6446 = vmatprep.mubr.f32.mxu0 0.0
        %6447 = vmatmul.mubr.f32.gmra.mxu0 %v3408
        %v6448 = vpop.f32.mrf.mxu0
        %v6449 = vadd.f32 0.0, %v6448
        %v6450 = vpop.f32.mrf.mxu0
        %6451 = vmatprep.mubr.f32.mxu0 0.0
        %6452 = vmatmul.mubr.f32.gmra.mxu0 %v3411
        %v6453 = vpop.f32.mrf.mxu0
        %v6454 = vadd.f32 0.0, %v6453
        %v6455 = vpop.f32.mrf.mxu0
        %6456 = vmatprep.mubr.f32.mxu0 0.0
        %6457 = vmatmul.mubr.f32.gmra.mxu0 %v3414
        %v6458 = vpop.f32.mrf.mxu0
        %v6459 = vadd.f32 0.0, %v6458
        %v6460 = vpop.f32.mrf.mxu0
        %6461 = vmatprep.mubr.f32.mxu0 0.0
        %6462 = vmatmul.mubr.f32.gmra.mxu0 %v3417
        %v6463 = vpop.f32.mrf.mxu0
        %v6464 = vadd.f32 0.0, %v6463
        %v6465 = vpop.f32.mrf.mxu0
        %6466 = vmatprep.mubr.f32.mxu0 0.0
        %6467 = vmatmul.mubr.f32.gmra.mxu0 %v3420
        %v6468 = vpop.f32.mrf.mxu0
        %v6469 = vadd.f32 0.0, %v6468
        %v6470 = vpop.f32.mrf.mxu0
        %6471 = vmatprep.mubr.f32.mxu0 0.0
        %6472 = vmatmul.mubr.f32.gmra.mxu0 %v3423
        %v6473 = vpop.f32.mrf.mxu0
        %v6474 = vadd.f32 0.0, %v6473
        %v6475 = vpop.f32.mrf.mxu0
        %6476 = vmatprep.mubr.f32.mxu0 0.0
        %6477 = vmatmul.mubr.f32.gmra.mxu0 %v3426
        %v6478 = vpop.f32.mrf.mxu0
        %v6479 = vadd.f32 0.0, %v6478
        %v6480 = vpop.f32.mrf.mxu0
        %6481 = vmatprep.mubr.f32.mxu0 0.0
        %6482 = vmatmul.mubr.f32.gmra.mxu0 %v3429
        %v6483 = vpop.f32.mrf.mxu0
        %v6484 = vadd.f32 0.0, %v6483
        %v6485 = vpop.f32.mrf.mxu0
        %6486 = vdwg.mxu0
        %s6487 = scalar_lea.vmem %s306, 1664 [#allocation12]
        %6488 = vst [vmem:[%s6487] sm:$0xff] %v6409
        %6489 = vst [vmem:[%s6487 + $0x8] sm:$0xff] %v6414
        %6490 = vst [vmem:[%s6487 + $0x10] sm:$0xff] %v6419
        %6491 = vst [vmem:[%s6487 + $0x18] sm:$0xff] %v6424
        %6492 = vst [vmem:[%s6487 + $0x20] sm:$0xff] %v6429
        %6493 = vst [vmem:[%s6487 + $0x28] sm:$0xff] %v6434
        %6494 = vst [vmem:[%s6487 + $0x30] sm:$0xff] %v6439
        %6495 = vst [vmem:[%s6487 + $0x38] sm:$0xff] %v6444
        %6496 = vst [vmem:[%s6487 + $0x40] sm:$0xff] %v6449
        %6497 = vst [vmem:[%s6487 + $0x48] sm:$0xff] %v6454
        %6498 = vst [vmem:[%s6487 + $0x50] sm:$0xff] %v6459
        %6499 = vst [vmem:[%s6487 + $0x58] sm:$0xff] %v6464
        %6500 = vst [vmem:[%s6487 + $0x60] sm:$0xff] %v6469
        %6501 = vst [vmem:[%s6487 + $0x68] sm:$0xff] %v6474
        %6502 = vst [vmem:[%s6487 + $0x70] sm:$0xff] %v6479
        %6503 = vst [vmem:[%s6487 + $0x78] sm:$0xff] %v6484
        %v6504 = vld [vmem:[#allocation3 + $0xe] sm:$0x1]
        %v6505 = vld [vmem:[#allocation3 + $0x26] sm:$0x1]
        %v6506 = vld [vmem:[#allocation3 + $0x3e] sm:$0x1]
        %v6507 = vld [vmem:[#allocation3 + $0x56] sm:$0x1]
        %v6508 = vld [vmem:[#allocation3 + $0x6e] sm:$0x1]
        %v6509 = vld [vmem:[#allocation3 + $0x86] sm:$0x1]
        %v6510 = vld [vmem:[#allocation3 + $0x9e] sm:$0x1]
        %v6511 = vld [vmem:[#allocation3 + $0xb6] sm:$0x1]
        %v6512 = vld [vmem:[#allocation3 + $0xce] sm:$0x1]
        %v6513 = vld [vmem:[#allocation3 + $0xe6] sm:$0x1]
        %v6514 = vld [vmem:[#allocation3 + $0xfe] sm:$0x1]
        %v6515 = vld [vmem:[#allocation3 + $0x116] sm:$0x1]
        %v6516 = vld [vmem:[#allocation3 + $0x12e] sm:$0x1]
        %v6517 = vld [vmem:[#allocation3 + $0x146] sm:$0x1]
        %v6518 = vld [vmem:[#allocation3 + $0x15e] sm:$0x1]
        %v6519 = vld [vmem:[#allocation3 + $0x176] sm:$0x1]
        %v6536 = vrot.slane %v6505, 7
        %v6537 = vsel %vm3347, %v6536, %v6504
        %v6538 = vrot.slane %v6506, 6
        %v6539 = vsel %vm3350, %v6538, %v6537
        %v6540 = vrot.slane %v6507, 5
        %v6541 = vsel %vm3353, %v6540, %v6539
        %v6542 = vrot.slane %v6508, 4
        %v6543 = vsel %vm3356, %v6542, %v6541
        %v6544 = vrot.slane %v6509, 3
        %v6545 = vsel %vm3359, %v6544, %v6543
        %v6546 = vrot.slane %v6510, 2
        %v6547 = vsel %vm3362, %v6546, %v6545
        %v6548 = vrot.slane %v6511, 1
        %v6549 = vsel %vm3365, %v6548, %v6547
        %v6550 = vrot.slane %v6513, 7
        %v6551 = vsel %vm3347, %v6550, %v6512
        %v6552 = vrot.slane %v6514, 6
        %v6553 = vsel %vm3350, %v6552, %v6551
        %v6554 = vrot.slane %v6515, 5
        %v6555 = vsel %vm3353, %v6554, %v6553
        %v6556 = vrot.slane %v6516, 4
        %v6557 = vsel %vm3356, %v6556, %v6555
        %v6558 = vrot.slane %v6517, 3
        %v6559 = vsel %vm3359, %v6558, %v6557
        %v6560 = vrot.slane %v6518, 2
        %v6561 = vsel %vm3362, %v6560, %v6559
        %v6562 = vrot.slane %v6519, 1
        %v6563 = vsel %vm3365, %v6562, %v6561
        %6566 = vmatprep.subr.mxu0 0.0
        %6567 = vmatpush1.msra.mxu0 0.0
        %6568 = vmatprep.subr.mxu0 0.0
        %6569 = vmatpush1.msra.mxu0 0.0
        %6570 = vmatprep.subr.mxu0 0.0
        %6571 = vmatpush1.msra.mxu0 0.0
        %6572 = vmatprep.subr.mxu0 0.0
        %6573 = vmatpush1.msra.mxu0 0.0
        %6574 = vmatprep.subr.mxu0 0.0
        %6575 = vmatpush1.msra.mxu0 0.0
        %6576 = vmatprep.subr.mxu0 0.0
        %6577 = vmatpush1.msra.mxu0 0.0
        %6578 = vmatprep.subr.mxu0 0.0
        %6579 = vmatpush1.msra.mxu0 0.0
        %6580 = vmatprep.subr.mxu0 0.0
        %6581 = vmatpush1.msra.mxu0 0.0
        %6582 = vmatprep.subr.mxu0 0.0
        %6583 = vmatpush1.msra.mxu0 0.0
        %6584 = vmatprep.subr.mxu0 0.0
        %6585 = vmatpush1.msra.mxu0 0.0
        %6586 = vmatprep.subr.mxu0 0.0
        %6587 = vmatpush1.msra.mxu0 0.0
        %6588 = vmatprep.subr.mxu0 0.0
        %6589 = vmatpush1.msra.mxu0 0.0
        %6590 = vmatprep.subr.mxu0 0.0
        %6591 = vmatpush1.msra.mxu0 0.0
        %6592 = vmatprep.subr.mxu0 0.0
        %6593 = vmatpush1.msra.mxu0 0.0
        %6594 = vmatprep.subr.mxu0 0.0
        %6595 = vmatpush1.msra.mxu0 %v6563
        %6596 = vmatprep.subr.mxu0 0.0
        %6597 = vmatpush1.msra.mxu0 %v6549
        %6598 = vmatprep.subr.mxu0 0.0
        %6599 = vmatpush2.msra.mxu0 0.0
        %6600 = vmatprep.subr.mxu0 0.0
        %6601 = vmatpush2.msra.mxu0 0.0
        %6602 = vmatprep.subr.mxu0 0.0
        %6603 = vmatpush2.msra.mxu0 0.0
        %6604 = vmatprep.subr.mxu0 0.0
        %6605 = vmatpush2.msra.mxu0 0.0
        %6606 = vmatprep.subr.mxu0 0.0
        %6607 = vmatpush2.msra.mxu0 0.0
        %6608 = vmatprep.subr.mxu0 0.0
        %6609 = vmatpush2.msra.mxu0 0.0
        %6610 = vmatprep.subr.mxu0 0.0
        %6611 = vmatpush2.msra.mxu0 0.0
        %6612 = vmatprep.subr.mxu0 0.0
        %6613 = vmatpush2.msra.mxu0 0.0
        %6614 = vmatprep.subr.mxu0 0.0
        %6615 = vmatpush2.msra.mxu0 0.0
        %6616 = vmatprep.subr.mxu0 0.0
        %6617 = vmatpush2.msra.mxu0 0.0
        %6618 = vmatprep.subr.mxu0 0.0
        %6619 = vmatpush2.msra.mxu0 0.0
        %6620 = vmatprep.subr.mxu0 0.0
        %6621 = vmatpush2.msra.mxu0 0.0
        %6622 = vmatprep.subr.mxu0 0.0
        %6623 = vmatpush2.msra.mxu0 0.0
        %6624 = vmatprep.subr.mxu0 0.0
        %6625 = vmatpush2.msra.mxu0 0.0
        %6626 = vmatprep.subr.mxu0 0.0
        %6627 = vmatpush2.msra.mxu0 0.0
        %6628 = vmatprep.subr.mxu0 0.0
        %6629 = vmatpush2.msra.mxu0 0.0
        %6630 = vmatprep.mubr.f32.mxu0 0.0
        %6631 = vmatmul.mubr.f32.gmra.mxu0 %v3384
        %v6632 = vpop.f32.mrf.mxu0
        %v6633 = vadd.f32 0.0, %v6632
        %v6634 = vpop.f32.mrf.mxu0
        %6635 = vmatprep.mubr.f32.mxu0 0.0
        %6636 = vmatmul.mubr.f32.gmra.mxu0 %v3387
        %v6637 = vpop.f32.mrf.mxu0
        %v6638 = vadd.f32 0.0, %v6637
        %v6639 = vpop.f32.mrf.mxu0
        %6640 = vmatprep.mubr.f32.mxu0 0.0
        %6641 = vmatmul.mubr.f32.gmra.mxu0 %v3390
        %v6642 = vpop.f32.mrf.mxu0
        %v6643 = vadd.f32 0.0, %v6642
        %v6644 = vpop.f32.mrf.mxu0
        %6645 = vmatprep.mubr.f32.mxu0 0.0
        %6646 = vmatmul.mubr.f32.gmra.mxu0 %v3393
        %v6647 = vpop.f32.mrf.mxu0
        %v6648 = vadd.f32 0.0, %v6647
        %v6649 = vpop.f32.mrf.mxu0
        %6650 = vmatprep.mubr.f32.mxu0 0.0
        %6651 = vmatmul.mubr.f32.gmra.mxu0 %v3396
        %v6652 = vpop.f32.mrf.mxu0
        %v6653 = vadd.f32 0.0, %v6652
        %v6654 = vpop.f32.mrf.mxu0
        %6655 = vmatprep.mubr.f32.mxu0 0.0
        %6656 = vmatmul.mubr.f32.gmra.mxu0 %v3399
        %v6657 = vpop.f32.mrf.mxu0
        %v6658 = vadd.f32 0.0, %v6657
        %v6659 = vpop.f32.mrf.mxu0
        %6660 = vmatprep.mubr.f32.mxu0 0.0
        %6661 = vmatmul.mubr.f32.gmra.mxu0 %v3402
        %v6662 = vpop.f32.mrf.mxu0
        %v6663 = vadd.f32 0.0, %v6662
        %v6664 = vpop.f32.mrf.mxu0
        %6665 = vmatprep.mubr.f32.mxu0 0.0
        %6666 = vmatmul.mubr.f32.gmra.mxu0 %v3405
        %v6667 = vpop.f32.mrf.mxu0
        %v6668 = vadd.f32 0.0, %v6667
        %v6669 = vpop.f32.mrf.mxu0
        %6670 = vmatprep.mubr.f32.mxu0 0.0
        %6671 = vmatmul.mubr.f32.gmra.mxu0 %v3408
        %v6672 = vpop.f32.mrf.mxu0
        %v6673 = vadd.f32 0.0, %v6672
        %v6674 = vpop.f32.mrf.mxu0
        %6675 = vmatprep.mubr.f32.mxu0 0.0
        %6676 = vmatmul.mubr.f32.gmra.mxu0 %v3411
        %v6677 = vpop.f32.mrf.mxu0
        %v6678 = vadd.f32 0.0, %v6677
        %v6679 = vpop.f32.mrf.mxu0
        %6680 = vmatprep.mubr.f32.mxu0 0.0
        %6681 = vmatmul.mubr.f32.gmra.mxu0 %v3414
        %v6682 = vpop.f32.mrf.mxu0
        %v6683 = vadd.f32 0.0, %v6682
        %v6684 = vpop.f32.mrf.mxu0
        %6685 = vmatprep.mubr.f32.mxu0 0.0
        %6686 = vmatmul.mubr.f32.gmra.mxu0 %v3417
        %v6687 = vpop.f32.mrf.mxu0
        %v6688 = vadd.f32 0.0, %v6687
        %v6689 = vpop.f32.mrf.mxu0
        %6690 = vmatprep.mubr.f32.mxu0 0.0
        %6691 = vmatmul.mubr.f32.gmra.mxu0 %v3420
        %v6692 = vpop.f32.mrf.mxu0
        %v6693 = vadd.f32 0.0, %v6692
        %v6694 = vpop.f32.mrf.mxu0
        %6695 = vmatprep.mubr.f32.mxu0 0.0
        %6696 = vmatmul.mubr.f32.gmra.mxu0 %v3423
        %v6697 = vpop.f32.mrf.mxu0
        %v6698 = vadd.f32 0.0, %v6697
        %v6699 = vpop.f32.mrf.mxu0
        %6700 = vmatprep.mubr.f32.mxu0 0.0
        %6701 = vmatmul.mubr.f32.gmra.mxu0 %v3426
        %v6702 = vpop.f32.mrf.mxu0
        %v6703 = vadd.f32 0.0, %v6702
        %v6704 = vpop.f32.mrf.mxu0
        %6705 = vmatprep.mubr.f32.mxu0 0.0
        %6706 = vmatmul.mubr.f32.gmra.mxu0 %v3429
        %v6707 = vpop.f32.mrf.mxu0
        %v6708 = vadd.f32 0.0, %v6707
        %v6709 = vpop.f32.mrf.mxu0
        %6710 = vdwg.mxu0
        %s6711 = scalar_lea.vmem %s306, 1792 [#allocation12]
        %6712 = vst [vmem:[%s6711] sm:$0xff] %v6633
        %6713 = vst [vmem:[%s6711 + $0x8] sm:$0xff] %v6638
        %6714 = vst [vmem:[%s6711 + $0x10] sm:$0xff] %v6643
        %6715 = vst [vmem:[%s6711 + $0x18] sm:$0xff] %v6648
        %6716 = vst [vmem:[%s6711 + $0x20] sm:$0xff] %v6653
        %6717 = vst [vmem:[%s6711 + $0x28] sm:$0xff] %v6658
        %6718 = vst [vmem:[%s6711 + $0x30] sm:$0xff] %v6663
        %6719 = vst [vmem:[%s6711 + $0x38] sm:$0xff] %v6668
        %6720 = vst [vmem:[%s6711 + $0x40] sm:$0xff] %v6673
        %6721 = vst [vmem:[%s6711 + $0x48] sm:$0xff] %v6678
        %6722 = vst [vmem:[%s6711 + $0x50] sm:$0xff] %v6683
        %6723 = vst [vmem:[%s6711 + $0x58] sm:$0xff] %v6688
        %6724 = vst [vmem:[%s6711 + $0x60] sm:$0xff] %v6693
        %6725 = vst [vmem:[%s6711 + $0x68] sm:$0xff] %v6698
        %6726 = vst [vmem:[%s6711 + $0x70] sm:$0xff] %v6703
        %6727 = vst [vmem:[%s6711 + $0x78] sm:$0xff] %v6708
        %v6728 = vld [vmem:[#allocation3 + $0xf] sm:$0x1]
        %v6729 = vld [vmem:[#allocation3 + $0x27] sm:$0x1]
        %v6730 = vld [vmem:[#allocation3 + $0x3f] sm:$0x1]
        %v6731 = vld [vmem:[#allocation3 + $0x57] sm:$0x1]
        %v6732 = vld [vmem:[#allocation3 + $0x6f] sm:$0x1]
        %v6733 = vld [vmem:[#allocation3 + $0x87] sm:$0x1]
        %v6734 = vld [vmem:[#allocation3 + $0x9f] sm:$0x1]
        %v6735 = vld [vmem:[#allocation3 + $0xb7] sm:$0x1]
        %v6736 = vld [vmem:[#allocation3 + $0xcf] sm:$0x1]
        %v6737 = vld [vmem:[#allocation3 + $0xe7] sm:$0x1]
        %v6738 = vld [vmem:[#allocation3 + $0xff] sm:$0x1]
        %v6739 = vld [vmem:[#allocation3 + $0x117] sm:$0x1]
        %v6740 = vld [vmem:[#allocation3 + $0x12f] sm:$0x1]
        %v6741 = vld [vmem:[#allocation3 + $0x147] sm:$0x1]
        %v6742 = vld [vmem:[#allocation3 + $0x15f] sm:$0x1]
        %v6743 = vld [vmem:[#allocation3 + $0x177] sm:$0x1]
        %v6760 = vrot.slane %v6729, 7
        %v6761 = vsel %vm3347, %v6760, %v6728
        %v6762 = vrot.slane %v6730, 6
        %v6763 = vsel %vm3350, %v6762, %v6761
        %v6764 = vrot.slane %v6731, 5
        %v6765 = vsel %vm3353, %v6764, %v6763
        %v6766 = vrot.slane %v6732, 4
        %v6767 = vsel %vm3356, %v6766, %v6765
        %v6768 = vrot.slane %v6733, 3
        %v6769 = vsel %vm3359, %v6768, %v6767
        %v6770 = vrot.slane %v6734, 2
        %v6771 = vsel %vm3362, %v6770, %v6769
        %v6772 = vrot.slane %v6735, 1
        %v6773 = vsel %vm3365, %v6772, %v6771
        %v6774 = vrot.slane %v6737, 7
        %v6775 = vsel %vm3347, %v6774, %v6736
        %v6776 = vrot.slane %v6738, 6
        %v6777 = vsel %vm3350, %v6776, %v6775
        %v6778 = vrot.slane %v6739, 5
        %v6779 = vsel %vm3353, %v6778, %v6777
        %v6780 = vrot.slane %v6740, 4
        %v6781 = vsel %vm3356, %v6780, %v6779
        %v6782 = vrot.slane %v6741, 3
        %v6783 = vsel %vm3359, %v6782, %v6781
        %v6784 = vrot.slane %v6742, 2
        %v6785 = vsel %vm3362, %v6784, %v6783
        %v6786 = vrot.slane %v6743, 1
        %v6787 = vsel %vm3365, %v6786, %v6785
        %6790 = vmatprep.subr.mxu0 0.0
        %6791 = vmatpush1.msra.mxu0 0.0
        %6792 = vmatprep.subr.mxu0 0.0
        %6793 = vmatpush1.msra.mxu0 0.0
        %6794 = vmatprep.subr.mxu0 0.0
        %6795 = vmatpush1.msra.mxu0 0.0
        %6796 = vmatprep.subr.mxu0 0.0
        %6797 = vmatpush1.msra.mxu0 0.0
        %6798 = vmatprep.subr.mxu0 0.0
        %6799 = vmatpush1.msra.mxu0 0.0
        %6800 = vmatprep.subr.mxu0 0.0
        %6801 = vmatpush1.msra.mxu0 0.0
        %6802 = vmatprep.subr.mxu0 0.0
        %6803 = vmatpush1.msra.mxu0 0.0
        %6804 = vmatprep.subr.mxu0 0.0
        %6805 = vmatpush1.msra.mxu0 0.0
        %6806 = vmatprep.subr.mxu0 0.0
        %6807 = vmatpush1.msra.mxu0 0.0
        %6808 = vmatprep.subr.mxu0 0.0
        %6809 = vmatpush1.msra.mxu0 0.0
        %6810 = vmatprep.subr.mxu0 0.0
        %6811 = vmatpush1.msra.mxu0 0.0
        %6812 = vmatprep.subr.mxu0 0.0
        %6813 = vmatpush1.msra.mxu0 0.0
        %6814 = vmatprep.subr.mxu0 0.0
        %6815 = vmatpush1.msra.mxu0 0.0
        %6816 = vmatprep.subr.mxu0 0.0
        %6817 = vmatpush1.msra.mxu0 0.0
        %6818 = vmatprep.subr.mxu0 0.0
        %6819 = vmatpush1.msra.mxu0 %v6787
        %6820 = vmatprep.subr.mxu0 0.0
        %6821 = vmatpush1.msra.mxu0 %v6773
        %6822 = vmatprep.subr.mxu0 0.0
        %6823 = vmatpush2.msra.mxu0 0.0
        %6824 = vmatprep.subr.mxu0 0.0
        %6825 = vmatpush2.msra.mxu0 0.0
        %6826 = vmatprep.subr.mxu0 0.0
        %6827 = vmatpush2.msra.mxu0 0.0
        %6828 = vmatprep.subr.mxu0 0.0
        %6829 = vmatpush2.msra.mxu0 0.0
        %6830 = vmatprep.subr.mxu0 0.0
        %6831 = vmatpush2.msra.mxu0 0.0
        %6832 = vmatprep.subr.mxu0 0.0
        %6833 = vmatpush2.msra.mxu0 0.0
        %6834 = vmatprep.subr.mxu0 0.0
        %6835 = vmatpush2.msra.mxu0 0.0
        %6836 = vmatprep.subr.mxu0 0.0
        %6837 = vmatpush2.msra.mxu0 0.0
        %6838 = vmatprep.subr.mxu0 0.0
        %6839 = vmatpush2.msra.mxu0 0.0
        %6840 = vmatprep.subr.mxu0 0.0
        %6841 = vmatpush2.msra.mxu0 0.0
        %6842 = vmatprep.subr.mxu0 0.0
        %6843 = vmatpush2.msra.mxu0 0.0
        %6844 = vmatprep.subr.mxu0 0.0
        %6845 = vmatpush2.msra.mxu0 0.0
        %6846 = vmatprep.subr.mxu0 0.0
        %6847 = vmatpush2.msra.mxu0 0.0
        %6848 = vmatprep.subr.mxu0 0.0
        %6849 = vmatpush2.msra.mxu0 0.0
        %6850 = vmatprep.subr.mxu0 0.0
        %6851 = vmatpush2.msra.mxu0 0.0
        %6852 = vmatprep.subr.mxu0 0.0
        %6853 = vmatpush2.msra.mxu0 0.0
        %6854 = vmatprep.mubr.f32.mxu0 0.0
        %6855 = vmatmul.mubr.f32.gmra.mxu0 %v3384
        %v6856 = vpop.f32.mrf.mxu0
        %v6857 = vadd.f32 0.0, %v6856
        %v6858 = vpop.f32.mrf.mxu0
        %6859 = vmatprep.mubr.f32.mxu0 0.0
        %6860 = vmatmul.mubr.f32.gmra.mxu0 %v3387
        %v6861 = vpop.f32.mrf.mxu0
        %v6862 = vadd.f32 0.0, %v6861
        %v6863 = vpop.f32.mrf.mxu0
        %6864 = vmatprep.mubr.f32.mxu0 0.0
        %6865 = vmatmul.mubr.f32.gmra.mxu0 %v3390
        %v6866 = vpop.f32.mrf.mxu0
        %v6867 = vadd.f32 0.0, %v6866
        %v6868 = vpop.f32.mrf.mxu0
        %6869 = vmatprep.mubr.f32.mxu0 0.0
        %6870 = vmatmul.mubr.f32.gmra.mxu0 %v3393
        %v6871 = vpop.f32.mrf.mxu0
        %v6872 = vadd.f32 0.0, %v6871
        %v6873 = vpop.f32.mrf.mxu0
        %6874 = vmatprep.mubr.f32.mxu0 0.0
        %6875 = vmatmul.mubr.f32.gmra.mxu0 %v3396
        %v6876 = vpop.f32.mrf.mxu0
        %v6877 = vadd.f32 0.0, %v6876
        %v6878 = vpop.f32.mrf.mxu0
        %6879 = vmatprep.mubr.f32.mxu0 0.0
        %6880 = vmatmul.mubr.f32.gmra.mxu0 %v3399
        %v6881 = vpop.f32.mrf.mxu0
        %v6882 = vadd.f32 0.0, %v6881
        %v6883 = vpop.f32.mrf.mxu0
        %6884 = vmatprep.mubr.f32.mxu0 0.0
        %6885 = vmatmul.mubr.f32.gmra.mxu0 %v3402
        %v6886 = vpop.f32.mrf.mxu0
        %v6887 = vadd.f32 0.0, %v6886
        %v6888 = vpop.f32.mrf.mxu0
        %6889 = vmatprep.mubr.f32.mxu0 0.0
        %6890 = vmatmul.mubr.f32.gmra.mxu0 %v3405
        %v6891 = vpop.f32.mrf.mxu0
        %v6892 = vadd.f32 0.0, %v6891
        %v6893 = vpop.f32.mrf.mxu0
        %6894 = vmatprep.mubr.f32.mxu0 0.0
        %6895 = vmatmul.mubr.f32.gmra.mxu0 %v3408
        %v6896 = vpop.f32.mrf.mxu0
        %v6897 = vadd.f32 0.0, %v6896
        %v6898 = vpop.f32.mrf.mxu0
        %6899 = vmatprep.mubr.f32.mxu0 0.0
        %6900 = vmatmul.mubr.f32.gmra.mxu0 %v3411
        %v6901 = vpop.f32.mrf.mxu0
        %v6902 = vadd.f32 0.0, %v6901
        %v6903 = vpop.f32.mrf.mxu0
        %6904 = vmatprep.mubr.f32.mxu0 0.0
        %6905 = vmatmul.mubr.f32.gmra.mxu0 %v3414
        %v6906 = vpop.f32.mrf.mxu0
        %v6907 = vadd.f32 0.0, %v6906
        %v6908 = vpop.f32.mrf.mxu0
        %6909 = vmatprep.mubr.f32.mxu0 0.0
        %6910 = vmatmul.mubr.f32.gmra.mxu0 %v3417
        %v6911 = vpop.f32.mrf.mxu0
        %v6912 = vadd.f32 0.0, %v6911
        %v6913 = vpop.f32.mrf.mxu0
        %6914 = vmatprep.mubr.f32.mxu0 0.0
        %6915 = vmatmul.mubr.f32.gmra.mxu0 %v3420
        %v6916 = vpop.f32.mrf.mxu0
        %v6917 = vadd.f32 0.0, %v6916
        %v6918 = vpop.f32.mrf.mxu0
        %6919 = vmatprep.mubr.f32.mxu0 0.0
        %6920 = vmatmul.mubr.f32.gmra.mxu0 %v3423
        %v6921 = vpop.f32.mrf.mxu0
        %v6922 = vadd.f32 0.0, %v6921
        %v6923 = vpop.f32.mrf.mxu0
        %6924 = vmatprep.mubr.f32.mxu0 0.0
        %6925 = vmatmul.mubr.f32.gmra.mxu0 %v3426
        %v6926 = vpop.f32.mrf.mxu0
        %v6927 = vadd.f32 0.0, %v6926
        %v6928 = vpop.f32.mrf.mxu0
        %6929 = vmatprep.mubr.f32.mxu0 0.0
        %6930 = vmatmul.mubr.f32.gmra.mxu0 %v3429
        %v6931 = vpop.f32.mrf.mxu0
        %v6932 = vadd.f32 0.0, %v6931
        %v6933 = vpop.f32.mrf.mxu0
        %6934 = vdwg.mxu0
        %s6935 = scalar_lea.vmem %s306, 1920 [#allocation12]
        %6936 = vst [vmem:[%s6935] sm:$0xff] %v6857
        %6937 = vst [vmem:[%s6935 + $0x8] sm:$0xff] %v6862
        %6938 = vst [vmem:[%s6935 + $0x10] sm:$0xff] %v6867
        %6939 = vst [vmem:[%s6935 + $0x18] sm:$0xff] %v6872
        %6940 = vst [vmem:[%s6935 + $0x20] sm:$0xff] %v6877
        %6941 = vst [vmem:[%s6935 + $0x28] sm:$0xff] %v6882
        %6942 = vst [vmem:[%s6935 + $0x30] sm:$0xff] %v6887
        %6943 = vst [vmem:[%s6935 + $0x38] sm:$0xff] %v6892
        %6944 = vst [vmem:[%s6935 + $0x40] sm:$0xff] %v6897
        %6945 = vst [vmem:[%s6935 + $0x48] sm:$0xff] %v6902
        %6946 = vst [vmem:[%s6935 + $0x50] sm:$0xff] %v6907
        %6947 = vst [vmem:[%s6935 + $0x58] sm:$0xff] %v6912
        %6948 = vst [vmem:[%s6935 + $0x60] sm:$0xff] %v6917
        %6949 = vst [vmem:[%s6935 + $0x68] sm:$0xff] %v6922
        %6950 = vst [vmem:[%s6935 + $0x70] sm:$0xff] %v6927
        %6951 = vst [vmem:[%s6935 + $0x78] sm:$0xff] %v6932
        %v6952 = vld [vmem:[#allocation3 + $0x10] sm:$0x1]
        %v6953 = vld [vmem:[#allocation3 + $0x28] sm:$0x1]
        %v6954 = vld [vmem:[#allocation3 + $0x40] sm:$0x1]
        %v6955 = vld [vmem:[#allocation3 + $0x58] sm:$0x1]
        %v6956 = vld [vmem:[#allocation3 + $0x70] sm:$0x1]
        %v6957 = vld [vmem:[#allocation3 + $0x88] sm:$0x1]
        %v6958 = vld [vmem:[#allocation3 + $0xa0] sm:$0x1]
        %v6959 = vld [vmem:[#allocation3 + $0xb8] sm:$0x1]
        %v6960 = vld [vmem:[#allocation3 + $0xd0] sm:$0x1]
        %v6961 = vld [vmem:[#allocation3 + $0xe8] sm:$0x1]
        %v6962 = vld [vmem:[#allocation3 + $0x100] sm:$0x1]
        %v6963 = vld [vmem:[#allocation3 + $0x118] sm:$0x1]
        %v6964 = vld [vmem:[#allocation3 + $0x130] sm:$0x1]
        %v6965 = vld [vmem:[#allocation3 + $0x148] sm:$0x1]
        %v6966 = vld [vmem:[#allocation3 + $0x160] sm:$0x1]
        %v6967 = vld [vmem:[#allocation3 + $0x178] sm:$0x1]
        %v6984 = vrot.slane %v6953, 7
        %v6985 = vsel %vm3347, %v6984, %v6952
        %v6986 = vrot.slane %v6954, 6
        %v6987 = vsel %vm3350, %v6986, %v6985
        %v6988 = vrot.slane %v6955, 5
        %v6989 = vsel %vm3353, %v6988, %v6987
        %v6990 = vrot.slane %v6956, 4
        %v6991 = vsel %vm3356, %v6990, %v6989
        %v6992 = vrot.slane %v6957, 3
        %v6993 = vsel %vm3359, %v6992, %v6991
        %v6994 = vrot.slane %v6958, 2
        %v6995 = vsel %vm3362, %v6994, %v6993
        %v6996 = vrot.slane %v6959, 1
        %v6997 = vsel %vm3365, %v6996, %v6995
        %v6998 = vrot.slane %v6961, 7
        %v6999 = vsel %vm3347, %v6998, %v6960
        %v7000 = vrot.slane %v6962, 6
        %v7001 = vsel %vm3350, %v7000, %v6999
        %v7002 = vrot.slane %v6963, 5
        %v7003 = vsel %vm3353, %v7002, %v7001
        %v7004 = vrot.slane %v6964, 4
        %v7005 = vsel %vm3356, %v7004, %v7003
        %v7006 = vrot.slane %v6965, 3
        %v7007 = vsel %vm3359, %v7006, %v7005
        %v7008 = vrot.slane %v6966, 2
        %v7009 = vsel %vm3362, %v7008, %v7007
        %v7010 = vrot.slane %v6967, 1
        %v7011 = vsel %vm3365, %v7010, %v7009
        %7014 = vmatprep.subr.mxu0 0.0
        %7015 = vmatpush1.msra.mxu0 0.0
        %7016 = vmatprep.subr.mxu0 0.0
        %7017 = vmatpush1.msra.mxu0 0.0
        %7018 = vmatprep.subr.mxu0 0.0
        %7019 = vmatpush1.msra.mxu0 0.0
        %7020 = vmatprep.subr.mxu0 0.0
        %7021 = vmatpush1.msra.mxu0 0.0
        %7022 = vmatprep.subr.mxu0 0.0
        %7023 = vmatpush1.msra.mxu0 0.0
        %7024 = vmatprep.subr.mxu0 0.0
        %7025 = vmatpush1.msra.mxu0 0.0
        %7026 = vmatprep.subr.mxu0 0.0
        %7027 = vmatpush1.msra.mxu0 0.0
        %7028 = vmatprep.subr.mxu0 0.0
        %7029 = vmatpush1.msra.mxu0 0.0
        %7030 = vmatprep.subr.mxu0 0.0
        %7031 = vmatpush1.msra.mxu0 0.0
        %7032 = vmatprep.subr.mxu0 0.0
        %7033 = vmatpush1.msra.mxu0 0.0
        %7034 = vmatprep.subr.mxu0 0.0
        %7035 = vmatpush1.msra.mxu0 0.0
        %7036 = vmatprep.subr.mxu0 0.0
        %7037 = vmatpush1.msra.mxu0 0.0
        %7038 = vmatprep.subr.mxu0 0.0
        %7039 = vmatpush1.msra.mxu0 0.0
        %7040 = vmatprep.subr.mxu0 0.0
        %7041 = vmatpush1.msra.mxu0 0.0
        %7042 = vmatprep.subr.mxu0 0.0
        %7043 = vmatpush1.msra.mxu0 %v7011
        %7044 = vmatprep.subr.mxu0 0.0
        %7045 = vmatpush1.msra.mxu0 %v6997
        %7046 = vmatprep.subr.mxu0 0.0
        %7047 = vmatpush2.msra.mxu0 0.0
        %7048 = vmatprep.subr.mxu0 0.0
        %7049 = vmatpush2.msra.mxu0 0.0
        %7050 = vmatprep.subr.mxu0 0.0
        %7051 = vmatpush2.msra.mxu0 0.0
        %7052 = vmatprep.subr.mxu0 0.0
        %7053 = vmatpush2.msra.mxu0 0.0
        %7054 = vmatprep.subr.mxu0 0.0
        %7055 = vmatpush2.msra.mxu0 0.0
        %7056 = vmatprep.subr.mxu0 0.0
        %7057 = vmatpush2.msra.mxu0 0.0
        %7058 = vmatprep.subr.mxu0 0.0
        %7059 = vmatpush2.msra.mxu0 0.0
        %7060 = vmatprep.subr.mxu0 0.0
        %7061 = vmatpush2.msra.mxu0 0.0
        %7062 = vmatprep.subr.mxu0 0.0
        %7063 = vmatpush2.msra.mxu0 0.0
        %7064 = vmatprep.subr.mxu0 0.0
        %7065 = vmatpush2.msra.mxu0 0.0
        %7066 = vmatprep.subr.mxu0 0.0
        %7067 = vmatpush2.msra.mxu0 0.0
        %7068 = vmatprep.subr.mxu0 0.0
        %7069 = vmatpush2.msra.mxu0 0.0
        %7070 = vmatprep.subr.mxu0 0.0
        %7071 = vmatpush2.msra.mxu0 0.0
        %7072 = vmatprep.subr.mxu0 0.0
        %7073 = vmatpush2.msra.mxu0 0.0
        %7074 = vmatprep.subr.mxu0 0.0
        %7075 = vmatpush2.msra.mxu0 0.0
        %7076 = vmatprep.subr.mxu0 0.0
        %7077 = vmatpush2.msra.mxu0 0.0
        %7078 = vmatprep.mubr.f32.mxu0 0.0
        %7079 = vmatmul.mubr.f32.gmra.mxu0 %v3384
        %v7080 = vpop.f32.mrf.mxu0
        %v7081 = vadd.f32 0.0, %v7080
        %v7082 = vpop.f32.mrf.mxu0
        %7083 = vmatprep.mubr.f32.mxu0 0.0
        %7084 = vmatmul.mubr.f32.gmra.mxu0 %v3387
        %v7085 = vpop.f32.mrf.mxu0
        %v7086 = vadd.f32 0.0, %v7085
        %v7087 = vpop.f32.mrf.mxu0
        %7088 = vmatprep.mubr.f32.mxu0 0.0
        %7089 = vmatmul.mubr.f32.gmra.mxu0 %v3390
        %v7090 = vpop.f32.mrf.mxu0
        %v7091 = vadd.f32 0.0, %v7090
        %v7092 = vpop.f32.mrf.mxu0
        %7093 = vmatprep.mubr.f32.mxu0 0.0
        %7094 = vmatmul.mubr.f32.gmra.mxu0 %v3393
        %v7095 = vpop.f32.mrf.mxu0
        %v7096 = vadd.f32 0.0, %v7095
        %v7097 = vpop.f32.mrf.mxu0
        %7098 = vmatprep.mubr.f32.mxu0 0.0
        %7099 = vmatmul.mubr.f32.gmra.mxu0 %v3396
        %v7100 = vpop.f32.mrf.mxu0
        %v7101 = vadd.f32 0.0, %v7100
        %v7102 = vpop.f32.mrf.mxu0
        %7103 = vmatprep.mubr.f32.mxu0 0.0
        %7104 = vmatmul.mubr.f32.gmra.mxu0 %v3399
        %v7105 = vpop.f32.mrf.mxu0
        %v7106 = vadd.f32 0.0, %v7105
        %v7107 = vpop.f32.mrf.mxu0
        %7108 = vmatprep.mubr.f32.mxu0 0.0
        %7109 = vmatmul.mubr.f32.gmra.mxu0 %v3402
        %v7110 = vpop.f32.mrf.mxu0
        %v7111 = vadd.f32 0.0, %v7110
        %v7112 = vpop.f32.mrf.mxu0
        %7113 = vmatprep.mubr.f32.mxu0 0.0
        %7114 = vmatmul.mubr.f32.gmra.mxu0 %v3405
        %v7115 = vpop.f32.mrf.mxu0
        %v7116 = vadd.f32 0.0, %v7115
        %v7117 = vpop.f32.mrf.mxu0
        %7118 = vmatprep.mubr.f32.mxu0 0.0
        %7119 = vmatmul.mubr.f32.gmra.mxu0 %v3408
        %v7120 = vpop.f32.mrf.mxu0
        %v7121 = vadd.f32 0.0, %v7120
        %v7122 = vpop.f32.mrf.mxu0
        %7123 = vmatprep.mubr.f32.mxu0 0.0
        %7124 = vmatmul.mubr.f32.gmra.mxu0 %v3411
        %v7125 = vpop.f32.mrf.mxu0
        %v7126 = vadd.f32 0.0, %v7125
        %v7127 = vpop.f32.mrf.mxu0
        %7128 = vmatprep.mubr.f32.mxu0 0.0
        %7129 = vmatmul.mubr.f32.gmra.mxu0 %v3414
        %v7130 = vpop.f32.mrf.mxu0
        %v7131 = vadd.f32 0.0, %v7130
        %v7132 = vpop.f32.mrf.mxu0
        %7133 = vmatprep.mubr.f32.mxu0 0.0
        %7134 = vmatmul.mubr.f32.gmra.mxu0 %v3417
        %v7135 = vpop.f32.mrf.mxu0
        %v7136 = vadd.f32 0.0, %v7135
        %v7137 = vpop.f32.mrf.mxu0
        %7138 = vmatprep.mubr.f32.mxu0 0.0
        %7139 = vmatmul.mubr.f32.gmra.mxu0 %v3420
        %v7140 = vpop.f32.mrf.mxu0
        %v7141 = vadd.f32 0.0, %v7140
        %v7142 = vpop.f32.mrf.mxu0
        %7143 = vmatprep.mubr.f32.mxu0 0.0
        %7144 = vmatmul.mubr.f32.gmra.mxu0 %v3423
        %v7145 = vpop.f32.mrf.mxu0
        %v7146 = vadd.f32 0.0, %v7145
        %v7147 = vpop.f32.mrf.mxu0
        %7148 = vmatprep.mubr.f32.mxu0 0.0
        %7149 = vmatmul.mubr.f32.gmra.mxu0 %v3426
        %v7150 = vpop.f32.mrf.mxu0
        %v7151 = vadd.f32 0.0, %v7150
        %v7152 = vpop.f32.mrf.mxu0
        %7153 = vmatprep.mubr.f32.mxu0 0.0
        %7154 = vmatmul.mubr.f32.gmra.mxu0 %v3429
        %v7155 = vpop.f32.mrf.mxu0
        %v7156 = vadd.f32 0.0, %v7155
        %v7157 = vpop.f32.mrf.mxu0
        %7158 = vdwg.mxu0
        %s7159 = scalar_lea.vmem %s306, 2048 [#allocation12]
        %7160 = vst [vmem:[%s7159] sm:$0xff] %v7081
        %7161 = vst [vmem:[%s7159 + $0x8] sm:$0xff] %v7086
        %7162 = vst [vmem:[%s7159 + $0x10] sm:$0xff] %v7091
        %7163 = vst [vmem:[%s7159 + $0x18] sm:$0xff] %v7096
        %7164 = vst [vmem:[%s7159 + $0x20] sm:$0xff] %v7101
        %7165 = vst [vmem:[%s7159 + $0x28] sm:$0xff] %v7106
        %7166 = vst [vmem:[%s7159 + $0x30] sm:$0xff] %v7111
        %7167 = vst [vmem:[%s7159 + $0x38] sm:$0xff] %v7116
        %7168 = vst [vmem:[%s7159 + $0x40] sm:$0xff] %v7121
        %7169 = vst [vmem:[%s7159 + $0x48] sm:$0xff] %v7126
        %7170 = vst [vmem:[%s7159 + $0x50] sm:$0xff] %v7131
        %7171 = vst [vmem:[%s7159 + $0x58] sm:$0xff] %v7136
        %7172 = vst [vmem:[%s7159 + $0x60] sm:$0xff] %v7141
        %7173 = vst [vmem:[%s7159 + $0x68] sm:$0xff] %v7146
        %7174 = vst [vmem:[%s7159 + $0x70] sm:$0xff] %v7151
        %7175 = vst [vmem:[%s7159 + $0x78] sm:$0xff] %v7156
        %v7176 = vld [vmem:[#allocation3 + $0x11] sm:$0x1]
        %v7177 = vld [vmem:[#allocation3 + $0x29] sm:$0x1]
        %v7178 = vld [vmem:[#allocation3 + $0x41] sm:$0x1]
        %v7179 = vld [vmem:[#allocation3 + $0x59] sm:$0x1]
        %v7180 = vld [vmem:[#allocation3 + $0x71] sm:$0x1]
        %v7181 = vld [vmem:[#allocation3 + $0x89] sm:$0x1]
        %v7182 = vld [vmem:[#allocation3 + $0xa1] sm:$0x1]
        %v7183 = vld [vmem:[#allocation3 + $0xb9] sm:$0x1]
        %v7184 = vld [vmem:[#allocation3 + $0xd1] sm:$0x1]
        %v7185 = vld [vmem:[#allocation3 + $0xe9] sm:$0x1]
        %v7186 = vld [vmem:[#allocation3 + $0x101] sm:$0x1]
        %v7187 = vld [vmem:[#allocation3 + $0x119] sm:$0x1]
        %v7188 = vld [vmem:[#allocation3 + $0x131] sm:$0x1]
        %v7189 = vld [vmem:[#allocation3 + $0x149] sm:$0x1]
        %v7190 = vld [vmem:[#allocation3 + $0x161] sm:$0x1]
        %v7191 = vld [vmem:[#allocation3 + $0x179] sm:$0x1]
        %v7208 = vrot.slane %v7177, 7
        %v7209 = vsel %vm3347, %v7208, %v7176
        %v7210 = vrot.slane %v7178, 6
        %v7211 = vsel %vm3350, %v7210, %v7209
        %v7212 = vrot.slane %v7179, 5
        %v7213 = vsel %vm3353, %v7212, %v7211
        %v7214 = vrot.slane %v7180, 4
        %v7215 = vsel %vm3356, %v7214, %v7213
        %v7216 = vrot.slane %v7181, 3
        %v7217 = vsel %vm3359, %v7216, %v7215
        %v7218 = vrot.slane %v7182, 2
        %v7219 = vsel %vm3362, %v7218, %v7217
        %v7220 = vrot.slane %v7183, 1
        %v7221 = vsel %vm3365, %v7220, %v7219
        %v7222 = vrot.slane %v7185, 7
        %v7223 = vsel %vm3347, %v7222, %v7184
        %v7224 = vrot.slane %v7186, 6
        %v7225 = vsel %vm3350, %v7224, %v7223
        %v7226 = vrot.slane %v7187, 5
        %v7227 = vsel %vm3353, %v7226, %v7225
        %v7228 = vrot.slane %v7188, 4
        %v7229 = vsel %vm3356, %v7228, %v7227
        %v7230 = vrot.slane %v7189, 3
        %v7231 = vsel %vm3359, %v7230, %v7229
        %v7232 = vrot.slane %v7190, 2
        %v7233 = vsel %vm3362, %v7232, %v7231
        %v7234 = vrot.slane %v7191, 1
        %v7235 = vsel %vm3365, %v7234, %v7233
        %7238 = vmatprep.subr.mxu0 0.0
        %7239 = vmatpush1.msra.mxu0 0.0
        %7240 = vmatprep.subr.mxu0 0.0
        %7241 = vmatpush1.msra.mxu0 0.0
        %7242 = vmatprep.subr.mxu0 0.0
        %7243 = vmatpush1.msra.mxu0 0.0
        %7244 = vmatprep.subr.mxu0 0.0
        %7245 = vmatpush1.msra.mxu0 0.0
        %7246 = vmatprep.subr.mxu0 0.0
        %7247 = vmatpush1.msra.mxu0 0.0
        %7248 = vmatprep.subr.mxu0 0.0
        %7249 = vmatpush1.msra.mxu0 0.0
        %7250 = vmatprep.subr.mxu0 0.0
        %7251 = vmatpush1.msra.mxu0 0.0
        %7252 = vmatprep.subr.mxu0 0.0
        %7253 = vmatpush1.msra.mxu0 0.0
        %7254 = vmatprep.subr.mxu0 0.0
        %7255 = vmatpush1.msra.mxu0 0.0
        %7256 = vmatprep.subr.mxu0 0.0
        %7257 = vmatpush1.msra.mxu0 0.0
        %7258 = vmatprep.subr.mxu0 0.0
        %7259 = vmatpush1.msra.mxu0 0.0
        %7260 = vmatprep.subr.mxu0 0.0
        %7261 = vmatpush1.msra.mxu0 0.0
        %7262 = vmatprep.subr.mxu0 0.0
        %7263 = vmatpush1.msra.mxu0 0.0
        %7264 = vmatprep.subr.mxu0 0.0
        %7265 = vmatpush1.msra.mxu0 0.0
        %7266 = vmatprep.subr.mxu0 0.0
        %7267 = vmatpush1.msra.mxu0 %v7235
        %7268 = vmatprep.subr.mxu0 0.0
        %7269 = vmatpush1.msra.mxu0 %v7221
        %7270 = vmatprep.subr.mxu0 0.0
        %7271 = vmatpush2.msra.mxu0 0.0
        %7272 = vmatprep.subr.mxu0 0.0
        %7273 = vmatpush2.msra.mxu0 0.0
        %7274 = vmatprep.subr.mxu0 0.0
        %7275 = vmatpush2.msra.mxu0 0.0
        %7276 = vmatprep.subr.mxu0 0.0
        %7277 = vmatpush2.msra.mxu0 0.0
        %7278 = vmatprep.subr.mxu0 0.0
        %7279 = vmatpush2.msra.mxu0 0.0
        %7280 = vmatprep.subr.mxu0 0.0
        %7281 = vmatpush2.msra.mxu0 0.0
        %7282 = vmatprep.subr.mxu0 0.0
        %7283 = vmatpush2.msra.mxu0 0.0
        %7284 = vmatprep.subr.mxu0 0.0
        %7285 = vmatpush2.msra.mxu0 0.0
        %7286 = vmatprep.subr.mxu0 0.0
        %7287 = vmatpush2.msra.mxu0 0.0
        %7288 = vmatprep.subr.mxu0 0.0
        %7289 = vmatpush2.msra.mxu0 0.0
        %7290 = vmatprep.subr.mxu0 0.0
        %7291 = vmatpush2.msra.mxu0 0.0
        %7292 = vmatprep.subr.mxu0 0.0
        %7293 = vmatpush2.msra.mxu0 0.0
        %7294 = vmatprep.subr.mxu0 0.0
        %7295 = vmatpush2.msra.mxu0 0.0
        %7296 = vmatprep.subr.mxu0 0.0
        %7297 = vmatpush2.msra.mxu0 0.0
        %7298 = vmatprep.subr.mxu0 0.0
        %7299 = vmatpush2.msra.mxu0 0.0
        %7300 = vmatprep.subr.mxu0 0.0
        %7301 = vmatpush2.msra.mxu0 0.0
        %7302 = vmatprep.mubr.f32.mxu0 0.0
        %7303 = vmatmul.mubr.f32.gmra.mxu0 %v3384
        %v7304 = vpop.f32.mrf.mxu0
        %v7305 = vadd.f32 0.0, %v7304
        %v7306 = vpop.f32.mrf.mxu0
        %7307 = vmatprep.mubr.f32.mxu0 0.0
        %7308 = vmatmul.mubr.f32.gmra.mxu0 %v3387
        %v7309 = vpop.f32.mrf.mxu0
        %v7310 = vadd.f32 0.0, %v7309
        %v7311 = vpop.f32.mrf.mxu0
        %7312 = vmatprep.mubr.f32.mxu0 0.0
        %7313 = vmatmul.mubr.f32.gmra.mxu0 %v3390
        %v7314 = vpop.f32.mrf.mxu0
        %v7315 = vadd.f32 0.0, %v7314
        %v7316 = vpop.f32.mrf.mxu0
        %7317 = vmatprep.mubr.f32.mxu0 0.0
        %7318 = vmatmul.mubr.f32.gmra.mxu0 %v3393
        %v7319 = vpop.f32.mrf.mxu0
        %v7320 = vadd.f32 0.0, %v7319
        %v7321 = vpop.f32.mrf.mxu0
        %7322 = vmatprep.mubr.f32.mxu0 0.0
        %7323 = vmatmul.mubr.f32.gmra.mxu0 %v3396
        %v7324 = vpop.f32.mrf.mxu0
        %v7325 = vadd.f32 0.0, %v7324
        %v7326 = vpop.f32.mrf.mxu0
        %7327 = vmatprep.mubr.f32.mxu0 0.0
        %7328 = vmatmul.mubr.f32.gmra.mxu0 %v3399
        %v7329 = vpop.f32.mrf.mxu0
        %v7330 = vadd.f32 0.0, %v7329
        %v7331 = vpop.f32.mrf.mxu0
        %7332 = vmatprep.mubr.f32.mxu0 0.0
        %7333 = vmatmul.mubr.f32.gmra.mxu0 %v3402
        %v7334 = vpop.f32.mrf.mxu0
        %v7335 = vadd.f32 0.0, %v7334
        %v7336 = vpop.f32.mrf.mxu0
        %7337 = vmatprep.mubr.f32.mxu0 0.0
        %7338 = vmatmul.mubr.f32.gmra.mxu0 %v3405
        %v7339 = vpop.f32.mrf.mxu0
        %v7340 = vadd.f32 0.0, %v7339
        %v7341 = vpop.f32.mrf.mxu0
        %7342 = vmatprep.mubr.f32.mxu0 0.0
        %7343 = vmatmul.mubr.f32.gmra.mxu0 %v3408
        %v7344 = vpop.f32.mrf.mxu0
        %v7345 = vadd.f32 0.0, %v7344
        %v7346 = vpop.f32.mrf.mxu0
        %7347 = vmatprep.mubr.f32.mxu0 0.0
        %7348 = vmatmul.mubr.f32.gmra.mxu0 %v3411
        %v7349 = vpop.f32.mrf.mxu0
        %v7350 = vadd.f32 0.0, %v7349
        %v7351 = vpop.f32.mrf.mxu0
        %7352 = vmatprep.mubr.f32.mxu0 0.0
        %7353 = vmatmul.mubr.f32.gmra.mxu0 %v3414
        %v7354 = vpop.f32.mrf.mxu0
        %v7355 = vadd.f32 0.0, %v7354
        %v7356 = vpop.f32.mrf.mxu0
        %7357 = vmatprep.mubr.f32.mxu0 0.0
        %7358 = vmatmul.mubr.f32.gmra.mxu0 %v3417
        %v7359 = vpop.f32.mrf.mxu0
        %v7360 = vadd.f32 0.0, %v7359
        %v7361 = vpop.f32.mrf.mxu0
        %7362 = vmatprep.mubr.f32.mxu0 0.0
        %7363 = vmatmul.mubr.f32.gmra.mxu0 %v3420
        %v7364 = vpop.f32.mrf.mxu0
        %v7365 = vadd.f32 0.0, %v7364
        %v7366 = vpop.f32.mrf.mxu0
        %7367 = vmatprep.mubr.f32.mxu0 0.0
        %7368 = vmatmul.mubr.f32.gmra.mxu0 %v3423
        %v7369 = vpop.f32.mrf.mxu0
        %v7370 = vadd.f32 0.0, %v7369
        %v7371 = vpop.f32.mrf.mxu0
        %7372 = vmatprep.mubr.f32.mxu0 0.0
        %7373 = vmatmul.mubr.f32.gmra.mxu0 %v3426
        %v7374 = vpop.f32.mrf.mxu0
        %v7375 = vadd.f32 0.0, %v7374
        %v7376 = vpop.f32.mrf.mxu0
        %7377 = vmatprep.mubr.f32.mxu0 0.0
        %7378 = vmatmul.mubr.f32.gmra.mxu0 %v3429
        %v7379 = vpop.f32.mrf.mxu0
        %v7380 = vadd.f32 0.0, %v7379
        %v7381 = vpop.f32.mrf.mxu0
        %7382 = vdwg.mxu0
        %s7383 = scalar_lea.vmem %s306, 2176 [#allocation12]
        %7384 = vst [vmem:[%s7383] sm:$0xff] %v7305
        %7385 = vst [vmem:[%s7383 + $0x8] sm:$0xff] %v7310
        %7386 = vst [vmem:[%s7383 + $0x10] sm:$0xff] %v7315
        %7387 = vst [vmem:[%s7383 + $0x18] sm:$0xff] %v7320
        %7388 = vst [vmem:[%s7383 + $0x20] sm:$0xff] %v7325
        %7389 = vst [vmem:[%s7383 + $0x28] sm:$0xff] %v7330
        %7390 = vst [vmem:[%s7383 + $0x30] sm:$0xff] %v7335
        %7391 = vst [vmem:[%s7383 + $0x38] sm:$0xff] %v7340
        %7392 = vst [vmem:[%s7383 + $0x40] sm:$0xff] %v7345
        %7393 = vst [vmem:[%s7383 + $0x48] sm:$0xff] %v7350
        %7394 = vst [vmem:[%s7383 + $0x50] sm:$0xff] %v7355
        %7395 = vst [vmem:[%s7383 + $0x58] sm:$0xff] %v7360
        %7396 = vst [vmem:[%s7383 + $0x60] sm:$0xff] %v7365
        %7397 = vst [vmem:[%s7383 + $0x68] sm:$0xff] %v7370
        %7398 = vst [vmem:[%s7383 + $0x70] sm:$0xff] %v7375
        %7399 = vst [vmem:[%s7383 + $0x78] sm:$0xff] %v7380
        %v7400 = vld [vmem:[#allocation3 + $0x12] sm:$0x1]
        %v7401 = vld [vmem:[#allocation3 + $0x2a] sm:$0x1]
        %v7402 = vld [vmem:[#allocation3 + $0x42] sm:$0x1]
        %v7403 = vld [vmem:[#allocation3 + $0x5a] sm:$0x1]
        %v7404 = vld [vmem:[#allocation3 + $0x72] sm:$0x1]
        %v7405 = vld [vmem:[#allocation3 + $0x8a] sm:$0x1]
        %v7406 = vld [vmem:[#allocation3 + $0xa2] sm:$0x1]
        %v7407 = vld [vmem:[#allocation3 + $0xba] sm:$0x1]
        %v7408 = vld [vmem:[#allocation3 + $0xd2] sm:$0x1]
        %v7409 = vld [vmem:[#allocation3 + $0xea] sm:$0x1]
        %v7410 = vld [vmem:[#allocation3 + $0x102] sm:$0x1]
        %v7411 = vld [vmem:[#allocation3 + $0x11a] sm:$0x1]
        %v7412 = vld [vmem:[#allocation3 + $0x132] sm:$0x1]
        %v7413 = vld [vmem:[#allocation3 + $0x14a] sm:$0x1]
        %v7414 = vld [vmem:[#allocation3 + $0x162] sm:$0x1]
        %v7415 = vld [vmem:[#allocation3 + $0x17a] sm:$0x1]
        %v7432 = vrot.slane %v7401, 7
        %v7433 = vsel %vm3347, %v7432, %v7400
        %v7434 = vrot.slane %v7402, 6
        %v7435 = vsel %vm3350, %v7434, %v7433
        %v7436 = vrot.slane %v7403, 5
        %v7437 = vsel %vm3353, %v7436, %v7435
        %v7438 = vrot.slane %v7404, 4
        %v7439 = vsel %vm3356, %v7438, %v7437
        %v7440 = vrot.slane %v7405, 3
        %v7441 = vsel %vm3359, %v7440, %v7439
        %v7442 = vrot.slane %v7406, 2
        %v7443 = vsel %vm3362, %v7442, %v7441
        %v7444 = vrot.slane %v7407, 1
        %v7445 = vsel %vm3365, %v7444, %v7443
        %v7446 = vrot.slane %v7409, 7
        %v7447 = vsel %vm3347, %v7446, %v7408
        %v7448 = vrot.slane %v7410, 6
        %v7449 = vsel %vm3350, %v7448, %v7447
        %v7450 = vrot.slane %v7411, 5
        %v7451 = vsel %vm3353, %v7450, %v7449
        %v7452 = vrot.slane %v7412, 4
        %v7453 = vsel %vm3356, %v7452, %v7451
        %v7454 = vrot.slane %v7413, 3
        %v7455 = vsel %vm3359, %v7454, %v7453
        %v7456 = vrot.slane %v7414, 2
        %v7457 = vsel %vm3362, %v7456, %v7455
        %v7458 = vrot.slane %v7415, 1
        %v7459 = vsel %vm3365, %v7458, %v7457
        %7462 = vmatprep.subr.mxu0 0.0
        %7463 = vmatpush1.msra.mxu0 0.0
        %7464 = vmatprep.subr.mxu0 0.0
        %7465 = vmatpush1.msra.mxu0 0.0
        %7466 = vmatprep.subr.mxu0 0.0
        %7467 = vmatpush1.msra.mxu0 0.0
        %7468 = vmatprep.subr.mxu0 0.0
        %7469 = vmatpush1.msra.mxu0 0.0
        %7470 = vmatprep.subr.mxu0 0.0
        %7471 = vmatpush1.msra.mxu0 0.0
        %7472 = vmatprep.subr.mxu0 0.0
        %7473 = vmatpush1.msra.mxu0 0.0
        %7474 = vmatprep.subr.mxu0 0.0
        %7475 = vmatpush1.msra.mxu0 0.0
        %7476 = vmatprep.subr.mxu0 0.0
        %7477 = vmatpush1.msra.mxu0 0.0
        %7478 = vmatprep.subr.mxu0 0.0
        %7479 = vmatpush1.msra.mxu0 0.0
        %7480 = vmatprep.subr.mxu0 0.0
        %7481 = vmatpush1.msra.mxu0 0.0
        %7482 = vmatprep.subr.mxu0 0.0
        %7483 = vmatpush1.msra.mxu0 0.0
        %7484 = vmatprep.subr.mxu0 0.0
        %7485 = vmatpush1.msra.mxu0 0.0
        %7486 = vmatprep.subr.mxu0 0.0
        %7487 = vmatpush1.msra.mxu0 0.0
        %7488 = vmatprep.subr.mxu0 0.0
        %7489 = vmatpush1.msra.mxu0 0.0
        %7490 = vmatprep.subr.mxu0 0.0
        %7491 = vmatpush1.msra.mxu0 %v7459
        %7492 = vmatprep.subr.mxu0 0.0
        %7493 = vmatpush1.msra.mxu0 %v7445
        %7494 = vmatprep.subr.mxu0 0.0
        %7495 = vmatpush2.msra.mxu0 0.0
        %7496 = vmatprep.subr.mxu0 0.0
        %7497 = vmatpush2.msra.mxu0 0.0
        %7498 = vmatprep.subr.mxu0 0.0
        %7499 = vmatpush2.msra.mxu0 0.0
        %7500 = vmatprep.subr.mxu0 0.0
        %7501 = vmatpush2.msra.mxu0 0.0
        %7502 = vmatprep.subr.mxu0 0.0
        %7503 = vmatpush2.msra.mxu0 0.0
        %7504 = vmatprep.subr.mxu0 0.0
        %7505 = vmatpush2.msra.mxu0 0.0
        %7506 = vmatprep.subr.mxu0 0.0
        %7507 = vmatpush2.msra.mxu0 0.0
        %7508 = vmatprep.subr.mxu0 0.0
        %7509 = vmatpush2.msra.mxu0 0.0
        %7510 = vmatprep.subr.mxu0 0.0
        %7511 = vmatpush2.msra.mxu0 0.0
        %7512 = vmatprep.subr.mxu0 0.0
        %7513 = vmatpush2.msra.mxu0 0.0
        %7514 = vmatprep.subr.mxu0 0.0
        %7515 = vmatpush2.msra.mxu0 0.0
        %7516 = vmatprep.subr.mxu0 0.0
        %7517 = vmatpush2.msra.mxu0 0.0
        %7518 = vmatprep.subr.mxu0 0.0
        %7519 = vmatpush2.msra.mxu0 0.0
        %7520 = vmatprep.subr.mxu0 0.0
        %7521 = vmatpush2.msra.mxu0 0.0
        %7522 = vmatprep.subr.mxu0 0.0
        %7523 = vmatpush2.msra.mxu0 0.0
        %7524 = vmatprep.subr.mxu0 0.0
        %7525 = vmatpush2.msra.mxu0 0.0
        %7526 = vmatprep.mubr.f32.mxu0 0.0
        %7527 = vmatmul.mubr.f32.gmra.mxu0 %v3384
        %v7528 = vpop.f32.mrf.mxu0
        %v7529 = vadd.f32 0.0, %v7528
        %v7530 = vpop.f32.mrf.mxu0
        %7531 = vmatprep.mubr.f32.mxu0 0.0
        %7532 = vmatmul.mubr.f32.gmra.mxu0 %v3387
        %v7533 = vpop.f32.mrf.mxu0
        %v7534 = vadd.f32 0.0, %v7533
        %v7535 = vpop.f32.mrf.mxu0
        %7536 = vmatprep.mubr.f32.mxu0 0.0
        %7537 = vmatmul.mubr.f32.gmra.mxu0 %v3390
        %v7538 = vpop.f32.mrf.mxu0
        %v7539 = vadd.f32 0.0, %v7538
        %v7540 = vpop.f32.mrf.mxu0
        %7541 = vmatprep.mubr.f32.mxu0 0.0
        %7542 = vmatmul.mubr.f32.gmra.mxu0 %v3393
        %v7543 = vpop.f32.mrf.mxu0
        %v7544 = vadd.f32 0.0, %v7543
        %v7545 = vpop.f32.mrf.mxu0
        %7546 = vmatprep.mubr.f32.mxu0 0.0
        %7547 = vmatmul.mubr.f32.gmra.mxu0 %v3396
        %v7548 = vpop.f32.mrf.mxu0
        %v7549 = vadd.f32 0.0, %v7548
        %v7550 = vpop.f32.mrf.mxu0
        %7551 = vmatprep.mubr.f32.mxu0 0.0
        %7552 = vmatmul.mubr.f32.gmra.mxu0 %v3399
        %v7553 = vpop.f32.mrf.mxu0
        %v7554 = vadd.f32 0.0, %v7553
        %v7555 = vpop.f32.mrf.mxu0
        %7556 = vmatprep.mubr.f32.mxu0 0.0
        %7557 = vmatmul.mubr.f32.gmra.mxu0 %v3402
        %v7558 = vpop.f32.mrf.mxu0
        %v7559 = vadd.f32 0.0, %v7558
        %v7560 = vpop.f32.mrf.mxu0
        %7561 = vmatprep.mubr.f32.mxu0 0.0
        %7562 = vmatmul.mubr.f32.gmra.mxu0 %v3405
        %v7563 = vpop.f32.mrf.mxu0
        %v7564 = vadd.f32 0.0, %v7563
        %v7565 = vpop.f32.mrf.mxu0
        %7566 = vmatprep.mubr.f32.mxu0 0.0
        %7567 = vmatmul.mubr.f32.gmra.mxu0 %v3408
        %v7568 = vpop.f32.mrf.mxu0
        %v7569 = vadd.f32 0.0, %v7568
        %v7570 = vpop.f32.mrf.mxu0
        %7571 = vmatprep.mubr.f32.mxu0 0.0
        %7572 = vmatmul.mubr.f32.gmra.mxu0 %v3411
        %v7573 = vpop.f32.mrf.mxu0
        %v7574 = vadd.f32 0.0, %v7573
        %v7575 = vpop.f32.mrf.mxu0
        %7576 = vmatprep.mubr.f32.mxu0 0.0
        %7577 = vmatmul.mubr.f32.gmra.mxu0 %v3414
        %v7578 = vpop.f32.mrf.mxu0
        %v7579 = vadd.f32 0.0, %v7578
        %v7580 = vpop.f32.mrf.mxu0
        %7581 = vmatprep.mubr.f32.mxu0 0.0
        %7582 = vmatmul.mubr.f32.gmra.mxu0 %v3417
        %v7583 = vpop.f32.mrf.mxu0
        %v7584 = vadd.f32 0.0, %v7583
        %v7585 = vpop.f32.mrf.mxu0
        %7586 = vmatprep.mubr.f32.mxu0 0.0
        %7587 = vmatmul.mubr.f32.gmra.mxu0 %v3420
        %v7588 = vpop.f32.mrf.mxu0
        %v7589 = vadd.f32 0.0, %v7588
        %v7590 = vpop.f32.mrf.mxu0
        %7591 = vmatprep.mubr.f32.mxu0 0.0
        %7592 = vmatmul.mubr.f32.gmra.mxu0 %v3423
        %v7593 = vpop.f32.mrf.mxu0
        %v7594 = vadd.f32 0.0, %v7593
        %v7595 = vpop.f32.mrf.mxu0
        %7596 = vmatprep.mubr.f32.mxu0 0.0
        %7597 = vmatmul.mubr.f32.gmra.mxu0 %v3426
        %v7598 = vpop.f32.mrf.mxu0
        %v7599 = vadd.f32 0.0, %v7598
        %v7600 = vpop.f32.mrf.mxu0
        %7601 = vmatprep.mubr.f32.mxu0 0.0
        %7602 = vmatmul.mubr.f32.gmra.mxu0 %v3429
        %v7603 = vpop.f32.mrf.mxu0
        %v7604 = vadd.f32 0.0, %v7603
        %v7605 = vpop.f32.mrf.mxu0
        %7606 = vdwg.mxu0
        %s7607 = scalar_lea.vmem %s306, 2304 [#allocation12]
        %7608 = vst [vmem:[%s7607] sm:$0xff] %v7529
        %7609 = vst [vmem:[%s7607 + $0x8] sm:$0xff] %v7534
        %7610 = vst [vmem:[%s7607 + $0x10] sm:$0xff] %v7539
        %7611 = vst [vmem:[%s7607 + $0x18] sm:$0xff] %v7544
        %7612 = vst [vmem:[%s7607 + $0x20] sm:$0xff] %v7549
        %7613 = vst [vmem:[%s7607 + $0x28] sm:$0xff] %v7554
        %7614 = vst [vmem:[%s7607 + $0x30] sm:$0xff] %v7559
        %7615 = vst [vmem:[%s7607 + $0x38] sm:$0xff] %v7564
        %7616 = vst [vmem:[%s7607 + $0x40] sm:$0xff] %v7569
        %7617 = vst [vmem:[%s7607 + $0x48] sm:$0xff] %v7574
        %7618 = vst [vmem:[%s7607 + $0x50] sm:$0xff] %v7579
        %7619 = vst [vmem:[%s7607 + $0x58] sm:$0xff] %v7584
        %7620 = vst [vmem:[%s7607 + $0x60] sm:$0xff] %v7589
        %7621 = vst [vmem:[%s7607 + $0x68] sm:$0xff] %v7594
        %7622 = vst [vmem:[%s7607 + $0x70] sm:$0xff] %v7599
        %7623 = vst [vmem:[%s7607 + $0x78] sm:$0xff] %v7604
        %v7624 = vld [vmem:[#allocation3 + $0x13] sm:$0x1]
        %v7625 = vld [vmem:[#allocation3 + $0x2b] sm:$0x1]
        %v7626 = vld [vmem:[#allocation3 + $0x43] sm:$0x1]
        %v7627 = vld [vmem:[#allocation3 + $0x5b] sm:$0x1]
        %v7628 = vld [vmem:[#allocation3 + $0x73] sm:$0x1]
        %v7629 = vld [vmem:[#allocation3 + $0x8b] sm:$0x1]
        %v7630 = vld [vmem:[#allocation3 + $0xa3] sm:$0x1]
        %v7631 = vld [vmem:[#allocation3 + $0xbb] sm:$0x1]
        %v7632 = vld [vmem:[#allocation3 + $0xd3] sm:$0x1]
        %v7633 = vld [vmem:[#allocation3 + $0xeb] sm:$0x1]
        %v7634 = vld [vmem:[#allocation3 + $0x103] sm:$0x1]
        %v7635 = vld [vmem:[#allocation3 + $0x11b] sm:$0x1]
        %v7636 = vld [vmem:[#allocation3 + $0x133] sm:$0x1]
        %v7637 = vld [vmem:[#allocation3 + $0x14b] sm:$0x1]
        %v7638 = vld [vmem:[#allocation3 + $0x163] sm:$0x1]
        %v7639 = vld [vmem:[#allocation3 + $0x17b] sm:$0x1]
        %v7656 = vrot.slane %v7625, 7
        %v7657 = vsel %vm3347, %v7656, %v7624
        %v7658 = vrot.slane %v7626, 6
        %v7659 = vsel %vm3350, %v7658, %v7657
        %v7660 = vrot.slane %v7627, 5
        %v7661 = vsel %vm3353, %v7660, %v7659
        %v7662 = vrot.slane %v7628, 4
        %v7663 = vsel %vm3356, %v7662, %v7661
        %v7664 = vrot.slane %v7629, 3
        %v7665 = vsel %vm3359, %v7664, %v7663
        %v7666 = vrot.slane %v7630, 2
        %v7667 = vsel %vm3362, %v7666, %v7665
        %v7668 = vrot.slane %v7631, 1
        %v7669 = vsel %vm3365, %v7668, %v7667
        %v7670 = vrot.slane %v7633, 7
        %v7671 = vsel %vm3347, %v7670, %v7632
        %v7672 = vrot.slane %v7634, 6
        %v7673 = vsel %vm3350, %v7672, %v7671
        %v7674 = vrot.slane %v7635, 5
        %v7675 = vsel %vm3353, %v7674, %v7673
        %v7676 = vrot.slane %v7636, 4
        %v7677 = vsel %vm3356, %v7676, %v7675
        %v7678 = vrot.slane %v7637, 3
        %v7679 = vsel %vm3359, %v7678, %v7677
        %v7680 = vrot.slane %v7638, 2
        %v7681 = vsel %vm3362, %v7680, %v7679
        %v7682 = vrot.slane %v7639, 1
        %v7683 = vsel %vm3365, %v7682, %v7681
        %7686 = vmatprep.subr.mxu0 0.0
        %7687 = vmatpush1.msra.mxu0 0.0
        %7688 = vmatprep.subr.mxu0 0.0
        %7689 = vmatpush1.msra.mxu0 0.0
        %7690 = vmatprep.subr.mxu0 0.0
        %7691 = vmatpush1.msra.mxu0 0.0
        %7692 = vmatprep.subr.mxu0 0.0
        %7693 = vmatpush1.msra.mxu0 0.0
        %7694 = vmatprep.subr.mxu0 0.0
        %7695 = vmatpush1.msra.mxu0 0.0
        %7696 = vmatprep.subr.mxu0 0.0
        %7697 = vmatpush1.msra.mxu0 0.0
        %7698 = vmatprep.subr.mxu0 0.0
        %7699 = vmatpush1.msra.mxu0 0.0
        %7700 = vmatprep.subr.mxu0 0.0
        %7701 = vmatpush1.msra.mxu0 0.0
        %7702 = vmatprep.subr.mxu0 0.0
        %7703 = vmatpush1.msra.mxu0 0.0
        %7704 = vmatprep.subr.mxu0 0.0
        %7705 = vmatpush1.msra.mxu0 0.0
        %7706 = vmatprep.subr.mxu0 0.0
        %7707 = vmatpush1.msra.mxu0 0.0
        %7708 = vmatprep.subr.mxu0 0.0
        %7709 = vmatpush1.msra.mxu0 0.0
        %7710 = vmatprep.subr.mxu0 0.0
        %7711 = vmatpush1.msra.mxu0 0.0
        %7712 = vmatprep.subr.mxu0 0.0
        %7713 = vmatpush1.msra.mxu0 0.0
        %7714 = vmatprep.subr.mxu0 0.0
        %7715 = vmatpush1.msra.mxu0 %v7683
        %7716 = vmatprep.subr.mxu0 0.0
        %7717 = vmatpush1.msra.mxu0 %v7669
        %7718 = vmatprep.subr.mxu0 0.0
        %7719 = vmatpush2.msra.mxu0 0.0
        %7720 = vmatprep.subr.mxu0 0.0
        %7721 = vmatpush2.msra.mxu0 0.0
        %7722 = vmatprep.subr.mxu0 0.0
        %7723 = vmatpush2.msra.mxu0 0.0
        %7724 = vmatprep.subr.mxu0 0.0
        %7725 = vmatpush2.msra.mxu0 0.0
        %7726 = vmatprep.subr.mxu0 0.0
        %7727 = vmatpush2.msra.mxu0 0.0
        %7728 = vmatprep.subr.mxu0 0.0
        %7729 = vmatpush2.msra.mxu0 0.0
        %7730 = vmatprep.subr.mxu0 0.0
        %7731 = vmatpush2.msra.mxu0 0.0
        %7732 = vmatprep.subr.mxu0 0.0
        %7733 = vmatpush2.msra.mxu0 0.0
        %7734 = vmatprep.subr.mxu0 0.0
        %7735 = vmatpush2.msra.mxu0 0.0
        %7736 = vmatprep.subr.mxu0 0.0
        %7737 = vmatpush2.msra.mxu0 0.0
        %7738 = vmatprep.subr.mxu0 0.0
        %7739 = vmatpush2.msra.mxu0 0.0
        %7740 = vmatprep.subr.mxu0 0.0
        %7741 = vmatpush2.msra.mxu0 0.0
        %7742 = vmatprep.subr.mxu0 0.0
        %7743 = vmatpush2.msra.mxu0 0.0
        %7744 = vmatprep.subr.mxu0 0.0
        %7745 = vmatpush2.msra.mxu0 0.0
        %7746 = vmatprep.subr.mxu0 0.0
        %7747 = vmatpush2.msra.mxu0 0.0
        %7748 = vmatprep.subr.mxu0 0.0
        %7749 = vmatpush2.msra.mxu0 0.0
        %7750 = vmatprep.mubr.f32.mxu0 0.0
        %7751 = vmatmul.mubr.f32.gmra.mxu0 %v3384
        %v7752 = vpop.f32.mrf.mxu0
        %v7753 = vadd.f32 0.0, %v7752
        %v7754 = vpop.f32.mrf.mxu0
        %7755 = vmatprep.mubr.f32.mxu0 0.0
        %7756 = vmatmul.mubr.f32.gmra.mxu0 %v3387
        %v7757 = vpop.f32.mrf.mxu0
        %v7758 = vadd.f32 0.0, %v7757
        %v7759 = vpop.f32.mrf.mxu0
        %7760 = vmatprep.mubr.f32.mxu0 0.0
        %7761 = vmatmul.mubr.f32.gmra.mxu0 %v3390
        %v7762 = vpop.f32.mrf.mxu0
        %v7763 = vadd.f32 0.0, %v7762
        %v7764 = vpop.f32.mrf.mxu0
        %7765 = vmatprep.mubr.f32.mxu0 0.0
        %7766 = vmatmul.mubr.f32.gmra.mxu0 %v3393
        %v7767 = vpop.f32.mrf.mxu0
        %v7768 = vadd.f32 0.0, %v7767
        %v7769 = vpop.f32.mrf.mxu0
        %7770 = vmatprep.mubr.f32.mxu0 0.0
        %7771 = vmatmul.mubr.f32.gmra.mxu0 %v3396
        %v7772 = vpop.f32.mrf.mxu0
        %v7773 = vadd.f32 0.0, %v7772
        %v7774 = vpop.f32.mrf.mxu0
        %7775 = vmatprep.mubr.f32.mxu0 0.0
        %7776 = vmatmul.mubr.f32.gmra.mxu0 %v3399
        %v7777 = vpop.f32.mrf.mxu0
        %v7778 = vadd.f32 0.0, %v7777
        %v7779 = vpop.f32.mrf.mxu0
        %7780 = vmatprep.mubr.f32.mxu0 0.0
        %7781 = vmatmul.mubr.f32.gmra.mxu0 %v3402
        %v7782 = vpop.f32.mrf.mxu0
        %v7783 = vadd.f32 0.0, %v7782
        %v7784 = vpop.f32.mrf.mxu0
        %7785 = vmatprep.mubr.f32.mxu0 0.0
        %7786 = vmatmul.mubr.f32.gmra.mxu0 %v3405
        %v7787 = vpop.f32.mrf.mxu0
        %v7788 = vadd.f32 0.0, %v7787
        %v7789 = vpop.f32.mrf.mxu0
        %7790 = vmatprep.mubr.f32.mxu0 0.0
        %7791 = vmatmul.mubr.f32.gmra.mxu0 %v3408
        %v7792 = vpop.f32.mrf.mxu0
        %v7793 = vadd.f32 0.0, %v7792
        %v7794 = vpop.f32.mrf.mxu0
        %7795 = vmatprep.mubr.f32.mxu0 0.0
        %7796 = vmatmul.mubr.f32.gmra.mxu0 %v3411
        %v7797 = vpop.f32.mrf.mxu0
        %v7798 = vadd.f32 0.0, %v7797
        %v7799 = vpop.f32.mrf.mxu0
        %7800 = vmatprep.mubr.f32.mxu0 0.0
        %7801 = vmatmul.mubr.f32.gmra.mxu0 %v3414
        %v7802 = vpop.f32.mrf.mxu0
        %v7803 = vadd.f32 0.0, %v7802
        %v7804 = vpop.f32.mrf.mxu0
        %7805 = vmatprep.mubr.f32.mxu0 0.0
        %7806 = vmatmul.mubr.f32.gmra.mxu0 %v3417
        %v7807 = vpop.f32.mrf.mxu0
        %v7808 = vadd.f32 0.0, %v7807
        %v7809 = vpop.f32.mrf.mxu0
        %7810 = vmatprep.mubr.f32.mxu0 0.0
        %7811 = vmatmul.mubr.f32.gmra.mxu0 %v3420
        %v7812 = vpop.f32.mrf.mxu0
        %v7813 = vadd.f32 0.0, %v7812
        %v7814 = vpop.f32.mrf.mxu0
        %7815 = vmatprep.mubr.f32.mxu0 0.0
        %7816 = vmatmul.mubr.f32.gmra.mxu0 %v3423
        %v7817 = vpop.f32.mrf.mxu0
        %v7818 = vadd.f32 0.0, %v7817
        %v7819 = vpop.f32.mrf.mxu0
        %7820 = vmatprep.mubr.f32.mxu0 0.0
        %7821 = vmatmul.mubr.f32.gmra.mxu0 %v3426
        %v7822 = vpop.f32.mrf.mxu0
        %v7823 = vadd.f32 0.0, %v7822
        %v7824 = vpop.f32.mrf.mxu0
        %7825 = vmatprep.mubr.f32.mxu0 0.0
        %7826 = vmatmul.mubr.f32.gmra.mxu0 %v3429
        %v7827 = vpop.f32.mrf.mxu0
        %v7828 = vadd.f32 0.0, %v7827
        %v7829 = vpop.f32.mrf.mxu0
        %7830 = vdwg.mxu0
        %s7831 = scalar_lea.vmem %s306, 2432 [#allocation12]
        %7832 = vst [vmem:[%s7831] sm:$0xff] %v7753
        %7833 = vst [vmem:[%s7831 + $0x8] sm:$0xff] %v7758
        %7834 = vst [vmem:[%s7831 + $0x10] sm:$0xff] %v7763
        %7835 = vst [vmem:[%s7831 + $0x18] sm:$0xff] %v7768
        %7836 = vst [vmem:[%s7831 + $0x20] sm:$0xff] %v7773
        %7837 = vst [vmem:[%s7831 + $0x28] sm:$0xff] %v7778
        %7838 = vst [vmem:[%s7831 + $0x30] sm:$0xff] %v7783
        %7839 = vst [vmem:[%s7831 + $0x38] sm:$0xff] %v7788
        %7840 = vst [vmem:[%s7831 + $0x40] sm:$0xff] %v7793
        %7841 = vst [vmem:[%s7831 + $0x48] sm:$0xff] %v7798
        %7842 = vst [vmem:[%s7831 + $0x50] sm:$0xff] %v7803
        %7843 = vst [vmem:[%s7831 + $0x58] sm:$0xff] %v7808
        %7844 = vst [vmem:[%s7831 + $0x60] sm:$0xff] %v7813
        %7845 = vst [vmem:[%s7831 + $0x68] sm:$0xff] %v7818
        %7846 = vst [vmem:[%s7831 + $0x70] sm:$0xff] %v7823
        %7847 = vst [vmem:[%s7831 + $0x78] sm:$0xff] %v7828
        %v7848 = vld [vmem:[#allocation3 + $0x14] sm:$0x1]
        %v7849 = vld [vmem:[#allocation3 + $0x2c] sm:$0x1]
        %v7850 = vld [vmem:[#allocation3 + $0x44] sm:$0x1]
        %v7851 = vld [vmem:[#allocation3 + $0x5c] sm:$0x1]
        %v7852 = vld [vmem:[#allocation3 + $0x74] sm:$0x1]
        %v7853 = vld [vmem:[#allocation3 + $0x8c] sm:$0x1]
        %v7854 = vld [vmem:[#allocation3 + $0xa4] sm:$0x1]
        %v7855 = vld [vmem:[#allocation3 + $0xbc] sm:$0x1]
        %v7856 = vld [vmem:[#allocation3 + $0xd4] sm:$0x1]
        %v7857 = vld [vmem:[#allocation3 + $0xec] sm:$0x1]
        %v7858 = vld [vmem:[#allocation3 + $0x104] sm:$0x1]
        %v7859 = vld [vmem:[#allocation3 + $0x11c] sm:$0x1]
        %v7860 = vld [vmem:[#allocation3 + $0x134] sm:$0x1]
        %v7861 = vld [vmem:[#allocation3 + $0x14c] sm:$0x1]
        %v7862 = vld [vmem:[#allocation3 + $0x164] sm:$0x1]
        %v7863 = vld [vmem:[#allocation3 + $0x17c] sm:$0x1]
        %v7880 = vrot.slane %v7849, 7
        %v7881 = vsel %vm3347, %v7880, %v7848
        %v7882 = vrot.slane %v7850, 6
        %v7883 = vsel %vm3350, %v7882, %v7881
        %v7884 = vrot.slane %v7851, 5
        %v7885 = vsel %vm3353, %v7884, %v7883
        %v7886 = vrot.slane %v7852, 4
        %v7887 = vsel %vm3356, %v7886, %v7885
        %v7888 = vrot.slane %v7853, 3
        %v7889 = vsel %vm3359, %v7888, %v7887
        %v7890 = vrot.slane %v7854, 2
        %v7891 = vsel %vm3362, %v7890, %v7889
        %v7892 = vrot.slane %v7855, 1
        %v7893 = vsel %vm3365, %v7892, %v7891
        %v7894 = vrot.slane %v7857, 7
        %v7895 = vsel %vm3347, %v7894, %v7856
        %v7896 = vrot.slane %v7858, 6
        %v7897 = vsel %vm3350, %v7896, %v7895
        %v7898 = vrot.slane %v7859, 5
        %v7899 = vsel %vm3353, %v7898, %v7897
        %v7900 = vrot.slane %v7860, 4
        %v7901 = vsel %vm3356, %v7900, %v7899
        %v7902 = vrot.slane %v7861, 3
        %v7903 = vsel %vm3359, %v7902, %v7901
        %v7904 = vrot.slane %v7862, 2
        %v7905 = vsel %vm3362, %v7904, %v7903
        %v7906 = vrot.slane %v7863, 1
        %v7907 = vsel %vm3365, %v7906, %v7905
        %7910 = vmatprep.subr.mxu0 0.0
        %7911 = vmatpush1.msra.mxu0 0.0
        %7912 = vmatprep.subr.mxu0 0.0
        %7913 = vmatpush1.msra.mxu0 0.0
        %7914 = vmatprep.subr.mxu0 0.0
        %7915 = vmatpush1.msra.mxu0 0.0
        %7916 = vmatprep.subr.mxu0 0.0
        %7917 = vmatpush1.msra.mxu0 0.0
        %7918 = vmatprep.subr.mxu0 0.0
        %7919 = vmatpush1.msra.mxu0 0.0
        %7920 = vmatprep.subr.mxu0 0.0
        %7921 = vmatpush1.msra.mxu0 0.0
        %7922 = vmatprep.subr.mxu0 0.0
        %7923 = vmatpush1.msra.mxu0 0.0
        %7924 = vmatprep.subr.mxu0 0.0
        %7925 = vmatpush1.msra.mxu0 0.0
        %7926 = vmatprep.subr.mxu0 0.0
        %7927 = vmatpush1.msra.mxu0 0.0
        %7928 = vmatprep.subr.mxu0 0.0
        %7929 = vmatpush1.msra.mxu0 0.0
        %7930 = vmatprep.subr.mxu0 0.0
        %7931 = vmatpush1.msra.mxu0 0.0
        %7932 = vmatprep.subr.mxu0 0.0
        %7933 = vmatpush1.msra.mxu0 0.0
        %7934 = vmatprep.subr.mxu0 0.0
        %7935 = vmatpush1.msra.mxu0 0.0
        %7936 = vmatprep.subr.mxu0 0.0
        %7937 = vmatpush1.msra.mxu0 0.0
        %7938 = vmatprep.subr.mxu0 0.0
        %7939 = vmatpush1.msra.mxu0 %v7907
        %7940 = vmatprep.subr.mxu0 0.0
        %7941 = vmatpush1.msra.mxu0 %v7893
        %7942 = vmatprep.subr.mxu0 0.0
        %7943 = vmatpush2.msra.mxu0 0.0
        %7944 = vmatprep.subr.mxu0 0.0
        %7945 = vmatpush2.msra.mxu0 0.0
        %7946 = vmatprep.subr.mxu0 0.0
        %7947 = vmatpush2.msra.mxu0 0.0
        %7948 = vmatprep.subr.mxu0 0.0
        %7949 = vmatpush2.msra.mxu0 0.0
        %7950 = vmatprep.subr.mxu0 0.0
        %7951 = vmatpush2.msra.mxu0 0.0
        %7952 = vmatprep.subr.mxu0 0.0
        %7953 = vmatpush2.msra.mxu0 0.0
        %7954 = vmatprep.subr.mxu0 0.0
        %7955 = vmatpush2.msra.mxu0 0.0
        %7956 = vmatprep.subr.mxu0 0.0
        %7957 = vmatpush2.msra.mxu0 0.0
        %7958 = vmatprep.subr.mxu0 0.0
        %7959 = vmatpush2.msra.mxu0 0.0
        %7960 = vmatprep.subr.mxu0 0.0
        %7961 = vmatpush2.msra.mxu0 0.0
        %7962 = vmatprep.subr.mxu0 0.0
        %7963 = vmatpush2.msra.mxu0 0.0
        %7964 = vmatprep.subr.mxu0 0.0
        %7965 = vmatpush2.msra.mxu0 0.0
        %7966 = vmatprep.subr.mxu0 0.0
        %7967 = vmatpush2.msra.mxu0 0.0
        %7968 = vmatprep.subr.mxu0 0.0
        %7969 = vmatpush2.msra.mxu0 0.0
        %7970 = vmatprep.subr.mxu0 0.0
        %7971 = vmatpush2.msra.mxu0 0.0
        %7972 = vmatprep.subr.mxu0 0.0
        %7973 = vmatpush2.msra.mxu0 0.0
        %7974 = vmatprep.mubr.f32.mxu0 0.0
        %7975 = vmatmul.mubr.f32.gmra.mxu0 %v3384
        %v7976 = vpop.f32.mrf.mxu0
        %v7977 = vadd.f32 0.0, %v7976
        %v7978 = vpop.f32.mrf.mxu0
        %7979 = vmatprep.mubr.f32.mxu0 0.0
        %7980 = vmatmul.mubr.f32.gmra.mxu0 %v3387
        %v7981 = vpop.f32.mrf.mxu0
        %v7982 = vadd.f32 0.0, %v7981
        %v7983 = vpop.f32.mrf.mxu0
        %7984 = vmatprep.mubr.f32.mxu0 0.0
        %7985 = vmatmul.mubr.f32.gmra.mxu0 %v3390
        %v7986 = vpop.f32.mrf.mxu0
        %v7987 = vadd.f32 0.0, %v7986
        %v7988 = vpop.f32.mrf.mxu0
        %7989 = vmatprep.mubr.f32.mxu0 0.0
        %7990 = vmatmul.mubr.f32.gmra.mxu0 %v3393
        %v7991 = vpop.f32.mrf.mxu0
        %v7992 = vadd.f32 0.0, %v7991
        %v7993 = vpop.f32.mrf.mxu0
        %7994 = vmatprep.mubr.f32.mxu0 0.0
        %7995 = vmatmul.mubr.f32.gmra.mxu0 %v3396
        %v7996 = vpop.f32.mrf.mxu0
        %v7997 = vadd.f32 0.0, %v7996
        %v7998 = vpop.f32.mrf.mxu0
        %7999 = vmatprep.mubr.f32.mxu0 0.0
        %8000 = vmatmul.mubr.f32.gmra.mxu0 %v3399
        %v8001 = vpop.f32.mrf.mxu0
        %v8002 = vadd.f32 0.0, %v8001
        %v8003 = vpop.f32.mrf.mxu0
        %8004 = vmatprep.mubr.f32.mxu0 0.0
        %8005 = vmatmul.mubr.f32.gmra.mxu0 %v3402
        %v8006 = vpop.f32.mrf.mxu0
        %v8007 = vadd.f32 0.0, %v8006
        %v8008 = vpop.f32.mrf.mxu0
        %8009 = vmatprep.mubr.f32.mxu0 0.0
        %8010 = vmatmul.mubr.f32.gmra.mxu0 %v3405
        %v8011 = vpop.f32.mrf.mxu0
        %v8012 = vadd.f32 0.0, %v8011
        %v8013 = vpop.f32.mrf.mxu0
        %8014 = vmatprep.mubr.f32.mxu0 0.0
        %8015 = vmatmul.mubr.f32.gmra.mxu0 %v3408
        %v8016 = vpop.f32.mrf.mxu0
        %v8017 = vadd.f32 0.0, %v8016
        %v8018 = vpop.f32.mrf.mxu0
        %8019 = vmatprep.mubr.f32.mxu0 0.0
        %8020 = vmatmul.mubr.f32.gmra.mxu0 %v3411
        %v8021 = vpop.f32.mrf.mxu0
        %v8022 = vadd.f32 0.0, %v8021
        %v8023 = vpop.f32.mrf.mxu0
        %8024 = vmatprep.mubr.f32.mxu0 0.0
        %8025 = vmatmul.mubr.f32.gmra.mxu0 %v3414
        %v8026 = vpop.f32.mrf.mxu0
        %v8027 = vadd.f32 0.0, %v8026
        %v8028 = vpop.f32.mrf.mxu0
        %8029 = vmatprep.mubr.f32.mxu0 0.0
        %8030 = vmatmul.mubr.f32.gmra.mxu0 %v3417
        %v8031 = vpop.f32.mrf.mxu0
        %v8032 = vadd.f32 0.0, %v8031
        %v8033 = vpop.f32.mrf.mxu0
        %8034 = vmatprep.mubr.f32.mxu0 0.0
        %8035 = vmatmul.mubr.f32.gmra.mxu0 %v3420
        %v8036 = vpop.f32.mrf.mxu0
        %v8037 = vadd.f32 0.0, %v8036
        %v8038 = vpop.f32.mrf.mxu0
        %8039 = vmatprep.mubr.f32.mxu0 0.0
        %8040 = vmatmul.mubr.f32.gmra.mxu0 %v3423
        %v8041 = vpop.f32.mrf.mxu0
        %v8042 = vadd.f32 0.0, %v8041
        %v8043 = vpop.f32.mrf.mxu0
        %8044 = vmatprep.mubr.f32.mxu0 0.0
        %8045 = vmatmul.mubr.f32.gmra.mxu0 %v3426
        %v8046 = vpop.f32.mrf.mxu0
        %v8047 = vadd.f32 0.0, %v8046
        %v8048 = vpop.f32.mrf.mxu0
        %8049 = vmatprep.mubr.f32.mxu0 0.0
        %8050 = vmatmul.mubr.f32.gmra.mxu0 %v3429
        %v8051 = vpop.f32.mrf.mxu0
        %v8052 = vadd.f32 0.0, %v8051
        %v8053 = vpop.f32.mrf.mxu0
        %8054 = vdwg.mxu0
        %s8055 = scalar_lea.vmem %s306, 2560 [#allocation12]
        %8056 = vst [vmem:[%s8055] sm:$0xff] %v7977
        %8057 = vst [vmem:[%s8055 + $0x8] sm:$0xff] %v7982
        %8058 = vst [vmem:[%s8055 + $0x10] sm:$0xff] %v7987
        %8059 = vst [vmem:[%s8055 + $0x18] sm:$0xff] %v7992
        %8060 = vst [vmem:[%s8055 + $0x20] sm:$0xff] %v7997
        %8061 = vst [vmem:[%s8055 + $0x28] sm:$0xff] %v8002
        %8062 = vst [vmem:[%s8055 + $0x30] sm:$0xff] %v8007
        %8063 = vst [vmem:[%s8055 + $0x38] sm:$0xff] %v8012
        %8064 = vst [vmem:[%s8055 + $0x40] sm:$0xff] %v8017
        %8065 = vst [vmem:[%s8055 + $0x48] sm:$0xff] %v8022
        %8066 = vst [vmem:[%s8055 + $0x50] sm:$0xff] %v8027
        %8067 = vst [vmem:[%s8055 + $0x58] sm:$0xff] %v8032
        %8068 = vst [vmem:[%s8055 + $0x60] sm:$0xff] %v8037
        %8069 = vst [vmem:[%s8055 + $0x68] sm:$0xff] %v8042
        %8070 = vst [vmem:[%s8055 + $0x70] sm:$0xff] %v8047
        %8071 = vst [vmem:[%s8055 + $0x78] sm:$0xff] %v8052
        %v8072 = vld [vmem:[#allocation3 + $0x15] sm:$0x1]
        %v8073 = vld [vmem:[#allocation3 + $0x2d] sm:$0x1]
        %v8074 = vld [vmem:[#allocation3 + $0x45] sm:$0x1]
        %v8075 = vld [vmem:[#allocation3 + $0x5d] sm:$0x1]
        %v8076 = vld [vmem:[#allocation3 + $0x75] sm:$0x1]
        %v8077 = vld [vmem:[#allocation3 + $0x8d] sm:$0x1]
        %v8078 = vld [vmem:[#allocation3 + $0xa5] sm:$0x1]
        %v8079 = vld [vmem:[#allocation3 + $0xbd] sm:$0x1]
        %v8080 = vld [vmem:[#allocation3 + $0xd5] sm:$0x1]
        %v8081 = vld [vmem:[#allocation3 + $0xed] sm:$0x1]
        %v8082 = vld [vmem:[#allocation3 + $0x105] sm:$0x1]
        %v8083 = vld [vmem:[#allocation3 + $0x11d] sm:$0x1]
        %v8084 = vld [vmem:[#allocation3 + $0x135] sm:$0x1]
        %v8085 = vld [vmem:[#allocation3 + $0x14d] sm:$0x1]
        %v8086 = vld [vmem:[#allocation3 + $0x165] sm:$0x1]
        %v8087 = vld [vmem:[#allocation3 + $0x17d] sm:$0x1]
        %v8104 = vrot.slane %v8073, 7
        %v8105 = vsel %vm3347, %v8104, %v8072
        %v8106 = vrot.slane %v8074, 6
        %v8107 = vsel %vm3350, %v8106, %v8105
        %v8108 = vrot.slane %v8075, 5
        %v8109 = vsel %vm3353, %v8108, %v8107
        %v8110 = vrot.slane %v8076, 4
        %v8111 = vsel %vm3356, %v8110, %v8109
        %v8112 = vrot.slane %v8077, 3
        %v8113 = vsel %vm3359, %v8112, %v8111
        %v8114 = vrot.slane %v8078, 2
        %v8115 = vsel %vm3362, %v8114, %v8113
        %v8116 = vrot.slane %v8079, 1
        %v8117 = vsel %vm3365, %v8116, %v8115
        %v8118 = vrot.slane %v8081, 7
        %v8119 = vsel %vm3347, %v8118, %v8080
        %v8120 = vrot.slane %v8082, 6
        %v8121 = vsel %vm3350, %v8120, %v8119
        %v8122 = vrot.slane %v8083, 5
        %v8123 = vsel %vm3353, %v8122, %v8121
        %v8124 = vrot.slane %v8084, 4
        %v8125 = vsel %vm3356, %v8124, %v8123
        %v8126 = vrot.slane %v8085, 3
        %v8127 = vsel %vm3359, %v8126, %v8125
        %v8128 = vrot.slane %v8086, 2
        %v8129 = vsel %vm3362, %v8128, %v8127
        %v8130 = vrot.slane %v8087, 1
        %v8131 = vsel %vm3365, %v8130, %v8129
        %8134 = vmatprep.subr.mxu0 0.0
        %8135 = vmatpush1.msra.mxu0 0.0
        %8136 = vmatprep.subr.mxu0 0.0
        %8137 = vmatpush1.msra.mxu0 0.0
        %8138 = vmatprep.subr.mxu0 0.0
        %8139 = vmatpush1.msra.mxu0 0.0
        %8140 = vmatprep.subr.mxu0 0.0
        %8141 = vmatpush1.msra.mxu0 0.0
        %8142 = vmatprep.subr.mxu0 0.0
        %8143 = vmatpush1.msra.mxu0 0.0
        %8144 = vmatprep.subr.mxu0 0.0
        %8145 = vmatpush1.msra.mxu0 0.0
        %8146 = vmatprep.subr.mxu0 0.0
        %8147 = vmatpush1.msra.mxu0 0.0
        %8148 = vmatprep.subr.mxu0 0.0
        %8149 = vmatpush1.msra.mxu0 0.0
        %8150 = vmatprep.subr.mxu0 0.0
        %8151 = vmatpush1.msra.mxu0 0.0
        %8152 = vmatprep.subr.mxu0 0.0
        %8153 = vmatpush1.msra.mxu0 0.0
        %8154 = vmatprep.subr.mxu0 0.0
        %8155 = vmatpush1.msra.mxu0 0.0
        %8156 = vmatprep.subr.mxu0 0.0
        %8157 = vmatpush1.msra.mxu0 0.0
        %8158 = vmatprep.subr.mxu0 0.0
        %8159 = vmatpush1.msra.mxu0 0.0
        %8160 = vmatprep.subr.mxu0 0.0
        %8161 = vmatpush1.msra.mxu0 0.0
        %8162 = vmatprep.subr.mxu0 0.0
        %8163 = vmatpush1.msra.mxu0 %v8131
        %8164 = vmatprep.subr.mxu0 0.0
        %8165 = vmatpush1.msra.mxu0 %v8117
        %8166 = vmatprep.subr.mxu0 0.0
        %8167 = vmatpush2.msra.mxu0 0.0
        %8168 = vmatprep.subr.mxu0 0.0
        %8169 = vmatpush2.msra.mxu0 0.0
        %8170 = vmatprep.subr.mxu0 0.0
        %8171 = vmatpush2.msra.mxu0 0.0
        %8172 = vmatprep.subr.mxu0 0.0
        %8173 = vmatpush2.msra.mxu0 0.0
        %8174 = vmatprep.subr.mxu0 0.0
        %8175 = vmatpush2.msra.mxu0 0.0
        %8176 = vmatprep.subr.mxu0 0.0
        %8177 = vmatpush2.msra.mxu0 0.0
        %8178 = vmatprep.subr.mxu0 0.0
        %8179 = vmatpush2.msra.mxu0 0.0
        %8180 = vmatprep.subr.mxu0 0.0
        %8181 = vmatpush2.msra.mxu0 0.0
        %8182 = vmatprep.subr.mxu0 0.0
        %8183 = vmatpush2.msra.mxu0 0.0
        %8184 = vmatprep.subr.mxu0 0.0
        %8185 = vmatpush2.msra.mxu0 0.0
        %8186 = vmatprep.subr.mxu0 0.0
        %8187 = vmatpush2.msra.mxu0 0.0
        %8188 = vmatprep.subr.mxu0 0.0
        %8189 = vmatpush2.msra.mxu0 0.0
        %8190 = vmatprep.subr.mxu0 0.0
        %8191 = vmatpush2.msra.mxu0 0.0
        %8192 = vmatprep.subr.mxu0 0.0
        %8193 = vmatpush2.msra.mxu0 0.0
        %8194 = vmatprep.subr.mxu0 0.0
        %8195 = vmatpush2.msra.mxu0 0.0
        %8196 = vmatprep.subr.mxu0 0.0
        %8197 = vmatpush2.msra.mxu0 0.0
        %8198 = vmatprep.mubr.f32.mxu0 0.0
        %8199 = vmatmul.mubr.f32.gmra.mxu0 %v3384
        %v8200 = vpop.f32.mrf.mxu0
        %v8201 = vadd.f32 0.0, %v8200
        %v8202 = vpop.f32.mrf.mxu0
        %8203 = vmatprep.mubr.f32.mxu0 0.0
        %8204 = vmatmul.mubr.f32.gmra.mxu0 %v3387
        %v8205 = vpop.f32.mrf.mxu0
        %v8206 = vadd.f32 0.0, %v8205
        %v8207 = vpop.f32.mrf.mxu0
        %8208 = vmatprep.mubr.f32.mxu0 0.0
        %8209 = vmatmul.mubr.f32.gmra.mxu0 %v3390
        %v8210 = vpop.f32.mrf.mxu0
        %v8211 = vadd.f32 0.0, %v8210
        %v8212 = vpop.f32.mrf.mxu0
        %8213 = vmatprep.mubr.f32.mxu0 0.0
        %8214 = vmatmul.mubr.f32.gmra.mxu0 %v3393
        %v8215 = vpop.f32.mrf.mxu0
        %v8216 = vadd.f32 0.0, %v8215
        %v8217 = vpop.f32.mrf.mxu0
        %8218 = vmatprep.mubr.f32.mxu0 0.0
        %8219 = vmatmul.mubr.f32.gmra.mxu0 %v3396
        %v8220 = vpop.f32.mrf.mxu0
        %v8221 = vadd.f32 0.0, %v8220
        %v8222 = vpop.f32.mrf.mxu0
        %8223 = vmatprep.mubr.f32.mxu0 0.0
        %8224 = vmatmul.mubr.f32.gmra.mxu0 %v3399
        %v8225 = vpop.f32.mrf.mxu0
        %v8226 = vadd.f32 0.0, %v8225
        %v8227 = vpop.f32.mrf.mxu0
        %8228 = vmatprep.mubr.f32.mxu0 0.0
        %8229 = vmatmul.mubr.f32.gmra.mxu0 %v3402
        %v8230 = vpop.f32.mrf.mxu0
        %v8231 = vadd.f32 0.0, %v8230
        %v8232 = vpop.f32.mrf.mxu0
        %8233 = vmatprep.mubr.f32.mxu0 0.0
        %8234 = vmatmul.mubr.f32.gmra.mxu0 %v3405
        %v8235 = vpop.f32.mrf.mxu0
        %v8236 = vadd.f32 0.0, %v8235
        %v8237 = vpop.f32.mrf.mxu0
        %8238 = vmatprep.mubr.f32.mxu0 0.0
        %8239 = vmatmul.mubr.f32.gmra.mxu0 %v3408
        %v8240 = vpop.f32.mrf.mxu0
        %v8241 = vadd.f32 0.0, %v8240
        %v8242 = vpop.f32.mrf.mxu0
        %8243 = vmatprep.mubr.f32.mxu0 0.0
        %8244 = vmatmul.mubr.f32.gmra.mxu0 %v3411
        %v8245 = vpop.f32.mrf.mxu0
        %v8246 = vadd.f32 0.0, %v8245
        %v8247 = vpop.f32.mrf.mxu0
        %8248 = vmatprep.mubr.f32.mxu0 0.0
        %8249 = vmatmul.mubr.f32.gmra.mxu0 %v3414
        %v8250 = vpop.f32.mrf.mxu0
        %v8251 = vadd.f32 0.0, %v8250
        %v8252 = vpop.f32.mrf.mxu0
        %8253 = vmatprep.mubr.f32.mxu0 0.0
        %8254 = vmatmul.mubr.f32.gmra.mxu0 %v3417
        %v8255 = vpop.f32.mrf.mxu0
        %v8256 = vadd.f32 0.0, %v8255
        %v8257 = vpop.f32.mrf.mxu0
        %8258 = vmatprep.mubr.f32.mxu0 0.0
        %8259 = vmatmul.mubr.f32.gmra.mxu0 %v3420
        %v8260 = vpop.f32.mrf.mxu0
        %v8261 = vadd.f32 0.0, %v8260
        %v8262 = vpop.f32.mrf.mxu0
        %8263 = vmatprep.mubr.f32.mxu0 0.0
        %8264 = vmatmul.mubr.f32.gmra.mxu0 %v3423
        %v8265 = vpop.f32.mrf.mxu0
        %v8266 = vadd.f32 0.0, %v8265
        %v8267 = vpop.f32.mrf.mxu0
        %8268 = vmatprep.mubr.f32.mxu0 0.0
        %8269 = vmatmul.mubr.f32.gmra.mxu0 %v3426
        %v8270 = vpop.f32.mrf.mxu0
        %v8271 = vadd.f32 0.0, %v8270
        %v8272 = vpop.f32.mrf.mxu0
        %8273 = vmatprep.mubr.f32.mxu0 0.0
        %8274 = vmatmul.mubr.f32.gmra.mxu0 %v3429
        %v8275 = vpop.f32.mrf.mxu0
        %v8276 = vadd.f32 0.0, %v8275
        %v8277 = vpop.f32.mrf.mxu0
        %8278 = vdwg.mxu0
        %s8279 = scalar_lea.vmem %s306, 2688 [#allocation12]
        %8280 = vst [vmem:[%s8279] sm:$0xff] %v8201
        %8281 = vst [vmem:[%s8279 + $0x8] sm:$0xff] %v8206
        %8282 = vst [vmem:[%s8279 + $0x10] sm:$0xff] %v8211
        %8283 = vst [vmem:[%s8279 + $0x18] sm:$0xff] %v8216
        %8284 = vst [vmem:[%s8279 + $0x20] sm:$0xff] %v8221
        %8285 = vst [vmem:[%s8279 + $0x28] sm:$0xff] %v8226
        %8286 = vst [vmem:[%s8279 + $0x30] sm:$0xff] %v8231
        %8287 = vst [vmem:[%s8279 + $0x38] sm:$0xff] %v8236
        %8288 = vst [vmem:[%s8279 + $0x40] sm:$0xff] %v8241
        %8289 = vst [vmem:[%s8279 + $0x48] sm:$0xff] %v8246
        %8290 = vst [vmem:[%s8279 + $0x50] sm:$0xff] %v8251
        %8291 = vst [vmem:[%s8279 + $0x58] sm:$0xff] %v8256
        %8292 = vst [vmem:[%s8279 + $0x60] sm:$0xff] %v8261
        %8293 = vst [vmem:[%s8279 + $0x68] sm:$0xff] %v8266
        %8294 = vst [vmem:[%s8279 + $0x70] sm:$0xff] %v8271
        %8295 = vst [vmem:[%s8279 + $0x78] sm:$0xff] %v8276
        %v8296 = vld [vmem:[#allocation3 + $0x16] sm:$0x1]
        %v8297 = vld [vmem:[#allocation3 + $0x2e] sm:$0x1]
        %v8298 = vld [vmem:[#allocation3 + $0x46] sm:$0x1]
        %v8299 = vld [vmem:[#allocation3 + $0x5e] sm:$0x1]
        %v8300 = vld [vmem:[#allocation3 + $0x76] sm:$0x1]
        %v8301 = vld [vmem:[#allocation3 + $0x8e] sm:$0x1]
        %v8302 = vld [vmem:[#allocation3 + $0xa6] sm:$0x1]
        %v8303 = vld [vmem:[#allocation3 + $0xbe] sm:$0x1]
        %v8304 = vld [vmem:[#allocation3 + $0xd6] sm:$0x1]
        %v8305 = vld [vmem:[#allocation3 + $0xee] sm:$0x1]
        %v8306 = vld [vmem:[#allocation3 + $0x106] sm:$0x1]
        %v8307 = vld [vmem:[#allocation3 + $0x11e] sm:$0x1]
        %v8308 = vld [vmem:[#allocation3 + $0x136] sm:$0x1]
        %v8309 = vld [vmem:[#allocation3 + $0x14e] sm:$0x1]
        %v8310 = vld [vmem:[#allocation3 + $0x166] sm:$0x1]
        %v8311 = vld [vmem:[#allocation3 + $0x17e] sm:$0x1]
        %v8328 = vrot.slane %v8297, 7
        %v8329 = vsel %vm3347, %v8328, %v8296
        %v8330 = vrot.slane %v8298, 6
        %v8331 = vsel %vm3350, %v8330, %v8329
        %v8332 = vrot.slane %v8299, 5
        %v8333 = vsel %vm3353, %v8332, %v8331
        %v8334 = vrot.slane %v8300, 4
        %v8335 = vsel %vm3356, %v8334, %v8333
        %v8336 = vrot.slane %v8301, 3
        %v8337 = vsel %vm3359, %v8336, %v8335
        %v8338 = vrot.slane %v8302, 2
        %v8339 = vsel %vm3362, %v8338, %v8337
        %v8340 = vrot.slane %v8303, 1
        %v8341 = vsel %vm3365, %v8340, %v8339
        %v8342 = vrot.slane %v8305, 7
        %v8343 = vsel %vm3347, %v8342, %v8304
        %v8344 = vrot.slane %v8306, 6
        %v8345 = vsel %vm3350, %v8344, %v8343
        %v8346 = vrot.slane %v8307, 5
        %v8347 = vsel %vm3353, %v8346, %v8345
        %v8348 = vrot.slane %v8308, 4
        %v8349 = vsel %vm3356, %v8348, %v8347
        %v8350 = vrot.slane %v8309, 3
        %v8351 = vsel %vm3359, %v8350, %v8349
        %v8352 = vrot.slane %v8310, 2
        %v8353 = vsel %vm3362, %v8352, %v8351
        %v8354 = vrot.slane %v8311, 1
        %v8355 = vsel %vm3365, %v8354, %v8353
        %8358 = vmatprep.subr.mxu0 0.0
        %8359 = vmatpush1.msra.mxu0 0.0
        %8360 = vmatprep.subr.mxu0 0.0
        %8361 = vmatpush1.msra.mxu0 0.0
        %8362 = vmatprep.subr.mxu0 0.0
        %8363 = vmatpush1.msra.mxu0 0.0
        %8364 = vmatprep.subr.mxu0 0.0
        %8365 = vmatpush1.msra.mxu0 0.0
        %8366 = vmatprep.subr.mxu0 0.0
        %8367 = vmatpush1.msra.mxu0 0.0
        %8368 = vmatprep.subr.mxu0 0.0
        %8369 = vmatpush1.msra.mxu0 0.0
        %8370 = vmatprep.subr.mxu0 0.0
        %8371 = vmatpush1.msra.mxu0 0.0
        %8372 = vmatprep.subr.mxu0 0.0
        %8373 = vmatpush1.msra.mxu0 0.0
        %8374 = vmatprep.subr.mxu0 0.0
        %8375 = vmatpush1.msra.mxu0 0.0
        %8376 = vmatprep.subr.mxu0 0.0
        %8377 = vmatpush1.msra.mxu0 0.0
        %8378 = vmatprep.subr.mxu0 0.0
        %8379 = vmatpush1.msra.mxu0 0.0
        %8380 = vmatprep.subr.mxu0 0.0
        %8381 = vmatpush1.msra.mxu0 0.0
        %8382 = vmatprep.subr.mxu0 0.0
        %8383 = vmatpush1.msra.mxu0 0.0
        %8384 = vmatprep.subr.mxu0 0.0
        %8385 = vmatpush1.msra.mxu0 0.0
        %8386 = vmatprep.subr.mxu0 0.0
        %8387 = vmatpush1.msra.mxu0 %v8355
        %8388 = vmatprep.subr.mxu0 0.0
        %8389 = vmatpush1.msra.mxu0 %v8341
        %8390 = vmatprep.subr.mxu0 0.0
        %8391 = vmatpush2.msra.mxu0 0.0
        %8392 = vmatprep.subr.mxu0 0.0
        %8393 = vmatpush2.msra.mxu0 0.0
        %8394 = vmatprep.subr.mxu0 0.0
        %8395 = vmatpush2.msra.mxu0 0.0
        %8396 = vmatprep.subr.mxu0 0.0
        %8397 = vmatpush2.msra.mxu0 0.0
        %8398 = vmatprep.subr.mxu0 0.0
        %8399 = vmatpush2.msra.mxu0 0.0
        %8400 = vmatprep.subr.mxu0 0.0
        %8401 = vmatpush2.msra.mxu0 0.0
        %8402 = vmatprep.subr.mxu0 0.0
        %8403 = vmatpush2.msra.mxu0 0.0
        %8404 = vmatprep.subr.mxu0 0.0
        %8405 = vmatpush2.msra.mxu0 0.0
        %8406 = vmatprep.subr.mxu0 0.0
        %8407 = vmatpush2.msra.mxu0 0.0
        %8408 = vmatprep.subr.mxu0 0.0
        %8409 = vmatpush2.msra.mxu0 0.0
        %8410 = vmatprep.subr.mxu0 0.0
        %8411 = vmatpush2.msra.mxu0 0.0
        %8412 = vmatprep.subr.mxu0 0.0
        %8413 = vmatpush2.msra.mxu0 0.0
        %8414 = vmatprep.subr.mxu0 0.0
        %8415 = vmatpush2.msra.mxu0 0.0
        %8416 = vmatprep.subr.mxu0 0.0
        %8417 = vmatpush2.msra.mxu0 0.0
        %8418 = vmatprep.subr.mxu0 0.0
        %8419 = vmatpush2.msra.mxu0 0.0
        %8420 = vmatprep.subr.mxu0 0.0
        %8421 = vmatpush2.msra.mxu0 0.0
        %8422 = vmatprep.mubr.f32.mxu0 0.0
        %8423 = vmatmul.mubr.f32.gmra.mxu0 %v3384
        %v8424 = vpop.f32.mrf.mxu0
        %v8425 = vadd.f32 0.0, %v8424
        %v8426 = vpop.f32.mrf.mxu0
        %8427 = vmatprep.mubr.f32.mxu0 0.0
        %8428 = vmatmul.mubr.f32.gmra.mxu0 %v3387
        %v8429 = vpop.f32.mrf.mxu0
        %v8430 = vadd.f32 0.0, %v8429
        %v8431 = vpop.f32.mrf.mxu0
        %8432 = vmatprep.mubr.f32.mxu0 0.0
        %8433 = vmatmul.mubr.f32.gmra.mxu0 %v3390
        %v8434 = vpop.f32.mrf.mxu0
        %v8435 = vadd.f32 0.0, %v8434
        %v8436 = vpop.f32.mrf.mxu0
        %8437 = vmatprep.mubr.f32.mxu0 0.0
        %8438 = vmatmul.mubr.f32.gmra.mxu0 %v3393
        %v8439 = vpop.f32.mrf.mxu0
        %v8440 = vadd.f32 0.0, %v8439
        %v8441 = vpop.f32.mrf.mxu0
        %8442 = vmatprep.mubr.f32.mxu0 0.0
        %8443 = vmatmul.mubr.f32.gmra.mxu0 %v3396
        %v8444 = vpop.f32.mrf.mxu0
        %v8445 = vadd.f32 0.0, %v8444
        %v8446 = vpop.f32.mrf.mxu0
        %8447 = vmatprep.mubr.f32.mxu0 0.0
        %8448 = vmatmul.mubr.f32.gmra.mxu0 %v3399
        %v8449 = vpop.f32.mrf.mxu0
        %v8450 = vadd.f32 0.0, %v8449
        %v8451 = vpop.f32.mrf.mxu0
        %8452 = vmatprep.mubr.f32.mxu0 0.0
        %8453 = vmatmul.mubr.f32.gmra.mxu0 %v3402
        %v8454 = vpop.f32.mrf.mxu0
        %v8455 = vadd.f32 0.0, %v8454
        %v8456 = vpop.f32.mrf.mxu0
        %8457 = vmatprep.mubr.f32.mxu0 0.0
        %8458 = vmatmul.mubr.f32.gmra.mxu0 %v3405
        %v8459 = vpop.f32.mrf.mxu0
        %v8460 = vadd.f32 0.0, %v8459
        %v8461 = vpop.f32.mrf.mxu0
        %8462 = vmatprep.mubr.f32.mxu0 0.0
        %8463 = vmatmul.mubr.f32.gmra.mxu0 %v3408
        %v8464 = vpop.f32.mrf.mxu0
        %v8465 = vadd.f32 0.0, %v8464
        %v8466 = vpop.f32.mrf.mxu0
        %8467 = vmatprep.mubr.f32.mxu0 0.0
        %8468 = vmatmul.mubr.f32.gmra.mxu0 %v3411
        %v8469 = vpop.f32.mrf.mxu0
        %v8470 = vadd.f32 0.0, %v8469
        %v8471 = vpop.f32.mrf.mxu0
        %8472 = vmatprep.mubr.f32.mxu0 0.0
        %8473 = vmatmul.mubr.f32.gmra.mxu0 %v3414
        %v8474 = vpop.f32.mrf.mxu0
        %v8475 = vadd.f32 0.0, %v8474
        %v8476 = vpop.f32.mrf.mxu0
        %8477 = vmatprep.mubr.f32.mxu0 0.0
        %8478 = vmatmul.mubr.f32.gmra.mxu0 %v3417
        %v8479 = vpop.f32.mrf.mxu0
        %v8480 = vadd.f32 0.0, %v8479
        %v8481 = vpop.f32.mrf.mxu0
        %8482 = vmatprep.mubr.f32.mxu0 0.0
        %8483 = vmatmul.mubr.f32.gmra.mxu0 %v3420
        %v8484 = vpop.f32.mrf.mxu0
        %v8485 = vadd.f32 0.0, %v8484
        %v8486 = vpop.f32.mrf.mxu0
        %8487 = vmatprep.mubr.f32.mxu0 0.0
        %8488 = vmatmul.mubr.f32.gmra.mxu0 %v3423
        %v8489 = vpop.f32.mrf.mxu0
        %v8490 = vadd.f32 0.0, %v8489
        %v8491 = vpop.f32.mrf.mxu0
        %8492 = vmatprep.mubr.f32.mxu0 0.0
        %8493 = vmatmul.mubr.f32.gmra.mxu0 %v3426
        %v8494 = vpop.f32.mrf.mxu0
        %v8495 = vadd.f32 0.0, %v8494
        %v8496 = vpop.f32.mrf.mxu0
        %8497 = vmatprep.mubr.f32.mxu0 0.0
        %8498 = vmatmul.mubr.f32.gmra.mxu0 %v3429
        %v8499 = vpop.f32.mrf.mxu0
        %v8500 = vadd.f32 0.0, %v8499
        %v8501 = vpop.f32.mrf.mxu0
        %8502 = vdwg.mxu0
        %s8503 = scalar_lea.vmem %s306, 2816 [#allocation12]
        %8504 = vst [vmem:[%s8503] sm:$0xff] %v8425
        %8505 = vst [vmem:[%s8503 + $0x8] sm:$0xff] %v8430
        %8506 = vst [vmem:[%s8503 + $0x10] sm:$0xff] %v8435
        %8507 = vst [vmem:[%s8503 + $0x18] sm:$0xff] %v8440
        %8508 = vst [vmem:[%s8503 + $0x20] sm:$0xff] %v8445
        %8509 = vst [vmem:[%s8503 + $0x28] sm:$0xff] %v8450
        %8510 = vst [vmem:[%s8503 + $0x30] sm:$0xff] %v8455
        %8511 = vst [vmem:[%s8503 + $0x38] sm:$0xff] %v8460
        %8512 = vst [vmem:[%s8503 + $0x40] sm:$0xff] %v8465
        %8513 = vst [vmem:[%s8503 + $0x48] sm:$0xff] %v8470
        %8514 = vst [vmem:[%s8503 + $0x50] sm:$0xff] %v8475
        %8515 = vst [vmem:[%s8503 + $0x58] sm:$0xff] %v8480
        %8516 = vst [vmem:[%s8503 + $0x60] sm:$0xff] %v8485
        %8517 = vst [vmem:[%s8503 + $0x68] sm:$0xff] %v8490
        %8518 = vst [vmem:[%s8503 + $0x70] sm:$0xff] %v8495
        %8519 = vst [vmem:[%s8503 + $0x78] sm:$0xff] %v8500
        %v8520 = vld [vmem:[#allocation3 + $0x17] sm:$0x1]
        %v8521 = vld [vmem:[#allocation3 + $0x2f] sm:$0x1]
        %v8522 = vld [vmem:[#allocation3 + $0x47] sm:$0x1]
        %v8523 = vld [vmem:[#allocation3 + $0x5f] sm:$0x1]
        %v8524 = vld [vmem:[#allocation3 + $0x77] sm:$0x1]
        %v8525 = vld [vmem:[#allocation3 + $0x8f] sm:$0x1]
        %v8526 = vld [vmem:[#allocation3 + $0xa7] sm:$0x1]
        %v8527 = vld [vmem:[#allocation3 + $0xbf] sm:$0x1]
        %v8528 = vld [vmem:[#allocation3 + $0xd7] sm:$0x1]
        %v8529 = vld [vmem:[#allocation3 + $0xef] sm:$0x1]
        %v8530 = vld [vmem:[#allocation3 + $0x107] sm:$0x1]
        %v8531 = vld [vmem:[#allocation3 + $0x11f] sm:$0x1]
        %v8532 = vld [vmem:[#allocation3 + $0x137] sm:$0x1]
        %v8533 = vld [vmem:[#allocation3 + $0x14f] sm:$0x1]
        %v8534 = vld [vmem:[#allocation3 + $0x167] sm:$0x1]
        %v8535 = vld [vmem:[#allocation3 + $0x17f] sm:$0x1]
        %v8552 = vrot.slane %v8521, 7
        %v8553 = vsel %vm3347, %v8552, %v8520
        %v8554 = vrot.slane %v8522, 6
        %v8555 = vsel %vm3350, %v8554, %v8553
        %v8556 = vrot.slane %v8523, 5
        %v8557 = vsel %vm3353, %v8556, %v8555
        %v8558 = vrot.slane %v8524, 4
        %v8559 = vsel %vm3356, %v8558, %v8557
        %v8560 = vrot.slane %v8525, 3
        %v8561 = vsel %vm3359, %v8560, %v8559
        %v8562 = vrot.slane %v8526, 2
        %v8563 = vsel %vm3362, %v8562, %v8561
        %v8564 = vrot.slane %v8527, 1
        %v8565 = vsel %vm3365, %v8564, %v8563
        %v8566 = vrot.slane %v8529, 7
        %v8567 = vsel %vm3347, %v8566, %v8528
        %v8568 = vrot.slane %v8530, 6
        %v8569 = vsel %vm3350, %v8568, %v8567
        %v8570 = vrot.slane %v8531, 5
        %v8571 = vsel %vm3353, %v8570, %v8569
        %v8572 = vrot.slane %v8532, 4
        %v8573 = vsel %vm3356, %v8572, %v8571
        %v8574 = vrot.slane %v8533, 3
        %v8575 = vsel %vm3359, %v8574, %v8573
        %v8576 = vrot.slane %v8534, 2
        %v8577 = vsel %vm3362, %v8576, %v8575
        %v8578 = vrot.slane %v8535, 1
        %v8579 = vsel %vm3365, %v8578, %v8577
        %8582 = vmatprep.subr.mxu0 0.0
        %8583 = vmatpush1.msra.mxu0 0.0
        %8584 = vmatprep.subr.mxu0 0.0
        %8585 = vmatpush1.msra.mxu0 0.0
        %8586 = vmatprep.subr.mxu0 0.0
        %8587 = vmatpush1.msra.mxu0 0.0
        %8588 = vmatprep.subr.mxu0 0.0
        %8589 = vmatpush1.msra.mxu0 0.0
        %8590 = vmatprep.subr.mxu0 0.0
        %8591 = vmatpush1.msra.mxu0 0.0
        %8592 = vmatprep.subr.mxu0 0.0
        %8593 = vmatpush1.msra.mxu0 0.0
        %8594 = vmatprep.subr.mxu0 0.0
        %8595 = vmatpush1.msra.mxu0 0.0
        %8596 = vmatprep.subr.mxu0 0.0
        %8597 = vmatpush1.msra.mxu0 0.0
        %8598 = vmatprep.subr.mxu0 0.0
        %8599 = vmatpush1.msra.mxu0 0.0
        %8600 = vmatprep.subr.mxu0 0.0
        %8601 = vmatpush1.msra.mxu0 0.0
        %8602 = vmatprep.subr.mxu0 0.0
        %8603 = vmatpush1.msra.mxu0 0.0
        %8604 = vmatprep.subr.mxu0 0.0
        %8605 = vmatpush1.msra.mxu0 0.0
        %8606 = vmatprep.subr.mxu0 0.0
        %8607 = vmatpush1.msra.mxu0 0.0
        %8608 = vmatprep.subr.mxu0 0.0
        %8609 = vmatpush1.msra.mxu0 0.0
        %8610 = vmatprep.subr.mxu0 0.0
        %8611 = vmatpush1.msra.mxu0 %v8579
        %8612 = vmatprep.subr.mxu0 0.0
        %8613 = vmatpush1.msra.mxu0 %v8565
        %8614 = vmatprep.subr.mxu0 0.0
        %8615 = vmatpush2.msra.mxu0 0.0
        %8616 = vmatprep.subr.mxu0 0.0
        %8617 = vmatpush2.msra.mxu0 0.0
        %8618 = vmatprep.subr.mxu0 0.0
        %8619 = vmatpush2.msra.mxu0 0.0
        %8620 = vmatprep.subr.mxu0 0.0
        %8621 = vmatpush2.msra.mxu0 0.0
        %8622 = vmatprep.subr.mxu0 0.0
        %8623 = vmatpush2.msra.mxu0 0.0
        %8624 = vmatprep.subr.mxu0 0.0
        %8625 = vmatpush2.msra.mxu0 0.0
        %8626 = vmatprep.subr.mxu0 0.0
        %8627 = vmatpush2.msra.mxu0 0.0
        %8628 = vmatprep.subr.mxu0 0.0
        %8629 = vmatpush2.msra.mxu0 0.0
        %8630 = vmatprep.subr.mxu0 0.0
        %8631 = vmatpush2.msra.mxu0 0.0
        %8632 = vmatprep.subr.mxu0 0.0
        %8633 = vmatpush2.msra.mxu0 0.0
        %8634 = vmatprep.subr.mxu0 0.0
        %8635 = vmatpush2.msra.mxu0 0.0
        %8636 = vmatprep.subr.mxu0 0.0
        %8637 = vmatpush2.msra.mxu0 0.0
        %8638 = vmatprep.subr.mxu0 0.0
        %8639 = vmatpush2.msra.mxu0 0.0
        %8640 = vmatprep.subr.mxu0 0.0
        %8641 = vmatpush2.msra.mxu0 0.0
        %8642 = vmatprep.subr.mxu0 0.0
        %8643 = vmatpush2.msra.mxu0 0.0
        %8644 = vmatprep.subr.mxu0 0.0
        %8645 = vmatpush2.msra.mxu0 0.0
        %8646 = vmatprep.mubr.f32.mxu0 0.0
        %8647 = vmatmul.mubr.f32.gmra.mxu0 %v3384
        %v8648 = vpop.f32.mrf.mxu0
        %v8649 = vadd.f32 0.0, %v8648
        %v8650 = vpop.f32.mrf.mxu0
        %8651 = vmatprep.mubr.f32.mxu0 0.0
        %8652 = vmatmul.mubr.f32.gmra.mxu0 %v3387
        %v8653 = vpop.f32.mrf.mxu0
        %v8654 = vadd.f32 0.0, %v8653
        %v8655 = vpop.f32.mrf.mxu0
        %8656 = vmatprep.mubr.f32.mxu0 0.0
        %8657 = vmatmul.mubr.f32.gmra.mxu0 %v3390
        %v8658 = vpop.f32.mrf.mxu0
        %v8659 = vadd.f32 0.0, %v8658
        %v8660 = vpop.f32.mrf.mxu0
        %8661 = vmatprep.mubr.f32.mxu0 0.0
        %8662 = vmatmul.mubr.f32.gmra.mxu0 %v3393
        %v8663 = vpop.f32.mrf.mxu0
        %v8664 = vadd.f32 0.0, %v8663
        %v8665 = vpop.f32.mrf.mxu0
        %8666 = vmatprep.mubr.f32.mxu0 0.0
        %8667 = vmatmul.mubr.f32.gmra.mxu0 %v3396
        %v8668 = vpop.f32.mrf.mxu0
        %v8669 = vadd.f32 0.0, %v8668
        %v8670 = vpop.f32.mrf.mxu0
        %8671 = vmatprep.mubr.f32.mxu0 0.0
        %8672 = vmatmul.mubr.f32.gmra.mxu0 %v3399
        %v8673 = vpop.f32.mrf.mxu0
        %v8674 = vadd.f32 0.0, %v8673
        %v8675 = vpop.f32.mrf.mxu0
        %8676 = vmatprep.mubr.f32.mxu0 0.0
        %8677 = vmatmul.mubr.f32.gmra.mxu0 %v3402
        %v8678 = vpop.f32.mrf.mxu0
        %v8679 = vadd.f32 0.0, %v8678
        %v8680 = vpop.f32.mrf.mxu0
        %8681 = vmatprep.mubr.f32.mxu0 0.0
        %8682 = vmatmul.mubr.f32.gmra.mxu0 %v3405
        %v8683 = vpop.f32.mrf.mxu0
        %v8684 = vadd.f32 0.0, %v8683
        %v8685 = vpop.f32.mrf.mxu0
        %8686 = vmatprep.mubr.f32.mxu0 0.0
        %8687 = vmatmul.mubr.f32.gmra.mxu0 %v3408
        %v8688 = vpop.f32.mrf.mxu0
        %v8689 = vadd.f32 0.0, %v8688
        %v8690 = vpop.f32.mrf.mxu0
        %8691 = vmatprep.mubr.f32.mxu0 0.0
        %8692 = vmatmul.mubr.f32.gmra.mxu0 %v3411
        %v8693 = vpop.f32.mrf.mxu0
        %v8694 = vadd.f32 0.0, %v8693
        %v8695 = vpop.f32.mrf.mxu0
        %8696 = vmatprep.mubr.f32.mxu0 0.0
        %8697 = vmatmul.mubr.f32.gmra.mxu0 %v3414
        %v8698 = vpop.f32.mrf.mxu0
        %v8699 = vadd.f32 0.0, %v8698
        %v8700 = vpop.f32.mrf.mxu0
        %8701 = vmatprep.mubr.f32.mxu0 0.0
        %8702 = vmatmul.mubr.f32.gmra.mxu0 %v3417
        %v8703 = vpop.f32.mrf.mxu0
        %v8704 = vadd.f32 0.0, %v8703
        %v8705 = vpop.f32.mrf.mxu0
        %8706 = vmatprep.mubr.f32.mxu0 0.0
        %8707 = vmatmul.mubr.f32.gmra.mxu0 %v3420
        %v8708 = vpop.f32.mrf.mxu0
        %v8709 = vadd.f32 0.0, %v8708
        %v8710 = vpop.f32.mrf.mxu0
        %8711 = vmatprep.mubr.f32.mxu0 0.0
        %8712 = vmatmul.mubr.f32.gmra.mxu0 %v3423
        %v8713 = vpop.f32.mrf.mxu0
        %v8714 = vadd.f32 0.0, %v8713
        %v8715 = vpop.f32.mrf.mxu0
        %8716 = vmatprep.mubr.f32.mxu0 0.0
        %8717 = vmatmul.mubr.f32.gmra.mxu0 %v3426
        %v8718 = vpop.f32.mrf.mxu0
        %v8719 = vadd.f32 0.0, %v8718
        %v8720 = vpop.f32.mrf.mxu0
        %8721 = vmatprep.mubr.f32.mxu0 0.0
        %8722 = vmatmul.mubr.f32.gmra.mxu0 %v3429
        %v8723 = vpop.f32.mrf.mxu0
        %v8724 = vadd.f32 0.0, %v8723
        %v8725 = vpop.f32.mrf.mxu0
        %8726 = vdwg.mxu0
        %s8727 = scalar_lea.vmem %s306, 2944 [#allocation12]
        %8728 = vst [vmem:[%s8727] sm:$0xff] %v8649
        %8729 = vst [vmem:[%s8727 + $0x8] sm:$0xff] %v8654
        %8730 = vst [vmem:[%s8727 + $0x10] sm:$0xff] %v8659
        %8731 = vst [vmem:[%s8727 + $0x18] sm:$0xff] %v8664
        %8732 = vst [vmem:[%s8727 + $0x20] sm:$0xff] %v8669
        %8733 = vst [vmem:[%s8727 + $0x28] sm:$0xff] %v8674
        %8734 = vst [vmem:[%s8727 + $0x30] sm:$0xff] %v8679
        %8735 = vst [vmem:[%s8727 + $0x38] sm:$0xff] %v8684
        %8736 = vst [vmem:[%s8727 + $0x40] sm:$0xff] %v8689
        %8737 = vst [vmem:[%s8727 + $0x48] sm:$0xff] %v8694
        %8738 = vst [vmem:[%s8727 + $0x50] sm:$0xff] %v8699
        %8739 = vst [vmem:[%s8727 + $0x58] sm:$0xff] %v8704
        %8740 = vst [vmem:[%s8727 + $0x60] sm:$0xff] %v8709
        %8741 = vst [vmem:[%s8727 + $0x68] sm:$0xff] %v8714
        %8742 = vst [vmem:[%s8727 + $0x70] sm:$0xff] %v8719
        %8743 = vst [vmem:[%s8727 + $0x78] sm:$0xff] %v8724
        %s8744 = sand.u32 %s161, 1
        %s8745 = scalar_lea.sflag [#allocation6], %s8744
        %s8746 = sand.u32 %s161, 1
        %s8747 = smul.addr %s8746, 3072
        %s8748 = scalar_lea.vmem [#allocation12], %s8747
        // Predicated region
        $region57: #{tpu_custom_call.1} parent=39 // pred_check
          %p8749 = pneg %p171
        $region58: #{tpu_custom_call.1} parent=39 // pred_check_branch
          %8751 = sbr.rel (%p8749) target = $region60
        $region59: #{tpu_custom_call.1} parent=39 // pred_region
          %s8752 = smul.u32 24, %s29
          %s8754 = ssub.s32 49152, 49152
          %8755 = vsyncadd %s8745, %s8754
          %s8756 = smul.addr %s8752, 16
          %s8757 = smul.addr %s28, 384
          %s8758 = sadd.s32 %s8756, %s8757
          %s8759 = smul.addr %s8758, 128
          %s8760 = scalar_lea.hbm %s5, %s8759
          %s8761 = sshll.u32 %s8748, 4
          %s8762 = int_to_ptr.vmem [resolvable:$true] %s8761
          %8767 = dma.vmem_to_hbm [thread:$0]  %s8762, 49152, %s8760, %s8745, 128, 128, 8
        $region60: #{tpu_custom_call.1} parent=39 // pred_fallthru
          _
      $region40: #{tpu_custom_call.1} parent=5 // pred_fallthru
        _
      %p8768 = scmp.le.s32.totalorder 2, %s19
      // Predicated region
      $region61: #{tpu_custom_call.1} parent=5 // pred_check
        %p8769 = pneg %p8768
      $region62: #{tpu_custom_call.1} parent=5 // pred_check_branch
        %8771 = sbr.rel (%p8769) target = $region64
      $region63: #{tpu_custom_call.1} parent=5 // pred_region
        %s8772 = ssub.s32 %s19, 2
        // Predicated region
        $region65: #{tpu_custom_call.1} parent=63 // pred_check
          %p8773 = pneg %p177
        $region66: #{tpu_custom_call.1} parent=63 // pred_check_branch
          %8775 = sbr.rel (%p8773) target = $region68
        $region67: #{tpu_custom_call.1} parent=63 // pred_region
          %s8776 = sand.u32 %s162, 1
          %s8777 = scalar_lea.sflag [#allocation6], %s8776
          %s8778 = sand.u32 %s162, 1
          %s8779 = smul.addr %s8778, 3072
          %s8780 = scalar_lea.vmem [#allocation12], %s8779
          %8781 = dma.done %s8777, 49152
        $region68: #{tpu_custom_call.1} parent=63 // pred_fallthru
          _
      $region64: #{tpu_custom_call.1} parent=5 // pred_fallthru
        _
    $region6: #{tpu_custom_call.1} parent=1 // loop_footer
      %s23 = sadd.s32 1, %s19
    $region7: #{tpu_custom_call.1} parent=1 // loop_footer_branch
      %18 = sbr.rel target = $region3
    $region8: #{tpu_custom_call.1} parent=1 // loop_exit
      _
    %8782 = vsyncpa [#allocation5], 1
    %s8783 = scalar_lea.sflag [#allocation5], 1
    %8784 = vsyncpa %s8783, 1
    %8785 = vsyncpa [#allocation8], 1
    %8786 = vsyncpa [#allocation11], 1
    %8787 = vsyncpa [#allocation6], 1
    %s8788 = scalar_lea.sflag [#allocation6], 1
    %8789 = vsyncpa %s8788, 1

</llo_original>
